<compile_context>
chip_gen: v6e
topology: v6e:2x2x1
jax: 0.10.0
libtpu: 0.0.40
codegen_flags: <defaults>
</compile_context>

<pallas_src>
import jax
import jax.numpy as jnp
import numpy as np
from jax.experimental import pallas as pl
from jax.experimental.pallas import tpu as pltpu


# --------------------------- in-kernel helpers ------------------------------


def _conv3x3_im2col(pad_ref, cols_ref, w_ref, b_ref, h, w, activation):
    """3x3 'same' conv read from a zero-padded (h+2, w+2, cin) VMEM scratch.

    Assembles the (h*w, 9*cin) im2col patch matrix in `cols_ref`, runs ONE
    bf16 MXU matmul against the pre-flattened (9*cin, cout) weights, then
    adds the bias and applies the fused activation in f32.
    Returns the flat (h*w, cout) f32 result.
    """
    cin = pad_ref.shape[2]
    for dy in range(3):
        for dx in range(3):
            k = dy * 3 + dx
            cols_ref[0:h * w, k * cin:(k + 1) * cin] = (
                pad_ref[dy:dy + h, dx:dx + w, :].reshape(h * w, cin))
    patches = cols_ref[0:h * w, 0:9 * cin].astype(jnp.bfloat16)
    acc = jnp.dot(patches, w_ref[...], preferred_element_type=jnp.float32)
    acc = acc + b_ref[...]                              # (1, cout) f32 broadcast
    if activation == "relu":
        acc = jnp.maximum(acc, 0.0)
    elif activation == "sigmoid":
        acc = jax.nn.sigmoid(acc)
    return acc


def _maxpool2x2(x_flat, h, w, c):
    """MaxPool2d(2, 2) of a flat (h*w, c) activation -> (h//2, w//2, c)."""
    x = x_flat.reshape(h, w, c)
    x = jnp.max(x.reshape(h, w // 2, 2, c), axis=2)       # pool width pairs
    x = jnp.max(x.reshape(h // 2, 2, w // 2, c), axis=1)  # pool height pairs
    return x


def _upsample2x_relu(x_flat, up_ref):
    """relu(nearest 2x upsample): (h*w, c) -> (4*h*w, c) via a 0/1 matmul."""
    up = jnp.dot(up_ref[...], x_flat, preferred_element_type=jnp.float32)
    return jnp.maximum(up, 0.0)


# ------------------------------ fused kernel --------------------------------


def _autoencoder_kernel(x_ref,
                        w1_ref, b1_ref, w2_ref, b2_ref, w3_ref, b3_ref,
                        w4_ref, b4_ref, w5_ref, b5_ref,
                        up_half_ref, up_full_ref,
                        o_ref,
                        pad_in, pad_half, pad_qtr, pad_full, cols):
    H, W = o_ref.shape[1], o_ref.shape[2]
    H2, W2, H4, W4 = H // 2, W // 2, H // 4, W // 4
    C = w1_ref.shape[1]                                   # 32

    # encode1: relu(conv3x3(1->32)); input zero-padded in VMEM.
    pad_in[...] = jnp.zeros(pad_in.shape, pad_in.dtype)
    pad_in[1:H + 1, 1:W + 1, :] = x_ref[0]
    a = _conv3x3_im2col(pad_in, cols, w1_ref, b1_ref, H, W, "relu")

    a = _maxpool2x2(a, H, W, C)                           # (H2, W2, C)

    # encode2: relu(conv3x3(32->32))
    pad_half[...] = jnp.zeros(pad_half.shape, pad_half.dtype)
    pad_half[1:H2 + 1, 1:W2 + 1, :] = a
    a = _conv3x3_im2col(pad_half, cols, w2_ref, b2_ref, H2, W2, "relu")

    a = _maxpool2x2(a, H2, W2, C)                         # (H4, W4, C)

    # decode1: conv3x3(32->32), then relu(nearest_up2)
    pad_qtr[...] = jnp.zeros(pad_qtr.shape, pad_qtr.dtype)
    pad_qtr[1:H4 + 1, 1:W4 + 1, :] = a
    a = _conv3x3_im2col(pad_qtr, cols, w3_ref, b3_ref, H4, W4, "none")
    a = _upsample2x_relu(a, up_half_ref)                  # (H2*W2, C)

    # decode2: conv3x3(32->32), then relu(nearest_up2)
    # pad_half's border is still zero from encode2; only rewrite the interior.
    pad_half[1:H2 + 1, 1:W2 + 1, :] = a.reshape(H2, W2, C)
    a = _conv3x3_im2col(pad_half, cols, w4_ref, b4_ref, H2, W2, "none")
    a = _upsample2x_relu(a, up_full_ref)                  # (H*W, C)

    # output: sigmoid(conv3x3(32->1))
    pad_full[...] = jnp.zeros(pad_full.shape, pad_full.dtype)
    pad_full[1:H + 1, 1:W + 1, :] = a.reshape(H, W, C)
    a = _conv3x3_im2col(pad_full, cols, w5_ref, b5_ref, H, W, "sigmoid")

    o_ref[0] = a.reshape(H, W, 1)


# ------------------------------ wrapper / glue -------------------------------


def _upsample_matrix(h, w):
    """(4*h*w, h*w) 0/1 matrix implementing nearest-neighbour 2x upsampling of
    a row-major-flattened (h*w, C) feature map as a single matmul."""
    m = np.arange(4 * h * w)
    k = np.arange(h * w)
    sel = ((((m[:, None] // (2 * w)) // 2) == (k[None, :] // w)) &
           (((m[:, None] % (2 * w)) // 2) == (k[None, :] % w)))
    return jnp.asarray(sel.astype(np.float32))


def _fused_forward_nhwc(x_nhwc, params):
    N, H, W, cin = x_nhwc.shape
    assert cin == 1 and H % 4 == 0 and W % 4 == 0, (N, H, W, cin)
    C = params["encode1_w"].shape[-1]                     # 32
    H2, W2, H4, W4 = H // 2, W // 2, H // 4, W // 4

    def wflat(name):   # (3,3,cin,cout) HWIO -> (9*cin, cout), bf16 for the MXU
        wt = params[name + "_w"]
        return wt.reshape(9 * wt.shape[2], wt.shape[3]).astype(jnp.bfloat16)

    def brow(name):    # (cout,) -> (1, cout), f32 (added after f32 accumulation)
        return params[name + "_b"].reshape(1, -1).astype(jnp.float32)

    up_half = _upsample_matrix(H4, W4)                    # (H2*W2, H4*W4)
    up_full = _upsample_matrix(H2, W2)                    # (H*W,  H2*W2)

    def const_spec(*shape):
        # Constant index_map: DMA'd into VMEM once, resident across the batch.
        return pl.BlockSpec(shape, lambda n: (0,) * len(shape))

    return pl.pallas_call(
        _autoencoder_kernel,
        out_shape=jax.ShapeDtypeStruct((N, H, W, 1), jnp.float32),
        grid=(N,),
        in_specs=[
            pl.BlockSpec((1, H, W, 1), lambda n: (n, 0, 0, 0)),
            const_spec(9, C), const_spec(1, C),            # encode1
            const_spec(9 * C, C), const_spec(1, C),        # encode2
            const_spec(9 * C, C), const_spec(1, C),        # decode1
            const_spec(9 * C, C), const_spec(1, C),        # decode2
            const_spec(9 * C, 1), const_spec(1, 1),        # output
            const_spec(H2 * W2, H4 * W4),                  # upsample H/4 -> H/2
            const_spec(H * W, H2 * W2),                    # upsample H/2 -> H
        ],
        out_specs=pl.BlockSpec((1, H, W, 1), lambda n: (n, 0, 0, 0)),
        scratch_shapes=[
            pltpu.VMEM((H + 2, W + 2, 1), jnp.float32),    # padded input
            pltpu.VMEM((H2 + 2, W2 + 2, C), jnp.float32),  # padded half-res act
            pltpu.VMEM((H4 + 2, W4 + 2, C), jnp.float32),  # padded quarter-res act
            pltpu.VMEM((H + 2, W + 2, C), jnp.float32),    # padded full-res act
            pltpu.VMEM((H * W, 9 * C), jnp.float32),       # im2col patch matrix
        ],
        compiler_params=pltpu.CompilerParams(
            dimension_semantics=("parallel",)),
    )(x_nhwc,
      wflat("encode1"), brow("encode1"),
      wflat("encode2"), brow("encode2"),
      wflat("decode1"), brow("decode1"),
      wflat("decode2"), brow("decode2"),
      wflat("output"), brow("output"),
      up_half, up_full)


@jax.jit
def autoencoder_forward(x_nchw, params):
    """Forward pass; input/output in PyTorch NCHW layout: (N, 1, H, W)."""
    x = jnp.transpose(x_nchw, (0, 2, 3, 1))               # NCHW -> NHWC
    y = _fused_forward_nhwc(x, params)                    # (N, H, W, 1)
    return jnp.transpose(y, (0, 3, 1, 2))                 # NHWC -> NCHW


# ------------------------------- parameters ----------------------------------


def init_params(key):
    """Deterministic init matching PyTorch Conv2d default (uniform +-1/sqrt(fan_in)).
    Weights stored as (3, 3, Cin, Cout) (HWIO)."""
    layers = [("encode1", 1, 32), ("encode2", 32, 32),
              ("decode1", 32, 32), ("decode2", 32, 32), ("output", 32, 1)]
    params = {}
    for name, cin, cout in layers:
        key, kw, kb = jax.random.split(key, 3)
        bound = 1.0 / jnp.sqrt(cin * 9)
        params[name + "_w"] = jax.random.uniform(
            kw, (3, 3, cin, cout), jnp.float32, -bound, bound)
        params[name + "_b"] = jax.random.uniform(
            kb, (cout,), jnp.float32, -bound, bound)
    return params


# ----------------------- pure-JAX reference (check) ---------------------------


def _conv_ref(x, w, b):
    y = jax.lax.conv_general_dilated(
        x, w, window_strides=(1, 1), padding="SAME",
        dimension_numbers=("NHWC", "HWIO", "NHWC"),
        precision=jax.lax.Precision.HIGHEST)
    return y + b


def _pool_ref(x):
    N, H, W, C = x.shape
    return jnp.max(x.reshape(N, H // 2, 2, W // 2, 2, C), axis=(2, 4))


def _upsample2_nearest_ref(x):
    return jnp.repeat(jnp.repeat(x, 2, axis=1), 2, axis=2)


def forward_ref(x_nchw, params):
    x = jnp.transpose(x_nchw, (0, 2, 3, 1))
    x = jax.nn.relu(_conv_ref(x, params["encode1_w"], params["encode1_b"]))
    x = _pool_ref(x)
    x = jax.nn.relu(_conv_ref(x, params["encode2_w"], params["encode2_b"]))
    x = _pool_ref(x)
    x = _conv_ref(x, params["decode1_w"], params["decode1_b"])
    x = jax.nn.relu(_upsample2_nearest_ref(x))
    x = _conv_ref(x, params["decode2_w"], params["decode2_b"])
    x = jax.nn.relu(_upsample2_nearest_ref(x))
    x = jax.nn.sigmoid(_conv_ref(x, params["output_w"], params["output_b"]))
    return jnp.transpose(x, (0, 3, 1, 2))


# ------------------------------------ main ------------------------------------


if __name__ == "__main__":
    key = jax.random.PRNGKey(0)
    kp, kx = jax.random.split(key)
    params = init_params(kp)
    # MNIST-like input at small spatial size: (N=2, C=1, H=16, W=16), NCHW.
    x = jax.random.uniform(kx, (2, 1, 16, 16), jnp.float32)

    y = autoencoder_forward(x, params)
    y = jax.block_until_ready(y)
    assert y.shape == (2, 1, 16, 16), y.shape

    y_ref = forward_ref(x, params)
    max_err = float(jnp.max(jnp.abs(y - y_ref)))
    # bf16 MXU operands (f32 accumulation) vs HIGHEST-precision f32 reference.
    assert max_err < 2e-2, f"mismatch vs reference: {max_err}"

    print("KERNEL_OK")
</pallas_src>

<mosaic_0001>
module attributes {stable_mosaic.version = 11 : i64} {
  func.func @_autoencoder_kernel(%arg0: i32, %arg1: memref<1x16x16x1xf32, #tpu.memory_space<vmem>>, %arg2: memref<9x32xbf16, #tpu.memory_space<vmem>>, %arg3: memref<1x32xf32, #tpu.memory_space<vmem>>, %arg4: memref<288x32xbf16, #tpu.memory_space<vmem>>, %arg5: memref<1x32xf32, #tpu.memory_space<vmem>>, %arg6: memref<288x32xbf16, #tpu.memory_space<vmem>>, %arg7: memref<1x32xf32, #tpu.memory_space<vmem>>, %arg8: memref<288x32xbf16, #tpu.memory_space<vmem>>, %arg9: memref<1x32xf32, #tpu.memory_space<vmem>>, %arg10: memref<288x1xbf16, #tpu.memory_space<vmem>>, %arg11: memref<1x1xf32, #tpu.memory_space<vmem>>, %arg12: memref<64x16xf32, #tpu.memory_space<vmem>>, %arg13: memref<256x64xf32, #tpu.memory_space<vmem>>, %arg14: memref<1x16x16x1xf32, #tpu.memory_space<vmem>>, %arg15: memref<18x18x1xf32, #tpu.memory_space<vmem>>, %arg16: memref<10x10x32xf32, #tpu.memory_space<vmem>>, %arg17: memref<6x6x32xf32, #tpu.memory_space<vmem>>, %arg18: memref<18x18x32xf32, #tpu.memory_space<vmem>>, %arg19: memref<256x288xf32, #tpu.memory_space<vmem>>) attributes {dimension_semantics = [#tpu.dimension_semantics<parallel>], iteration_bounds = array<i64: 2>, scalar_prefetch = 0 : i64, scratch_operands = 5 : i64, tpu.core_type = #tpu.core_type<tc>, window_params = [{transform_indices = @transform_0, window_bounds = array<i64: 1, 16, 16, 1>}, {pipeline_mode = #tpu.pipeline_mode<synchronous>, transform_indices = @transform_1, window_bounds = array<i64: 9, 32>}, {pipeline_mode = #tpu.pipeline_mode<synchronous>, transform_indices = @transform_2, window_bounds = array<i64: 1, 32>}, {pipeline_mode = #tpu.pipeline_mode<synchronous>, transform_indices = @transform_3, window_bounds = array<i64: 288, 32>}, {pipeline_mode = #tpu.pipeline_mode<synchronous>, transform_indices = @transform_4, window_bounds = array<i64: 1, 32>}, {pipeline_mode = #tpu.pipeline_mode<synchronous>, transform_indices = @transform_5, window_bounds = array<i64: 288, 32>}, {pipeline_mode = #tpu.pipeline_mode<synchronous>, transform_indices = @transform_6, window_bounds = array<i64: 1, 32>}, {pipeline_mode = #tpu.pipeline_mode<synchronous>, transform_indices = @transform_7, window_bounds = array<i64: 288, 32>}, {pipeline_mode = #tpu.pipeline_mode<synchronous>, transform_indices = @transform_8, window_bounds = array<i64: 1, 32>}, {pipeline_mode = #tpu.pipeline_mode<synchronous>, transform_indices = @transform_9, window_bounds = array<i64: 288, 1>}, {pipeline_mode = #tpu.pipeline_mode<synchronous>, transform_indices = @transform_10, window_bounds = array<i64: 1, 1>}, {pipeline_mode = #tpu.pipeline_mode<synchronous>, transform_indices = @transform_11, window_bounds = array<i64: 64, 16>}, {pipeline_mode = #tpu.pipeline_mode<synchronous>, transform_indices = @transform_12, window_bounds = array<i64: 256, 64>}, {transform_indices = @transform_13, window_bounds = array<i64: 1, 16, 16, 1>}]} {
    %cst = arith.constant 0.000000e+00 : f32
    %0 = vector.broadcast %cst : f32 to vector<18x18x1xf32>
    %c0 = arith.constant 0 : index
    %c0_0 = arith.constant 0 : index
    %c0_1 = arith.constant 0 : index
    %1 = vector.load %arg15[%c0, %c0_0, %c0_1] : memref<18x18x1xf32, #tpu.memory_space<vmem>>, vector<18x18x1xf32>
    tpu.vector_store %arg15[%c0, %c0_0, %c0_1], %0 {strides = array<i32>} : memref<18x18x1xf32, #tpu.memory_space<vmem>>, vector<18x18x1xf32>,
    %c0_2 = arith.constant 0 : index
    %c0_3 = arith.constant 0 : index
    %c0_4 = arith.constant 0 : index
    %c0_5 = arith.constant 0 : index
    %2 = vector.load %arg1[%c0_2, %c0_3, %c0_4, %c0_5] : memref<1x16x16x1xf32, #tpu.memory_space<vmem>>, vector<1x16x16x1xf32>
    %3 = vector.shape_cast %2 : vector<1x16x16x1xf32> to vector<16x16x1xf32>
    %c1 = arith.constant 1 : index
    %c1_6 = arith.constant 1 : index
    %c0_7 = arith.constant 0 : index
    %4 = vector.load %arg15[%c1, %c1_6, %c0_7] : memref<18x18x1xf32, #tpu.memory_space<vmem>>, vector<16x16x1xf32>
    tpu.vector_store %arg15[%c1, %c1_6, %c0_7], %3 {strides = array<i32>} : memref<18x18x1xf32, #tpu.memory_space<vmem>>, vector<16x16x1xf32>,
    %c0_8 = arith.constant 0 : index
    %c0_9 = arith.constant 0 : index
    %c0_10 = arith.constant 0 : index
    %5 = vector.load %arg15[%c0_8, %c0_9, %c0_10] : memref<18x18x1xf32, #tpu.memory_space<vmem>>, vector<16x16x1xf32>
    %6 = vector.shape_cast %5 : vector<16x16x1xf32> to vector<256x1xf32>
    %c0_11 = arith.constant 0 : index
    %c0_12 = arith.constant 0 : index
    %7 = vector.load %arg19[%c0_11, %c0_12] : memref<256x288xf32, #tpu.memory_space<vmem>>, vector<256x1xf32>
    tpu.vector_store %arg19[%c0_11, %c0_12], %6 {strides = array<i32>} : memref<256x288xf32, #tpu.memory_space<vmem>>, vector<256x1xf32>,
    %c0_13 = arith.constant 0 : index
    %c1_14 = arith.constant 1 : index
    %c0_15 = arith.constant 0 : index
    %8 = vector.load %arg15[%c0_13, %c1_14, %c0_15] : memref<18x18x1xf32, #tpu.memory_space<vmem>>, vector<16x16x1xf32>
    %9 = vector.shape_cast %8 : vector<16x16x1xf32> to vector<256x1xf32>
    %c0_16 = arith.constant 0 : index
    %c1_17 = arith.constant 1 : index
    %10 = vector.load %arg19[%c0_16, %c1_17] : memref<256x288xf32, #tpu.memory_space<vmem>>, vector<256x1xf32>
    tpu.vector_store %arg19[%c0_16, %c1_17], %9 {strides = array<i32>} : memref<256x288xf32, #tpu.memory_space<vmem>>, vector<256x1xf32>,
    %c0_18 = arith.constant 0 : index
    %c2 = arith.constant 2 : index
    %c0_19 = arith.constant 0 : index
    %11 = vector.load %arg15[%c0_18, %c2, %c0_19] : memref<18x18x1xf32, #tpu.memory_space<vmem>>, vector<16x16x1xf32>
    %12 = vector.shape_cast %11 : vector<16x16x1xf32> to vector<256x1xf32>
    %c0_20 = arith.constant 0 : index
    %c2_21 = arith.constant 2 : index
    %13 = vector.load %arg19[%c0_20, %c2_21] : memref<256x288xf32, #tpu.memory_space<vmem>>, vector<256x1xf32>
    tpu.vector_store %arg19[%c0_20, %c2_21], %12 {strides = array<i32>} : memref<256x288xf32, #tpu.memory_space<vmem>>, vector<256x1xf32>,
    %c1_22 = arith.constant 1 : index
    %c0_23 = arith.constant 0 : index
    %c0_24 = arith.constant 0 : index
    %14 = vector.load %arg15[%c1_22, %c0_23, %c0_24] : memref<18x18x1xf32, #tpu.memory_space<vmem>>, vector<16x16x1xf32>
    %15 = vector.shape_cast %14 : vector<16x16x1xf32> to vector<256x1xf32>
    %c0_25 = arith.constant 0 : index
    %c3 = arith.constant 3 : index
    %16 = vector.load %arg19[%c0_25, %c3] : memref<256x288xf32, #tpu.memory_space<vmem>>, vector<256x1xf32>
    tpu.vector_store %arg19[%c0_25, %c3], %15 {strides = array<i32>} : memref<256x288xf32, #tpu.memory_space<vmem>>, vector<256x1xf32>,
    %c1_26 = arith.constant 1 : index
    %c1_27 = arith.constant 1 : index
    %c0_28 = arith.constant 0 : index
    %17 = vector.load %arg15[%c1_26, %c1_27, %c0_28] : memref<18x18x1xf32, #tpu.memory_space<vmem>>, vector<16x16x1xf32>
    %18 = vector.shape_cast %17 : vector<16x16x1xf32> to vector<256x1xf32>
    %c0_29 = arith.constant 0 : index
    %c4 = arith.constant 4 : index
    %19 = vector.load %arg19[%c0_29, %c4] : memref<256x288xf32, #tpu.memory_space<vmem>>, vector<256x1xf32>
    tpu.vector_store %arg19[%c0_29, %c4], %18 {strides = array<i32>} : memref<256x288xf32, #tpu.memory_space<vmem>>, vector<256x1xf32>,
    %c1_30 = arith.constant 1 : index
    %c2_31 = arith.constant 2 : index
    %c0_32 = arith.constant 0 : index
    %20 = vector.load %arg15[%c1_30, %c2_31, %c0_32] : memref<18x18x1xf32, #tpu.memory_space<vmem>>, vector<16x16x1xf32>
    %21 = vector.shape_cast %20 : vector<16x16x1xf32> to vector<256x1xf32>
    %c0_33 = arith.constant 0 : index
    %c5 = arith.constant 5 : index
    %22 = vector.load %arg19[%c0_33, %c5] : memref<256x288xf32, #tpu.memory_space<vmem>>, vector<256x1xf32>
    tpu.vector_store %arg19[%c0_33, %c5], %21 {strides = array<i32>} : memref<256x288xf32, #tpu.memory_space<vmem>>, vector<256x1xf32>,
    %c2_34 = arith.constant 2 : index
    %c0_35 = arith.constant 0 : index
    %c0_36 = arith.constant 0 : index
    %23 = vector.load %arg15[%c2_34, %c0_35, %c0_36] : memref<18x18x1xf32, #tpu.memory_space<vmem>>, vector<16x16x1xf32>
    %24 = vector.shape_cast %23 : vector<16x16x1xf32> to vector<256x1xf32>
    %c0_37 = arith.constant 0 : index
    %c6 = arith.constant 6 : index
    %25 = vector.load %arg19[%c0_37, %c6] : memref<256x288xf32, #tpu.memory_space<vmem>>, vector<256x1xf32>
    tpu.vector_store %arg19[%c0_37, %c6], %24 {strides = array<i32>} : memref<256x288xf32, #tpu.memory_space<vmem>>, vector<256x1xf32>,
    %c2_38 = arith.constant 2 : index
    %c1_39 = arith.constant 1 : index
    %c0_40 = arith.constant 0 : index
    %26 = vector.load %arg15[%c2_38, %c1_39, %c0_40] : memref<18x18x1xf32, #tpu.memory_space<vmem>>, vector<16x16x1xf32>
    %27 = vector.shape_cast %26 : vector<16x16x1xf32> to vector<256x1xf32>
    %c0_41 = arith.constant 0 : index
    %c7 = arith.constant 7 : index
    %28 = vector.load %arg19[%c0_41, %c7] : memref<256x288xf32, #tpu.memory_space<vmem>>, vector<256x1xf32>
    tpu.vector_store %arg19[%c0_41, %c7], %27 {strides = array<i32>} : memref<256x288xf32, #tpu.memory_space<vmem>>, vector<256x1xf32>,
    %c2_42 = arith.constant 2 : index
    %c2_43 = arith.constant 2 : index
    %c0_44 = arith.constant 0 : index
    %29 = vector.load %arg15[%c2_42, %c2_43, %c0_44] : memref<18x18x1xf32, #tpu.memory_space<vmem>>, vector<16x16x1xf32>
    %30 = vector.shape_cast %29 : vector<16x16x1xf32> to vector<256x1xf32>
    %c0_45 = arith.constant 0 : index
    %c8 = arith.constant 8 : index
    %31 = vector.load %arg19[%c0_45, %c8] : memref<256x288xf32, #tpu.memory_space<vmem>>, vector<256x1xf32>
    tpu.vector_store %arg19[%c0_45, %c8], %30 {strides = array<i32>} : memref<256x288xf32, #tpu.memory_space<vmem>>, vector<256x1xf32>,
    %c0_46 = arith.constant 0 : index
    %c0_47 = arith.constant 0 : index
    %32 = vector.load %arg19[%c0_46, %c0_47] : memref<256x288xf32, #tpu.memory_space<vmem>>, vector<256x9xf32>
    %33 = arith.truncf %32 : vector<256x9xf32> to vector<256x9xbf16>
    %c0_48 = arith.constant 0 : index
    %c0_49 = arith.constant 0 : index
    %34 = vector.load %arg2[%c0_48, %c0_49] : memref<9x32xbf16, #tpu.memory_space<vmem>>, vector<9x32xbf16>
    %cst_50 = arith.constant dense<0.000000e+00> : vector<256x32xf32>
    %35 = tpu.matmul %33, %34, %cst_50 {dimension_numbers = #tpu.dot_dimension_numbers<[1], [0], [0], [1], [0, 0, 1, 1], [], []>} : vector<256x9xbf16>, vector<9x32xbf16>, vector<256x32xf32> -> vector<256x32xf32>
    %c0_51 = arith.constant 0 : index
    %c0_52 = arith.constant 0 : index
    %36 = vector.load %arg3[%c0_51, %c0_52] : memref<1x32xf32, #tpu.memory_space<vmem>>, vector<1x32xf32>
    %37 = vector.broadcast %36 : vector<1x32xf32> to vector<256x32xf32>
    %38 = arith.addf %35, %37 : vector<256x32xf32>
    %cst_53 = arith.constant 0.000000e+00 : f32
    %39 = vector.broadcast %cst_53 : f32 to vector<256x32xf32>
    %40 = arith.maximumf %38, %39 : vector<256x32xf32>
    %41 = vector.shape_cast %40 : vector<256x32xf32> to vector<16x16x32xf32>
    %42 = vector.shape_cast %41 : vector<16x16x32xf32> to vector<16x8x2x32xf32>
    %cst_54 = arith.constant dense<0xFF800000> : vector<16x8x32xf32>
    %43 = vector.multi_reduction <maximumf>, %42, %cst_54 [2] : vector<16x8x2x32xf32> to vector<16x8x32xf32>
    %44 = vector.shape_cast %43 : vector<16x8x32xf32> to vector<8x2x8x32xf32>
    %cst_55 = arith.constant dense<0xFF800000> : vector<8x8x32xf32>
    %45 = vector.multi_reduction <maximumf>, %44, %cst_55 [1] : vector<8x2x8x32xf32> to vector<8x8x32xf32>
    %cst_56 = arith.constant 0.000000e+00 : f32
    %46 = vector.broadcast %cst_56 : f32 to vector<10x10x32xf32>
    %c0_57 = arith.constant 0 : index
    %c0_58 = arith.constant 0 : index
    %c0_59 = arith.constant 0 : index
    %47 = vector.load %arg16[%c0_57, %c0_58, %c0_59] : memref<10x10x32xf32, #tpu.memory_space<vmem>>, vector<10x10x32xf32>
    tpu.vector_store %arg16[%c0_57, %c0_58, %c0_59], %46 {strides = array<i32>} : memref<10x10x32xf32, #tpu.memory_space<vmem>>, vector<10x10x32xf32>,
    %c1_60 = arith.constant 1 : index
    %c1_61 = arith.constant 1 : index
    %c0_62 = arith.constant 0 : index
    %48 = vector.load %arg16[%c1_60, %c1_61, %c0_62] : memref<10x10x32xf32, #tpu.memory_space<vmem>>, vector<8x8x32xf32>
    tpu.vector_store %arg16[%c1_60, %c1_61, %c0_62], %45 {strides = array<i32>} : memref<10x10x32xf32, #tpu.memory_space<vmem>>, vector<8x8x32xf32>,
    %c0_63 = arith.constant 0 : index
    %c0_64 = arith.constant 0 : index
    %c0_65 = arith.constant 0 : index
    %49 = vector.load %arg16[%c0_63, %c0_64, %c0_65] : memref<10x10x32xf32, #tpu.memory_space<vmem>>, vector<8x8x32xf32>
    %50 = vector.shape_cast %49 : vector<8x8x32xf32> to vector<64x32xf32>
    %c0_66 = arith.constant 0 : index
    %c0_67 = arith.constant 0 : index
    %51 = vector.load %arg19[%c0_66, %c0_67] : memref<256x288xf32, #tpu.memory_space<vmem>>, vector<64x32xf32>
    tpu.vector_store %arg19[%c0_66, %c0_67], %50 {strides = array<i32>} : memref<256x288xf32, #tpu.memory_space<vmem>>, vector<64x32xf32>,
    %c0_68 = arith.constant 0 : index
    %c1_69 = arith.constant 1 : index
    %c0_70 = arith.constant 0 : index
    %52 = vector.load %arg16[%c0_68, %c1_69, %c0_70] : memref<10x10x32xf32, #tpu.memory_space<vmem>>, vector<8x8x32xf32>
    %53 = vector.shape_cast %52 : vector<8x8x32xf32> to vector<64x32xf32>
    %c0_71 = arith.constant 0 : index
    %c32 = arith.constant 32 : index
    %54 = vector.load %arg19[%c0_71, %c32] : memref<256x288xf32, #tpu.memory_space<vmem>>, vector<64x32xf32>
    tpu.vector_store %arg19[%c0_71, %c32], %53 {strides = array<i32>} : memref<256x288xf32, #tpu.memory_space<vmem>>, vector<64x32xf32>,
    %c0_72 = arith.constant 0 : index
    %c2_73 = arith.constant 2 : index
    %c0_74 = arith.constant 0 : index
    %55 = vector.load %arg16[%c0_72, %c2_73, %c0_74] : memref<10x10x32xf32, #tpu.memory_space<vmem>>, vector<8x8x32xf32>
    %56 = vector.shape_cast %55 : vector<8x8x32xf32> to vector<64x32xf32>
    %c0_75 = arith.constant 0 : index
    %c64 = arith.constant 64 : index
    %57 = vector.load %arg19[%c0_75, %c64] : memref<256x288xf32, #tpu.memory_space<vmem>>, vector<64x32xf32>
    tpu.vector_store %arg19[%c0_75, %c64], %56 {strides = array<i32>} : memref<256x288xf32, #tpu.memory_space<vmem>>, vector<64x32xf32>,
    %c1_76 = arith.constant 1 : index
    %c0_77 = arith.constant 0 : index
    %c0_78 = arith.constant 0 : index
    %58 = vector.load %arg16[%c1_76, %c0_77, %c0_78] : memref<10x10x32xf32, #tpu.memory_space<vmem>>, vector<8x8x32xf32>
    %59 = vector.shape_cast %58 : vector<8x8x32xf32> to vector<64x32xf32>
    %c0_79 = arith.constant 0 : index
    %c96 = arith.constant 96 : index
    %60 = vector.load %arg19[%c0_79, %c96] : memref<256x288xf32, #tpu.memory_space<vmem>>, vector<64x32xf32>
    tpu.vector_store %arg19[%c0_79, %c96], %59 {strides = array<i32>} : memref<256x288xf32, #tpu.memory_space<vmem>>, vector<64x32xf32>,
    %c1_80 = arith.constant 1 : index
    %c1_81 = arith.constant 1 : index
    %c0_82 = arith.constant 0 : index
    %61 = vector.load %arg16[%c1_80, %c1_81, %c0_82] : memref<10x10x32xf32, #tpu.memory_space<vmem>>, vector<8x8x32xf32>
    %62 = vector.shape_cast %61 : vector<8x8x32xf32> to vector<64x32xf32>
    %c0_83 = arith.constant 0 : index
    %c128 = arith.constant 128 : index
    %63 = vector.load %arg19[%c0_83, %c128] : memref<256x288xf32, #tpu.memory_space<vmem>>, vector<64x32xf32>
    tpu.vector_store %arg19[%c0_83, %c128], %62 {strides = array<i32>} : memref<256x288xf32, #tpu.memory_space<vmem>>, vector<64x32xf32>,
    %c1_84 = arith.constant 1 : index
    %c2_85 = arith.constant 2 : index
    %c0_86 = arith.constant 0 : index
    %64 = vector.load %arg16[%c1_84, %c2_85, %c0_86] : memref<10x10x32xf32, #tpu.memory_space<vmem>>, vector<8x8x32xf32>
    %65 = vector.shape_cast %64 : vector<8x8x32xf32> to vector<64x32xf32>
    %c0_87 = arith.constant 0 : index
    %c160 = arith.constant 160 : index
    %66 = vector.load %arg19[%c0_87, %c160] : memref<256x288xf32, #tpu.memory_space<vmem>>, vector<64x32xf32>
    tpu.vector_store %arg19[%c0_87, %c160], %65 {strides = array<i32>} : memref<256x288xf32, #tpu.memory_space<vmem>>, vector<64x32xf32>,
    %c2_88 = arith.constant 2 : index
    %c0_89 = arith.constant 0 : index
    %c0_90 = arith.constant 0 : index
    %67 = vector.load %arg16[%c2_88, %c0_89, %c0_90] : memref<10x10x32xf32, #tpu.memory_space<vmem>>, vector<8x8x32xf32>
    %68 = vector.shape_cast %67 : vector<8x8x32xf32> to vector<64x32xf32>
    %c0_91 = arith.constant 0 : index
    %c192 = arith.constant 192 : index
    %69 = vector.load %arg19[%c0_91, %c192] : memref<256x288xf32, #tpu.memory_space<vmem>>, vector<64x32xf32>
    tpu.vector_store %arg19[%c0_91, %c192], %68 {strides = array<i32>} : memref<256x288xf32, #tpu.memory_space<vmem>>, vector<64x32xf32>,
    %c2_92 = arith.constant 2 : index
    %c1_93 = arith.constant 1 : index
    %c0_94 = arith.constant 0 : index
    %70 = vector.load %arg16[%c2_92, %c1_93, %c0_94] : memref<10x10x32xf32, #tpu.memory_space<vmem>>, vector<8x8x32xf32>
    %71 = vector.shape_cast %70 : vector<8x8x32xf32> to vector<64x32xf32>
    %c0_95 = arith.constant 0 : index
    %c224 = arith.constant 224 : index
    %72 = vector.load %arg19[%c0_95, %c224] : memref<256x288xf32, #tpu.memory_space<vmem>>, vector<64x32xf32>
    tpu.vector_store %arg19[%c0_95, %c224], %71 {strides = array<i32>} : memref<256x288xf32, #tpu.memory_space<vmem>>, vector<64x32xf32>,
    %c2_96 = arith.constant 2 : index
    %c2_97 = arith.constant 2 : index
    %c0_98 = arith.constant 0 : index
    %73 = vector.load %arg16[%c2_96, %c2_97, %c0_98] : memref<10x10x32xf32, #tpu.memory_space<vmem>>, vector<8x8x32xf32>
    %74 = vector.shape_cast %73 : vector<8x8x32xf32> to vector<64x32xf32>
    %c0_99 = arith.constant 0 : index
    %c256 = arith.constant 256 : index
    %75 = vector.load %arg19[%c0_99, %c256] : memref<256x288xf32, #tpu.memory_space<vmem>>, vector<64x32xf32>
    tpu.vector_store %arg19[%c0_99, %c256], %74 {strides = array<i32>} : memref<256x288xf32, #tpu.memory_space<vmem>>, vector<64x32xf32>,
    %c0_100 = arith.constant 0 : index
    %c0_101 = arith.constant 0 : index
    %76 = vector.load %arg19[%c0_100, %c0_101] : memref<256x288xf32, #tpu.memory_space<vmem>>, vector<64x288xf32>
    %77 = arith.truncf %76 : vector<64x288xf32> to vector<64x288xbf16>
    %c0_102 = arith.constant 0 : index
    %c0_103 = arith.constant 0 : index
    %78 = vector.load %arg4[%c0_102, %c0_103] : memref<288x32xbf16, #tpu.memory_space<vmem>>, vector<288x32xbf16>
    %cst_104 = arith.constant dense<0.000000e+00> : vector<64x32xf32>
    %79 = tpu.matmul %77, %78, %cst_104 {dimension_numbers = #tpu.dot_dimension_numbers<[1], [0], [0], [1], [0, 0, 1, 1], [], []>} : vector<64x288xbf16>, vector<288x32xbf16>, vector<64x32xf32> -> vector<64x32xf32>
    %c0_105 = arith.constant 0 : index
    %c0_106 = arith.constant 0 : index
    %80 = vector.load %arg5[%c0_105, %c0_106] : memref<1x32xf32, #tpu.memory_space<vmem>>, vector<1x32xf32>
    %81 = vector.broadcast %80 : vector<1x32xf32> to vector<64x32xf32>
    %82 = arith.addf %79, %81 : vector<64x32xf32>
    %cst_107 = arith.constant 0.000000e+00 : f32
    %83 = vector.broadcast %cst_107 : f32 to vector<64x32xf32>
    %84 = arith.maximumf %82, %83 : vector<64x32xf32>
    %85 = vector.shape_cast %84 : vector<64x32xf32> to vector<8x8x32xf32>
    %86 = vector.shape_cast %85 : vector<8x8x32xf32> to vector<8x4x2x32xf32>
    %cst_108 = arith.constant dense<0xFF800000> : vector<8x4x32xf32>
    %87 = vector.multi_reduction <maximumf>, %86, %cst_108 [2] : vector<8x4x2x32xf32> to vector<8x4x32xf32>
    %88 = vector.shape_cast %87 : vector<8x4x32xf32> to vector<4x2x4x32xf32>
    %cst_109 = arith.constant dense<0xFF800000> : vector<4x4x32xf32>
    %89 = vector.multi_reduction <maximumf>, %88, %cst_109 [1] : vector<4x2x4x32xf32> to vector<4x4x32xf32>
    %cst_110 = arith.constant 0.000000e+00 : f32
    %90 = vector.broadcast %cst_110 : f32 to vector<6x6x32xf32>
    %c0_111 = arith.constant 0 : index
    %c0_112 = arith.constant 0 : index
    %c0_113 = arith.constant 0 : index
    %91 = vector.load %arg17[%c0_111, %c0_112, %c0_113] : memref<6x6x32xf32, #tpu.memory_space<vmem>>, vector<6x6x32xf32>
    tpu.vector_store %arg17[%c0_111, %c0_112, %c0_113], %90 {strides = array<i32>} : memref<6x6x32xf32, #tpu.memory_space<vmem>>, vector<6x6x32xf32>,
    %c1_114 = arith.constant 1 : index
    %c1_115 = arith.constant 1 : index
    %c0_116 = arith.constant 0 : index
    %92 = vector.load %arg17[%c1_114, %c1_115, %c0_116] : memref<6x6x32xf32, #tpu.memory_space<vmem>>, vector<4x4x32xf32>
    tpu.vector_store %arg17[%c1_114, %c1_115, %c0_116], %89 {strides = array<i32>} : memref<6x6x32xf32, #tpu.memory_space<vmem>>, vector<4x4x32xf32>,
    %c0_117 = arith.constant 0 : index
    %c0_118 = arith.constant 0 : index
    %c0_119 = arith.constant 0 : index
    %93 = vector.load %arg17[%c0_117, %c0_118, %c0_119] : memref<6x6x32xf32, #tpu.memory_space<vmem>>, vector<4x4x32xf32>
    %94 = vector.shape_cast %93 : vector<4x4x32xf32> to vector<16x32xf32>
    %c0_120 = arith.constant 0 : index
    %c0_121 = arith.constant 0 : index
    %95 = vector.load %arg19[%c0_120, %c0_121] : memref<256x288xf32, #tpu.memory_space<vmem>>, vector<16x32xf32>
    tpu.vector_store %arg19[%c0_120, %c0_121], %94 {strides = array<i32>} : memref<256x288xf32, #tpu.memory_space<vmem>>, vector<16x32xf32>,
    %c0_122 = arith.constant 0 : index
    %c1_123 = arith.constant 1 : index
    %c0_124 = arith.constant 0 : index
    %96 = vector.load %arg17[%c0_122, %c1_123, %c0_124] : memref<6x6x32xf32, #tpu.memory_space<vmem>>, vector<4x4x32xf32>
    %97 = vector.shape_cast %96 : vector<4x4x32xf32> to vector<16x32xf32>
    %c0_125 = arith.constant 0 : index
    %c32_126 = arith.constant 32 : index
    %98 = vector.load %arg19[%c0_125, %c32_126] : memref<256x288xf32, #tpu.memory_space<vmem>>, vector<16x32xf32>
    tpu.vector_store %arg19[%c0_125, %c32_126], %97 {strides = array<i32>} : memref<256x288xf32, #tpu.memory_space<vmem>>, vector<16x32xf32>,
    %c0_127 = arith.constant 0 : index
    %c2_128 = arith.constant 2 : index
    %c0_129 = arith.constant 0 : index
    %99 = vector.load %arg17[%c0_127, %c2_128, %c0_129] : memref<6x6x32xf32, #tpu.memory_space<vmem>>, vector<4x4x32xf32>
    %100 = vector.shape_cast %99 : vector<4x4x32xf32> to vector<16x32xf32>
    %c0_130 = arith.constant 0 : index
    %c64_131 = arith.constant 64 : index
    %101 = vector.load %arg19[%c0_130, %c64_131] : memref<256x288xf32, #tpu.memory_space<vmem>>, vector<16x32xf32>
    tpu.vector_store %arg19[%c0_130, %c64_131], %100 {strides = array<i32>} : memref<256x288xf32, #tpu.memory_space<vmem>>, vector<16x32xf32>,
    %c1_132 = arith.constant 1 : index
    %c0_133 = arith.constant 0 : index
    %c0_134 = arith.constant 0 : index
    %102 = vector.load %arg17[%c1_132, %c0_133, %c0_134] : memref<6x6x32xf32, #tpu.memory_space<vmem>>, vector<4x4x32xf32>
    %103 = vector.shape_cast %102 : vector<4x4x32xf32> to vector<16x32xf32>
    %c0_135 = arith.constant 0 : index
    %c96_136 = arith.constant 96 : index
    %104 = vector.load %arg19[%c0_135, %c96_136] : memref<256x288xf32, #tpu.memory_space<vmem>>, vector<16x32xf32>
    tpu.vector_store %arg19[%c0_135, %c96_136], %103 {strides = array<i32>} : memref<256x288xf32, #tpu.memory_space<vmem>>, vector<16x32xf32>,
    %c1_137 = arith.constant 1 : index
    %c1_138 = arith.constant 1 : index
    %c0_139 = arith.constant 0 : index
    %105 = vector.load %arg17[%c1_137, %c1_138, %c0_139] : memref<6x6x32xf32, #tpu.memory_space<vmem>>, vector<4x4x32xf32>
    %106 = vector.shape_cast %105 : vector<4x4x32xf32> to vector<16x32xf32>
    %c0_140 = arith.constant 0 : index
    %c128_141 = arith.constant 128 : index
    %107 = vector.load %arg19[%c0_140, %c128_141] : memref<256x288xf32, #tpu.memory_space<vmem>>, vector<16x32xf32>
    tpu.vector_store %arg19[%c0_140, %c128_141], %106 {strides = array<i32>} : memref<256x288xf32, #tpu.memory_space<vmem>>, vector<16x32xf32>,
    %c1_142 = arith.constant 1 : index
    %c2_143 = arith.constant 2 : index
    %c0_144 = arith.constant 0 : index
    %108 = vector.load %arg17[%c1_142, %c2_143, %c0_144] : memref<6x6x32xf32, #tpu.memory_space<vmem>>, vector<4x4x32xf32>
    %109 = vector.shape_cast %108 : vector<4x4x32xf32> to vector<16x32xf32>
    %c0_145 = arith.constant 0 : index
    %c160_146 = arith.constant 160 : index
    %110 = vector.load %arg19[%c0_145, %c160_146] : memref<256x288xf32, #tpu.memory_space<vmem>>, vector<16x32xf32>
    tpu.vector_store %arg19[%c0_145, %c160_146], %109 {strides = array<i32>} : memref<256x288xf32, #tpu.memory_space<vmem>>, vector<16x32xf32>,
    %c2_147 = arith.constant 2 : index
    %c0_148 = arith.constant 0 : index
    %c0_149 = arith.constant 0 : index
    %111 = vector.load %arg17[%c2_147, %c0_148, %c0_149] : memref<6x6x32xf32, #tpu.memory_space<vmem>>, vector<4x4x32xf32>
    %112 = vector.shape_cast %111 : vector<4x4x32xf32> to vector<16x32xf32>
    %c0_150 = arith.constant 0 : index
    %c192_151 = arith.constant 192 : index
    %113 = vector.load %arg19[%c0_150, %c192_151] : memref<256x288xf32, #tpu.memory_space<vmem>>, vector<16x32xf32>
    tpu.vector_store %arg19[%c0_150, %c192_151], %112 {strides = array<i32>} : memref<256x288xf32, #tpu.memory_space<vmem>>, vector<16x32xf32>,
    %c2_152 = arith.constant 2 : index
    %c1_153 = arith.constant 1 : index
    %c0_154 = arith.constant 0 : index
    %114 = vector.load %arg17[%c2_152, %c1_153, %c0_154] : memref<6x6x32xf32, #tpu.memory_space<vmem>>, vector<4x4x32xf32>
    %115 = vector.shape_cast %114 : vector<4x4x32xf32> to vector<16x32xf32>
    %c0_155 = arith.constant 0 : index
    %c224_156 = arith.constant 224 : index
    %116 = vector.load %arg19[%c0_155, %c224_156] : memref<256x288xf32, #tpu.memory_space<vmem>>, vector<16x32xf32>
    tpu.vector_store %arg19[%c0_155, %c224_156], %115 {strides = array<i32>} : memref<256x288xf32, #tpu.memory_space<vmem>>, vector<16x32xf32>,
    %c2_157 = arith.constant 2 : index
    %c2_158 = arith.constant 2 : index
    %c0_159 = arith.constant 0 : index
    %117 = vector.load %arg17[%c2_157, %c2_158, %c0_159] : memref<6x6x32xf32, #tpu.memory_space<vmem>>, vector<4x4x32xf32>
    %118 = vector.shape_cast %117 : vector<4x4x32xf32> to vector<16x32xf32>
    %c0_160 = arith.constant 0 : index
    %c256_161 = arith.constant 256 : index
    %119 = vector.load %arg19[%c0_160, %c256_161] : memref<256x288xf32, #tpu.memory_space<vmem>>, vector<16x32xf32>
    tpu.vector_store %arg19[%c0_160, %c256_161], %118 {strides = array<i32>} : memref<256x288xf32, #tpu.memory_space<vmem>>, vector<16x32xf32>,
    %c0_162 = arith.constant 0 : index
    %c0_163 = arith.constant 0 : index
    %120 = vector.load %arg19[%c0_162, %c0_163] : memref<256x288xf32, #tpu.memory_space<vmem>>, vector<16x288xf32>
    %121 = arith.truncf %120 : vector<16x288xf32> to vector<16x288xbf16>
    %c0_164 = arith.constant 0 : index
    %c0_165 = arith.constant 0 : index
    %122 = vector.load %arg6[%c0_164, %c0_165] : memref<288x32xbf16, #tpu.memory_space<vmem>>, vector<288x32xbf16>
    %cst_166 = arith.constant dense<0.000000e+00> : vector<16x32xf32>
    %123 = tpu.matmul %121, %122, %cst_166 {dimension_numbers = #tpu.dot_dimension_numbers<[1], [0], [0], [1], [0, 0, 1, 1], [], []>} : vector<16x288xbf16>, vector<288x32xbf16>, vector<16x32xf32> -> vector<16x32xf32>
    %c0_167 = arith.constant 0 : index
    %c0_168 = arith.constant 0 : index
    %124 = vector.load %arg7[%c0_167, %c0_168] : memref<1x32xf32, #tpu.memory_space<vmem>>, vector<1x32xf32>
    %125 = vector.broadcast %124 : vector<1x32xf32> to vector<16x32xf32>
    %126 = arith.addf %123, %125 : vector<16x32xf32>
    %c0_169 = arith.constant 0 : index
    %c0_170 = arith.constant 0 : index
    %127 = vector.load %arg12[%c0_169, %c0_170] : memref<64x16xf32, #tpu.memory_space<vmem>>, vector<64x16xf32>
    %cst_171 = arith.constant dense<0.000000e+00> : vector<64x32xf32>
    %128 = tpu.matmul %127, %126, %cst_171 {dimension_numbers = #tpu.dot_dimension_numbers<[1], [0], [0], [1], [0, 0, 1, 1], [], []>} : vector<64x16xf32>, vector<16x32xf32>, vector<64x32xf32> -> vector<64x32xf32>
    %cst_172 = arith.constant 0.000000e+00 : f32
    %129 = vector.broadcast %cst_172 : f32 to vector<64x32xf32>
    %130 = arith.maximumf %128, %129 : vector<64x32xf32>
    %131 = vector.shape_cast %130 : vector<64x32xf32> to vector<8x8x32xf32>
    %c1_173 = arith.constant 1 : index
    %c1_174 = arith.constant 1 : index
    %c0_175 = arith.constant 0 : index
    %132 = vector.load %arg16[%c1_173, %c1_174, %c0_175] : memref<10x10x32xf32, #tpu.memory_space<vmem>>, vector<8x8x32xf32>
    tpu.vector_store %arg16[%c1_173, %c1_174, %c0_175], %131 {strides = array<i32>} : memref<10x10x32xf32, #tpu.memory_space<vmem>>, vector<8x8x32xf32>,
    %c0_176 = arith.constant 0 : index
    %c0_177 = arith.constant 0 : index
    %c0_178 = arith.constant 0 : index
    %133 = vector.load %arg16[%c0_176, %c0_177, %c0_178] : memref<10x10x32xf32, #tpu.memory_space<vmem>>, vector<8x8x32xf32>
    %134 = vector.shape_cast %133 : vector<8x8x32xf32> to vector<64x32xf32>
    %c0_179 = arith.constant 0 : index
    %c0_180 = arith.constant 0 : index
    %135 = vector.load %arg19[%c0_179, %c0_180] : memref<256x288xf32, #tpu.memory_space<vmem>>, vector<64x32xf32>
    tpu.vector_store %arg19[%c0_179, %c0_180], %134 {strides = array<i32>} : memref<256x288xf32, #tpu.memory_space<vmem>>, vector<64x32xf32>,
    %c0_181 = arith.constant 0 : index
    %c1_182 = arith.constant 1 : index
    %c0_183 = arith.constant 0 : index
    %136 = vector.load %arg16[%c0_181, %c1_182, %c0_183] : memref<10x10x32xf32, #tpu.memory_space<vmem>>, vector<8x8x32xf32>
    %137 = vector.shape_cast %136 : vector<8x8x32xf32> to vector<64x32xf32>
    %c0_184 = arith.constant 0 : index
    %c32_185 = arith.constant 32 : index
    %138 = vector.load %arg19[%c0_184, %c32_185] : memref<256x288xf32, #tpu.memory_space<vmem>>, vector<64x32xf32>
    tpu.vector_store %arg19[%c0_184, %c32_185], %137 {strides = array<i32>} : memref<256x288xf32, #tpu.memory_space<vmem>>, vector<64x32xf32>,
    %c0_186 = arith.constant 0 : index
    %c2_187 = arith.constant 2 : index
    %c0_188 = arith.constant 0 : index
    %139 = vector.load %arg16[%c0_186, %c2_187, %c0_188] : memref<10x10x32xf32, #tpu.memory_space<vmem>>, vector<8x8x32xf32>
    %140 = vector.shape_cast %139 : vector<8x8x32xf32> to vector<64x32xf32>
    %c0_189 = arith.constant 0 : index
    %c64_190 = arith.constant 64 : index
    %141 = vector.load %arg19[%c0_189, %c64_190] : memref<256x288xf32, #tpu.memory_space<vmem>>, vector<64x32xf32>
    tpu.vector_store %arg19[%c0_189, %c64_190], %140 {strides = array<i32>} : memref<256x288xf32, #tpu.memory_space<vmem>>, vector<64x32xf32>,
    %c1_191 = arith.constant 1 : index
    %c0_192 = arith.constant 0 : index
    %c0_193 = arith.constant 0 : index
    %142 = vector.load %arg16[%c1_191, %c0_192, %c0_193] : memref<10x10x32xf32, #tpu.memory_space<vmem>>, vector<8x8x32xf32>
    %143 = vector.shape_cast %142 : vector<8x8x32xf32> to vector<64x32xf32>
    %c0_194 = arith.constant 0 : index
    %c96_195 = arith.constant 96 : index
    %144 = vector.load %arg19[%c0_194, %c96_195] : memref<256x288xf32, #tpu.memory_space<vmem>>, vector<64x32xf32>
    tpu.vector_store %arg19[%c0_194, %c96_195], %143 {strides = array<i32>} : memref<256x288xf32, #tpu.memory_space<vmem>>, vector<64x32xf32>,
    %c1_196 = arith.constant 1 : index
    %c1_197 = arith.constant 1 : index
    %c0_198 = arith.constant 0 : index
    %145 = vector.load %arg16[%c1_196, %c1_197, %c0_198] : memref<10x10x32xf32, #tpu.memory_space<vmem>>, vector<8x8x32xf32>
    %146 = vector.shape_cast %145 : vector<8x8x32xf32> to vector<64x32xf32>
    %c0_199 = arith.constant 0 : index
    %c128_200 = arith.constant 128 : index
    %147 = vector.load %arg19[%c0_199, %c128_200] : memref<256x288xf32, #tpu.memory_space<vmem>>, vector<64x32xf32>
    tpu.vector_store %arg19[%c0_199, %c128_200], %146 {strides = array<i32>} : memref<256x288xf32, #tpu.memory_space<vmem>>, vector<64x32xf32>,
    %c1_201 = arith.constant 1 : index
    %c2_202 = arith.constant 2 : index
    %c0_203 = arith.constant 0 : index
    %148 = vector.load %arg16[%c1_201, %c2_202, %c0_203] : memref<10x10x32xf32, #tpu.memory_space<vmem>>, vector<8x8x32xf32>
    %149 = vector.shape_cast %148 : vector<8x8x32xf32> to vector<64x32xf32>
    %c0_204 = arith.constant 0 : index
    %c160_205 = arith.constant 160 : index
    %150 = vector.load %arg19[%c0_204, %c160_205] : memref<256x288xf32, #tpu.memory_space<vmem>>, vector<64x32xf32>
    tpu.vector_store %arg19[%c0_204, %c160_205], %149 {strides = array<i32>} : memref<256x288xf32, #tpu.memory_space<vmem>>, vector<64x32xf32>,
    %c2_206 = arith.constant 2 : index
    %c0_207 = arith.constant 0 : index
    %c0_208 = arith.constant 0 : index
    %151 = vector.load %arg16[%c2_206, %c0_207, %c0_208] : memref<10x10x32xf32, #tpu.memory_space<vmem>>, vector<8x8x32xf32>
    %152 = vector.shape_cast %151 : vector<8x8x32xf32> to vector<64x32xf32>
    %c0_209 = arith.constant 0 : index
    %c192_210 = arith.constant 192 : index
    %153 = vector.load %arg19[%c0_209, %c192_210] : memref<256x288xf32, #tpu.memory_space<vmem>>, vector<64x32xf32>
    tpu.vector_store %arg19[%c0_209, %c192_210], %152 {strides = array<i32>} : memref<256x288xf32, #tpu.memory_space<vmem>>, vector<64x32xf32>,
    %c2_211 = arith.constant 2 : index
    %c1_212 = arith.constant 1 : index
    %c0_213 = arith.constant 0 : index
    %154 = vector.load %arg16[%c2_211, %c1_212, %c0_213] : memref<10x10x32xf32, #tpu.memory_space<vmem>>, vector<8x8x32xf32>
    %155 = vector.shape_cast %154 : vector<8x8x32xf32> to vector<64x32xf32>
    %c0_214 = arith.constant 0 : index
    %c224_215 = arith.constant 224 : index
    %156 = vector.load %arg19[%c0_214, %c224_215] : memref<256x288xf32, #tpu.memory_space<vmem>>, vector<64x32xf32>
    tpu.vector_store %arg19[%c0_214, %c224_215], %155 {strides = array<i32>} : memref<256x288xf32, #tpu.memory_space<vmem>>, vector<64x32xf32>,
    %c2_216 = arith.constant 2 : index
    %c2_217 = arith.constant 2 : index
    %c0_218 = arith.constant 0 : index
    %157 = vector.load %arg16[%c2_216, %c2_217, %c0_218] : memref<10x10x32xf32, #tpu.memory_space<vmem>>, vector<8x8x32xf32>
    %158 = vector.shape_cast %157 : vector<8x8x32xf32> to vector<64x32xf32>
    %c0_219 = arith.constant 0 : index
    %c256_220 = arith.constant 256 : index
    %159 = vector.load %arg19[%c0_219, %c256_220] : memref<256x288xf32, #tpu.memory_space<vmem>>, vector<64x32xf32>
    tpu.vector_store %arg19[%c0_219, %c256_220], %158 {strides = array<i32>} : memref<256x288xf32, #tpu.memory_space<vmem>>, vector<64x32xf32>,
    %c0_221 = arith.constant 0 : index
    %c0_222 = arith.constant 0 : index
    %160 = vector.load %arg19[%c0_221, %c0_222] : memref<256x288xf32, #tpu.memory_space<vmem>>, vector<64x288xf32>
    %161 = arith.truncf %160 : vector<64x288xf32> to vector<64x288xbf16>
    %c0_223 = arith.constant 0 : index
    %c0_224 = arith.constant 0 : index
    %162 = vector.load %arg8[%c0_223, %c0_224] : memref<288x32xbf16, #tpu.memory_space<vmem>>, vector<288x32xbf16>
    %cst_225 = arith.constant dense<0.000000e+00> : vector<64x32xf32>
    %163 = tpu.matmul %161, %162, %cst_225 {dimension_numbers = #tpu.dot_dimension_numbers<[1], [0], [0], [1], [0, 0, 1, 1], [], []>} : vector<64x288xbf16>, vector<288x32xbf16>, vector<64x32xf32> -> vector<64x32xf32>
    %c0_226 = arith.constant 0 : index
    %c0_227 = arith.constant 0 : index
    %164 = vector.load %arg9[%c0_226, %c0_227] : memref<1x32xf32, #tpu.memory_space<vmem>>, vector<1x32xf32>
    %165 = vector.broadcast %164 : vector<1x32xf32> to vector<64x32xf32>
    %166 = arith.addf %163, %165 : vector<64x32xf32>
    %c0_228 = arith.constant 0 : index
    %c0_229 = arith.constant 0 : index
    %167 = vector.load %arg13[%c0_228, %c0_229] : memref<256x64xf32, #tpu.memory_space<vmem>>, vector<256x64xf32>
    %cst_230 = arith.constant dense<0.000000e+00> : vector<256x32xf32>
    %168 = tpu.matmul %167, %166, %cst_230 {dimension_numbers = #tpu.dot_dimension_numbers<[1], [0], [0], [1], [0, 0, 1, 1], [], []>} : vector<256x64xf32>, vector<64x32xf32>, vector<256x32xf32> -> vector<256x32xf32>
    %cst_231 = arith.constant 0.000000e+00 : f32
    %169 = vector.broadcast %cst_231 : f32 to vector<256x32xf32>
    %170 = arith.maximumf %168, %169 : vector<256x32xf32>
    %cst_232 = arith.constant 0.000000e+00 : f32
    %171 = vector.broadcast %cst_232 : f32 to vector<18x18x32xf32>
    %c0_233 = arith.constant 0 : index
    %c0_234 = arith.constant 0 : index
    %c0_235 = arith.constant 0 : index
    %172 = vector.load %arg18[%c0_233, %c0_234, %c0_235] : memref<18x18x32xf32, #tpu.memory_space<vmem>>, vector<18x18x32xf32>
    tpu.vector_store %arg18[%c0_233, %c0_234, %c0_235], %171 {strides = array<i32>} : memref<18x18x32xf32, #tpu.memory_space<vmem>>, vector<18x18x32xf32>,
    %173 = vector.shape_cast %170 : vector<256x32xf32> to vector<16x16x32xf32>
    %c1_236 = arith.constant 1 : index
    %c1_237 = arith.constant 1 : index
    %c0_238 = arith.constant 0 : index
    %174 = vector.load %arg18[%c1_236, %c1_237, %c0_238] : memref<18x18x32xf32, #tpu.memory_space<vmem>>, vector<16x16x32xf32>
    tpu.vector_store %arg18[%c1_236, %c1_237, %c0_238], %173 {strides = array<i32>} : memref<18x18x32xf32, #tpu.memory_space<vmem>>, vector<16x16x32xf32>,
    %c0_239 = arith.constant 0 : index
    %c0_240 = arith.constant 0 : index
    %c0_241 = arith.constant 0 : index
    %175 = vector.load %arg18[%c0_239, %c0_240, %c0_241] : memref<18x18x32xf32, #tpu.memory_space<vmem>>, vector<16x16x32xf32>
    %176 = vector.shape_cast %175 : vector<16x16x32xf32> to vector<256x32xf32>
    %c0_242 = arith.constant 0 : index
    %c0_243 = arith.constant 0 : index
    %177 = vector.load %arg19[%c0_242, %c0_243] : memref<256x288xf32, #tpu.memory_space<vmem>>, vector<256x32xf32>
    tpu.vector_store %arg19[%c0_242, %c0_243], %176 {strides = array<i32>} : memref<256x288xf32, #tpu.memory_space<vmem>>, vector<256x32xf32>,
    %c0_244 = arith.constant 0 : index
    %c1_245 = arith.constant 1 : index
    %c0_246 = arith.constant 0 : index
    %178 = vector.load %arg18[%c0_244, %c1_245, %c0_246] : memref<18x18x32xf32, #tpu.memory_space<vmem>>, vector<16x16x32xf32>
    %179 = vector.shape_cast %178 : vector<16x16x32xf32> to vector<256x32xf32>
    %c0_247 = arith.constant 0 : index
    %c32_248 = arith.constant 32 : index
    %180 = vector.load %arg19[%c0_247, %c32_248] : memref<256x288xf32, #tpu.memory_space<vmem>>, vector<256x32xf32>
    tpu.vector_store %arg19[%c0_247, %c32_248], %179 {strides = array<i32>} : memref<256x288xf32, #tpu.memory_space<vmem>>, vector<256x32xf32>,
    %c0_249 = arith.constant 0 : index
    %c2_250 = arith.constant 2 : index
    %c0_251 = arith.constant 0 : index
    %181 = vector.load %arg18[%c0_249, %c2_250, %c0_251] : memref<18x18x32xf32, #tpu.memory_space<vmem>>, vector<16x16x32xf32>
    %182 = vector.shape_cast %181 : vector<16x16x32xf32> to vector<256x32xf32>
    %c0_252 = arith.constant 0 : index
    %c64_253 = arith.constant 64 : index
    %183 = vector.load %arg19[%c0_252, %c64_253] : memref<256x288xf32, #tpu.memory_space<vmem>>, vector<256x32xf32>
    tpu.vector_store %arg19[%c0_252, %c64_253], %182 {strides = array<i32>} : memref<256x288xf32, #tpu.memory_space<vmem>>, vector<256x32xf32>,
    %c1_254 = arith.constant 1 : index
    %c0_255 = arith.constant 0 : index
    %c0_256 = arith.constant 0 : index
    %184 = vector.load %arg18[%c1_254, %c0_255, %c0_256] : memref<18x18x32xf32, #tpu.memory_space<vmem>>, vector<16x16x32xf32>
    %185 = vector.shape_cast %184 : vector<16x16x32xf32> to vector<256x32xf32>
    %c0_257 = arith.constant 0 : index
    %c96_258 = arith.constant 96 : index
    %186 = vector.load %arg19[%c0_257, %c96_258] : memref<256x288xf32, #tpu.memory_space<vmem>>, vector<256x32xf32>
    tpu.vector_store %arg19[%c0_257, %c96_258], %185 {strides = array<i32>} : memref<256x288xf32, #tpu.memory_space<vmem>>, vector<256x32xf32>,
    %c1_259 = arith.constant 1 : index
    %c1_260 = arith.constant 1 : index
    %c0_261 = arith.constant 0 : index
    %187 = vector.load %arg18[%c1_259, %c1_260, %c0_261] : memref<18x18x32xf32, #tpu.memory_space<vmem>>, vector<16x16x32xf32>
    %188 = vector.shape_cast %187 : vector<16x16x32xf32> to vector<256x32xf32>
    %c0_262 = arith.constant 0 : index
    %c128_263 = arith.constant 128 : index
    %189 = vector.load %arg19[%c0_262, %c128_263] : memref<256x288xf32, #tpu.memory_space<vmem>>, vector<256x32xf32>
    tpu.vector_store %arg19[%c0_262, %c128_263], %188 {strides = array<i32>} : memref<256x288xf32, #tpu.memory_space<vmem>>, vector<256x32xf32>,
    %c1_264 = arith.constant 1 : index
    %c2_265 = arith.constant 2 : index
    %c0_266 = arith.constant 0 : index
    %190 = vector.load %arg18[%c1_264, %c2_265, %c0_266] : memref<18x18x32xf32, #tpu.memory_space<vmem>>, vector<16x16x32xf32>
    %191 = vector.shape_cast %190 : vector<16x16x32xf32> to vector<256x32xf32>
    %c0_267 = arith.constant 0 : index
    %c160_268 = arith.constant 160 : index
    %192 = vector.load %arg19[%c0_267, %c160_268] : memref<256x288xf32, #tpu.memory_space<vmem>>, vector<256x32xf32>
    tpu.vector_store %arg19[%c0_267, %c160_268], %191 {strides = array<i32>} : memref<256x288xf32, #tpu.memory_space<vmem>>, vector<256x32xf32>,
    %c2_269 = arith.constant 2 : index
    %c0_270 = arith.constant 0 : index
    %c0_271 = arith.constant 0 : index
    %193 = vector.load %arg18[%c2_269, %c0_270, %c0_271] : memref<18x18x32xf32, #tpu.memory_space<vmem>>, vector<16x16x32xf32>
    %194 = vector.shape_cast %193 : vector<16x16x32xf32> to vector<256x32xf32>
    %c0_272 = arith.constant 0 : index
    %c192_273 = arith.constant 192 : index
    %195 = vector.load %arg19[%c0_272, %c192_273] : memref<256x288xf32, #tpu.memory_space<vmem>>, vector<256x32xf32>
    tpu.vector_store %arg19[%c0_272, %c192_273], %194 {strides = array<i32>} : memref<256x288xf32, #tpu.memory_space<vmem>>, vector<256x32xf32>,
    %c2_274 = arith.constant 2 : index
    %c1_275 = arith.constant 1 : index
    %c0_276 = arith.constant 0 : index
    %196 = vector.load %arg18[%c2_274, %c1_275, %c0_276] : memref<18x18x32xf32, #tpu.memory_space<vmem>>, vector<16x16x32xf32>
    %197 = vector.shape_cast %196 : vector<16x16x32xf32> to vector<256x32xf32>
    %c0_277 = arith.constant 0 : index
    %c224_278 = arith.constant 224 : index
    %198 = vector.load %arg19[%c0_277, %c224_278] : memref<256x288xf32, #tpu.memory_space<vmem>>, vector<256x32xf32>
    tpu.vector_store %arg19[%c0_277, %c224_278], %197 {strides = array<i32>} : memref<256x288xf32, #tpu.memory_space<vmem>>, vector<256x32xf32>,
    %c2_279 = arith.constant 2 : index
    %c2_280 = arith.constant 2 : index
    %c0_281 = arith.constant 0 : index
    %199 = vector.load %arg18[%c2_279, %c2_280, %c0_281] : memref<18x18x32xf32, #tpu.memory_space<vmem>>, vector<16x16x32xf32>
    %200 = vector.shape_cast %199 : vector<16x16x32xf32> to vector<256x32xf32>
    %c0_282 = arith.constant 0 : index
    %c256_283 = arith.constant 256 : index
    %201 = vector.load %arg19[%c0_282, %c256_283] : memref<256x288xf32, #tpu.memory_space<vmem>>, vector<256x32xf32>
    tpu.vector_store %arg19[%c0_282, %c256_283], %200 {strides = array<i32>} : memref<256x288xf32, #tpu.memory_space<vmem>>, vector<256x32xf32>,
    %c0_284 = arith.constant 0 : index
    %c0_285 = arith.constant 0 : index
    %202 = vector.load %arg19[%c0_284, %c0_285] : memref<256x288xf32, #tpu.memory_space<vmem>>, vector<256x288xf32>
    %203 = arith.truncf %202 : vector<256x288xf32> to vector<256x288xbf16>
    %c0_286 = arith.constant 0 : index
    %c0_287 = arith.constant 0 : index
    %204 = vector.load %arg10[%c0_286, %c0_287] : memref<288x1xbf16, #tpu.memory_space<vmem>>, vector<288x1xbf16>
    %cst_288 = arith.constant dense<0.000000e+00> : vector<256x1xf32>
    %205 = tpu.matmul %203, %204, %cst_288 {dimension_numbers = #tpu.dot_dimension_numbers<[1], [0], [0], [1], [0, 0, 1, 1], [], []>} : vector<256x288xbf16>, vector<288x1xbf16>, vector<256x1xf32> -> vector<256x1xf32>
    %c0_289 = arith.constant 0 : index
    %c0_290 = arith.constant 0 : index
    %206 = vector.load %arg11[%c0_289, %c0_290] : memref<1x1xf32, #tpu.memory_space<vmem>>, vector<1x1xf32>
    %207 = vector.broadcast %206 : vector<1x1xf32> to vector<256x1xf32>
    %208 = arith.addf %205, %207 : vector<256x1xf32>
    %209 = arith.negf %208 : vector<256x1xf32>
    %210 = math.exp %209 : vector<256x1xf32>
    %cst_291 = arith.constant 1.000000e+00 : f32
    %211 = vector.broadcast %cst_291 : f32 to vector<256x1xf32>
    %212 = arith.addf %211, %210 : vector<256x1xf32>
    %213 = arith.divf %211, %212 : vector<256x1xf32>
    %214 = vector.shape_cast %213 : vector<256x1xf32> to vector<16x16x1xf32>
    %c0_292 = arith.constant 0 : index
    %c0_293 = arith.constant 0 : index
    %c0_294 = arith.constant 0 : index
    %c0_295 = arith.constant 0 : index
    %215 = vector.load %arg14[%c0_292, %c0_293, %c0_294, %c0_295] : memref<1x16x16x1xf32, #tpu.memory_space<vmem>>, vector<1x16x16x1xf32>
    %216 = vector.shape_cast %215 : vector<1x16x16x1xf32> to vector<16x16x1xf32>
    %217 = vector.shape_cast %214 : vector<16x16x1xf32> to vector<1x16x16x1xf32>
    tpu.vector_store %arg14[%c0_292, %c0_293, %c0_294, %c0_295], %217 {strides = array<i32>} : memref<1x16x16x1xf32, #tpu.memory_space<vmem>>, vector<1x16x16x1xf32>,
    return
  }
  func.func @transform_0(%arg0: i32) -> (i32, i32, i32, i32) {
    %c0_i32 = arith.constant 0 : i32
    %c0_i32_0 = arith.constant 0 : i32
    %c0_i32_1 = arith.constant 0 : i32
    %c0_i32_2 = arith.constant 0 : i32
    return %arg0, %c0_i32, %c0_i32_0, %c0_i32_1 : i32, i32, i32, i32
  }
  func.func @transform_1(%arg0: i32) -> (i32, i32) {
    %c0_i32 = arith.constant 0 : i32
    %c0_i32_0 = arith.constant 0 : i32
    %c0_i32_1 = arith.constant 0 : i32
    return %c0_i32, %c0_i32_0 : i32, i32
  }
  func.func @transform_2(%arg0: i32) -> (i32, i32) {
    %c0_i32 = arith.constant 0 : i32
    %c0_i32_0 = arith.constant 0 : i32
    %c0_i32_1 = arith.constant 0 : i32
    return %c0_i32, %c0_i32_0 : i32, i32
  }
  func.func @transform_3(%arg0: i32) -> (i32, i32) {
    %c0_i32 = arith.constant 0 : i32
    %c0_i32_0 = arith.constant 0 : i32
    %c0_i32_1 = arith.constant 0 : i32
    return %c0_i32, %c0_i32_0 : i32, i32
  }
  func.func @transform_4(%arg0: i32) -> (i32, i32) {
    %c0_i32 = arith.constant 0 : i32
    %c0_i32_0 = arith.constant 0 : i32
    %c0_i32_1 = arith.constant 0 : i32
    return %c0_i32, %c0_i32_0 : i32, i32
  }
  func.func @transform_5(%arg0: i32) -> (i32, i32) {
    %c0_i32 = arith.constant 0 : i32
    %c0_i32_0 = arith.constant 0 : i32
    %c0_i32_1 = arith.constant 0 : i32
    return %c0_i32, %c0_i32_0 : i32, i32
  }
  func.func @transform_6(%arg0: i32) -> (i32, i32) {
    %c0_i32 = arith.constant 0 : i32
    %c0_i32_0 = arith.constant 0 : i32
    %c0_i32_1 = arith.constant 0 : i32
    return %c0_i32, %c0_i32_0 : i32, i32
  }
  func.func @transform_7(%arg0: i32) -> (i32, i32) {
    %c0_i32 = arith.constant 0 : i32
    %c0_i32_0 = arith.constant 0 : i32
    %c0_i32_1 = arith.constant 0 : i32
    return %c0_i32, %c0_i32_0 : i32, i32
  }
  func.func @transform_8(%arg0: i32) -> (i32, i32) {
    %c0_i32 = arith.constant 0 : i32
    %c0_i32_0 = arith.constant 0 : i32
    %c0_i32_1 = arith.constant 0 : i32
    return %c0_i32, %c0_i32_0 : i32, i32
  }
  func.func @transform_9(%arg0: i32) -> (i32, i32) {
    %c0_i32 = arith.constant 0 : i32
    %c0_i32_0 = arith.constant 0 : i32
    %c0_i32_1 = arith.constant 0 : i32
    return %c0_i32, %c0_i32_0 : i32, i32
  }
  func.func @transform_10(%arg0: i32) -> (i32, i32) {
    %c0_i32 = arith.constant 0 : i32
    %c0_i32_0 = arith.constant 0 : i32
    %c0_i32_1 = arith.constant 0 : i32
    return %c0_i32, %c0_i32_0 : i32, i32
  }
  func.func @transform_11(%arg0: i32) -> (i32, i32) {
    %c0_i32 = arith.constant 0 : i32
    %c0_i32_0 = arith.constant 0 : i32
    %c0_i32_1 = arith.constant 0 : i32
    return %c0_i32, %c0_i32_0 : i32, i32
  }
  func.func @transform_12(%arg0: i32) -> (i32, i32) {
    %c0_i32 = arith.constant 0 : i32
    %c0_i32_0 = arith.constant 0 : i32
    %c0_i32_1 = arith.constant 0 : i32
    return %c0_i32, %c0_i32_0 : i32, i32
  }
  func.func @transform_13(%arg0: i32) -> (i32, i32, i32, i32) {
    %c0_i32 = arith.constant 0 : i32
    %c0_i32_0 = arith.constant 0 : i32
    %c0_i32_1 = arith.constant 0 : i32
    %c0_i32_2 = arith.constant 0 : i32
    return %arg0, %c0_i32, %c0_i32_0, %c0_i32_1 : i32, i32, i32, i32
  }
}

</mosaic_0001>

<llo_original>
// kernel: autoencoder_forward.1
$region0: #{autoencoder_forward.1}
  #allocation0 [shape = 'u32[]', space=smem, size = 0x4, offset = 0x4, fixed_abs, tag = 'smem constant byte address 0x4 - core index']
  #allocation1 [shape = 'u32[144,128]{1,0:T(1,128)}', space=vmem, size = 0x12000, scoped, tag = 'internal scratch']
  #allocation2 [shape = 'f32[18,18,1]{2,1,0:T(8,128)}', space=vmem, size = 0x36000, scoped, tag = 'scratch operand']
  #allocation3 [shape = 'f32[10,10,32]{2,1,0:T(8,128)}', space=vmem, size = 0x14000, scoped, tag = 'scratch operand']
  #allocation4 [shape = 'f32[6,6,32]{2,1,0:T(8,128)}', space=vmem, size = 0x6000, scoped, tag = 'scratch operand']
  #allocation5 [shape = 'f32[18,18,32]{2,1,0:T(8,128)}', space=vmem, size = 0x36000, scoped, tag = 'scratch operand']
  #allocation6 [shape = 'f32[256,288]{1,0:T(8,128)}', space=vmem, size = 0x60000, scoped, tag = 'scratch operand']
  #allocation7 [shape = 'f32[1,1]{1,0:T(1,128)S(1)}', space=vmem, size = 0x200, scoped, tag = 'scoped memory for autoencoder_forward.1']
  %s0 = inlined_call_operand.vmem [shape: f32[2,16,16,1], index: 0, kind: input, shape index: {}]
  %s1 = inlined_call_operand.vmem [shape: bf16[9,32], index: 1, kind: input, shape index: {}]
  %s2 = inlined_call_operand.vmem [shape: f32[1,32], index: 2, kind: input, shape index: {}]
  %s3 = inlined_call_operand.vmem [shape: bf16[288,32], index: 3, kind: input, shape index: {}]
  %s4 = inlined_call_operand.vmem [shape: f32[1,32], index: 4, kind: input, shape index: {}]
  %s5 = inlined_call_operand.vmem [shape: bf16[288,32], index: 5, kind: input, shape index: {}]
  %s6 = inlined_call_operand.vmem [shape: f32[1,32], index: 6, kind: input, shape index: {}]
  %s7 = inlined_call_operand.vmem [shape: bf16[288,32], index: 7, kind: input, shape index: {}]
  %s8 = inlined_call_operand.vmem [shape: f32[1,32], index: 8, kind: input, shape index: {}]
  %s9 = inlined_call_operand.vmem [shape: bf16[288,1], index: 9, kind: input, shape index: {}]
  %s10 = inlined_call_operand.<no memory space> [shape: f32[1,1], index: 10, kind: input, shape index: {}]
  %s11 = inlined_call_operand.vmem [shape: f32[64,16], index: 11, kind: input, shape index: {}]
  %s12 = inlined_call_operand.vmem [shape: f32[256,64], index: 12, kind: input, shape index: {}]
  %s13 = inlined_call_operand.vmem [shape: f32[2,16,16,1], index: 13, kind: output, shape index: {}]
  %s14 = sld [smem:[#allocation0]]
  $region85: #{autoencoder_forward.1} parent=0
    _
  %s16 = ssub.s32 1, %s14
  %s17 = scalar_select 0, %s16, %s14
  %v18 = vstv %s10
  %19 = vst [vmem:[#allocation7] sm:$0x1] %v18
  loop: start=0, step=1, limit=4
  $region2: #{autoencoder_forward.1} parent=0 // loop_pre_header
    _
  $region3: #{autoencoder_forward.1} parent=0 // loop_header
    %s21 = sphi 0, %s25
    %p22 = scmp.ge.s32.totalorder %s21, 4
    %s31 = sphi 0, %s33
    %s34 = sphi 0, %s31
    %s35 = sphi 0, %s34
    %s51 = sphi 0, %s35
    %s55 = sphi 0, %s55
    %s57 = sphi 0, %s55
    %s58 = sphi 0, %s57
    %s72 = sphi 0, %s58
    %s76 = sphi 0, %s76
    %s78 = sphi 0, %s76
    %s79 = sphi 0, %s78
    %s93 = sphi 0, %s79
    %s97 = sphi 0, %s97
    %s99 = sphi 0, %s97
    %s100 = sphi 0, %s99
    %s114 = sphi 0, %s100
    %s118 = sphi 0, %s118
    %s120 = sphi 0, %s118
    %s121 = sphi 0, %s120
    %s135 = sphi 0, %s121
    %s139 = sphi 0, %s139
    %s141 = sphi 0, %s139
    %s142 = sphi 0, %s141
    %s156 = sphi 0, %s142
    %s160 = sphi 0, %s160
    %s162 = sphi 0, %s160
    %s163 = sphi 0, %s162
    %s177 = sphi 0, %s163
    %s181 = sphi 0, %s181
    %s183 = sphi 0, %s181
    %s184 = sphi 0, %s183
    %s198 = sphi 0, %s184
    %s202 = sphi 0, %s202
    %s204 = sphi 0, %s202
    %s205 = sphi 0, %s204
    %s219 = sphi 0, %s205
    %s223 = sphi 0, %s223
    %s225 = sphi 0, %s223
    %s226 = sphi 0, %s225
    %s240 = sphi 0, %s226
    %s244 = sphi 0, %s244
    %s246 = sphi 0, %s244
    %s247 = sphi 0, %s246
    %s261 = sphi 0, %s247
    %s265 = sphi 0, %s265
    %s267 = sphi 0, %s265
    %s268 = sphi 0, %s267
    %s282 = sphi 0, %s268
    %s286 = sphi 0, %s286
    %s288 = sphi 0, %s286
    %s289 = sphi 0, %s288
    %s303 = sphi 0, %s289
    %s309 = sphi 0, %s311
    %s312 = sphi 0, %s309
    %s313 = sphi 0, %s312
    %s329 = sphi 0, %s313
  $region4: #{autoencoder_forward.1} parent=0 // loop_header_branch
    %24 = sbr.rel (%p22) target = $region8
  $region5: #{autoencoder_forward.1} parent=0 // loop_body
    %s26 = ssub.s32 %s21, 1
    %s27 = ssub.s32 %s21, 2
    %s28 = sadd.s32 %s21, 1
    %s29 = ssub.s32 %s21, %s28
    %p30 = scmp.eq.s32.totalorder %s29, 0
    %s32 = sadd.s32 %s31, 1
    %s33 = scalar_select %p30, %s31, %s32
    %p36 = pneg %p30
    %p37 = scmp.eq.s32.totalorder %s21, 1
    %p38 = por %p36, %p37
    %p39 = scmp.ne.s32.totalorder %s31, %s34
    %p40 = scmp.eq.s32.totalorder %s21, 0
    %p41 = por %p39, %p40
    %p42 = scmp.ne.s32.totalorder %s31, %s34
    %p43 = scmp.eq.s32.totalorder %s26, 1
    %p44 = por %p42, %p43
    %p45 = scmp.ne.s32.totalorder %s34, %s35
    %p46 = scmp.eq.s32.totalorder %s26, 0
    %p47 = por %p45, %p46
    %p48 = scmp.ne.s32.totalorder %s34, %s35
    %p49 = scmp.eq.s32.totalorder %s27, 1
    %p50 = por %p48, %p49
    %p52 = scmp.ne.s32.totalorder %s35, %s51
    %p53 = scmp.eq.s32.totalorder %s27, 0
    %p54 = por %p52, %p53
    %s56 = sadd.s32 %s55, 1
    %p59 = scmp.eq.s32.totalorder %s21, 1
    %p60 = scmp.ne.s32.totalorder %s55, %s57
    %p61 = scmp.eq.s32.totalorder %s21, 0
    %p62 = por %p60, %p61
    %p63 = scmp.ne.s32.totalorder %s55, %s57
    %p64 = scmp.eq.s32.totalorder %s26, 1
    %p65 = por %p63, %p64
    %p66 = scmp.ne.s32.totalorder %s57, %s58
    %p67 = scmp.eq.s32.totalorder %s26, 0
    %p68 = por %p66, %p67
    %p69 = scmp.ne.s32.totalorder %s57, %s58
    %p70 = scmp.eq.s32.totalorder %s27, 1
    %p71 = por %p69, %p70
    %p73 = scmp.ne.s32.totalorder %s58, %s72
    %p74 = scmp.eq.s32.totalorder %s27, 0
    %p75 = por %p73, %p74
    %s77 = sadd.s32 %s76, 1
    %p80 = scmp.eq.s32.totalorder %s21, 1
    %p81 = scmp.ne.s32.totalorder %s76, %s78
    %p82 = scmp.eq.s32.totalorder %s21, 0
    %p83 = por %p81, %p82
    %p84 = scmp.ne.s32.totalorder %s76, %s78
    %p85 = scmp.eq.s32.totalorder %s26, 1
    %p86 = por %p84, %p85
    %p87 = scmp.ne.s32.totalorder %s78, %s79
    %p88 = scmp.eq.s32.totalorder %s26, 0
    %p89 = por %p87, %p88
    %p90 = scmp.ne.s32.totalorder %s78, %s79
    %p91 = scmp.eq.s32.totalorder %s27, 1
    %p92 = por %p90, %p91
    %p94 = scmp.ne.s32.totalorder %s79, %s93
    %p95 = scmp.eq.s32.totalorder %s27, 0
    %p96 = por %p94, %p95
    %s98 = sadd.s32 %s97, 1
    %p101 = scmp.eq.s32.totalorder %s21, 1
    %p102 = scmp.ne.s32.totalorder %s97, %s99
    %p103 = scmp.eq.s32.totalorder %s21, 0
    %p104 = por %p102, %p103
    %p105 = scmp.ne.s32.totalorder %s97, %s99
    %p106 = scmp.eq.s32.totalorder %s26, 1
    %p107 = por %p105, %p106
    %p108 = scmp.ne.s32.totalorder %s99, %s100
    %p109 = scmp.eq.s32.totalorder %s26, 0
    %p110 = por %p108, %p109
    %p111 = scmp.ne.s32.totalorder %s99, %s100
    %p112 = scmp.eq.s32.totalorder %s27, 1
    %p113 = por %p111, %p112
    %p115 = scmp.ne.s32.totalorder %s100, %s114
    %p116 = scmp.eq.s32.totalorder %s27, 0
    %p117 = por %p115, %p116
    %s119 = sadd.s32 %s118, 1
    %p122 = scmp.eq.s32.totalorder %s21, 1
    %p123 = scmp.ne.s32.totalorder %s118, %s120
    %p124 = scmp.eq.s32.totalorder %s21, 0
    %p125 = por %p123, %p124
    %p126 = scmp.ne.s32.totalorder %s118, %s120
    %p127 = scmp.eq.s32.totalorder %s26, 1
    %p128 = por %p126, %p127
    %p129 = scmp.ne.s32.totalorder %s120, %s121
    %p130 = scmp.eq.s32.totalorder %s26, 0
    %p131 = por %p129, %p130
    %p132 = scmp.ne.s32.totalorder %s120, %s121
    %p133 = scmp.eq.s32.totalorder %s27, 1
    %p134 = por %p132, %p133
    %p136 = scmp.ne.s32.totalorder %s121, %s135
    %p137 = scmp.eq.s32.totalorder %s27, 0
    %p138 = por %p136, %p137
    %s140 = sadd.s32 %s139, 1
    %p143 = scmp.eq.s32.totalorder %s21, 1
    %p144 = scmp.ne.s32.totalorder %s139, %s141
    %p145 = scmp.eq.s32.totalorder %s21, 0
    %p146 = por %p144, %p145
    %p147 = scmp.ne.s32.totalorder %s139, %s141
    %p148 = scmp.eq.s32.totalorder %s26, 1
    %p149 = por %p147, %p148
    %p150 = scmp.ne.s32.totalorder %s141, %s142
    %p151 = scmp.eq.s32.totalorder %s26, 0
    %p152 = por %p150, %p151
    %p153 = scmp.ne.s32.totalorder %s141, %s142
    %p154 = scmp.eq.s32.totalorder %s27, 1
    %p155 = por %p153, %p154
    %p157 = scmp.ne.s32.totalorder %s142, %s156
    %p158 = scmp.eq.s32.totalorder %s27, 0
    %p159 = por %p157, %p158
    %s161 = sadd.s32 %s160, 1
    %p164 = scmp.eq.s32.totalorder %s21, 1
    %p165 = scmp.ne.s32.totalorder %s160, %s162
    %p166 = scmp.eq.s32.totalorder %s21, 0
    %p167 = por %p165, %p166
    %p168 = scmp.ne.s32.totalorder %s160, %s162
    %p169 = scmp.eq.s32.totalorder %s26, 1
    %p170 = por %p168, %p169
    %p171 = scmp.ne.s32.totalorder %s162, %s163
    %p172 = scmp.eq.s32.totalorder %s26, 0
    %p173 = por %p171, %p172
    %p174 = scmp.ne.s32.totalorder %s162, %s163
    %p175 = scmp.eq.s32.totalorder %s27, 1
    %p176 = por %p174, %p175
    %p178 = scmp.ne.s32.totalorder %s163, %s177
    %p179 = scmp.eq.s32.totalorder %s27, 0
    %p180 = por %p178, %p179
    %s182 = sadd.s32 %s181, 1
    %p185 = scmp.eq.s32.totalorder %s21, 1
    %p186 = scmp.ne.s32.totalorder %s181, %s183
    %p187 = scmp.eq.s32.totalorder %s21, 0
    %p188 = por %p186, %p187
    %p189 = scmp.ne.s32.totalorder %s181, %s183
    %p190 = scmp.eq.s32.totalorder %s26, 1
    %p191 = por %p189, %p190
    %p192 = scmp.ne.s32.totalorder %s183, %s184
    %p193 = scmp.eq.s32.totalorder %s26, 0
    %p194 = por %p192, %p193
    %p195 = scmp.ne.s32.totalorder %s183, %s184
    %p196 = scmp.eq.s32.totalorder %s27, 1
    %p197 = por %p195, %p196
    %p199 = scmp.ne.s32.totalorder %s184, %s198
    %p200 = scmp.eq.s32.totalorder %s27, 0
    %p201 = por %p199, %p200
    %s203 = sadd.s32 %s202, 1
    %p206 = scmp.eq.s32.totalorder %s21, 1
    %p207 = scmp.ne.s32.totalorder %s202, %s204
    %p208 = scmp.eq.s32.totalorder %s21, 0
    %p209 = por %p207, %p208
    %p210 = scmp.ne.s32.totalorder %s202, %s204
    %p211 = scmp.eq.s32.totalorder %s26, 1
    %p212 = por %p210, %p211
    %p213 = scmp.ne.s32.totalorder %s204, %s205
    %p214 = scmp.eq.s32.totalorder %s26, 0
    %p215 = por %p213, %p214
    %p216 = scmp.ne.s32.totalorder %s204, %s205
    %p217 = scmp.eq.s32.totalorder %s27, 1
    %p218 = por %p216, %p217
    %p220 = scmp.ne.s32.totalorder %s205, %s219
    %p221 = scmp.eq.s32.totalorder %s27, 0
    %p222 = por %p220, %p221
    %s224 = sadd.s32 %s223, 1
    %p227 = scmp.eq.s32.totalorder %s21, 1
    %p228 = scmp.ne.s32.totalorder %s223, %s225
    %p229 = scmp.eq.s32.totalorder %s21, 0
    %p230 = por %p228, %p229
    %p231 = scmp.ne.s32.totalorder %s223, %s225
    %p232 = scmp.eq.s32.totalorder %s26, 1
    %p233 = por %p231, %p232
    %p234 = scmp.ne.s32.totalorder %s225, %s226
    %p235 = scmp.eq.s32.totalorder %s26, 0
    %p236 = por %p234, %p235
    %p237 = scmp.ne.s32.totalorder %s225, %s226
    %p238 = scmp.eq.s32.totalorder %s27, 1
    %p239 = por %p237, %p238
    %p241 = scmp.ne.s32.totalorder %s226, %s240
    %p242 = scmp.eq.s32.totalorder %s27, 0
    %p243 = por %p241, %p242
    %s245 = sadd.s32 %s244, 1
    %p248 = scmp.eq.s32.totalorder %s21, 1
    %p249 = scmp.ne.s32.totalorder %s244, %s246
    %p250 = scmp.eq.s32.totalorder %s21, 0
    %p251 = por %p249, %p250
    %p252 = scmp.ne.s32.totalorder %s244, %s246
    %p253 = scmp.eq.s32.totalorder %s26, 1
    %p254 = por %p252, %p253
    %p255 = scmp.ne.s32.totalorder %s246, %s247
    %p256 = scmp.eq.s32.totalorder %s26, 0
    %p257 = por %p255, %p256
    %p258 = scmp.ne.s32.totalorder %s246, %s247
    %p259 = scmp.eq.s32.totalorder %s27, 1
    %p260 = por %p258, %p259
    %p262 = scmp.ne.s32.totalorder %s247, %s261
    %p263 = scmp.eq.s32.totalorder %s27, 0
    %p264 = por %p262, %p263
    %s266 = sadd.s32 %s265, 1
    %p269 = scmp.eq.s32.totalorder %s21, 1
    %p270 = scmp.ne.s32.totalorder %s265, %s267
    %p271 = scmp.eq.s32.totalorder %s21, 0
    %p272 = por %p270, %p271
    %p273 = scmp.ne.s32.totalorder %s265, %s267
    %p274 = scmp.eq.s32.totalorder %s26, 1
    %p275 = por %p273, %p274
    %p276 = scmp.ne.s32.totalorder %s267, %s268
    %p277 = scmp.eq.s32.totalorder %s26, 0
    %p278 = por %p276, %p277
    %p279 = scmp.ne.s32.totalorder %s267, %s268
    %p280 = scmp.eq.s32.totalorder %s27, 1
    %p281 = por %p279, %p280
    %p283 = scmp.ne.s32.totalorder %s268, %s282
    %p284 = scmp.eq.s32.totalorder %s27, 0
    %p285 = por %p283, %p284
    %s287 = sadd.s32 %s286, 1
    %p290 = scmp.eq.s32.totalorder %s21, 1
    %p291 = scmp.ne.s32.totalorder %s286, %s288
    %p292 = scmp.eq.s32.totalorder %s21, 0
    %p293 = por %p291, %p292
    %p294 = scmp.ne.s32.totalorder %s286, %s288
    %p295 = scmp.eq.s32.totalorder %s26, 1
    %p296 = por %p294, %p295
    %p297 = scmp.ne.s32.totalorder %s288, %s289
    %p298 = scmp.eq.s32.totalorder %s26, 0
    %p299 = por %p297, %p298
    %p300 = scmp.ne.s32.totalorder %s288, %s289
    %p301 = scmp.eq.s32.totalorder %s27, 1
    %p302 = por %p300, %p301
    %p304 = scmp.ne.s32.totalorder %s289, %s303
    %p305 = scmp.eq.s32.totalorder %s27, 0
    %p306 = por %p304, %p305
    %s307 = ssub.s32 %s21, %s28
    %p308 = scmp.eq.s32.totalorder %s307, 0
    %s310 = sadd.s32 %s309, 1
    %s311 = scalar_select %p308, %s309, %s310
    %p314 = pneg %p308
    %p315 = scmp.eq.s32.totalorder %s21, 1
    %p316 = por %p314, %p315
    %p317 = scmp.ne.s32.totalorder %s309, %s312
    %p318 = scmp.eq.s32.totalorder %s21, 0
    %p319 = por %p317, %p318
    %p320 = scmp.ne.s32.totalorder %s309, %s312
    %p321 = scmp.eq.s32.totalorder %s26, 1
    %p322 = por %p320, %p321
    %p323 = scmp.ne.s32.totalorder %s312, %s313
    %p324 = scmp.eq.s32.totalorder %s26, 0
    %p325 = por %p323, %p324
    %p326 = scmp.ne.s32.totalorder %s312, %s313
    %p327 = scmp.eq.s32.totalorder %s27, 1
    %p328 = por %p326, %p327
    %p330 = scmp.ne.s32.totalorder %s313, %s329
    %p331 = scmp.eq.s32.totalorder %s27, 0
    %p332 = por %p330, %p331
    %p333 = scmp.le.s32.totalorder 1, %s21
    %p334 = scmp.lt.s32.totalorder %s21, 3
    %p335 = pnand %p333, %p334
    %p336 = pneg %p335
    // Predicated region
    $region9: #{autoencoder_forward.1} parent=5 // pred_check
      _
    $region10: #{autoencoder_forward.1} parent=5 // pred_check_branch
      %338 = sbr.rel (%p335) target = $region12
    $region11: #{autoencoder_forward.1} parent=5 // pred_region
      %s339 = ssub.s32 %s21, 1
      // Predicated region
      $region13: #{autoencoder_forward.1} parent=11 // pred_check
        %p340 = pneg %p68
      $region14: #{autoencoder_forward.1} parent=11 // pred_check_branch
        %342 = sbr.rel (%p340) target = $region16
      $region15: #{autoencoder_forward.1} parent=11 // pred_region
        _
      $region16: #{autoencoder_forward.1} parent=11 // pred_fallthru
        _
      // Predicated region
      $region17: #{autoencoder_forward.1} parent=11 // pred_check
        %p343 = pneg %p89
      $region18: #{autoencoder_forward.1} parent=11 // pred_check_branch
        %345 = sbr.rel (%p343) target = $region20
      $region19: #{autoencoder_forward.1} parent=11 // pred_region
        _
      $region20: #{autoencoder_forward.1} parent=11 // pred_fallthru
        _
      // Predicated region
      $region21: #{autoencoder_forward.1} parent=11 // pred_check
        %p346 = pneg %p110
      $region22: #{autoencoder_forward.1} parent=11 // pred_check_branch
        %348 = sbr.rel (%p346) target = $region24
      $region23: #{autoencoder_forward.1} parent=11 // pred_region
        _
      $region24: #{autoencoder_forward.1} parent=11 // pred_fallthru
        _
      // Predicated region
      $region25: #{autoencoder_forward.1} parent=11 // pred_check
        %p349 = pneg %p131
      $region26: #{autoencoder_forward.1} parent=11 // pred_check_branch
        %351 = sbr.rel (%p349) target = $region28
      $region27: #{autoencoder_forward.1} parent=11 // pred_region
        _
      $region28: #{autoencoder_forward.1} parent=11 // pred_fallthru
        _
      // Predicated region
      $region29: #{autoencoder_forward.1} parent=11 // pred_check
        %p352 = pneg %p152
      $region30: #{autoencoder_forward.1} parent=11 // pred_check_branch
        %354 = sbr.rel (%p352) target = $region32
      $region31: #{autoencoder_forward.1} parent=11 // pred_region
        _
      $region32: #{autoencoder_forward.1} parent=11 // pred_fallthru
        _
      // Predicated region
      $region33: #{autoencoder_forward.1} parent=11 // pred_check
        %p355 = pneg %p173
      $region34: #{autoencoder_forward.1} parent=11 // pred_check_branch
        %357 = sbr.rel (%p355) target = $region36
      $region35: #{autoencoder_forward.1} parent=11 // pred_region
        _
      $region36: #{autoencoder_forward.1} parent=11 // pred_fallthru
        _
      // Predicated region
      $region37: #{autoencoder_forward.1} parent=11 // pred_check
        %p358 = pneg %p194
      $region38: #{autoencoder_forward.1} parent=11 // pred_check_branch
        %360 = sbr.rel (%p358) target = $region40
      $region39: #{autoencoder_forward.1} parent=11 // pred_region
        _
      $region40: #{autoencoder_forward.1} parent=11 // pred_fallthru
        _
      // Predicated region
      $region41: #{autoencoder_forward.1} parent=11 // pred_check
        %p361 = pneg %p215
      $region42: #{autoencoder_forward.1} parent=11 // pred_check_branch
        %363 = sbr.rel (%p361) target = $region44
      $region43: #{autoencoder_forward.1} parent=11 // pred_region
        _
      $region44: #{autoencoder_forward.1} parent=11 // pred_fallthru
        _
      // Predicated region
      $region45: #{autoencoder_forward.1} parent=11 // pred_check
        %p364 = pneg %p236
      $region46: #{autoencoder_forward.1} parent=11 // pred_check_branch
        %366 = sbr.rel (%p364) target = $region48
      $region47: #{autoencoder_forward.1} parent=11 // pred_region
        _
      $region48: #{autoencoder_forward.1} parent=11 // pred_fallthru
        _
      // Predicated region
      $region49: #{autoencoder_forward.1} parent=11 // pred_check
        %p367 = pneg %p257
      $region50: #{autoencoder_forward.1} parent=11 // pred_check_branch
        %369 = sbr.rel (%p367) target = $region52
      $region51: #{autoencoder_forward.1} parent=11 // pred_region
        _
      $region52: #{autoencoder_forward.1} parent=11 // pred_fallthru
        _
      // Predicated region
      $region53: #{autoencoder_forward.1} parent=11 // pred_check
        %p370 = pneg %p278
      $region54: #{autoencoder_forward.1} parent=11 // pred_check_branch
        %372 = sbr.rel (%p370) target = $region56
      $region55: #{autoencoder_forward.1} parent=11 // pred_region
        _
      $region56: #{autoencoder_forward.1} parent=11 // pred_fallthru
        _
      // Predicated region
      $region57: #{autoencoder_forward.1} parent=11 // pred_check
        %p373 = pneg %p299
      $region58: #{autoencoder_forward.1} parent=11 // pred_check_branch
        %375 = sbr.rel (%p373) target = $region60
      $region59: #{autoencoder_forward.1} parent=11 // pred_region
        _
      $region60: #{autoencoder_forward.1} parent=11 // pred_fallthru
        _
    $region12: #{autoencoder_forward.1} parent=5 // pred_fallthru
      _
    %p376 = scmp.lt.s32.totalorder %s21, 2
    // Predicated region
    $region61: #{autoencoder_forward.1} parent=5 // pred_check
      %p377 = pneg %p376
    $region62: #{autoencoder_forward.1} parent=5 // pred_check_branch
      %379 = sbr.rel (%p377) target = $region64
    $region63: #{autoencoder_forward.1} parent=5 // pred_region
      // Predicated region
      $region65: #{autoencoder_forward.1} parent=63 // pred_check
        %p380 = pneg %p41
      $region66: #{autoencoder_forward.1} parent=63 // pred_check_branch
        %382 = sbr.rel (%p380) target = $region68
      $region67: #{autoencoder_forward.1} parent=63 // pred_region
        %p383 = scmp.lt.s32.totalorder %s21, 1
        %s384 = scalar_select %p383, %s21, 1
        %s385 = smul.addr %s384, 32
        %s386 = smul.addr %s385, 8
        %s387 = scalar_lea.vmem %s0, %s386
      $region68: #{autoencoder_forward.1} parent=63 // pred_fallthru
        _
    $region64: #{autoencoder_forward.1} parent=5 // pred_fallthru
      _
    %p388 = scmp.le.s32.totalorder 1, %s21
    %p389 = scmp.lt.s32.totalorder %s21, 3
    %p390 = pnand %p388, %p389
    %p391 = pneg %p390
    // Predicated region
    $region69: #{autoencoder_forward.1} parent=5 // pred_check
      _
    $region70: #{autoencoder_forward.1} parent=5 // pred_check_branch
      %393 = sbr.rel (%p390) target = $region72
    $region71: #{autoencoder_forward.1} parent=5 // pred_region
      %s394 = ssub.s32 %s21, 1
      %p395 = scmp.lt.s32.totalorder %s26, 1
      %s396 = scalar_select %p395, %s26, 1
      %s397 = smul.addr %s396, 32
      %s398 = smul.addr %s397, 8
      %s399 = scalar_lea.vmem %s0, %s398
      %p400 = pneg %p47
      %p401 = pneg %p44
      %p402 = pneg %p68
      %p403 = pneg %p65
      %p404 = pneg %p89
      %p405 = pneg %p86
      %p406 = pneg %p110
      %p407 = pneg %p107
      %p408 = pneg %p131
      %p409 = pneg %p128
      %p410 = pneg %p152
      %p411 = pneg %p149
      %p412 = pneg %p173
      %p413 = pneg %p170
      %p414 = pneg %p194
      %p415 = pneg %p191
      %p416 = pneg %p215
      %p417 = pneg %p212
      %p418 = pneg %p236
      %p419 = pneg %p233
      %p420 = pneg %p257
      %p421 = pneg %p254
      %p422 = pneg %p278
      %p423 = pneg %p275
      %p424 = pneg %p299
      %p425 = pneg %p296
      %p426 = pneg %p325
      %p427 = pneg %p322
      %p428 = scmp.lt.s32.totalorder %s26, 1
      %s429 = scalar_select %p428, %s26, 1
      %s430 = smul.addr %s429, 32
      %s431 = smul.addr %s430, 8
      %s432 = scalar_lea.vmem %s13, %s431
      %p433 = scmp.lt.s32.totalorder %s26, 1
      %s434 = scalar_select %p433, %s26, 1
      %s435 = smul.addr %s434, 32
      %s436 = smul.addr %s435, 8
      %s437 = scalar_lea.vmem %s0, %s436
      %p438 = scmp.lt.s32.totalorder %s26, 1
      %s439 = scalar_select %p438, %s26, 1
      %s440 = smul.addr %s439, 32
      %s441 = smul.addr %s440, 8
      %s442 = scalar_lea.vmem %s13, %s441
      %vm444 = vcmask 7168
      %445 = vst.msk [vmem:[#allocation2] sm:$0xff] %vm444, 0.0
      %446 = vst.msk [vmem:[#allocation2 + $0x8] sm:$0xff] %vm444, 0.0
      %vm447 = vcmask 1024
      %448 = vst.msk [vmem:[#allocation2 + $0x10] sm:$0x3] %vm447, 0.0
      %449 = vst.msk [vmem:[#allocation2 + $0x18] sm:$0xff] %vm444, 0.0
      %450 = vst.msk [vmem:[#allocation2 + $0x20] sm:$0xff] %vm444, 0.0
      %451 = vst.msk [vmem:[#allocation2 + $0x28] sm:$0x3] %vm447, 0.0
      %452 = vst.msk [vmem:[#allocation2 + $0x30] sm:$0xff] %vm444, 0.0
      %453 = vst.msk [vmem:[#allocation2 + $0x38] sm:$0xff] %vm444, 0.0
      %454 = vst.msk [vmem:[#allocation2 + $0x40] sm:$0x3] %vm447, 0.0
      %455 = vst.msk [vmem:[#allocation2 + $0x48] sm:$0xff] %vm444, 0.0
      %456 = vst.msk [vmem:[#allocation2 + $0x50] sm:$0xff] %vm444, 0.0
      %457 = vst.msk [vmem:[#allocation2 + $0x58] sm:$0x3] %vm447, 0.0
      %458 = vst.msk [vmem:[#allocation2 + $0x60] sm:$0xff] %vm444, 0.0
      %459 = vst.msk [vmem:[#allocation2 + $0x68] sm:$0xff] %vm444, 0.0
      %460 = vst.msk [vmem:[#allocation2 + $0x70] sm:$0x3] %vm447, 0.0
      %461 = vst.msk [vmem:[#allocation2 + $0x78] sm:$0xff] %vm444, 0.0
      %462 = vst.msk [vmem:[#allocation2 + $0x80] sm:$0xff] %vm444, 0.0
      %463 = vst.msk [vmem:[#allocation2 + $0x88] sm:$0x3] %vm447, 0.0
      %464 = vst.msk [vmem:[#allocation2 + $0x90] sm:$0xff] %vm444, 0.0
      %465 = vst.msk [vmem:[#allocation2 + $0x98] sm:$0xff] %vm444, 0.0
      %466 = vst.msk [vmem:[#allocation2 + $0xa0] sm:$0x3] %vm447, 0.0
      %467 = vst.msk [vmem:[#allocation2 + $0xa8] sm:$0xff] %vm444, 0.0
      %468 = vst.msk [vmem:[#allocation2 + $0xb0] sm:$0xff] %vm444, 0.0
      %469 = vst.msk [vmem:[#allocation2 + $0xb8] sm:$0x3] %vm447, 0.0
      %470 = vst.msk [vmem:[#allocation2 + $0xc0] sm:$0xff] %vm444, 0.0
      %471 = vst.msk [vmem:[#allocation2 + $0xc8] sm:$0xff] %vm444, 0.0
      %472 = vst.msk [vmem:[#allocation2 + $0xd0] sm:$0x3] %vm447, 0.0
      %473 = vst.msk [vmem:[#allocation2 + $0xd8] sm:$0xff] %vm444, 0.0
      %474 = vst.msk [vmem:[#allocation2 + $0xe0] sm:$0xff] %vm444, 0.0
      %475 = vst.msk [vmem:[#allocation2 + $0xe8] sm:$0x3] %vm447, 0.0
      %476 = vst.msk [vmem:[#allocation2 + $0xf0] sm:$0xff] %vm444, 0.0
      %477 = vst.msk [vmem:[#allocation2 + $0xf8] sm:$0xff] %vm444, 0.0
      %478 = vst.msk [vmem:[#allocation2 + $0x100] sm:$0x3] %vm447, 0.0
      %479 = vst.msk [vmem:[#allocation2 + $0x108] sm:$0xff] %vm444, 0.0
      %480 = vst.msk [vmem:[#allocation2 + $0x110] sm:$0xff] %vm444, 0.0
      %481 = vst.msk [vmem:[#allocation2 + $0x118] sm:$0x3] %vm447, 0.0
      %482 = vst.msk [vmem:[#allocation2 + $0x120] sm:$0xff] %vm444, 0.0
      %483 = vst.msk [vmem:[#allocation2 + $0x128] sm:$0xff] %vm444, 0.0
      %484 = vst.msk [vmem:[#allocation2 + $0x130] sm:$0x3] %vm447, 0.0
      %485 = vst.msk [vmem:[#allocation2 + $0x138] sm:$0xff] %vm444, 0.0
      %486 = vst.msk [vmem:[#allocation2 + $0x140] sm:$0xff] %vm444, 0.0
      %487 = vst.msk [vmem:[#allocation2 + $0x148] sm:$0x3] %vm447, 0.0
      %488 = vst.msk [vmem:[#allocation2 + $0x150] sm:$0xff] %vm444, 0.0
      %489 = vst.msk [vmem:[#allocation2 + $0x158] sm:$0xff] %vm444, 0.0
      %490 = vst.msk [vmem:[#allocation2 + $0x160] sm:$0x3] %vm447, 0.0
      %491 = vst.msk [vmem:[#allocation2 + $0x168] sm:$0xff] %vm444, 0.0
      %492 = vst.msk [vmem:[#allocation2 + $0x170] sm:$0xff] %vm444, 0.0
      %493 = vst.msk [vmem:[#allocation2 + $0x178] sm:$0x3] %vm447, 0.0
      %494 = vst.msk [vmem:[#allocation2 + $0x180] sm:$0xff] %vm444, 0.0
      %495 = vst.msk [vmem:[#allocation2 + $0x188] sm:$0xff] %vm444, 0.0
      %496 = vst.msk [vmem:[#allocation2 + $0x190] sm:$0x3] %vm447, 0.0
      %497 = vst.msk [vmem:[#allocation2 + $0x198] sm:$0xff] %vm444, 0.0
      %498 = vst.msk [vmem:[#allocation2 + $0x1a0] sm:$0xff] %vm444, 0.0
      %499 = vst.msk [vmem:[#allocation2 + $0x1a8] sm:$0x3] %vm447, 0.0
      %v500 = vld [vmem:[%s437] sm:$0xff]
      %v501 = vld [vmem:[%s437 + $0x8] sm:$0xff]
      %v502 = vld [vmem:[%s437 + $0x10] sm:$0xff]
      %v503 = vld [vmem:[%s437 + $0x18] sm:$0xff]
      %v504 = vld [vmem:[%s437 + $0x20] sm:$0xff]
      %v505 = vld [vmem:[%s437 + $0x28] sm:$0xff]
      %v506 = vld [vmem:[%s437 + $0x30] sm:$0xff]
      %v507 = vld [vmem:[%s437 + $0x38] sm:$0xff]
      %v508 = vld [vmem:[%s437 + $0x40] sm:$0xff]
      %v509 = vld [vmem:[%s437 + $0x48] sm:$0xff]
      %v510 = vld [vmem:[%s437 + $0x50] sm:$0xff]
      %v511 = vld [vmem:[%s437 + $0x58] sm:$0xff]
      %v512 = vld [vmem:[%s437 + $0x60] sm:$0xff]
      %v513 = vld [vmem:[%s437 + $0x68] sm:$0xff]
      %v514 = vld [vmem:[%s437 + $0x70] sm:$0xff]
      %v515 = vld [vmem:[%s437 + $0x78] sm:$0xff]
      %v516 = vld [vmem:[%s437 + $0x80] sm:$0xff]
      %v517 = vld [vmem:[%s437 + $0x88] sm:$0xff]
      %v518 = vld [vmem:[%s437 + $0x90] sm:$0xff]
      %v519 = vld [vmem:[%s437 + $0x98] sm:$0xff]
      %v520 = vld [vmem:[%s437 + $0xa0] sm:$0xff]
      %v521 = vld [vmem:[%s437 + $0xa8] sm:$0xff]
      %v522 = vld [vmem:[%s437 + $0xb0] sm:$0xff]
      %v523 = vld [vmem:[%s437 + $0xb8] sm:$0xff]
      %v524 = vld [vmem:[%s437 + $0xc0] sm:$0xff]
      %v525 = vld [vmem:[%s437 + $0xc8] sm:$0xff]
      %v526 = vld [vmem:[%s437 + $0xd0] sm:$0xff]
      %v527 = vld [vmem:[%s437 + $0xd8] sm:$0xff]
      %v528 = vld [vmem:[%s437 + $0xe0] sm:$0xff]
      %v529 = vld [vmem:[%s437 + $0xe8] sm:$0xff]
      %v530 = vld [vmem:[%s437 + $0xf0] sm:$0xff]
      %v531 = vld [vmem:[%s437 + $0xf8] sm:$0xff]
      %s532 = scalar_lea.vmem [#allocation2], 24
      %533 = vst.msk [vmem:[%s532 + $0x1] sm:$0xff] %vm444, %v500
      %534 = vst.msk [vmem:[%s532 + $0x9] sm:$0xff] %vm444, %v501
      %535 = vst.msk [vmem:[%s532 + $0x19] sm:$0xff] %vm444, %v502
      %536 = vst.msk [vmem:[%s532 + $0x21] sm:$0xff] %vm444, %v503
      %537 = vst.msk [vmem:[%s532 + $0x31] sm:$0xff] %vm444, %v504
      %538 = vst.msk [vmem:[%s532 + $0x39] sm:$0xff] %vm444, %v505
      %539 = vst.msk [vmem:[%s532 + $0x49] sm:$0xff] %vm444, %v506
      %540 = vst.msk [vmem:[%s532 + $0x51] sm:$0xff] %vm444, %v507
      %541 = vst.msk [vmem:[%s532 + $0x61] sm:$0xff] %vm444, %v508
      %542 = vst.msk [vmem:[%s532 + $0x69] sm:$0xff] %vm444, %v509
      %543 = vst.msk [vmem:[%s532 + $0x79] sm:$0xff] %vm444, %v510
      %544 = vst.msk [vmem:[%s532 + $0x81] sm:$0xff] %vm444, %v511
      %545 = vst.msk [vmem:[%s532 + $0x91] sm:$0xff] %vm444, %v512
      %546 = vst.msk [vmem:[%s532 + $0x99] sm:$0xff] %vm444, %v513
      %547 = vst.msk [vmem:[%s532 + $0xa9] sm:$0xff] %vm444, %v514
      %548 = vst.msk [vmem:[%s532 + $0xb1] sm:$0xff] %vm444, %v515
      %549 = vst.msk [vmem:[%s532 + $0xc1] sm:$0xff] %vm444, %v516
      %550 = vst.msk [vmem:[%s532 + $0xc9] sm:$0xff] %vm444, %v517
      %551 = vst.msk [vmem:[%s532 + $0xd9] sm:$0xff] %vm444, %v518
      %552 = vst.msk [vmem:[%s532 + $0xe1] sm:$0xff] %vm444, %v519
      %553 = vst.msk [vmem:[%s532 + $0xf1] sm:$0xff] %vm444, %v520
      %554 = vst.msk [vmem:[%s532 + $0xf9] sm:$0xff] %vm444, %v521
      %555 = vst.msk [vmem:[%s532 + $0x109] sm:$0xff] %vm444, %v522
      %556 = vst.msk [vmem:[%s532 + $0x111] sm:$0xff] %vm444, %v523
      %557 = vst.msk [vmem:[%s532 + $0x121] sm:$0xff] %vm444, %v524
      %558 = vst.msk [vmem:[%s532 + $0x129] sm:$0xff] %vm444, %v525
      %559 = vst.msk [vmem:[%s532 + $0x139] sm:$0xff] %vm444, %v526
      %560 = vst.msk [vmem:[%s532 + $0x141] sm:$0xff] %vm444, %v527
      %561 = vst.msk [vmem:[%s532 + $0x151] sm:$0xff] %vm444, %v528
      %562 = vst.msk [vmem:[%s532 + $0x159] sm:$0xff] %vm444, %v529
      %563 = vst.msk [vmem:[%s532 + $0x169] sm:$0xff] %vm444, %v530
      %564 = vst.msk [vmem:[%s532 + $0x171] sm:$0xff] %vm444, %v531
      %v565 = vld [vmem:[#allocation2] sm:$0xff]
      %v566 = vld [vmem:[#allocation2 + $0x8] sm:$0xff]
      %v567 = vld [vmem:[#allocation2 + $0x18] sm:$0xff]
      %v568 = vld [vmem:[#allocation2 + $0x20] sm:$0xff]
      %v569 = vld [vmem:[#allocation2 + $0x30] sm:$0xff]
      %v570 = vld [vmem:[#allocation2 + $0x38] sm:$0xff]
      %v571 = vld [vmem:[#allocation2 + $0x48] sm:$0xff]
      %v572 = vld [vmem:[#allocation2 + $0x50] sm:$0xff]
      %v573 = vld [vmem:[#allocation2 + $0x60] sm:$0xff]
      %v574 = vld [vmem:[#allocation2 + $0x68] sm:$0xff]
      %v575 = vld [vmem:[#allocation2 + $0x78] sm:$0xff]
      %v576 = vld [vmem:[#allocation2 + $0x80] sm:$0xff]
      %v577 = vld [vmem:[#allocation2 + $0x90] sm:$0xff]
      %v578 = vld [vmem:[#allocation2 + $0x98] sm:$0xff]
      %v579 = vld [vmem:[#allocation2 + $0xa8] sm:$0xff]
      %v580 = vld [vmem:[#allocation2 + $0xb0] sm:$0xff]
      %v581 = vld [vmem:[#allocation2 + $0xc0] sm:$0xff]
      %v582 = vld [vmem:[#allocation2 + $0xc8] sm:$0xff]
      %v583 = vld [vmem:[#allocation2 + $0xd8] sm:$0xff]
      %v584 = vld [vmem:[#allocation2 + $0xe0] sm:$0xff]
      %v585 = vld [vmem:[#allocation2 + $0xf0] sm:$0xff]
      %v586 = vld [vmem:[#allocation2 + $0xf8] sm:$0xff]
      %v587 = vld [vmem:[#allocation2 + $0x108] sm:$0xff]
      %v588 = vld [vmem:[#allocation2 + $0x110] sm:$0xff]
      %v589 = vld [vmem:[#allocation2 + $0x120] sm:$0xff]
      %v590 = vld [vmem:[#allocation2 + $0x128] sm:$0xff]
      %v591 = vld [vmem:[#allocation2 + $0x138] sm:$0xff]
      %v592 = vld [vmem:[#allocation2 + $0x140] sm:$0xff]
      %v593 = vld [vmem:[#allocation2 + $0x150] sm:$0xff]
      %v594 = vld [vmem:[#allocation2 + $0x158] sm:$0xff]
      %v595 = vld [vmem:[#allocation2 + $0x168] sm:$0xff]
      %v596 = vld [vmem:[#allocation2 + $0x170] sm:$0xff]
      %597 = vst.msk [vmem:[#allocation6] sm:$0xff] %vm444, %v565
      %598 = vst.msk [vmem:[#allocation6 + $0x18] sm:$0xff] %vm444, %v566
      %599 = vst.msk [vmem:[#allocation6 + $0x30] sm:$0xff] %vm444, %v567
      %600 = vst.msk [vmem:[#allocation6 + $0x48] sm:$0xff] %vm444, %v568
      %601 = vst.msk [vmem:[#allocation6 + $0x60] sm:$0xff] %vm444, %v569
      %602 = vst.msk [vmem:[#allocation6 + $0x78] sm:$0xff] %vm444, %v570
      %603 = vst.msk [vmem:[#allocation6 + $0x90] sm:$0xff] %vm444, %v571
      %604 = vst.msk [vmem:[#allocation6 + $0xa8] sm:$0xff] %vm444, %v572
      %605 = vst.msk [vmem:[#allocation6 + $0xc0] sm:$0xff] %vm444, %v573
      %606 = vst.msk [vmem:[#allocation6 + $0xd8] sm:$0xff] %vm444, %v574
      %607 = vst.msk [vmem:[#allocation6 + $0xf0] sm:$0xff] %vm444, %v575
      %608 = vst.msk [vmem:[#allocation6 + $0x108] sm:$0xff] %vm444, %v576
      %609 = vst.msk [vmem:[#allocation6 + $0x120] sm:$0xff] %vm444, %v577
      %610 = vst.msk [vmem:[#allocation6 + $0x138] sm:$0xff] %vm444, %v578
      %611 = vst.msk [vmem:[#allocation6 + $0x150] sm:$0xff] %vm444, %v579
      %612 = vst.msk [vmem:[#allocation6 + $0x168] sm:$0xff] %vm444, %v580
      %613 = vst.msk [vmem:[#allocation6 + $0x180] sm:$0xff] %vm444, %v581
      %614 = vst.msk [vmem:[#allocation6 + $0x198] sm:$0xff] %vm444, %v582
      %615 = vst.msk [vmem:[#allocation6 + $0x1b0] sm:$0xff] %vm444, %v583
      %616 = vst.msk [vmem:[#allocation6 + $0x1c8] sm:$0xff] %vm444, %v584
      %617 = vst.msk [vmem:[#allocation6 + $0x1e0] sm:$0xff] %vm444, %v585
      %618 = vst.msk [vmem:[#allocation6 + $0x1f8] sm:$0xff] %vm444, %v586
      %619 = vst.msk [vmem:[#allocation6 + $0x210] sm:$0xff] %vm444, %v587
      %620 = vst.msk [vmem:[#allocation6 + $0x228] sm:$0xff] %vm444, %v588
      %621 = vst.msk [vmem:[#allocation6 + $0x240] sm:$0xff] %vm444, %v589
      %622 = vst.msk [vmem:[#allocation6 + $0x258] sm:$0xff] %vm444, %v590
      %623 = vst.msk [vmem:[#allocation6 + $0x270] sm:$0xff] %vm444, %v591
      %624 = vst.msk [vmem:[#allocation6 + $0x288] sm:$0xff] %vm444, %v592
      %625 = vst.msk [vmem:[#allocation6 + $0x2a0] sm:$0xff] %vm444, %v593
      %626 = vst.msk [vmem:[#allocation6 + $0x2b8] sm:$0xff] %vm444, %v594
      %627 = vst.msk [vmem:[#allocation6 + $0x2d0] sm:$0xff] %vm444, %v595
      %628 = vst.msk [vmem:[#allocation6 + $0x2e8] sm:$0xff] %vm444, %v596
      %v629 = vld [vmem:[#allocation2 + $0x1] sm:$0xff]
      %v630 = vld [vmem:[#allocation2 + $0x9] sm:$0xff]
      %v631 = vld [vmem:[#allocation2 + $0x19] sm:$0xff]
      %v632 = vld [vmem:[#allocation2 + $0x21] sm:$0xff]
      %v633 = vld [vmem:[#allocation2 + $0x31] sm:$0xff]
      %v634 = vld [vmem:[#allocation2 + $0x39] sm:$0xff]
      %v635 = vld [vmem:[#allocation2 + $0x49] sm:$0xff]
      %v636 = vld [vmem:[#allocation2 + $0x51] sm:$0xff]
      %v637 = vld [vmem:[#allocation2 + $0x61] sm:$0xff]
      %v638 = vld [vmem:[#allocation2 + $0x69] sm:$0xff]
      %v639 = vld [vmem:[#allocation2 + $0x79] sm:$0xff]
      %v640 = vld [vmem:[#allocation2 + $0x81] sm:$0xff]
      %v641 = vld [vmem:[#allocation2 + $0x91] sm:$0xff]
      %v642 = vld [vmem:[#allocation2 + $0x99] sm:$0xff]
      %v643 = vld [vmem:[#allocation2 + $0xa9] sm:$0xff]
      %v644 = vld [vmem:[#allocation2 + $0xb1] sm:$0xff]
      %v645 = vld [vmem:[#allocation2 + $0xc1] sm:$0xff]
      %v646 = vld [vmem:[#allocation2 + $0xc9] sm:$0xff]
      %v647 = vld [vmem:[#allocation2 + $0xd9] sm:$0xff]
      %v648 = vld [vmem:[#allocation2 + $0xe1] sm:$0xff]
      %v649 = vld [vmem:[#allocation2 + $0xf1] sm:$0xff]
      %v650 = vld [vmem:[#allocation2 + $0xf9] sm:$0xff]
      %v651 = vld [vmem:[#allocation2 + $0x109] sm:$0xff]
      %v652 = vld [vmem:[#allocation2 + $0x111] sm:$0xff]
      %v653 = vld [vmem:[#allocation2 + $0x121] sm:$0xff]
      %v654 = vld [vmem:[#allocation2 + $0x129] sm:$0xff]
      %v655 = vld [vmem:[#allocation2 + $0x139] sm:$0xff]
      %v656 = vld [vmem:[#allocation2 + $0x141] sm:$0xff]
      %v657 = vld [vmem:[#allocation2 + $0x151] sm:$0xff]
      %v658 = vld [vmem:[#allocation2 + $0x159] sm:$0xff]
      %v659 = vld [vmem:[#allocation2 + $0x169] sm:$0xff]
      %v660 = vld [vmem:[#allocation2 + $0x171] sm:$0xff]
      %693 = vrot.lane.b32.xlu0 %v629, 1
      %v694 = vpop.permute.xlu0 %693
      %695 = vrot.lane.b32.xlu0 %v630, 1
      %v696 = vpop.permute.xlu0 %695
      %697 = vrot.lane.b32.xlu0 %v631, 1
      %v698 = vpop.permute.xlu0 %697
      %699 = vrot.lane.b32.xlu0 %v632, 1
      %v700 = vpop.permute.xlu0 %699
      %701 = vrot.lane.b32.xlu0 %v633, 1
      %v702 = vpop.permute.xlu0 %701
      %703 = vrot.lane.b32.xlu0 %v634, 1
      %v704 = vpop.permute.xlu0 %703
      %705 = vrot.lane.b32.xlu0 %v635, 1
      %v706 = vpop.permute.xlu0 %705
      %707 = vrot.lane.b32.xlu0 %v636, 1
      %v708 = vpop.permute.xlu0 %707
      %709 = vrot.lane.b32.xlu0 %v637, 1
      %v710 = vpop.permute.xlu0 %709
      %711 = vrot.lane.b32.xlu0 %v638, 1
      %v712 = vpop.permute.xlu0 %711
      %713 = vrot.lane.b32.xlu0 %v639, 1
      %v714 = vpop.permute.xlu0 %713
      %715 = vrot.lane.b32.xlu0 %v640, 1
      %v716 = vpop.permute.xlu0 %715
      %717 = vrot.lane.b32.xlu0 %v641, 1
      %v718 = vpop.permute.xlu0 %717
      %719 = vrot.lane.b32.xlu0 %v642, 1
      %v720 = vpop.permute.xlu0 %719
      %721 = vrot.lane.b32.xlu0 %v643, 1
      %v722 = vpop.permute.xlu0 %721
      %723 = vrot.lane.b32.xlu0 %v644, 1
      %v724 = vpop.permute.xlu0 %723
      %725 = vrot.lane.b32.xlu0 %v645, 1
      %v726 = vpop.permute.xlu0 %725
      %727 = vrot.lane.b32.xlu0 %v646, 1
      %v728 = vpop.permute.xlu0 %727
      %729 = vrot.lane.b32.xlu0 %v647, 1
      %v730 = vpop.permute.xlu0 %729
      %731 = vrot.lane.b32.xlu0 %v648, 1
      %v732 = vpop.permute.xlu0 %731
      %733 = vrot.lane.b32.xlu0 %v649, 1
      %v734 = vpop.permute.xlu0 %733
      %735 = vrot.lane.b32.xlu0 %v650, 1
      %v736 = vpop.permute.xlu0 %735
      %737 = vrot.lane.b32.xlu0 %v651, 1
      %v738 = vpop.permute.xlu0 %737
      %739 = vrot.lane.b32.xlu0 %v652, 1
      %v740 = vpop.permute.xlu0 %739
      %741 = vrot.lane.b32.xlu0 %v653, 1
      %v742 = vpop.permute.xlu0 %741
      %743 = vrot.lane.b32.xlu0 %v654, 1
      %v744 = vpop.permute.xlu0 %743
      %745 = vrot.lane.b32.xlu0 %v655, 1
      %v746 = vpop.permute.xlu0 %745
      %747 = vrot.lane.b32.xlu0 %v656, 1
      %v748 = vpop.permute.xlu0 %747
      %749 = vrot.lane.b32.xlu0 %v657, 1
      %v750 = vpop.permute.xlu0 %749
      %751 = vrot.lane.b32.xlu0 %v658, 1
      %v752 = vpop.permute.xlu0 %751
      %753 = vrot.lane.b32.xlu0 %v659, 1
      %v754 = vpop.permute.xlu0 %753
      %755 = vrot.lane.b32.xlu0 %v660, 1
      %v756 = vpop.permute.xlu0 %755
      %vm789 = vcmask 15368
      %790 = vst.msk [vmem:[#allocation6] sm:$0xff] %vm789, %v694
      %791 = vst.msk [vmem:[#allocation6 + $0x18] sm:$0xff] %vm789, %v696
      %792 = vst.msk [vmem:[#allocation6 + $0x30] sm:$0xff] %vm789, %v698
      %793 = vst.msk [vmem:[#allocation6 + $0x48] sm:$0xff] %vm789, %v700
      %794 = vst.msk [vmem:[#allocation6 + $0x60] sm:$0xff] %vm789, %v702
      %795 = vst.msk [vmem:[#allocation6 + $0x78] sm:$0xff] %vm789, %v704
      %796 = vst.msk [vmem:[#allocation6 + $0x90] sm:$0xff] %vm789, %v706
      %797 = vst.msk [vmem:[#allocation6 + $0xa8] sm:$0xff] %vm789, %v708
      %798 = vst.msk [vmem:[#allocation6 + $0xc0] sm:$0xff] %vm789, %v710
      %799 = vst.msk [vmem:[#allocation6 + $0xd8] sm:$0xff] %vm789, %v712
      %800 = vst.msk [vmem:[#allocation6 + $0xf0] sm:$0xff] %vm789, %v714
      %801 = vst.msk [vmem:[#allocation6 + $0x108] sm:$0xff] %vm789, %v716
      %802 = vst.msk [vmem:[#allocation6 + $0x120] sm:$0xff] %vm789, %v718
      %803 = vst.msk [vmem:[#allocation6 + $0x138] sm:$0xff] %vm789, %v720
      %804 = vst.msk [vmem:[#allocation6 + $0x150] sm:$0xff] %vm789, %v722
      %805 = vst.msk [vmem:[#allocation6 + $0x168] sm:$0xff] %vm789, %v724
      %806 = vst.msk [vmem:[#allocation6 + $0x180] sm:$0xff] %vm789, %v726
      %807 = vst.msk [vmem:[#allocation6 + $0x198] sm:$0xff] %vm789, %v728
      %808 = vst.msk [vmem:[#allocation6 + $0x1b0] sm:$0xff] %vm789, %v730
      %809 = vst.msk [vmem:[#allocation6 + $0x1c8] sm:$0xff] %vm789, %v732
      %810 = vst.msk [vmem:[#allocation6 + $0x1e0] sm:$0xff] %vm789, %v734
      %811 = vst.msk [vmem:[#allocation6 + $0x1f8] sm:$0xff] %vm789, %v736
      %812 = vst.msk [vmem:[#allocation6 + $0x210] sm:$0xff] %vm789, %v738
      %813 = vst.msk [vmem:[#allocation6 + $0x228] sm:$0xff] %vm789, %v740
      %814 = vst.msk [vmem:[#allocation6 + $0x240] sm:$0xff] %vm789, %v742
      %815 = vst.msk [vmem:[#allocation6 + $0x258] sm:$0xff] %vm789, %v744
      %816 = vst.msk [vmem:[#allocation6 + $0x270] sm:$0xff] %vm789, %v746
      %817 = vst.msk [vmem:[#allocation6 + $0x288] sm:$0xff] %vm789, %v748
      %818 = vst.msk [vmem:[#allocation6 + $0x2a0] sm:$0xff] %vm789, %v750
      %819 = vst.msk [vmem:[#allocation6 + $0x2b8] sm:$0xff] %vm789, %v752
      %820 = vst.msk [vmem:[#allocation6 + $0x2d0] sm:$0xff] %vm789, %v754
      %821 = vst.msk [vmem:[#allocation6 + $0x2e8] sm:$0xff] %vm789, %v756
      %v822 = vld [vmem:[#allocation2 + $0x2] sm:$0xff]
      %v823 = vld [vmem:[#allocation2 + $0xa] sm:$0xff]
      %v824 = vld [vmem:[#allocation2 + $0x1a] sm:$0xff]
      %v825 = vld [vmem:[#allocation2 + $0x22] sm:$0xff]
      %v826 = vld [vmem:[#allocation2 + $0x32] sm:$0xff]
      %v827 = vld [vmem:[#allocation2 + $0x3a] sm:$0xff]
      %v828 = vld [vmem:[#allocation2 + $0x4a] sm:$0xff]
      %v829 = vld [vmem:[#allocation2 + $0x52] sm:$0xff]
      %v830 = vld [vmem:[#allocation2 + $0x62] sm:$0xff]
      %v831 = vld [vmem:[#allocation2 + $0x6a] sm:$0xff]
      %v832 = vld [vmem:[#allocation2 + $0x7a] sm:$0xff]
      %v833 = vld [vmem:[#allocation2 + $0x82] sm:$0xff]
      %v834 = vld [vmem:[#allocation2 + $0x92] sm:$0xff]
      %v835 = vld [vmem:[#allocation2 + $0x9a] sm:$0xff]
      %v836 = vld [vmem:[#allocation2 + $0xaa] sm:$0xff]
      %v837 = vld [vmem:[#allocation2 + $0xb2] sm:$0xff]
      %v838 = vld [vmem:[#allocation2 + $0xc2] sm:$0xff]
      %v839 = vld [vmem:[#allocation2 + $0xca] sm:$0xff]
      %v840 = vld [vmem:[#allocation2 + $0xda] sm:$0xff]
      %v841 = vld [vmem:[#allocation2 + $0xe2] sm:$0xff]
      %v842 = vld [vmem:[#allocation2 + $0xf2] sm:$0xff]
      %v843 = vld [vmem:[#allocation2 + $0xfa] sm:$0xff]
      %v844 = vld [vmem:[#allocation2 + $0x10a] sm:$0xff]
      %v845 = vld [vmem:[#allocation2 + $0x112] sm:$0xff]
      %v846 = vld [vmem:[#allocation2 + $0x122] sm:$0xff]
      %v847 = vld [vmem:[#allocation2 + $0x12a] sm:$0xff]
      %v848 = vld [vmem:[#allocation2 + $0x13a] sm:$0xff]
      %v849 = vld [vmem:[#allocation2 + $0x142] sm:$0xff]
      %v850 = vld [vmem:[#allocation2 + $0x152] sm:$0xff]
      %v851 = vld [vmem:[#allocation2 + $0x15a] sm:$0xff]
      %v852 = vld [vmem:[#allocation2 + $0x16a] sm:$0xff]
      %v853 = vld [vmem:[#allocation2 + $0x172] sm:$0xff]
      %886 = vrot.lane.b32.xlu0 %v822, 2
      %v887 = vpop.permute.xlu0 %886
      %888 = vrot.lane.b32.xlu0 %v823, 2
      %v889 = vpop.permute.xlu0 %888
      %890 = vrot.lane.b32.xlu0 %v824, 2
      %v891 = vpop.permute.xlu0 %890
      %892 = vrot.lane.b32.xlu0 %v825, 2
      %v893 = vpop.permute.xlu0 %892
      %894 = vrot.lane.b32.xlu0 %v826, 2
      %v895 = vpop.permute.xlu0 %894
      %896 = vrot.lane.b32.xlu0 %v827, 2
      %v897 = vpop.permute.xlu0 %896
      %898 = vrot.lane.b32.xlu0 %v828, 2
      %v899 = vpop.permute.xlu0 %898
      %900 = vrot.lane.b32.xlu0 %v829, 2
      %v901 = vpop.permute.xlu0 %900
      %902 = vrot.lane.b32.xlu0 %v830, 2
      %v903 = vpop.permute.xlu0 %902
      %904 = vrot.lane.b32.xlu0 %v831, 2
      %v905 = vpop.permute.xlu0 %904
      %906 = vrot.lane.b32.xlu0 %v832, 2
      %v907 = vpop.permute.xlu0 %906
      %908 = vrot.lane.b32.xlu0 %v833, 2
      %v909 = vpop.permute.xlu0 %908
      %910 = vrot.lane.b32.xlu0 %v834, 2
      %v911 = vpop.permute.xlu0 %910
      %912 = vrot.lane.b32.xlu0 %v835, 2
      %v913 = vpop.permute.xlu0 %912
      %914 = vrot.lane.b32.xlu0 %v836, 2
      %v915 = vpop.permute.xlu0 %914
      %916 = vrot.lane.b32.xlu0 %v837, 2
      %v917 = vpop.permute.xlu0 %916
      %918 = vrot.lane.b32.xlu0 %v838, 2
      %v919 = vpop.permute.xlu0 %918
      %920 = vrot.lane.b32.xlu0 %v839, 2
      %v921 = vpop.permute.xlu0 %920
      %922 = vrot.lane.b32.xlu0 %v840, 2
      %v923 = vpop.permute.xlu0 %922
      %924 = vrot.lane.b32.xlu0 %v841, 2
      %v925 = vpop.permute.xlu0 %924
      %926 = vrot.lane.b32.xlu0 %v842, 2
      %v927 = vpop.permute.xlu0 %926
      %928 = vrot.lane.b32.xlu0 %v843, 2
      %v929 = vpop.permute.xlu0 %928
      %930 = vrot.lane.b32.xlu0 %v844, 2
      %v931 = vpop.permute.xlu0 %930
      %932 = vrot.lane.b32.xlu0 %v845, 2
      %v933 = vpop.permute.xlu0 %932
      %934 = vrot.lane.b32.xlu0 %v846, 2
      %v935 = vpop.permute.xlu0 %934
      %936 = vrot.lane.b32.xlu0 %v847, 2
      %v937 = vpop.permute.xlu0 %936
      %938 = vrot.lane.b32.xlu0 %v848, 2
      %v939 = vpop.permute.xlu0 %938
      %940 = vrot.lane.b32.xlu0 %v849, 2
      %v941 = vpop.permute.xlu0 %940
      %942 = vrot.lane.b32.xlu0 %v850, 2
      %v943 = vpop.permute.xlu0 %942
      %944 = vrot.lane.b32.xlu0 %v851, 2
      %v945 = vpop.permute.xlu0 %944
      %946 = vrot.lane.b32.xlu0 %v852, 2
      %v947 = vpop.permute.xlu0 %946
      %948 = vrot.lane.b32.xlu0 %v853, 2
      %v949 = vpop.permute.xlu0 %948
      %vm982 = vcmask 23568
      %983 = vst.msk [vmem:[#allocation6] sm:$0xff] %vm982, %v887
      %984 = vst.msk [vmem:[#allocation6 + $0x18] sm:$0xff] %vm982, %v889
      %985 = vst.msk [vmem:[#allocation6 + $0x30] sm:$0xff] %vm982, %v891
      %986 = vst.msk [vmem:[#allocation6 + $0x48] sm:$0xff] %vm982, %v893
      %987 = vst.msk [vmem:[#allocation6 + $0x60] sm:$0xff] %vm982, %v895
      %988 = vst.msk [vmem:[#allocation6 + $0x78] sm:$0xff] %vm982, %v897
      %989 = vst.msk [vmem:[#allocation6 + $0x90] sm:$0xff] %vm982, %v899
      %990 = vst.msk [vmem:[#allocation6 + $0xa8] sm:$0xff] %vm982, %v901
      %991 = vst.msk [vmem:[#allocation6 + $0xc0] sm:$0xff] %vm982, %v903
      %992 = vst.msk [vmem:[#allocation6 + $0xd8] sm:$0xff] %vm982, %v905
      %993 = vst.msk [vmem:[#allocation6 + $0xf0] sm:$0xff] %vm982, %v907
      %994 = vst.msk [vmem:[#allocation6 + $0x108] sm:$0xff] %vm982, %v909
      %995 = vst.msk [vmem:[#allocation6 + $0x120] sm:$0xff] %vm982, %v911
      %996 = vst.msk [vmem:[#allocation6 + $0x138] sm:$0xff] %vm982, %v913
      %997 = vst.msk [vmem:[#allocation6 + $0x150] sm:$0xff] %vm982, %v915
      %998 = vst.msk [vmem:[#allocation6 + $0x168] sm:$0xff] %vm982, %v917
      %999 = vst.msk [vmem:[#allocation6 + $0x180] sm:$0xff] %vm982, %v919
      %1000 = vst.msk [vmem:[#allocation6 + $0x198] sm:$0xff] %vm982, %v921
      %1001 = vst.msk [vmem:[#allocation6 + $0x1b0] sm:$0xff] %vm982, %v923
      %1002 = vst.msk [vmem:[#allocation6 + $0x1c8] sm:$0xff] %vm982, %v925
      %1003 = vst.msk [vmem:[#allocation6 + $0x1e0] sm:$0xff] %vm982, %v927
      %1004 = vst.msk [vmem:[#allocation6 + $0x1f8] sm:$0xff] %vm982, %v929
      %1005 = vst.msk [vmem:[#allocation6 + $0x210] sm:$0xff] %vm982, %v931
      %1006 = vst.msk [vmem:[#allocation6 + $0x228] sm:$0xff] %vm982, %v933
      %1007 = vst.msk [vmem:[#allocation6 + $0x240] sm:$0xff] %vm982, %v935
      %1008 = vst.msk [vmem:[#allocation6 + $0x258] sm:$0xff] %vm982, %v937
      %1009 = vst.msk [vmem:[#allocation6 + $0x270] sm:$0xff] %vm982, %v939
      %1010 = vst.msk [vmem:[#allocation6 + $0x288] sm:$0xff] %vm982, %v941
      %1011 = vst.msk [vmem:[#allocation6 + $0x2a0] sm:$0xff] %vm982, %v943
      %1012 = vst.msk [vmem:[#allocation6 + $0x2b8] sm:$0xff] %vm982, %v945
      %1013 = vst.msk [vmem:[#allocation6 + $0x2d0] sm:$0xff] %vm982, %v947
      %1014 = vst.msk [vmem:[#allocation6 + $0x2e8] sm:$0xff] %vm982, %v949
      %v1015 = vld [vmem:[%s532] sm:$0xff]
      %v1016 = vld [vmem:[%s532 + $0x8] sm:$0xff]
      %v1017 = vld [vmem:[%s532 + $0x18] sm:$0xff]
      %v1018 = vld [vmem:[%s532 + $0x20] sm:$0xff]
      %v1019 = vld [vmem:[%s532 + $0x30] sm:$0xff]
      %v1020 = vld [vmem:[%s532 + $0x38] sm:$0xff]
      %v1021 = vld [vmem:[%s532 + $0x48] sm:$0xff]
      %v1022 = vld [vmem:[%s532 + $0x50] sm:$0xff]
      %v1023 = vld [vmem:[%s532 + $0x60] sm:$0xff]
      %v1024 = vld [vmem:[%s532 + $0x68] sm:$0xff]
      %v1025 = vld [vmem:[%s532 + $0x78] sm:$0xff]
      %v1026 = vld [vmem:[%s532 + $0x80] sm:$0xff]
      %v1027 = vld [vmem:[%s532 + $0x90] sm:$0xff]
      %v1028 = vld [vmem:[%s532 + $0x98] sm:$0xff]
      %v1029 = vld [vmem:[%s532 + $0xa8] sm:$0xff]
      %v1030 = vld [vmem:[%s532 + $0xb0] sm:$0xff]
      %v1031 = vld [vmem:[%s532 + $0xc0] sm:$0xff]
      %v1032 = vld [vmem:[%s532 + $0xc8] sm:$0xff]
      %v1033 = vld [vmem:[%s532 + $0xd8] sm:$0xff]
      %v1034 = vld [vmem:[%s532 + $0xe0] sm:$0xff]
      %v1035 = vld [vmem:[%s532 + $0xf0] sm:$0xff]
      %v1036 = vld [vmem:[%s532 + $0xf8] sm:$0xff]
      %v1037 = vld [vmem:[%s532 + $0x108] sm:$0xff]
      %v1038 = vld [vmem:[%s532 + $0x110] sm:$0xff]
      %v1039 = vld [vmem:[%s532 + $0x120] sm:$0xff]
      %v1040 = vld [vmem:[%s532 + $0x128] sm:$0xff]
      %v1041 = vld [vmem:[%s532 + $0x138] sm:$0xff]
      %v1042 = vld [vmem:[%s532 + $0x140] sm:$0xff]
      %v1043 = vld [vmem:[%s532 + $0x150] sm:$0xff]
      %v1044 = vld [vmem:[%s532 + $0x158] sm:$0xff]
      %v1045 = vld [vmem:[%s532 + $0x168] sm:$0xff]
      %v1046 = vld [vmem:[%s532 + $0x170] sm:$0xff]
      %1079 = vrot.lane.b32.xlu0 %v1015, 3
      %v1080 = vpop.permute.xlu0 %1079
      %1081 = vrot.lane.b32.xlu0 %v1016, 3
      %v1082 = vpop.permute.xlu0 %1081
      %1083 = vrot.lane.b32.xlu0 %v1017, 3
      %v1084 = vpop.permute.xlu0 %1083
      %1085 = vrot.lane.b32.xlu0 %v1018, 3
      %v1086 = vpop.permute.xlu0 %1085
      %1087 = vrot.lane.b32.xlu0 %v1019, 3
      %v1088 = vpop.permute.xlu0 %1087
      %1089 = vrot.lane.b32.xlu0 %v1020, 3
      %v1090 = vpop.permute.xlu0 %1089
      %1091 = vrot.lane.b32.xlu0 %v1021, 3
      %v1092 = vpop.permute.xlu0 %1091
      %1093 = vrot.lane.b32.xlu0 %v1022, 3
      %v1094 = vpop.permute.xlu0 %1093
      %1095 = vrot.lane.b32.xlu0 %v1023, 3
      %v1096 = vpop.permute.xlu0 %1095
      %1097 = vrot.lane.b32.xlu0 %v1024, 3
      %v1098 = vpop.permute.xlu0 %1097
      %1099 = vrot.lane.b32.xlu0 %v1025, 3
      %v1100 = vpop.permute.xlu0 %1099
      %1101 = vrot.lane.b32.xlu0 %v1026, 3
      %v1102 = vpop.permute.xlu0 %1101
      %1103 = vrot.lane.b32.xlu0 %v1027, 3
      %v1104 = vpop.permute.xlu0 %1103
      %1105 = vrot.lane.b32.xlu0 %v1028, 3
      %v1106 = vpop.permute.xlu0 %1105
      %1107 = vrot.lane.b32.xlu0 %v1029, 3
      %v1108 = vpop.permute.xlu0 %1107
      %1109 = vrot.lane.b32.xlu0 %v1030, 3
      %v1110 = vpop.permute.xlu0 %1109
      %1111 = vrot.lane.b32.xlu0 %v1031, 3
      %v1112 = vpop.permute.xlu0 %1111
      %1113 = vrot.lane.b32.xlu0 %v1032, 3
      %v1114 = vpop.permute.xlu0 %1113
      %1115 = vrot.lane.b32.xlu0 %v1033, 3
      %v1116 = vpop.permute.xlu0 %1115
      %1117 = vrot.lane.b32.xlu0 %v1034, 3
      %v1118 = vpop.permute.xlu0 %1117
      %1119 = vrot.lane.b32.xlu0 %v1035, 3
      %v1120 = vpop.permute.xlu0 %1119
      %1121 = vrot.lane.b32.xlu0 %v1036, 3
      %v1122 = vpop.permute.xlu0 %1121
      %1123 = vrot.lane.b32.xlu0 %v1037, 3
      %v1124 = vpop.permute.xlu0 %1123
      %1125 = vrot.lane.b32.xlu0 %v1038, 3
      %v1126 = vpop.permute.xlu0 %1125
      %1127 = vrot.lane.b32.xlu0 %v1039, 3
      %v1128 = vpop.permute.xlu0 %1127
      %1129 = vrot.lane.b32.xlu0 %v1040, 3
      %v1130 = vpop.permute.xlu0 %1129
      %1131 = vrot.lane.b32.xlu0 %v1041, 3
      %v1132 = vpop.permute.xlu0 %1131
      %1133 = vrot.lane.b32.xlu0 %v1042, 3
      %v1134 = vpop.permute.xlu0 %1133
      %1135 = vrot.lane.b32.xlu0 %v1043, 3
      %v1136 = vpop.permute.xlu0 %1135
      %1137 = vrot.lane.b32.xlu0 %v1044, 3
      %v1138 = vpop.permute.xlu0 %1137
      %1139 = vrot.lane.b32.xlu0 %v1045, 3
      %v1140 = vpop.permute.xlu0 %1139
      %1141 = vrot.lane.b32.xlu0 %v1046, 3
      %v1142 = vpop.permute.xlu0 %1141
      %vm1175 = vcmask 31768
      %1176 = vst.msk [vmem:[#allocation6] sm:$0xff] %vm1175, %v1080
      %1177 = vst.msk [vmem:[#allocation6 + $0x18] sm:$0xff] %vm1175, %v1082
      %1178 = vst.msk [vmem:[#allocation6 + $0x30] sm:$0xff] %vm1175, %v1084
      %1179 = vst.msk [vmem:[#allocation6 + $0x48] sm:$0xff] %vm1175, %v1086
      %1180 = vst.msk [vmem:[#allocation6 + $0x60] sm:$0xff] %vm1175, %v1088
      %1181 = vst.msk [vmem:[#allocation6 + $0x78] sm:$0xff] %vm1175, %v1090
      %1182 = vst.msk [vmem:[#allocation6 + $0x90] sm:$0xff] %vm1175, %v1092
      %1183 = vst.msk [vmem:[#allocation6 + $0xa8] sm:$0xff] %vm1175, %v1094
      %1184 = vst.msk [vmem:[#allocation6 + $0xc0] sm:$0xff] %vm1175, %v1096
      %1185 = vst.msk [vmem:[#allocation6 + $0xd8] sm:$0xff] %vm1175, %v1098
      %1186 = vst.msk [vmem:[#allocation6 + $0xf0] sm:$0xff] %vm1175, %v1100
      %1187 = vst.msk [vmem:[#allocation6 + $0x108] sm:$0xff] %vm1175, %v1102
      %1188 = vst.msk [vmem:[#allocation6 + $0x120] sm:$0xff] %vm1175, %v1104
      %1189 = vst.msk [vmem:[#allocation6 + $0x138] sm:$0xff] %vm1175, %v1106
      %1190 = vst.msk [vmem:[#allocation6 + $0x150] sm:$0xff] %vm1175, %v1108
      %1191 = vst.msk [vmem:[#allocation6 + $0x168] sm:$0xff] %vm1175, %v1110
      %1192 = vst.msk [vmem:[#allocation6 + $0x180] sm:$0xff] %vm1175, %v1112
      %1193 = vst.msk [vmem:[#allocation6 + $0x198] sm:$0xff] %vm1175, %v1114
      %1194 = vst.msk [vmem:[#allocation6 + $0x1b0] sm:$0xff] %vm1175, %v1116
      %1195 = vst.msk [vmem:[#allocation6 + $0x1c8] sm:$0xff] %vm1175, %v1118
      %1196 = vst.msk [vmem:[#allocation6 + $0x1e0] sm:$0xff] %vm1175, %v1120
      %1197 = vst.msk [vmem:[#allocation6 + $0x1f8] sm:$0xff] %vm1175, %v1122
      %1198 = vst.msk [vmem:[#allocation6 + $0x210] sm:$0xff] %vm1175, %v1124
      %1199 = vst.msk [vmem:[#allocation6 + $0x228] sm:$0xff] %vm1175, %v1126
      %1200 = vst.msk [vmem:[#allocation6 + $0x240] sm:$0xff] %vm1175, %v1128
      %1201 = vst.msk [vmem:[#allocation6 + $0x258] sm:$0xff] %vm1175, %v1130
      %1202 = vst.msk [vmem:[#allocation6 + $0x270] sm:$0xff] %vm1175, %v1132
      %1203 = vst.msk [vmem:[#allocation6 + $0x288] sm:$0xff] %vm1175, %v1134
      %1204 = vst.msk [vmem:[#allocation6 + $0x2a0] sm:$0xff] %vm1175, %v1136
      %1205 = vst.msk [vmem:[#allocation6 + $0x2b8] sm:$0xff] %vm1175, %v1138
      %1206 = vst.msk [vmem:[#allocation6 + $0x2d0] sm:$0xff] %vm1175, %v1140
      %1207 = vst.msk [vmem:[#allocation6 + $0x2e8] sm:$0xff] %vm1175, %v1142
      %v1208 = vld [vmem:[%s532 + $0x1] sm:$0xff]
      %v1209 = vld [vmem:[%s532 + $0x9] sm:$0xff]
      %v1210 = vld [vmem:[%s532 + $0x19] sm:$0xff]
      %v1211 = vld [vmem:[%s532 + $0x21] sm:$0xff]
      %v1212 = vld [vmem:[%s532 + $0x31] sm:$0xff]
      %v1213 = vld [vmem:[%s532 + $0x39] sm:$0xff]
      %v1214 = vld [vmem:[%s532 + $0x49] sm:$0xff]
      %v1215 = vld [vmem:[%s532 + $0x51] sm:$0xff]
      %v1216 = vld [vmem:[%s532 + $0x61] sm:$0xff]
      %v1217 = vld [vmem:[%s532 + $0x69] sm:$0xff]
      %v1218 = vld [vmem:[%s532 + $0x79] sm:$0xff]
      %v1219 = vld [vmem:[%s532 + $0x81] sm:$0xff]
      %v1220 = vld [vmem:[%s532 + $0x91] sm:$0xff]
      %v1221 = vld [vmem:[%s532 + $0x99] sm:$0xff]
      %v1222 = vld [vmem:[%s532 + $0xa9] sm:$0xff]
      %v1223 = vld [vmem:[%s532 + $0xb1] sm:$0xff]
      %v1224 = vld [vmem:[%s532 + $0xc1] sm:$0xff]
      %v1225 = vld [vmem:[%s532 + $0xc9] sm:$0xff]
      %v1226 = vld [vmem:[%s532 + $0xd9] sm:$0xff]
      %v1227 = vld [vmem:[%s532 + $0xe1] sm:$0xff]
      %v1228 = vld [vmem:[%s532 + $0xf1] sm:$0xff]
      %v1229 = vld [vmem:[%s532 + $0xf9] sm:$0xff]
      %v1230 = vld [vmem:[%s532 + $0x109] sm:$0xff]
      %v1231 = vld [vmem:[%s532 + $0x111] sm:$0xff]
      %v1232 = vld [vmem:[%s532 + $0x121] sm:$0xff]
      %v1233 = vld [vmem:[%s532 + $0x129] sm:$0xff]
      %v1234 = vld [vmem:[%s532 + $0x139] sm:$0xff]
      %v1235 = vld [vmem:[%s532 + $0x141] sm:$0xff]
      %v1236 = vld [vmem:[%s532 + $0x151] sm:$0xff]
      %v1237 = vld [vmem:[%s532 + $0x159] sm:$0xff]
      %v1238 = vld [vmem:[%s532 + $0x169] sm:$0xff]
      %v1239 = vld [vmem:[%s532 + $0x171] sm:$0xff]
      %1272 = vrot.lane.b32.xlu0 %v1208, 4
      %v1273 = vpop.permute.xlu0 %1272
      %1274 = vrot.lane.b32.xlu0 %v1209, 4
      %v1275 = vpop.permute.xlu0 %1274
      %1276 = vrot.lane.b32.xlu0 %v1210, 4
      %v1277 = vpop.permute.xlu0 %1276
      %1278 = vrot.lane.b32.xlu0 %v1211, 4
      %v1279 = vpop.permute.xlu0 %1278
      %1280 = vrot.lane.b32.xlu0 %v1212, 4
      %v1281 = vpop.permute.xlu0 %1280
      %1282 = vrot.lane.b32.xlu0 %v1213, 4
      %v1283 = vpop.permute.xlu0 %1282
      %1284 = vrot.lane.b32.xlu0 %v1214, 4
      %v1285 = vpop.permute.xlu0 %1284
      %1286 = vrot.lane.b32.xlu0 %v1215, 4
      %v1287 = vpop.permute.xlu0 %1286
      %1288 = vrot.lane.b32.xlu0 %v1216, 4
      %v1289 = vpop.permute.xlu0 %1288
      %1290 = vrot.lane.b32.xlu0 %v1217, 4
      %v1291 = vpop.permute.xlu0 %1290
      %1292 = vrot.lane.b32.xlu0 %v1218, 4
      %v1293 = vpop.permute.xlu0 %1292
      %1294 = vrot.lane.b32.xlu0 %v1219, 4
      %v1295 = vpop.permute.xlu0 %1294
      %1296 = vrot.lane.b32.xlu0 %v1220, 4
      %v1297 = vpop.permute.xlu0 %1296
      %1298 = vrot.lane.b32.xlu0 %v1221, 4
      %v1299 = vpop.permute.xlu0 %1298
      %1300 = vrot.lane.b32.xlu0 %v1222, 4
      %v1301 = vpop.permute.xlu0 %1300
      %1302 = vrot.lane.b32.xlu0 %v1223, 4
      %v1303 = vpop.permute.xlu0 %1302
      %1304 = vrot.lane.b32.xlu0 %v1224, 4
      %v1305 = vpop.permute.xlu0 %1304
      %1306 = vrot.lane.b32.xlu0 %v1225, 4
      %v1307 = vpop.permute.xlu0 %1306
      %1308 = vrot.lane.b32.xlu0 %v1226, 4
      %v1309 = vpop.permute.xlu0 %1308
      %1310 = vrot.lane.b32.xlu0 %v1227, 4
      %v1311 = vpop.permute.xlu0 %1310
      %1312 = vrot.lane.b32.xlu0 %v1228, 4
      %v1313 = vpop.permute.xlu0 %1312
      %1314 = vrot.lane.b32.xlu0 %v1229, 4
      %v1315 = vpop.permute.xlu0 %1314
      %1316 = vrot.lane.b32.xlu0 %v1230, 4
      %v1317 = vpop.permute.xlu0 %1316
      %1318 = vrot.lane.b32.xlu0 %v1231, 4
      %v1319 = vpop.permute.xlu0 %1318
      %1320 = vrot.lane.b32.xlu0 %v1232, 4
      %v1321 = vpop.permute.xlu0 %1320
      %1322 = vrot.lane.b32.xlu0 %v1233, 4
      %v1323 = vpop.permute.xlu0 %1322
      %1324 = vrot.lane.b32.xlu0 %v1234, 4
      %v1325 = vpop.permute.xlu0 %1324
      %1326 = vrot.lane.b32.xlu0 %v1235, 4
      %v1327 = vpop.permute.xlu0 %1326
      %1328 = vrot.lane.b32.xlu0 %v1236, 4
      %v1329 = vpop.permute.xlu0 %1328
      %1330 = vrot.lane.b32.xlu0 %v1237, 4
      %v1331 = vpop.permute.xlu0 %1330
      %1332 = vrot.lane.b32.xlu0 %v1238, 4
      %v1333 = vpop.permute.xlu0 %1332
      %1334 = vrot.lane.b32.xlu0 %v1239, 4
      %v1335 = vpop.permute.xlu0 %1334
      %vm1368 = vcmask 39968
      %1369 = vst.msk [vmem:[#allocation6] sm:$0xff] %vm1368, %v1273
      %1370 = vst.msk [vmem:[#allocation6 + $0x18] sm:$0xff] %vm1368, %v1275
      %1371 = vst.msk [vmem:[#allocation6 + $0x30] sm:$0xff] %vm1368, %v1277
      %1372 = vst.msk [vmem:[#allocation6 + $0x48] sm:$0xff] %vm1368, %v1279
      %1373 = vst.msk [vmem:[#allocation6 + $0x60] sm:$0xff] %vm1368, %v1281
      %1374 = vst.msk [vmem:[#allocation6 + $0x78] sm:$0xff] %vm1368, %v1283
      %1375 = vst.msk [vmem:[#allocation6 + $0x90] sm:$0xff] %vm1368, %v1285
      %1376 = vst.msk [vmem:[#allocation6 + $0xa8] sm:$0xff] %vm1368, %v1287
      %1377 = vst.msk [vmem:[#allocation6 + $0xc0] sm:$0xff] %vm1368, %v1289
      %1378 = vst.msk [vmem:[#allocation6 + $0xd8] sm:$0xff] %vm1368, %v1291
      %1379 = vst.msk [vmem:[#allocation6 + $0xf0] sm:$0xff] %vm1368, %v1293
      %1380 = vst.msk [vmem:[#allocation6 + $0x108] sm:$0xff] %vm1368, %v1295
      %1381 = vst.msk [vmem:[#allocation6 + $0x120] sm:$0xff] %vm1368, %v1297
      %1382 = vst.msk [vmem:[#allocation6 + $0x138] sm:$0xff] %vm1368, %v1299
      %1383 = vst.msk [vmem:[#allocation6 + $0x150] sm:$0xff] %vm1368, %v1301
      %1384 = vst.msk [vmem:[#allocation6 + $0x168] sm:$0xff] %vm1368, %v1303
      %1385 = vst.msk [vmem:[#allocation6 + $0x180] sm:$0xff] %vm1368, %v1305
      %1386 = vst.msk [vmem:[#allocation6 + $0x198] sm:$0xff] %vm1368, %v1307
      %1387 = vst.msk [vmem:[#allocation6 + $0x1b0] sm:$0xff] %vm1368, %v1309
      %1388 = vst.msk [vmem:[#allocation6 + $0x1c8] sm:$0xff] %vm1368, %v1311
      %1389 = vst.msk [vmem:[#allocation6 + $0x1e0] sm:$0xff] %vm1368, %v1313
      %1390 = vst.msk [vmem:[#allocation6 + $0x1f8] sm:$0xff] %vm1368, %v1315
      %1391 = vst.msk [vmem:[#allocation6 + $0x210] sm:$0xff] %vm1368, %v1317
      %1392 = vst.msk [vmem:[#allocation6 + $0x228] sm:$0xff] %vm1368, %v1319
      %1393 = vst.msk [vmem:[#allocation6 + $0x240] sm:$0xff] %vm1368, %v1321
      %1394 = vst.msk [vmem:[#allocation6 + $0x258] sm:$0xff] %vm1368, %v1323
      %1395 = vst.msk [vmem:[#allocation6 + $0x270] sm:$0xff] %vm1368, %v1325
      %1396 = vst.msk [vmem:[#allocation6 + $0x288] sm:$0xff] %vm1368, %v1327
      %1397 = vst.msk [vmem:[#allocation6 + $0x2a0] sm:$0xff] %vm1368, %v1329
      %1398 = vst.msk [vmem:[#allocation6 + $0x2b8] sm:$0xff] %vm1368, %v1331
      %1399 = vst.msk [vmem:[#allocation6 + $0x2d0] sm:$0xff] %vm1368, %v1333
      %1400 = vst.msk [vmem:[#allocation6 + $0x2e8] sm:$0xff] %vm1368, %v1335
      %v1401 = vld [vmem:[%s532 + $0x2] sm:$0xff]
      %v1402 = vld [vmem:[%s532 + $0xa] sm:$0xff]
      %v1403 = vld [vmem:[%s532 + $0x1a] sm:$0xff]
      %v1404 = vld [vmem:[%s532 + $0x22] sm:$0xff]
      %v1405 = vld [vmem:[%s532 + $0x32] sm:$0xff]
      %v1406 = vld [vmem:[%s532 + $0x3a] sm:$0xff]
      %v1407 = vld [vmem:[%s532 + $0x4a] sm:$0xff]
      %v1408 = vld [vmem:[%s532 + $0x52] sm:$0xff]
      %v1409 = vld [vmem:[%s532 + $0x62] sm:$0xff]
      %v1410 = vld [vmem:[%s532 + $0x6a] sm:$0xff]
      %v1411 = vld [vmem:[%s532 + $0x7a] sm:$0xff]
      %v1412 = vld [vmem:[%s532 + $0x82] sm:$0xff]
      %v1413 = vld [vmem:[%s532 + $0x92] sm:$0xff]
      %v1414 = vld [vmem:[%s532 + $0x9a] sm:$0xff]
      %v1415 = vld [vmem:[%s532 + $0xaa] sm:$0xff]
      %v1416 = vld [vmem:[%s532 + $0xb2] sm:$0xff]
      %v1417 = vld [vmem:[%s532 + $0xc2] sm:$0xff]
      %v1418 = vld [vmem:[%s532 + $0xca] sm:$0xff]
      %v1419 = vld [vmem:[%s532 + $0xda] sm:$0xff]
      %v1420 = vld [vmem:[%s532 + $0xe2] sm:$0xff]
      %v1421 = vld [vmem:[%s532 + $0xf2] sm:$0xff]
      %v1422 = vld [vmem:[%s532 + $0xfa] sm:$0xff]
      %v1423 = vld [vmem:[%s532 + $0x10a] sm:$0xff]
      %v1424 = vld [vmem:[%s532 + $0x112] sm:$0xff]
      %v1425 = vld [vmem:[%s532 + $0x122] sm:$0xff]
      %v1426 = vld [vmem:[%s532 + $0x12a] sm:$0xff]
      %v1427 = vld [vmem:[%s532 + $0x13a] sm:$0xff]
      %v1428 = vld [vmem:[%s532 + $0x142] sm:$0xff]
      %v1429 = vld [vmem:[%s532 + $0x152] sm:$0xff]
      %v1430 = vld [vmem:[%s532 + $0x15a] sm:$0xff]
      %v1431 = vld [vmem:[%s532 + $0x16a] sm:$0xff]
      %v1432 = vld [vmem:[%s532 + $0x172] sm:$0xff]
      %1465 = vrot.lane.b32.xlu0 %v1401, 5
      %v1466 = vpop.permute.xlu0 %1465
      %1467 = vrot.lane.b32.xlu0 %v1402, 5
      %v1468 = vpop.permute.xlu0 %1467
      %1469 = vrot.lane.b32.xlu0 %v1403, 5
      %v1470 = vpop.permute.xlu0 %1469
      %1471 = vrot.lane.b32.xlu0 %v1404, 5
      %v1472 = vpop.permute.xlu0 %1471
      %1473 = vrot.lane.b32.xlu0 %v1405, 5
      %v1474 = vpop.permute.xlu0 %1473
      %1475 = vrot.lane.b32.xlu0 %v1406, 5
      %v1476 = vpop.permute.xlu0 %1475
      %1477 = vrot.lane.b32.xlu0 %v1407, 5
      %v1478 = vpop.permute.xlu0 %1477
      %1479 = vrot.lane.b32.xlu0 %v1408, 5
      %v1480 = vpop.permute.xlu0 %1479
      %1481 = vrot.lane.b32.xlu0 %v1409, 5
      %v1482 = vpop.permute.xlu0 %1481
      %1483 = vrot.lane.b32.xlu0 %v1410, 5
      %v1484 = vpop.permute.xlu0 %1483
      %1485 = vrot.lane.b32.xlu0 %v1411, 5
      %v1486 = vpop.permute.xlu0 %1485
      %1487 = vrot.lane.b32.xlu0 %v1412, 5
      %v1488 = vpop.permute.xlu0 %1487
      %1489 = vrot.lane.b32.xlu0 %v1413, 5
      %v1490 = vpop.permute.xlu0 %1489
      %1491 = vrot.lane.b32.xlu0 %v1414, 5
      %v1492 = vpop.permute.xlu0 %1491
      %1493 = vrot.lane.b32.xlu0 %v1415, 5
      %v1494 = vpop.permute.xlu0 %1493
      %1495 = vrot.lane.b32.xlu0 %v1416, 5
      %v1496 = vpop.permute.xlu0 %1495
      %1497 = vrot.lane.b32.xlu0 %v1417, 5
      %v1498 = vpop.permute.xlu0 %1497
      %1499 = vrot.lane.b32.xlu0 %v1418, 5
      %v1500 = vpop.permute.xlu0 %1499
      %1501 = vrot.lane.b32.xlu0 %v1419, 5
      %v1502 = vpop.permute.xlu0 %1501
      %1503 = vrot.lane.b32.xlu0 %v1420, 5
      %v1504 = vpop.permute.xlu0 %1503
      %1505 = vrot.lane.b32.xlu0 %v1421, 5
      %v1506 = vpop.permute.xlu0 %1505
      %1507 = vrot.lane.b32.xlu0 %v1422, 5
      %v1508 = vpop.permute.xlu0 %1507
      %1509 = vrot.lane.b32.xlu0 %v1423, 5
      %v1510 = vpop.permute.xlu0 %1509
      %1511 = vrot.lane.b32.xlu0 %v1424, 5
      %v1512 = vpop.permute.xlu0 %1511
      %1513 = vrot.lane.b32.xlu0 %v1425, 5
      %v1514 = vpop.permute.xlu0 %1513
      %1515 = vrot.lane.b32.xlu0 %v1426, 5
      %v1516 = vpop.permute.xlu0 %1515
      %1517 = vrot.lane.b32.xlu0 %v1427, 5
      %v1518 = vpop.permute.xlu0 %1517
      %1519 = vrot.lane.b32.xlu0 %v1428, 5
      %v1520 = vpop.permute.xlu0 %1519
      %1521 = vrot.lane.b32.xlu0 %v1429, 5
      %v1522 = vpop.permute.xlu0 %1521
      %1523 = vrot.lane.b32.xlu0 %v1430, 5
      %v1524 = vpop.permute.xlu0 %1523
      %1525 = vrot.lane.b32.xlu0 %v1431, 5
      %v1526 = vpop.permute.xlu0 %1525
      %1527 = vrot.lane.b32.xlu0 %v1432, 5
      %v1528 = vpop.permute.xlu0 %1527
      %vm1561 = vcmask 48168
      %1562 = vst.msk [vmem:[#allocation6] sm:$0xff] %vm1561, %v1466
      %1563 = vst.msk [vmem:[#allocation6 + $0x18] sm:$0xff] %vm1561, %v1468
      %1564 = vst.msk [vmem:[#allocation6 + $0x30] sm:$0xff] %vm1561, %v1470
      %1565 = vst.msk [vmem:[#allocation6 + $0x48] sm:$0xff] %vm1561, %v1472
      %1566 = vst.msk [vmem:[#allocation6 + $0x60] sm:$0xff] %vm1561, %v1474
      %1567 = vst.msk [vmem:[#allocation6 + $0x78] sm:$0xff] %vm1561, %v1476
      %1568 = vst.msk [vmem:[#allocation6 + $0x90] sm:$0xff] %vm1561, %v1478
      %1569 = vst.msk [vmem:[#allocation6 + $0xa8] sm:$0xff] %vm1561, %v1480
      %1570 = vst.msk [vmem:[#allocation6 + $0xc0] sm:$0xff] %vm1561, %v1482
      %1571 = vst.msk [vmem:[#allocation6 + $0xd8] sm:$0xff] %vm1561, %v1484
      %1572 = vst.msk [vmem:[#allocation6 + $0xf0] sm:$0xff] %vm1561, %v1486
      %1573 = vst.msk [vmem:[#allocation6 + $0x108] sm:$0xff] %vm1561, %v1488
      %1574 = vst.msk [vmem:[#allocation6 + $0x120] sm:$0xff] %vm1561, %v1490
      %1575 = vst.msk [vmem:[#allocation6 + $0x138] sm:$0xff] %vm1561, %v1492
      %1576 = vst.msk [vmem:[#allocation6 + $0x150] sm:$0xff] %vm1561, %v1494
      %1577 = vst.msk [vmem:[#allocation6 + $0x168] sm:$0xff] %vm1561, %v1496
      %1578 = vst.msk [vmem:[#allocation6 + $0x180] sm:$0xff] %vm1561, %v1498
      %1579 = vst.msk [vmem:[#allocation6 + $0x198] sm:$0xff] %vm1561, %v1500
      %1580 = vst.msk [vmem:[#allocation6 + $0x1b0] sm:$0xff] %vm1561, %v1502
      %1581 = vst.msk [vmem:[#allocation6 + $0x1c8] sm:$0xff] %vm1561, %v1504
      %1582 = vst.msk [vmem:[#allocation6 + $0x1e0] sm:$0xff] %vm1561, %v1506
      %1583 = vst.msk [vmem:[#allocation6 + $0x1f8] sm:$0xff] %vm1561, %v1508
      %1584 = vst.msk [vmem:[#allocation6 + $0x210] sm:$0xff] %vm1561, %v1510
      %1585 = vst.msk [vmem:[#allocation6 + $0x228] sm:$0xff] %vm1561, %v1512
      %1586 = vst.msk [vmem:[#allocation6 + $0x240] sm:$0xff] %vm1561, %v1514
      %1587 = vst.msk [vmem:[#allocation6 + $0x258] sm:$0xff] %vm1561, %v1516
      %1588 = vst.msk [vmem:[#allocation6 + $0x270] sm:$0xff] %vm1561, %v1518
      %1589 = vst.msk [vmem:[#allocation6 + $0x288] sm:$0xff] %vm1561, %v1520
      %1590 = vst.msk [vmem:[#allocation6 + $0x2a0] sm:$0xff] %vm1561, %v1522
      %1591 = vst.msk [vmem:[#allocation6 + $0x2b8] sm:$0xff] %vm1561, %v1524
      %1592 = vst.msk [vmem:[#allocation6 + $0x2d0] sm:$0xff] %vm1561, %v1526
      %1593 = vst.msk [vmem:[#allocation6 + $0x2e8] sm:$0xff] %vm1561, %v1528
      %s1594 = scalar_lea.vmem [#allocation2], 48
      %v1595 = vld [vmem:[%s1594] sm:$0xff]
      %v1596 = vld [vmem:[%s1594 + $0x8] sm:$0xff]
      %v1597 = vld [vmem:[%s1594 + $0x18] sm:$0xff]
      %v1598 = vld [vmem:[%s1594 + $0x20] sm:$0xff]
      %v1599 = vld [vmem:[%s1594 + $0x30] sm:$0xff]
      %v1600 = vld [vmem:[%s1594 + $0x38] sm:$0xff]
      %v1601 = vld [vmem:[%s1594 + $0x48] sm:$0xff]
      %v1602 = vld [vmem:[%s1594 + $0x50] sm:$0xff]
      %v1603 = vld [vmem:[%s1594 + $0x60] sm:$0xff]
      %v1604 = vld [vmem:[%s1594 + $0x68] sm:$0xff]
      %v1605 = vld [vmem:[%s1594 + $0x78] sm:$0xff]
      %v1606 = vld [vmem:[%s1594 + $0x80] sm:$0xff]
      %v1607 = vld [vmem:[%s1594 + $0x90] sm:$0xff]
      %v1608 = vld [vmem:[%s1594 + $0x98] sm:$0xff]
      %v1609 = vld [vmem:[%s1594 + $0xa8] sm:$0xff]
      %v1610 = vld [vmem:[%s1594 + $0xb0] sm:$0xff]
      %v1611 = vld [vmem:[%s1594 + $0xc0] sm:$0xff]
      %v1612 = vld [vmem:[%s1594 + $0xc8] sm:$0xff]
      %v1613 = vld [vmem:[%s1594 + $0xd8] sm:$0xff]
      %v1614 = vld [vmem:[%s1594 + $0xe0] sm:$0xff]
      %v1615 = vld [vmem:[%s1594 + $0xf0] sm:$0xff]
      %v1616 = vld [vmem:[%s1594 + $0xf8] sm:$0xff]
      %v1617 = vld [vmem:[%s1594 + $0x108] sm:$0xff]
      %v1618 = vld [vmem:[%s1594 + $0x110] sm:$0xff]
      %v1619 = vld [vmem:[%s1594 + $0x120] sm:$0xff]
      %v1620 = vld [vmem:[%s1594 + $0x128] sm:$0xff]
      %v1621 = vld [vmem:[%s1594 + $0x138] sm:$0xff]
      %v1622 = vld [vmem:[%s1594 + $0x140] sm:$0xff]
      %v1623 = vld [vmem:[%s1594 + $0x150] sm:$0xff]
      %v1624 = vld [vmem:[%s1594 + $0x158] sm:$0xff]
      %v1625 = vld [vmem:[%s1594 + $0x168] sm:$0xff]
      %v1626 = vld [vmem:[%s1594 + $0x170] sm:$0xff]
      %1659 = vrot.lane.b32.xlu0 %v1595, 6
      %v1660 = vpop.permute.xlu0 %1659
      %1661 = vrot.lane.b32.xlu0 %v1596, 6
      %v1662 = vpop.permute.xlu0 %1661
      %1663 = vrot.lane.b32.xlu0 %v1597, 6
      %v1664 = vpop.permute.xlu0 %1663
      %1665 = vrot.lane.b32.xlu0 %v1598, 6
      %v1666 = vpop.permute.xlu0 %1665
      %1667 = vrot.lane.b32.xlu0 %v1599, 6
      %v1668 = vpop.permute.xlu0 %1667
      %1669 = vrot.lane.b32.xlu0 %v1600, 6
      %v1670 = vpop.permute.xlu0 %1669
      %1671 = vrot.lane.b32.xlu0 %v1601, 6
      %v1672 = vpop.permute.xlu0 %1671
      %1673 = vrot.lane.b32.xlu0 %v1602, 6
      %v1674 = vpop.permute.xlu0 %1673
      %1675 = vrot.lane.b32.xlu0 %v1603, 6
      %v1676 = vpop.permute.xlu0 %1675
      %1677 = vrot.lane.b32.xlu0 %v1604, 6
      %v1678 = vpop.permute.xlu0 %1677
      %1679 = vrot.lane.b32.xlu0 %v1605, 6
      %v1680 = vpop.permute.xlu0 %1679
      %1681 = vrot.lane.b32.xlu0 %v1606, 6
      %v1682 = vpop.permute.xlu0 %1681
      %1683 = vrot.lane.b32.xlu0 %v1607, 6
      %v1684 = vpop.permute.xlu0 %1683
      %1685 = vrot.lane.b32.xlu0 %v1608, 6
      %v1686 = vpop.permute.xlu0 %1685
      %1687 = vrot.lane.b32.xlu0 %v1609, 6
      %v1688 = vpop.permute.xlu0 %1687
      %1689 = vrot.lane.b32.xlu0 %v1610, 6
      %v1690 = vpop.permute.xlu0 %1689
      %1691 = vrot.lane.b32.xlu0 %v1611, 6
      %v1692 = vpop.permute.xlu0 %1691
      %1693 = vrot.lane.b32.xlu0 %v1612, 6
      %v1694 = vpop.permute.xlu0 %1693
      %1695 = vrot.lane.b32.xlu0 %v1613, 6
      %v1696 = vpop.permute.xlu0 %1695
      %1697 = vrot.lane.b32.xlu0 %v1614, 6
      %v1698 = vpop.permute.xlu0 %1697
      %1699 = vrot.lane.b32.xlu0 %v1615, 6
      %v1700 = vpop.permute.xlu0 %1699
      %1701 = vrot.lane.b32.xlu0 %v1616, 6
      %v1702 = vpop.permute.xlu0 %1701
      %1703 = vrot.lane.b32.xlu0 %v1617, 6
      %v1704 = vpop.permute.xlu0 %1703
      %1705 = vrot.lane.b32.xlu0 %v1618, 6
      %v1706 = vpop.permute.xlu0 %1705
      %1707 = vrot.lane.b32.xlu0 %v1619, 6
      %v1708 = vpop.permute.xlu0 %1707
      %1709 = vrot.lane.b32.xlu0 %v1620, 6
      %v1710 = vpop.permute.xlu0 %1709
      %1711 = vrot.lane.b32.xlu0 %v1621, 6
      %v1712 = vpop.permute.xlu0 %1711
      %1713 = vrot.lane.b32.xlu0 %v1622, 6
      %v1714 = vpop.permute.xlu0 %1713
      %1715 = vrot.lane.b32.xlu0 %v1623, 6
      %v1716 = vpop.permute.xlu0 %1715
      %1717 = vrot.lane.b32.xlu0 %v1624, 6
      %v1718 = vpop.permute.xlu0 %1717
      %1719 = vrot.lane.b32.xlu0 %v1625, 6
      %v1720 = vpop.permute.xlu0 %1719
      %1721 = vrot.lane.b32.xlu0 %v1626, 6
      %v1722 = vpop.permute.xlu0 %1721
      %vm1755 = vcmask 56368
      %1756 = vst.msk [vmem:[#allocation6] sm:$0xff] %vm1755, %v1660
      %1757 = vst.msk [vmem:[#allocation6 + $0x18] sm:$0xff] %vm1755, %v1662
      %1758 = vst.msk [vmem:[#allocation6 + $0x30] sm:$0xff] %vm1755, %v1664
      %1759 = vst.msk [vmem:[#allocation6 + $0x48] sm:$0xff] %vm1755, %v1666
      %1760 = vst.msk [vmem:[#allocation6 + $0x60] sm:$0xff] %vm1755, %v1668
      %1761 = vst.msk [vmem:[#allocation6 + $0x78] sm:$0xff] %vm1755, %v1670
      %1762 = vst.msk [vmem:[#allocation6 + $0x90] sm:$0xff] %vm1755, %v1672
      %1763 = vst.msk [vmem:[#allocation6 + $0xa8] sm:$0xff] %vm1755, %v1674
      %1764 = vst.msk [vmem:[#allocation6 + $0xc0] sm:$0xff] %vm1755, %v1676
      %1765 = vst.msk [vmem:[#allocation6 + $0xd8] sm:$0xff] %vm1755, %v1678
      %1766 = vst.msk [vmem:[#allocation6 + $0xf0] sm:$0xff] %vm1755, %v1680
      %1767 = vst.msk [vmem:[#allocation6 + $0x108] sm:$0xff] %vm1755, %v1682
      %1768 = vst.msk [vmem:[#allocation6 + $0x120] sm:$0xff] %vm1755, %v1684
      %1769 = vst.msk [vmem:[#allocation6 + $0x138] sm:$0xff] %vm1755, %v1686
      %1770 = vst.msk [vmem:[#allocation6 + $0x150] sm:$0xff] %vm1755, %v1688
      %1771 = vst.msk [vmem:[#allocation6 + $0x168] sm:$0xff] %vm1755, %v1690
      %1772 = vst.msk [vmem:[#allocation6 + $0x180] sm:$0xff] %vm1755, %v1692
      %1773 = vst.msk [vmem:[#allocation6 + $0x198] sm:$0xff] %vm1755, %v1694
      %1774 = vst.msk [vmem:[#allocation6 + $0x1b0] sm:$0xff] %vm1755, %v1696
      %1775 = vst.msk [vmem:[#allocation6 + $0x1c8] sm:$0xff] %vm1755, %v1698
      %1776 = vst.msk [vmem:[#allocation6 + $0x1e0] sm:$0xff] %vm1755, %v1700
      %1777 = vst.msk [vmem:[#allocation6 + $0x1f8] sm:$0xff] %vm1755, %v1702
      %1778 = vst.msk [vmem:[#allocation6 + $0x210] sm:$0xff] %vm1755, %v1704
      %1779 = vst.msk [vmem:[#allocation6 + $0x228] sm:$0xff] %vm1755, %v1706
      %1780 = vst.msk [vmem:[#allocation6 + $0x240] sm:$0xff] %vm1755, %v1708
      %1781 = vst.msk [vmem:[#allocation6 + $0x258] sm:$0xff] %vm1755, %v1710
      %1782 = vst.msk [vmem:[#allocation6 + $0x270] sm:$0xff] %vm1755, %v1712
      %1783 = vst.msk [vmem:[#allocation6 + $0x288] sm:$0xff] %vm1755, %v1714
      %1784 = vst.msk [vmem:[#allocation6 + $0x2a0] sm:$0xff] %vm1755, %v1716
      %1785 = vst.msk [vmem:[#allocation6 + $0x2b8] sm:$0xff] %vm1755, %v1718
      %1786 = vst.msk [vmem:[#allocation6 + $0x2d0] sm:$0xff] %vm1755, %v1720
      %1787 = vst.msk [vmem:[#allocation6 + $0x2e8] sm:$0xff] %vm1755, %v1722
      %v1788 = vld [vmem:[%s1594 + $0x1] sm:$0xff]
      %v1789 = vld [vmem:[%s1594 + $0x9] sm:$0xff]
      %v1790 = vld [vmem:[%s1594 + $0x19] sm:$0xff]
      %v1791 = vld [vmem:[%s1594 + $0x21] sm:$0xff]
      %v1792 = vld [vmem:[%s1594 + $0x31] sm:$0xff]
      %v1793 = vld [vmem:[%s1594 + $0x39] sm:$0xff]
      %v1794 = vld [vmem:[%s1594 + $0x49] sm:$0xff]
      %v1795 = vld [vmem:[%s1594 + $0x51] sm:$0xff]
      %v1796 = vld [vmem:[%s1594 + $0x61] sm:$0xff]
      %v1797 = vld [vmem:[%s1594 + $0x69] sm:$0xff]
      %v1798 = vld [vmem:[%s1594 + $0x79] sm:$0xff]
      %v1799 = vld [vmem:[%s1594 + $0x81] sm:$0xff]
      %v1800 = vld [vmem:[%s1594 + $0x91] sm:$0xff]
      %v1801 = vld [vmem:[%s1594 + $0x99] sm:$0xff]
      %v1802 = vld [vmem:[%s1594 + $0xa9] sm:$0xff]
      %v1803 = vld [vmem:[%s1594 + $0xb1] sm:$0xff]
      %v1804 = vld [vmem:[%s1594 + $0xc1] sm:$0xff]
      %v1805 = vld [vmem:[%s1594 + $0xc9] sm:$0xff]
      %v1806 = vld [vmem:[%s1594 + $0xd9] sm:$0xff]
      %v1807 = vld [vmem:[%s1594 + $0xe1] sm:$0xff]
      %v1808 = vld [vmem:[%s1594 + $0xf1] sm:$0xff]
      %v1809 = vld [vmem:[%s1594 + $0xf9] sm:$0xff]
      %v1810 = vld [vmem:[%s1594 + $0x109] sm:$0xff]
      %v1811 = vld [vmem:[%s1594 + $0x111] sm:$0xff]
      %v1812 = vld [vmem:[%s1594 + $0x121] sm:$0xff]
      %v1813 = vld [vmem:[%s1594 + $0x129] sm:$0xff]
      %v1814 = vld [vmem:[%s1594 + $0x139] sm:$0xff]
      %v1815 = vld [vmem:[%s1594 + $0x141] sm:$0xff]
      %v1816 = vld [vmem:[%s1594 + $0x151] sm:$0xff]
      %v1817 = vld [vmem:[%s1594 + $0x159] sm:$0xff]
      %v1818 = vld [vmem:[%s1594 + $0x169] sm:$0xff]
      %v1819 = vld [vmem:[%s1594 + $0x171] sm:$0xff]
      %1852 = vrot.lane.b32.xlu0 %v1788, 7
      %v1853 = vpop.permute.xlu0 %1852
      %1854 = vrot.lane.b32.xlu0 %v1789, 7
      %v1855 = vpop.permute.xlu0 %1854
      %1856 = vrot.lane.b32.xlu0 %v1790, 7
      %v1857 = vpop.permute.xlu0 %1856
      %1858 = vrot.lane.b32.xlu0 %v1791, 7
      %v1859 = vpop.permute.xlu0 %1858
      %1860 = vrot.lane.b32.xlu0 %v1792, 7
      %v1861 = vpop.permute.xlu0 %1860
      %1862 = vrot.lane.b32.xlu0 %v1793, 7
      %v1863 = vpop.permute.xlu0 %1862
      %1864 = vrot.lane.b32.xlu0 %v1794, 7
      %v1865 = vpop.permute.xlu0 %1864
      %1866 = vrot.lane.b32.xlu0 %v1795, 7
      %v1867 = vpop.permute.xlu0 %1866
      %1868 = vrot.lane.b32.xlu0 %v1796, 7
      %v1869 = vpop.permute.xlu0 %1868
      %1870 = vrot.lane.b32.xlu0 %v1797, 7
      %v1871 = vpop.permute.xlu0 %1870
      %1872 = vrot.lane.b32.xlu0 %v1798, 7
      %v1873 = vpop.permute.xlu0 %1872
      %1874 = vrot.lane.b32.xlu0 %v1799, 7
      %v1875 = vpop.permute.xlu0 %1874
      %1876 = vrot.lane.b32.xlu0 %v1800, 7
      %v1877 = vpop.permute.xlu0 %1876
      %1878 = vrot.lane.b32.xlu0 %v1801, 7
      %v1879 = vpop.permute.xlu0 %1878
      %1880 = vrot.lane.b32.xlu0 %v1802, 7
      %v1881 = vpop.permute.xlu0 %1880
      %1882 = vrot.lane.b32.xlu0 %v1803, 7
      %v1883 = vpop.permute.xlu0 %1882
      %1884 = vrot.lane.b32.xlu0 %v1804, 7
      %v1885 = vpop.permute.xlu0 %1884
      %1886 = vrot.lane.b32.xlu0 %v1805, 7
      %v1887 = vpop.permute.xlu0 %1886
      %1888 = vrot.lane.b32.xlu0 %v1806, 7
      %v1889 = vpop.permute.xlu0 %1888
      %1890 = vrot.lane.b32.xlu0 %v1807, 7
      %v1891 = vpop.permute.xlu0 %1890
      %1892 = vrot.lane.b32.xlu0 %v1808, 7
      %v1893 = vpop.permute.xlu0 %1892
      %1894 = vrot.lane.b32.xlu0 %v1809, 7
      %v1895 = vpop.permute.xlu0 %1894
      %1896 = vrot.lane.b32.xlu0 %v1810, 7
      %v1897 = vpop.permute.xlu0 %1896
      %1898 = vrot.lane.b32.xlu0 %v1811, 7
      %v1899 = vpop.permute.xlu0 %1898
      %1900 = vrot.lane.b32.xlu0 %v1812, 7
      %v1901 = vpop.permute.xlu0 %1900
      %1902 = vrot.lane.b32.xlu0 %v1813, 7
      %v1903 = vpop.permute.xlu0 %1902
      %1904 = vrot.lane.b32.xlu0 %v1814, 7
      %v1905 = vpop.permute.xlu0 %1904
      %1906 = vrot.lane.b32.xlu0 %v1815, 7
      %v1907 = vpop.permute.xlu0 %1906
      %1908 = vrot.lane.b32.xlu0 %v1816, 7
      %v1909 = vpop.permute.xlu0 %1908
      %1910 = vrot.lane.b32.xlu0 %v1817, 7
      %v1911 = vpop.permute.xlu0 %1910
      %1912 = vrot.lane.b32.xlu0 %v1818, 7
      %v1913 = vpop.permute.xlu0 %1912
      %1914 = vrot.lane.b32.xlu0 %v1819, 7
      %v1915 = vpop.permute.xlu0 %1914
      %vm1948 = vcmask 64568
      %1949 = vst.msk [vmem:[#allocation6] sm:$0xff] %vm1948, %v1853
      %1950 = vst.msk [vmem:[#allocation6 + $0x18] sm:$0xff] %vm1948, %v1855
      %1951 = vst.msk [vmem:[#allocation6 + $0x30] sm:$0xff] %vm1948, %v1857
      %1952 = vst.msk [vmem:[#allocation6 + $0x48] sm:$0xff] %vm1948, %v1859
      %1953 = vst.msk [vmem:[#allocation6 + $0x60] sm:$0xff] %vm1948, %v1861
      %1954 = vst.msk [vmem:[#allocation6 + $0x78] sm:$0xff] %vm1948, %v1863
      %1955 = vst.msk [vmem:[#allocation6 + $0x90] sm:$0xff] %vm1948, %v1865
      %1956 = vst.msk [vmem:[#allocation6 + $0xa8] sm:$0xff] %vm1948, %v1867
      %1957 = vst.msk [vmem:[#allocation6 + $0xc0] sm:$0xff] %vm1948, %v1869
      %1958 = vst.msk [vmem:[#allocation6 + $0xd8] sm:$0xff] %vm1948, %v1871
      %1959 = vst.msk [vmem:[#allocation6 + $0xf0] sm:$0xff] %vm1948, %v1873
      %1960 = vst.msk [vmem:[#allocation6 + $0x108] sm:$0xff] %vm1948, %v1875
      %1961 = vst.msk [vmem:[#allocation6 + $0x120] sm:$0xff] %vm1948, %v1877
      %1962 = vst.msk [vmem:[#allocation6 + $0x138] sm:$0xff] %vm1948, %v1879
      %1963 = vst.msk [vmem:[#allocation6 + $0x150] sm:$0xff] %vm1948, %v1881
      %1964 = vst.msk [vmem:[#allocation6 + $0x168] sm:$0xff] %vm1948, %v1883
      %1965 = vst.msk [vmem:[#allocation6 + $0x180] sm:$0xff] %vm1948, %v1885
      %1966 = vst.msk [vmem:[#allocation6 + $0x198] sm:$0xff] %vm1948, %v1887
      %1967 = vst.msk [vmem:[#allocation6 + $0x1b0] sm:$0xff] %vm1948, %v1889
      %1968 = vst.msk [vmem:[#allocation6 + $0x1c8] sm:$0xff] %vm1948, %v1891
      %1969 = vst.msk [vmem:[#allocation6 + $0x1e0] sm:$0xff] %vm1948, %v1893
      %1970 = vst.msk [vmem:[#allocation6 + $0x1f8] sm:$0xff] %vm1948, %v1895
      %1971 = vst.msk [vmem:[#allocation6 + $0x210] sm:$0xff] %vm1948, %v1897
      %1972 = vst.msk [vmem:[#allocation6 + $0x228] sm:$0xff] %vm1948, %v1899
      %1973 = vst.msk [vmem:[#allocation6 + $0x240] sm:$0xff] %vm1948, %v1901
      %1974 = vst.msk [vmem:[#allocation6 + $0x258] sm:$0xff] %vm1948, %v1903
      %1975 = vst.msk [vmem:[#allocation6 + $0x270] sm:$0xff] %vm1948, %v1905
      %1976 = vst.msk [vmem:[#allocation6 + $0x288] sm:$0xff] %vm1948, %v1907
      %1977 = vst.msk [vmem:[#allocation6 + $0x2a0] sm:$0xff] %vm1948, %v1909
      %1978 = vst.msk [vmem:[#allocation6 + $0x2b8] sm:$0xff] %vm1948, %v1911
      %1979 = vst.msk [vmem:[#allocation6 + $0x2d0] sm:$0xff] %vm1948, %v1913
      %1980 = vst.msk [vmem:[#allocation6 + $0x2e8] sm:$0xff] %vm1948, %v1915
      %v1981 = vld [vmem:[%s1594 + $0x2] sm:$0xff]
      %v1982 = vld [vmem:[%s1594 + $0xa] sm:$0xff]
      %v1983 = vld [vmem:[%s1594 + $0x1a] sm:$0xff]
      %v1984 = vld [vmem:[%s1594 + $0x22] sm:$0xff]
      %v1985 = vld [vmem:[%s1594 + $0x32] sm:$0xff]
      %v1986 = vld [vmem:[%s1594 + $0x3a] sm:$0xff]
      %v1987 = vld [vmem:[%s1594 + $0x4a] sm:$0xff]
      %v1988 = vld [vmem:[%s1594 + $0x52] sm:$0xff]
      %v1989 = vld [vmem:[%s1594 + $0x62] sm:$0xff]
      %v1990 = vld [vmem:[%s1594 + $0x6a] sm:$0xff]
      %v1991 = vld [vmem:[%s1594 + $0x7a] sm:$0xff]
      %v1992 = vld [vmem:[%s1594 + $0x82] sm:$0xff]
      %v1993 = vld [vmem:[%s1594 + $0x92] sm:$0xff]
      %v1994 = vld [vmem:[%s1594 + $0x9a] sm:$0xff]
      %v1995 = vld [vmem:[%s1594 + $0xaa] sm:$0xff]
      %v1996 = vld [vmem:[%s1594 + $0xb2] sm:$0xff]
      %v1997 = vld [vmem:[%s1594 + $0xc2] sm:$0xff]
      %v1998 = vld [vmem:[%s1594 + $0xca] sm:$0xff]
      %v1999 = vld [vmem:[%s1594 + $0xda] sm:$0xff]
      %v2000 = vld [vmem:[%s1594 + $0xe2] sm:$0xff]
      %v2001 = vld [vmem:[%s1594 + $0xf2] sm:$0xff]
      %v2002 = vld [vmem:[%s1594 + $0xfa] sm:$0xff]
      %v2003 = vld [vmem:[%s1594 + $0x10a] sm:$0xff]
      %v2004 = vld [vmem:[%s1594 + $0x112] sm:$0xff]
      %v2005 = vld [vmem:[%s1594 + $0x122] sm:$0xff]
      %v2006 = vld [vmem:[%s1594 + $0x12a] sm:$0xff]
      %v2007 = vld [vmem:[%s1594 + $0x13a] sm:$0xff]
      %v2008 = vld [vmem:[%s1594 + $0x142] sm:$0xff]
      %v2009 = vld [vmem:[%s1594 + $0x152] sm:$0xff]
      %v2010 = vld [vmem:[%s1594 + $0x15a] sm:$0xff]
      %v2011 = vld [vmem:[%s1594 + $0x16a] sm:$0xff]
      %v2012 = vld [vmem:[%s1594 + $0x172] sm:$0xff]
      %2045 = vrot.lane.b32.xlu0 %v1981, 8
      %v2046 = vpop.permute.xlu0 %2045
      %2047 = vrot.lane.b32.xlu0 %v1982, 8
      %v2048 = vpop.permute.xlu0 %2047
      %2049 = vrot.lane.b32.xlu0 %v1983, 8
      %v2050 = vpop.permute.xlu0 %2049
      %2051 = vrot.lane.b32.xlu0 %v1984, 8
      %v2052 = vpop.permute.xlu0 %2051
      %2053 = vrot.lane.b32.xlu0 %v1985, 8
      %v2054 = vpop.permute.xlu0 %2053
      %2055 = vrot.lane.b32.xlu0 %v1986, 8
      %v2056 = vpop.permute.xlu0 %2055
      %2057 = vrot.lane.b32.xlu0 %v1987, 8
      %v2058 = vpop.permute.xlu0 %2057
      %2059 = vrot.lane.b32.xlu0 %v1988, 8
      %v2060 = vpop.permute.xlu0 %2059
      %2061 = vrot.lane.b32.xlu0 %v1989, 8
      %v2062 = vpop.permute.xlu0 %2061
      %2063 = vrot.lane.b32.xlu0 %v1990, 8
      %v2064 = vpop.permute.xlu0 %2063
      %2065 = vrot.lane.b32.xlu0 %v1991, 8
      %v2066 = vpop.permute.xlu0 %2065
      %2067 = vrot.lane.b32.xlu0 %v1992, 8
      %v2068 = vpop.permute.xlu0 %2067
      %2069 = vrot.lane.b32.xlu0 %v1993, 8
      %v2070 = vpop.permute.xlu0 %2069
      %2071 = vrot.lane.b32.xlu0 %v1994, 8
      %v2072 = vpop.permute.xlu0 %2071
      %2073 = vrot.lane.b32.xlu0 %v1995, 8
      %v2074 = vpop.permute.xlu0 %2073
      %2075 = vrot.lane.b32.xlu0 %v1996, 8
      %v2076 = vpop.permute.xlu0 %2075
      %2077 = vrot.lane.b32.xlu0 %v1997, 8
      %v2078 = vpop.permute.xlu0 %2077
      %2079 = vrot.lane.b32.xlu0 %v1998, 8
      %v2080 = vpop.permute.xlu0 %2079
      %2081 = vrot.lane.b32.xlu0 %v1999, 8
      %v2082 = vpop.permute.xlu0 %2081
      %2083 = vrot.lane.b32.xlu0 %v2000, 8
      %v2084 = vpop.permute.xlu0 %2083
      %2085 = vrot.lane.b32.xlu0 %v2001, 8
      %v2086 = vpop.permute.xlu0 %2085
      %2087 = vrot.lane.b32.xlu0 %v2002, 8
      %v2088 = vpop.permute.xlu0 %2087
      %2089 = vrot.lane.b32.xlu0 %v2003, 8
      %v2090 = vpop.permute.xlu0 %2089
      %2091 = vrot.lane.b32.xlu0 %v2004, 8
      %v2092 = vpop.permute.xlu0 %2091
      %2093 = vrot.lane.b32.xlu0 %v2005, 8
      %v2094 = vpop.permute.xlu0 %2093
      %2095 = vrot.lane.b32.xlu0 %v2006, 8
      %v2096 = vpop.permute.xlu0 %2095
      %2097 = vrot.lane.b32.xlu0 %v2007, 8
      %v2098 = vpop.permute.xlu0 %2097
      %2099 = vrot.lane.b32.xlu0 %v2008, 8
      %v2100 = vpop.permute.xlu0 %2099
      %2101 = vrot.lane.b32.xlu0 %v2009, 8
      %v2102 = vpop.permute.xlu0 %2101
      %2103 = vrot.lane.b32.xlu0 %v2010, 8
      %v2104 = vpop.permute.xlu0 %2103
      %2105 = vrot.lane.b32.xlu0 %v2011, 8
      %v2106 = vpop.permute.xlu0 %2105
      %2107 = vrot.lane.b32.xlu0 %v2012, 8
      %v2108 = vpop.permute.xlu0 %2107
      %vm2141 = vcmask 72768
      %2142 = vst.msk [vmem:[#allocation6] sm:$0xff] %vm2141, %v2046
      %2143 = vst.msk [vmem:[#allocation6 + $0x18] sm:$0xff] %vm2141, %v2048
      %2144 = vst.msk [vmem:[#allocation6 + $0x30] sm:$0xff] %vm2141, %v2050
      %2145 = vst.msk [vmem:[#allocation6 + $0x48] sm:$0xff] %vm2141, %v2052
      %2146 = vst.msk [vmem:[#allocation6 + $0x60] sm:$0xff] %vm2141, %v2054
      %2147 = vst.msk [vmem:[#allocation6 + $0x78] sm:$0xff] %vm2141, %v2056
      %2148 = vst.msk [vmem:[#allocation6 + $0x90] sm:$0xff] %vm2141, %v2058
      %2149 = vst.msk [vmem:[#allocation6 + $0xa8] sm:$0xff] %vm2141, %v2060
      %2150 = vst.msk [vmem:[#allocation6 + $0xc0] sm:$0xff] %vm2141, %v2062
      %2151 = vst.msk [vmem:[#allocation6 + $0xd8] sm:$0xff] %vm2141, %v2064
      %2152 = vst.msk [vmem:[#allocation6 + $0xf0] sm:$0xff] %vm2141, %v2066
      %2153 = vst.msk [vmem:[#allocation6 + $0x108] sm:$0xff] %vm2141, %v2068
      %2154 = vst.msk [vmem:[#allocation6 + $0x120] sm:$0xff] %vm2141, %v2070
      %2155 = vst.msk [vmem:[#allocation6 + $0x138] sm:$0xff] %vm2141, %v2072
      %2156 = vst.msk [vmem:[#allocation6 + $0x150] sm:$0xff] %vm2141, %v2074
      %2157 = vst.msk [vmem:[#allocation6 + $0x168] sm:$0xff] %vm2141, %v2076
      %2158 = vst.msk [vmem:[#allocation6 + $0x180] sm:$0xff] %vm2141, %v2078
      %2159 = vst.msk [vmem:[#allocation6 + $0x198] sm:$0xff] %vm2141, %v2080
      %2160 = vst.msk [vmem:[#allocation6 + $0x1b0] sm:$0xff] %vm2141, %v2082
      %2161 = vst.msk [vmem:[#allocation6 + $0x1c8] sm:$0xff] %vm2141, %v2084
      %2162 = vst.msk [vmem:[#allocation6 + $0x1e0] sm:$0xff] %vm2141, %v2086
      %2163 = vst.msk [vmem:[#allocation6 + $0x1f8] sm:$0xff] %vm2141, %v2088
      %2164 = vst.msk [vmem:[#allocation6 + $0x210] sm:$0xff] %vm2141, %v2090
      %2165 = vst.msk [vmem:[#allocation6 + $0x228] sm:$0xff] %vm2141, %v2092
      %2166 = vst.msk [vmem:[#allocation6 + $0x240] sm:$0xff] %vm2141, %v2094
      %2167 = vst.msk [vmem:[#allocation6 + $0x258] sm:$0xff] %vm2141, %v2096
      %2168 = vst.msk [vmem:[#allocation6 + $0x270] sm:$0xff] %vm2141, %v2098
      %2169 = vst.msk [vmem:[#allocation6 + $0x288] sm:$0xff] %vm2141, %v2100
      %2170 = vst.msk [vmem:[#allocation6 + $0x2a0] sm:$0xff] %vm2141, %v2102
      %2171 = vst.msk [vmem:[#allocation6 + $0x2b8] sm:$0xff] %vm2141, %v2104
      %2172 = vst.msk [vmem:[#allocation6 + $0x2d0] sm:$0xff] %vm2141, %v2106
      %2173 = vst.msk [vmem:[#allocation6 + $0x2e8] sm:$0xff] %vm2141, %v2108
      %v2174 = vld [vmem:[#allocation6] sm:$0xff]
      %v2175 = vld [vmem:[#allocation6 + $0x18] sm:$0xff]
      %v2176 = vld [vmem:[#allocation6 + $0x30] sm:$0xff]
      %v2177 = vld [vmem:[#allocation6 + $0x48] sm:$0xff]
      %v2178 = vld [vmem:[#allocation6 + $0x60] sm:$0xff]
      %v2179 = vld [vmem:[#allocation6 + $0x78] sm:$0xff]
      %v2180 = vld [vmem:[#allocation6 + $0x90] sm:$0xff]
      %v2181 = vld [vmem:[#allocation6 + $0xa8] sm:$0xff]
      %v2182 = vld [vmem:[#allocation6 + $0xc0] sm:$0xff]
      %v2183 = vld [vmem:[#allocation6 + $0xd8] sm:$0xff]
      %v2184 = vld [vmem:[#allocation6 + $0xf0] sm:$0xff]
      %v2185 = vld [vmem:[#allocation6 + $0x108] sm:$0xff]
      %v2186 = vld [vmem:[#allocation6 + $0x120] sm:$0xff]
      %v2187 = vld [vmem:[#allocation6 + $0x138] sm:$0xff]
      %v2188 = vld [vmem:[#allocation6 + $0x150] sm:$0xff]
      %v2189 = vld [vmem:[#allocation6 + $0x168] sm:$0xff]
      %v2190 = vld [vmem:[#allocation6 + $0x180] sm:$0xff]
      %v2191 = vld [vmem:[#allocation6 + $0x198] sm:$0xff]
      %v2192 = vld [vmem:[#allocation6 + $0x1b0] sm:$0xff]
      %v2193 = vld [vmem:[#allocation6 + $0x1c8] sm:$0xff]
      %v2194 = vld [vmem:[#allocation6 + $0x1e0] sm:$0xff]
      %v2195 = vld [vmem:[#allocation6 + $0x1f8] sm:$0xff]
      %v2196 = vld [vmem:[#allocation6 + $0x210] sm:$0xff]
      %v2197 = vld [vmem:[#allocation6 + $0x228] sm:$0xff]
      %v2198 = vld [vmem:[#allocation6 + $0x240] sm:$0xff]
      %v2199 = vld [vmem:[#allocation6 + $0x258] sm:$0xff]
      %v2200 = vld [vmem:[#allocation6 + $0x270] sm:$0xff]
      %v2201 = vld [vmem:[#allocation6 + $0x288] sm:$0xff]
      %v2202 = vld [vmem:[#allocation6 + $0x2a0] sm:$0xff]
      %v2203 = vld [vmem:[#allocation6 + $0x2b8] sm:$0xff]
      %v2204 = vld [vmem:[#allocation6 + $0x2d0] sm:$0xff]
      %v2205 = vld [vmem:[#allocation6 + $0x2e8] sm:$0xff]
      %v2206 = vpack.c.bf16 %v2175, %v2174
      %v2207 = vpack.c.bf16 %v2177, %v2176
      %v2208 = vpack.c.bf16 %v2179, %v2178
      %v2209 = vpack.c.bf16 %v2181, %v2180
      %v2210 = vpack.c.bf16 %v2183, %v2182
      %v2211 = vpack.c.bf16 %v2185, %v2184
      %v2212 = vpack.c.bf16 %v2187, %v2186
      %v2213 = vpack.c.bf16 %v2189, %v2188
      %v2214 = vpack.c.bf16 %v2191, %v2190
      %v2215 = vpack.c.bf16 %v2193, %v2192
      %v2216 = vpack.c.bf16 %v2195, %v2194
      %v2217 = vpack.c.bf16 %v2197, %v2196
      %v2218 = vpack.c.bf16 %v2199, %v2198
      %v2219 = vpack.c.bf16 %v2201, %v2200
      %v2220 = vpack.c.bf16 %v2203, %v2202
      %v2221 = vpack.c.bf16 %v2205, %v2204
      %v2222 = vld [vmem:[%s1] sm:$0xf]
      %v2223 = vld [vmem:[%s1 + $0x4] sm:$0x1]
      %v2224 = vld [vmem:[%s2] sm:$0x1]
      %v2226 = vlaneseq
      %v2227 = vshrl.u32 %v2226, 7
      %v2228 = vsub.s32 0, %v2227
      %v2229 = vrot.slane %v2224, %v2228
      %v2233 = vunpack.c.l.b16 %v2222
      %v2234 = vunpack.c.l.b16 %v2223
      %v2235 = vpack.c.b16 %v2234, %v2233
      %vm2236 = vcmask 72704
      %v2238 = vsel %vm2236, %v2206, 0
      %v2241 = vsel %vm2236, %v2207, 0
      %v2244 = vsel %vm2236, %v2208, 0
      %v2247 = vsel %vm2236, %v2209, 0
      %v2250 = vsel %vm2236, %v2210, 0
      %v2253 = vsel %vm2236, %v2211, 0
      %v2256 = vsel %vm2236, %v2212, 0
      %v2259 = vsel %vm2236, %v2213, 0
      %v2262 = vsel %vm2236, %v2214, 0
      %v2265 = vsel %vm2236, %v2215, 0
      %v2268 = vsel %vm2236, %v2216, 0
      %v2271 = vsel %vm2236, %v2217, 0
      %v2274 = vsel %vm2236, %v2218, 0
      %v2277 = vsel %vm2236, %v2219, 0
      %v2280 = vsel %vm2236, %v2220, 0
      %v2283 = vsel %vm2236, %v2221, 0
      %vm2285 = vcmask 1043456
      %vm2286 = vcmask 1044480
      %v2287 = vsel %vm2285, 4294967295, 65535
      %v2288 = vsel %vm2286, %v2287, 0
      %v2290 = vand.u32 %v2235, %v2288
      %2292 = vmatprep.subr.bf16.mxu0 0
      %2293 = vmatpush1.bf16.msra.mxu0 0
      %2294 = vmatprep.subr.bf16.mxu0 0
      %2295 = vmatpush1.bf16.msra.mxu0 0
      %2296 = vmatprep.subr.bf16.mxu0 0
      %2297 = vmatpush1.bf16.msra.mxu0 0
      %2298 = vmatprep.subr.bf16.mxu0 0
      %2299 = vmatpush1.bf16.msra.mxu0 0
      %2300 = vmatprep.subr.bf16.mxu0 0
      %2301 = vmatpush1.bf16.msra.mxu0 0
      %2302 = vmatprep.subr.bf16.mxu0 0
      %2303 = vmatpush1.bf16.msra.mxu0 0
      %2304 = vmatprep.subr.bf16.mxu0 0
      %2305 = vmatpush1.bf16.msra.mxu0 0
      %2306 = vmatprep.subr.bf16.mxu0 0
      %2307 = vmatpush1.bf16.msra.mxu0 %v2290
      %2308 = vmatprep.subr.bf16.mxu0 0
      %2309 = vmatpush2.bf16.msra.mxu0 0
      %2310 = vmatprep.subr.bf16.mxu0 0
      %2311 = vmatpush2.bf16.msra.mxu0 0
      %2312 = vmatprep.subr.bf16.mxu0 0
      %2313 = vmatpush2.bf16.msra.mxu0 0
      %2314 = vmatprep.subr.bf16.mxu0 0
      %2315 = vmatpush2.bf16.msra.mxu0 0
      %2316 = vmatprep.subr.bf16.mxu0 0
      %2317 = vmatpush2.bf16.msra.mxu0 0
      %2318 = vmatprep.subr.bf16.mxu0 0
      %2319 = vmatpush2.bf16.msra.mxu0 0
      %2320 = vmatprep.subr.bf16.mxu0 0
      %2321 = vmatpush2.bf16.msra.mxu0 0
      %2322 = vmatprep.subr.bf16.mxu0 0
      %2323 = vmatpush2.bf16.msra.mxu0 0
      %2324 = vmatprep.mubr.bf16.mxu0 0
      %2325 = vmatmul.mubr.bf16.gmra.mxu0 %v2238
      %v2326 = vpop.f32.mrf.mxu0
      %v2327 = vadd.f32 %v2229, %v2326
      %v2328 = vpop.f32.mrf.mxu0
      %v2329 = vpop.f32.mrf.mxu0
      %v2330 = vadd.f32 %v2229, %v2329
      %v2331 = vpop.f32.mrf.mxu0
      %2332 = vmatprep.mubr.bf16.mxu0 0
      %2333 = vmatmul.mubr.bf16.gmra.mxu0 %v2241
      %v2334 = vpop.f32.mrf.mxu0
      %v2335 = vadd.f32 %v2229, %v2334
      %v2336 = vpop.f32.mrf.mxu0
      %v2337 = vpop.f32.mrf.mxu0
      %v2338 = vadd.f32 %v2229, %v2337
      %v2339 = vpop.f32.mrf.mxu0
      %2340 = vmatprep.mubr.bf16.mxu0 0
      %2341 = vmatmul.mubr.bf16.gmra.mxu0 %v2244
      %v2342 = vpop.f32.mrf.mxu0
      %v2343 = vadd.f32 %v2229, %v2342
      %v2344 = vpop.f32.mrf.mxu0
      %v2345 = vpop.f32.mrf.mxu0
      %v2346 = vadd.f32 %v2229, %v2345
      %v2347 = vpop.f32.mrf.mxu0
      %2348 = vmatprep.mubr.bf16.mxu0 0
      %2349 = vmatmul.mubr.bf16.gmra.mxu0 %v2247
      %v2350 = vpop.f32.mrf.mxu0
      %v2351 = vadd.f32 %v2229, %v2350
      %v2352 = vpop.f32.mrf.mxu0
      %v2353 = vpop.f32.mrf.mxu0
      %v2354 = vadd.f32 %v2229, %v2353
      %v2355 = vpop.f32.mrf.mxu0
      %2356 = vmatprep.mubr.bf16.mxu0 0
      %2357 = vmatmul.mubr.bf16.gmra.mxu0 %v2250
      %v2358 = vpop.f32.mrf.mxu0
      %v2359 = vadd.f32 %v2229, %v2358
      %v2360 = vpop.f32.mrf.mxu0
      %v2361 = vpop.f32.mrf.mxu0
      %v2362 = vadd.f32 %v2229, %v2361
      %v2363 = vpop.f32.mrf.mxu0
      %2364 = vmatprep.mubr.bf16.mxu0 0
      %2365 = vmatmul.mubr.bf16.gmra.mxu0 %v2253
      %v2366 = vpop.f32.mrf.mxu0
      %v2367 = vadd.f32 %v2229, %v2366
      %v2368 = vpop.f32.mrf.mxu0
      %v2369 = vpop.f32.mrf.mxu0
      %v2370 = vadd.f32 %v2229, %v2369
      %v2371 = vpop.f32.mrf.mxu0
      %2372 = vmatprep.mubr.bf16.mxu0 0
      %2373 = vmatmul.mubr.bf16.gmra.mxu0 %v2256
      %v2374 = vpop.f32.mrf.mxu0
      %v2375 = vadd.f32 %v2229, %v2374
      %v2376 = vpop.f32.mrf.mxu0
      %v2377 = vpop.f32.mrf.mxu0
      %v2378 = vadd.f32 %v2229, %v2377
      %v2379 = vpop.f32.mrf.mxu0
      %2380 = vmatprep.mubr.bf16.mxu0 0
      %2381 = vmatmul.mubr.bf16.gmra.mxu0 %v2259
      %v2382 = vpop.f32.mrf.mxu0
      %v2383 = vadd.f32 %v2229, %v2382
      %v2384 = vpop.f32.mrf.mxu0
      %v2385 = vpop.f32.mrf.mxu0
      %v2386 = vadd.f32 %v2229, %v2385
      %v2387 = vpop.f32.mrf.mxu0
      %2388 = vmatprep.mubr.bf16.mxu0 0
      %2389 = vmatmul.mubr.bf16.gmra.mxu0 %v2262
      %v2390 = vpop.f32.mrf.mxu0
      %v2391 = vadd.f32 %v2229, %v2390
      %v2392 = vpop.f32.mrf.mxu0
      %v2393 = vpop.f32.mrf.mxu0
      %v2394 = vadd.f32 %v2229, %v2393
      %v2395 = vpop.f32.mrf.mxu0
      %2396 = vmatprep.mubr.bf16.mxu0 0
      %2397 = vmatmul.mubr.bf16.gmra.mxu0 %v2265
      %v2398 = vpop.f32.mrf.mxu0
      %v2399 = vadd.f32 %v2229, %v2398
      %v2400 = vpop.f32.mrf.mxu0
      %v2401 = vpop.f32.mrf.mxu0
      %v2402 = vadd.f32 %v2229, %v2401
      %v2403 = vpop.f32.mrf.mxu0
      %2404 = vmatprep.mubr.bf16.mxu0 0
      %2405 = vmatmul.mubr.bf16.gmra.mxu0 %v2268
      %v2406 = vpop.f32.mrf.mxu0
      %v2407 = vadd.f32 %v2229, %v2406
      %v2408 = vpop.f32.mrf.mxu0
      %v2409 = vpop.f32.mrf.mxu0
      %v2410 = vadd.f32 %v2229, %v2409
      %v2411 = vpop.f32.mrf.mxu0
      %2412 = vmatprep.mubr.bf16.mxu0 0
      %2413 = vmatmul.mubr.bf16.gmra.mxu0 %v2271
      %v2414 = vpop.f32.mrf.mxu0
      %v2415 = vadd.f32 %v2229, %v2414
      %v2416 = vpop.f32.mrf.mxu0
      %v2417 = vpop.f32.mrf.mxu0
      %v2418 = vadd.f32 %v2229, %v2417
      %v2419 = vpop.f32.mrf.mxu0
      %2420 = vmatprep.mubr.bf16.mxu0 0
      %2421 = vmatmul.mubr.bf16.gmra.mxu0 %v2274
      %v2422 = vpop.f32.mrf.mxu0
      %v2423 = vadd.f32 %v2229, %v2422
      %v2424 = vpop.f32.mrf.mxu0
      %v2425 = vpop.f32.mrf.mxu0
      %v2426 = vadd.f32 %v2229, %v2425
      %v2427 = vpop.f32.mrf.mxu0
      %2428 = vmatprep.mubr.bf16.mxu0 0
      %2429 = vmatmul.mubr.bf16.gmra.mxu0 %v2277
      %v2430 = vpop.f32.mrf.mxu0
      %v2431 = vadd.f32 %v2229, %v2430
      %v2432 = vpop.f32.mrf.mxu0
      %v2433 = vpop.f32.mrf.mxu0
      %v2434 = vadd.f32 %v2229, %v2433
      %v2435 = vpop.f32.mrf.mxu0
      %2436 = vmatprep.mubr.bf16.mxu0 0
      %2437 = vmatmul.mubr.bf16.gmra.mxu0 %v2280
      %v2438 = vpop.f32.mrf.mxu0
      %v2439 = vadd.f32 %v2229, %v2438
      %v2440 = vpop.f32.mrf.mxu0
      %v2441 = vpop.f32.mrf.mxu0
      %v2442 = vadd.f32 %v2229, %v2441
      %v2443 = vpop.f32.mrf.mxu0
      %2444 = vmatprep.mubr.bf16.mxu0 0
      %2445 = vmatmul.mubr.bf16.gmra.mxu0 %v2283
      %v2446 = vpop.f32.mrf.mxu0
      %v2447 = vadd.f32 %v2229, %v2446
      %v2448 = vpop.f32.mrf.mxu0
      %v2449 = vpop.f32.mrf.mxu0
      %v2450 = vadd.f32 %v2229, %v2449
      %v2451 = vpop.f32.mrf.mxu0
      %2452 = vdwg.mxu0
      %v2453 = vmax.f32 %v2327, 0.0
      %v2454 = vmax.f32 %v2330, 0.0
      %v2455 = vmax.f32 %v2335, 0.0
      %v2456 = vmax.f32 %v2338, 0.0
      %v2457 = vmax.f32 %v2343, 0.0
      %v2458 = vmax.f32 %v2346, 0.0
      %v2459 = vmax.f32 %v2351, 0.0
      %v2460 = vmax.f32 %v2354, 0.0
      %v2461 = vmax.f32 %v2359, 0.0
      %v2462 = vmax.f32 %v2362, 0.0
      %v2463 = vmax.f32 %v2367, 0.0
      %v2464 = vmax.f32 %v2370, 0.0
      %v2465 = vmax.f32 %v2375, 0.0
      %v2466 = vmax.f32 %v2378, 0.0
      %v2467 = vmax.f32 %v2383, 0.0
      %v2468 = vmax.f32 %v2386, 0.0
      %v2469 = vmax.f32 %v2391, 0.0
      %v2470 = vmax.f32 %v2394, 0.0
      %v2471 = vmax.f32 %v2399, 0.0
      %v2472 = vmax.f32 %v2402, 0.0
      %v2473 = vmax.f32 %v2407, 0.0
      %v2474 = vmax.f32 %v2410, 0.0
      %v2475 = vmax.f32 %v2415, 0.0
      %v2476 = vmax.f32 %v2418, 0.0
      %v2477 = vmax.f32 %v2423, 0.0
      %v2478 = vmax.f32 %v2426, 0.0
      %v2479 = vmax.f32 %v2431, 0.0
      %v2480 = vmax.f32 %v2434, 0.0
      %v2481 = vmax.f32 %v2439, 0.0
      %v2482 = vmax.f32 %v2442, 0.0
      %v2483 = vmax.f32 %v2447, 0.0
      %v2484 = vmax.f32 %v2450, 0.0
      %v2517 = vcombine.high %v2453, %v2453
      %v2519 = vunpack.c.l.s4 1983009808
      %v2520 = vunpack.c.0.s8 %v2519
      %v2521 = vlaneseq
      %v2522 = vshrl.u32 %v2521, 7
      %v2523 = vsub.s32 %v2520, %v2522
      %v2524 = vrot.slane %v2453, %v2523
      %v2526 = vunpack.c.l.s4 1983009808
      %v2527 = vunpack.c.0.s8 %v2526
      %v2528 = vlaneseq
      %v2529 = vshrl.u32 %v2528, 7
      %v2530 = vsub.s32 %v2527, %v2529
      %v2531 = vrot.slane %v2517, %v2530
      %v2532 = vcombine.high %v2524, %v2524
      %v2533 = vcombine.high %v2531, %v2531
      %v2534 = vcombine.high %v2454, %v2454
      %v2536 = vunpack.c.l.s4 1983009808
      %v2537 = vunpack.c.0.s8 %v2536
      %v2538 = vlaneseq
      %v2539 = vshrl.u32 %v2538, 7
      %v2540 = vsub.s32 %v2537, %v2539
      %v2541 = vrot.slane %v2454, %v2540
      %v2543 = vunpack.c.l.s4 1983009808
      %v2544 = vunpack.c.0.s8 %v2543
      %v2545 = vlaneseq
      %v2546 = vshrl.u32 %v2545, 7
      %v2547 = vsub.s32 %v2544, %v2546
      %v2548 = vrot.slane %v2534, %v2547
      %v2549 = vcombine.high %v2541, %v2541
      %v2550 = vcombine.high %v2548, %v2548
      %v2551 = vcombine.high %v2455, %v2455
      %v2553 = vunpack.c.l.s4 1983009808
      %v2554 = vunpack.c.0.s8 %v2553
      %v2555 = vlaneseq
      %v2556 = vshrl.u32 %v2555, 7
      %v2557 = vsub.s32 %v2554, %v2556
      %v2558 = vrot.slane %v2455, %v2557
      %v2560 = vunpack.c.l.s4 1983009808
      %v2561 = vunpack.c.0.s8 %v2560
      %v2562 = vlaneseq
      %v2563 = vshrl.u32 %v2562, 7
      %v2564 = vsub.s32 %v2561, %v2563
      %v2565 = vrot.slane %v2551, %v2564
      %v2566 = vcombine.high %v2558, %v2558
      %v2567 = vcombine.high %v2565, %v2565
      %v2568 = vcombine.high %v2456, %v2456
      %v2570 = vunpack.c.l.s4 1983009808
      %v2571 = vunpack.c.0.s8 %v2570
      %v2572 = vlaneseq
      %v2573 = vshrl.u32 %v2572, 7
      %v2574 = vsub.s32 %v2571, %v2573
      %v2575 = vrot.slane %v2456, %v2574
      %v2577 = vunpack.c.l.s4 1983009808
      %v2578 = vunpack.c.0.s8 %v2577
      %v2579 = vlaneseq
      %v2580 = vshrl.u32 %v2579, 7
      %v2581 = vsub.s32 %v2578, %v2580
      %v2582 = vrot.slane %v2568, %v2581
      %v2583 = vcombine.high %v2575, %v2575
      %v2584 = vcombine.high %v2582, %v2582
      %v2585 = vcombine.high %v2457, %v2457
      %v2587 = vunpack.c.l.s4 1983009808
      %v2588 = vunpack.c.0.s8 %v2587
      %v2589 = vlaneseq
      %v2590 = vshrl.u32 %v2589, 7
      %v2591 = vsub.s32 %v2588, %v2590
      %v2592 = vrot.slane %v2457, %v2591
      %v2594 = vunpack.c.l.s4 1983009808
      %v2595 = vunpack.c.0.s8 %v2594
      %v2596 = vlaneseq
      %v2597 = vshrl.u32 %v2596, 7
      %v2598 = vsub.s32 %v2595, %v2597
      %v2599 = vrot.slane %v2585, %v2598
      %v2600 = vcombine.high %v2592, %v2592
      %v2601 = vcombine.high %v2599, %v2599
      %v2602 = vcombine.high %v2458, %v2458
      %v2604 = vunpack.c.l.s4 1983009808
      %v2605 = vunpack.c.0.s8 %v2604
      %v2606 = vlaneseq
      %v2607 = vshrl.u32 %v2606, 7
      %v2608 = vsub.s32 %v2605, %v2607
      %v2609 = vrot.slane %v2458, %v2608
      %v2611 = vunpack.c.l.s4 1983009808
      %v2612 = vunpack.c.0.s8 %v2611
      %v2613 = vlaneseq
      %v2614 = vshrl.u32 %v2613, 7
      %v2615 = vsub.s32 %v2612, %v2614
      %v2616 = vrot.slane %v2602, %v2615
      %v2617 = vcombine.high %v2609, %v2609
      %v2618 = vcombine.high %v2616, %v2616
      %v2619 = vcombine.high %v2459, %v2459
      %v2621 = vunpack.c.l.s4 1983009808
      %v2622 = vunpack.c.0.s8 %v2621
      %v2623 = vlaneseq
      %v2624 = vshrl.u32 %v2623, 7
      %v2625 = vsub.s32 %v2622, %v2624
      %v2626 = vrot.slane %v2459, %v2625
      %v2628 = vunpack.c.l.s4 1983009808
      %v2629 = vunpack.c.0.s8 %v2628
      %v2630 = vlaneseq
      %v2631 = vshrl.u32 %v2630, 7
      %v2632 = vsub.s32 %v2629, %v2631
      %v2633 = vrot.slane %v2619, %v2632
      %v2634 = vcombine.high %v2626, %v2626
      %v2635 = vcombine.high %v2633, %v2633
      %v2636 = vcombine.high %v2460, %v2460
      %v2638 = vunpack.c.l.s4 1983009808
      %v2639 = vunpack.c.0.s8 %v2638
      %v2640 = vlaneseq
      %v2641 = vshrl.u32 %v2640, 7
      %v2642 = vsub.s32 %v2639, %v2641
      %v2643 = vrot.slane %v2460, %v2642
      %v2645 = vunpack.c.l.s4 1983009808
      %v2646 = vunpack.c.0.s8 %v2645
      %v2647 = vlaneseq
      %v2648 = vshrl.u32 %v2647, 7
      %v2649 = vsub.s32 %v2646, %v2648
      %v2650 = vrot.slane %v2636, %v2649
      %v2651 = vcombine.high %v2643, %v2643
      %v2652 = vcombine.high %v2650, %v2650
      %v2653 = vcombine.high %v2461, %v2461
      %v2655 = vunpack.c.l.s4 1983009808
      %v2656 = vunpack.c.0.s8 %v2655
      %v2657 = vlaneseq
      %v2658 = vshrl.u32 %v2657, 7
      %v2659 = vsub.s32 %v2656, %v2658
      %v2660 = vrot.slane %v2461, %v2659
      %v2662 = vunpack.c.l.s4 1983009808
      %v2663 = vunpack.c.0.s8 %v2662
      %v2664 = vlaneseq
      %v2665 = vshrl.u32 %v2664, 7
      %v2666 = vsub.s32 %v2663, %v2665
      %v2667 = vrot.slane %v2653, %v2666
      %v2668 = vcombine.high %v2660, %v2660
      %v2669 = vcombine.high %v2667, %v2667
      %v2670 = vcombine.high %v2462, %v2462
      %v2672 = vunpack.c.l.s4 1983009808
      %v2673 = vunpack.c.0.s8 %v2672
      %v2674 = vlaneseq
      %v2675 = vshrl.u32 %v2674, 7
      %v2676 = vsub.s32 %v2673, %v2675
      %v2677 = vrot.slane %v2462, %v2676
      %v2679 = vunpack.c.l.s4 1983009808
      %v2680 = vunpack.c.0.s8 %v2679
      %v2681 = vlaneseq
      %v2682 = vshrl.u32 %v2681, 7
      %v2683 = vsub.s32 %v2680, %v2682
      %v2684 = vrot.slane %v2670, %v2683
      %v2685 = vcombine.high %v2677, %v2677
      %v2686 = vcombine.high %v2684, %v2684
      %v2687 = vcombine.high %v2463, %v2463
      %v2689 = vunpack.c.l.s4 1983009808
      %v2690 = vunpack.c.0.s8 %v2689
      %v2691 = vlaneseq
      %v2692 = vshrl.u32 %v2691, 7
      %v2693 = vsub.s32 %v2690, %v2692
      %v2694 = vrot.slane %v2463, %v2693
      %v2696 = vunpack.c.l.s4 1983009808
      %v2697 = vunpack.c.0.s8 %v2696
      %v2698 = vlaneseq
      %v2699 = vshrl.u32 %v2698, 7
      %v2700 = vsub.s32 %v2697, %v2699
      %v2701 = vrot.slane %v2687, %v2700
      %v2702 = vcombine.high %v2694, %v2694
      %v2703 = vcombine.high %v2701, %v2701
      %v2704 = vcombine.high %v2464, %v2464
      %v2706 = vunpack.c.l.s4 1983009808
      %v2707 = vunpack.c.0.s8 %v2706
      %v2708 = vlaneseq
      %v2709 = vshrl.u32 %v2708, 7
      %v2710 = vsub.s32 %v2707, %v2709
      %v2711 = vrot.slane %v2464, %v2710
      %v2713 = vunpack.c.l.s4 1983009808
      %v2714 = vunpack.c.0.s8 %v2713
      %v2715 = vlaneseq
      %v2716 = vshrl.u32 %v2715, 7
      %v2717 = vsub.s32 %v2714, %v2716
      %v2718 = vrot.slane %v2704, %v2717
      %v2719 = vcombine.high %v2711, %v2711
      %v2720 = vcombine.high %v2718, %v2718
      %v2721 = vcombine.high %v2465, %v2465
      %v2723 = vunpack.c.l.s4 1983009808
      %v2724 = vunpack.c.0.s8 %v2723
      %v2725 = vlaneseq
      %v2726 = vshrl.u32 %v2725, 7
      %v2727 = vsub.s32 %v2724, %v2726
      %v2728 = vrot.slane %v2465, %v2727
      %v2730 = vunpack.c.l.s4 1983009808
      %v2731 = vunpack.c.0.s8 %v2730
      %v2732 = vlaneseq
      %v2733 = vshrl.u32 %v2732, 7
      %v2734 = vsub.s32 %v2731, %v2733
      %v2735 = vrot.slane %v2721, %v2734
      %v2736 = vcombine.high %v2728, %v2728
      %v2737 = vcombine.high %v2735, %v2735
      %v2738 = vcombine.high %v2466, %v2466
      %v2740 = vunpack.c.l.s4 1983009808
      %v2741 = vunpack.c.0.s8 %v2740
      %v2742 = vlaneseq
      %v2743 = vshrl.u32 %v2742, 7
      %v2744 = vsub.s32 %v2741, %v2743
      %v2745 = vrot.slane %v2466, %v2744
      %v2747 = vunpack.c.l.s4 1983009808
      %v2748 = vunpack.c.0.s8 %v2747
      %v2749 = vlaneseq
      %v2750 = vshrl.u32 %v2749, 7
      %v2751 = vsub.s32 %v2748, %v2750
      %v2752 = vrot.slane %v2738, %v2751
      %v2753 = vcombine.high %v2745, %v2745
      %v2754 = vcombine.high %v2752, %v2752
      %v2755 = vcombine.high %v2467, %v2467
      %v2757 = vunpack.c.l.s4 1983009808
      %v2758 = vunpack.c.0.s8 %v2757
      %v2759 = vlaneseq
      %v2760 = vshrl.u32 %v2759, 7
      %v2761 = vsub.s32 %v2758, %v2760
      %v2762 = vrot.slane %v2467, %v2761
      %v2764 = vunpack.c.l.s4 1983009808
      %v2765 = vunpack.c.0.s8 %v2764
      %v2766 = vlaneseq
      %v2767 = vshrl.u32 %v2766, 7
      %v2768 = vsub.s32 %v2765, %v2767
      %v2769 = vrot.slane %v2755, %v2768
      %v2770 = vcombine.high %v2762, %v2762
      %v2771 = vcombine.high %v2769, %v2769
      %v2772 = vcombine.high %v2468, %v2468
      %v2774 = vunpack.c.l.s4 1983009808
      %v2775 = vunpack.c.0.s8 %v2774
      %v2776 = vlaneseq
      %v2777 = vshrl.u32 %v2776, 7
      %v2778 = vsub.s32 %v2775, %v2777
      %v2779 = vrot.slane %v2468, %v2778
      %v2781 = vunpack.c.l.s4 1983009808
      %v2782 = vunpack.c.0.s8 %v2781
      %v2783 = vlaneseq
      %v2784 = vshrl.u32 %v2783, 7
      %v2785 = vsub.s32 %v2782, %v2784
      %v2786 = vrot.slane %v2772, %v2785
      %v2787 = vcombine.high %v2779, %v2779
      %v2788 = vcombine.high %v2786, %v2786
      %v2789 = vcombine.high %v2469, %v2469
      %v2791 = vunpack.c.l.s4 1983009808
      %v2792 = vunpack.c.0.s8 %v2791
      %v2793 = vlaneseq
      %v2794 = vshrl.u32 %v2793, 7
      %v2795 = vsub.s32 %v2792, %v2794
      %v2796 = vrot.slane %v2469, %v2795
      %v2798 = vunpack.c.l.s4 1983009808
      %v2799 = vunpack.c.0.s8 %v2798
      %v2800 = vlaneseq
      %v2801 = vshrl.u32 %v2800, 7
      %v2802 = vsub.s32 %v2799, %v2801
      %v2803 = vrot.slane %v2789, %v2802
      %v2804 = vcombine.high %v2796, %v2796
      %v2805 = vcombine.high %v2803, %v2803
      %v2806 = vcombine.high %v2470, %v2470
      %v2808 = vunpack.c.l.s4 1983009808
      %v2809 = vunpack.c.0.s8 %v2808
      %v2810 = vlaneseq
      %v2811 = vshrl.u32 %v2810, 7
      %v2812 = vsub.s32 %v2809, %v2811
      %v2813 = vrot.slane %v2470, %v2812
      %v2815 = vunpack.c.l.s4 1983009808
      %v2816 = vunpack.c.0.s8 %v2815
      %v2817 = vlaneseq
      %v2818 = vshrl.u32 %v2817, 7
      %v2819 = vsub.s32 %v2816, %v2818
      %v2820 = vrot.slane %v2806, %v2819
      %v2821 = vcombine.high %v2813, %v2813
      %v2822 = vcombine.high %v2820, %v2820
      %v2823 = vcombine.high %v2471, %v2471
      %v2825 = vunpack.c.l.s4 1983009808
      %v2826 = vunpack.c.0.s8 %v2825
      %v2827 = vlaneseq
      %v2828 = vshrl.u32 %v2827, 7
      %v2829 = vsub.s32 %v2826, %v2828
      %v2830 = vrot.slane %v2471, %v2829
      %v2832 = vunpack.c.l.s4 1983009808
      %v2833 = vunpack.c.0.s8 %v2832
      %v2834 = vlaneseq
      %v2835 = vshrl.u32 %v2834, 7
      %v2836 = vsub.s32 %v2833, %v2835
      %v2837 = vrot.slane %v2823, %v2836
      %v2838 = vcombine.high %v2830, %v2830
      %v2839 = vcombine.high %v2837, %v2837
      %v2840 = vcombine.high %v2472, %v2472
      %v2842 = vunpack.c.l.s4 1983009808
      %v2843 = vunpack.c.0.s8 %v2842
      %v2844 = vlaneseq
      %v2845 = vshrl.u32 %v2844, 7
      %v2846 = vsub.s32 %v2843, %v2845
      %v2847 = vrot.slane %v2472, %v2846
      %v2849 = vunpack.c.l.s4 1983009808
      %v2850 = vunpack.c.0.s8 %v2849
      %v2851 = vlaneseq
      %v2852 = vshrl.u32 %v2851, 7
      %v2853 = vsub.s32 %v2850, %v2852
      %v2854 = vrot.slane %v2840, %v2853
      %v2855 = vcombine.high %v2847, %v2847
      %v2856 = vcombine.high %v2854, %v2854
      %v2857 = vcombine.high %v2473, %v2473
      %v2859 = vunpack.c.l.s4 1983009808
      %v2860 = vunpack.c.0.s8 %v2859
      %v2861 = vlaneseq
      %v2862 = vshrl.u32 %v2861, 7
      %v2863 = vsub.s32 %v2860, %v2862
      %v2864 = vrot.slane %v2473, %v2863
      %v2866 = vunpack.c.l.s4 1983009808
      %v2867 = vunpack.c.0.s8 %v2866
      %v2868 = vlaneseq
      %v2869 = vshrl.u32 %v2868, 7
      %v2870 = vsub.s32 %v2867, %v2869
      %v2871 = vrot.slane %v2857, %v2870
      %v2872 = vcombine.high %v2864, %v2864
      %v2873 = vcombine.high %v2871, %v2871
      %v2874 = vcombine.high %v2474, %v2474
      %v2876 = vunpack.c.l.s4 1983009808
      %v2877 = vunpack.c.0.s8 %v2876
      %v2878 = vlaneseq
      %v2879 = vshrl.u32 %v2878, 7
      %v2880 = vsub.s32 %v2877, %v2879
      %v2881 = vrot.slane %v2474, %v2880
      %v2883 = vunpack.c.l.s4 1983009808
      %v2884 = vunpack.c.0.s8 %v2883
      %v2885 = vlaneseq
      %v2886 = vshrl.u32 %v2885, 7
      %v2887 = vsub.s32 %v2884, %v2886
      %v2888 = vrot.slane %v2874, %v2887
      %v2889 = vcombine.high %v2881, %v2881
      %v2890 = vcombine.high %v2888, %v2888
      %v2891 = vcombine.high %v2475, %v2475
      %v2893 = vunpack.c.l.s4 1983009808
      %v2894 = vunpack.c.0.s8 %v2893
      %v2895 = vlaneseq
      %v2896 = vshrl.u32 %v2895, 7
      %v2897 = vsub.s32 %v2894, %v2896
      %v2898 = vrot.slane %v2475, %v2897
      %v2900 = vunpack.c.l.s4 1983009808
      %v2901 = vunpack.c.0.s8 %v2900
      %v2902 = vlaneseq
      %v2903 = vshrl.u32 %v2902, 7
      %v2904 = vsub.s32 %v2901, %v2903
      %v2905 = vrot.slane %v2891, %v2904
      %v2906 = vcombine.high %v2898, %v2898
      %v2907 = vcombine.high %v2905, %v2905
      %v2908 = vcombine.high %v2476, %v2476
      %v2910 = vunpack.c.l.s4 1983009808
      %v2911 = vunpack.c.0.s8 %v2910
      %v2912 = vlaneseq
      %v2913 = vshrl.u32 %v2912, 7
      %v2914 = vsub.s32 %v2911, %v2913
      %v2915 = vrot.slane %v2476, %v2914
      %v2917 = vunpack.c.l.s4 1983009808
      %v2918 = vunpack.c.0.s8 %v2917
      %v2919 = vlaneseq
      %v2920 = vshrl.u32 %v2919, 7
      %v2921 = vsub.s32 %v2918, %v2920
      %v2922 = vrot.slane %v2908, %v2921
      %v2923 = vcombine.high %v2915, %v2915
      %v2924 = vcombine.high %v2922, %v2922
      %v2925 = vcombine.high %v2477, %v2477
      %v2927 = vunpack.c.l.s4 1983009808
      %v2928 = vunpack.c.0.s8 %v2927
      %v2929 = vlaneseq
      %v2930 = vshrl.u32 %v2929, 7
      %v2931 = vsub.s32 %v2928, %v2930
      %v2932 = vrot.slane %v2477, %v2931
      %v2934 = vunpack.c.l.s4 1983009808
      %v2935 = vunpack.c.0.s8 %v2934
      %v2936 = vlaneseq
      %v2937 = vshrl.u32 %v2936, 7
      %v2938 = vsub.s32 %v2935, %v2937
      %v2939 = vrot.slane %v2925, %v2938
      %v2940 = vcombine.high %v2932, %v2932
      %v2941 = vcombine.high %v2939, %v2939
      %v2942 = vcombine.high %v2478, %v2478
      %v2944 = vunpack.c.l.s4 1983009808
      %v2945 = vunpack.c.0.s8 %v2944
      %v2946 = vlaneseq
      %v2947 = vshrl.u32 %v2946, 7
      %v2948 = vsub.s32 %v2945, %v2947
      %v2949 = vrot.slane %v2478, %v2948
      %v2951 = vunpack.c.l.s4 1983009808
      %v2952 = vunpack.c.0.s8 %v2951
      %v2953 = vlaneseq
      %v2954 = vshrl.u32 %v2953, 7
      %v2955 = vsub.s32 %v2952, %v2954
      %v2956 = vrot.slane %v2942, %v2955
      %v2957 = vcombine.high %v2949, %v2949
      %v2958 = vcombine.high %v2956, %v2956
      %v2959 = vcombine.high %v2479, %v2479
      %v2961 = vunpack.c.l.s4 1983009808
      %v2962 = vunpack.c.0.s8 %v2961
      %v2963 = vlaneseq
      %v2964 = vshrl.u32 %v2963, 7
      %v2965 = vsub.s32 %v2962, %v2964
      %v2966 = vrot.slane %v2479, %v2965
      %v2968 = vunpack.c.l.s4 1983009808
      %v2969 = vunpack.c.0.s8 %v2968
      %v2970 = vlaneseq
      %v2971 = vshrl.u32 %v2970, 7
      %v2972 = vsub.s32 %v2969, %v2971
      %v2973 = vrot.slane %v2959, %v2972
      %v2974 = vcombine.high %v2966, %v2966
      %v2975 = vcombine.high %v2973, %v2973
      %v2976 = vcombine.high %v2480, %v2480
      %v2978 = vunpack.c.l.s4 1983009808
      %v2979 = vunpack.c.0.s8 %v2978
      %v2980 = vlaneseq
      %v2981 = vshrl.u32 %v2980, 7
      %v2982 = vsub.s32 %v2979, %v2981
      %v2983 = vrot.slane %v2480, %v2982
      %v2985 = vunpack.c.l.s4 1983009808
      %v2986 = vunpack.c.0.s8 %v2985
      %v2987 = vlaneseq
      %v2988 = vshrl.u32 %v2987, 7
      %v2989 = vsub.s32 %v2986, %v2988
      %v2990 = vrot.slane %v2976, %v2989
      %v2991 = vcombine.high %v2983, %v2983
      %v2992 = vcombine.high %v2990, %v2990
      %v2993 = vcombine.high %v2481, %v2481
      %v2995 = vunpack.c.l.s4 1983009808
      %v2996 = vunpack.c.0.s8 %v2995
      %v2997 = vlaneseq
      %v2998 = vshrl.u32 %v2997, 7
      %v2999 = vsub.s32 %v2996, %v2998
      %v3000 = vrot.slane %v2481, %v2999
      %v3002 = vunpack.c.l.s4 1983009808
      %v3003 = vunpack.c.0.s8 %v3002
      %v3004 = vlaneseq
      %v3005 = vshrl.u32 %v3004, 7
      %v3006 = vsub.s32 %v3003, %v3005
      %v3007 = vrot.slane %v2993, %v3006
      %v3008 = vcombine.high %v3000, %v3000
      %v3009 = vcombine.high %v3007, %v3007
      %v3010 = vcombine.high %v2482, %v2482
      %v3012 = vunpack.c.l.s4 1983009808
      %v3013 = vunpack.c.0.s8 %v3012
      %v3014 = vlaneseq
      %v3015 = vshrl.u32 %v3014, 7
      %v3016 = vsub.s32 %v3013, %v3015
      %v3017 = vrot.slane %v2482, %v3016
      %v3019 = vunpack.c.l.s4 1983009808
      %v3020 = vunpack.c.0.s8 %v3019
      %v3021 = vlaneseq
      %v3022 = vshrl.u32 %v3021, 7
      %v3023 = vsub.s32 %v3020, %v3022
      %v3024 = vrot.slane %v3010, %v3023
      %v3025 = vcombine.high %v3017, %v3017
      %v3026 = vcombine.high %v3024, %v3024
      %v3027 = vcombine.high %v2483, %v2483
      %v3029 = vunpack.c.l.s4 1983009808
      %v3030 = vunpack.c.0.s8 %v3029
      %v3031 = vlaneseq
      %v3032 = vshrl.u32 %v3031, 7
      %v3033 = vsub.s32 %v3030, %v3032
      %v3034 = vrot.slane %v2483, %v3033
      %v3036 = vunpack.c.l.s4 1983009808
      %v3037 = vunpack.c.0.s8 %v3036
      %v3038 = vlaneseq
      %v3039 = vshrl.u32 %v3038, 7
      %v3040 = vsub.s32 %v3037, %v3039
      %v3041 = vrot.slane %v3027, %v3040
      %v3042 = vcombine.high %v3034, %v3034
      %v3043 = vcombine.high %v3041, %v3041
      %v3044 = vcombine.high %v2484, %v2484
      %v3046 = vunpack.c.l.s4 1983009808
      %v3047 = vunpack.c.0.s8 %v3046
      %v3048 = vlaneseq
      %v3049 = vshrl.u32 %v3048, 7
      %v3050 = vsub.s32 %v3047, %v3049
      %v3051 = vrot.slane %v2484, %v3050
      %v3053 = vunpack.c.l.s4 1983009808
      %v3054 = vunpack.c.0.s8 %v3053
      %v3055 = vlaneseq
      %v3056 = vshrl.u32 %v3055, 7
      %v3057 = vsub.s32 %v3054, %v3056
      %v3058 = vrot.slane %v3044, %v3057
      %v3059 = vcombine.high %v3051, %v3051
      %v3060 = vcombine.high %v3058, %v3058
      %vm3189 = vcmask 254976
      %v3190 = vsel %vm3189, %v2524, -inf
      %v3191 = vrot.slane %v3190, 4
      %v3192 = vmax.f32 %v3190, %v3191
      %v3193 = vrot.slane %v3192, 2
      %v3194 = vmax.f32 %v3192, %v3193
      %v3195 = vrot.slane %v3194, 1
      %v3196 = vmax.f32 %v3194, %v3195
      %v3197 = vsel %vm3189, %v2532, -inf
      %v3198 = vrot.slane %v3197, 4
      %v3199 = vmax.f32 %v3197, %v3198
      %v3200 = vrot.slane %v3199, 2
      %v3201 = vmax.f32 %v3199, %v3200
      %v3202 = vrot.slane %v3201, 1
      %v3203 = vmax.f32 %v3201, %v3202
      %v3204 = vsel %vm3189, %v2531, -inf
      %v3205 = vrot.slane %v3204, 4
      %v3206 = vmax.f32 %v3204, %v3205
      %v3207 = vrot.slane %v3206, 2
      %v3208 = vmax.f32 %v3206, %v3207
      %v3209 = vrot.slane %v3208, 1
      %v3210 = vmax.f32 %v3208, %v3209
      %v3211 = vsel %vm3189, %v2533, -inf
      %v3212 = vrot.slane %v3211, 4
      %v3213 = vmax.f32 %v3211, %v3212
      %v3214 = vrot.slane %v3213, 2
      %v3215 = vmax.f32 %v3213, %v3214
      %v3216 = vrot.slane %v3215, 1
      %v3217 = vmax.f32 %v3215, %v3216
      %v3218 = vsel %vm3189, %v2541, -inf
      %v3219 = vrot.slane %v3218, 4
      %v3220 = vmax.f32 %v3218, %v3219
      %v3221 = vrot.slane %v3220, 2
      %v3222 = vmax.f32 %v3220, %v3221
      %v3223 = vrot.slane %v3222, 1
      %v3224 = vmax.f32 %v3222, %v3223
      %v3225 = vsel %vm3189, %v2549, -inf
      %v3226 = vrot.slane %v3225, 4
      %v3227 = vmax.f32 %v3225, %v3226
      %v3228 = vrot.slane %v3227, 2
      %v3229 = vmax.f32 %v3227, %v3228
      %v3230 = vrot.slane %v3229, 1
      %v3231 = vmax.f32 %v3229, %v3230
      %v3232 = vsel %vm3189, %v2548, -inf
      %v3233 = vrot.slane %v3232, 4
      %v3234 = vmax.f32 %v3232, %v3233
      %v3235 = vrot.slane %v3234, 2
      %v3236 = vmax.f32 %v3234, %v3235
      %v3237 = vrot.slane %v3236, 1
      %v3238 = vmax.f32 %v3236, %v3237
      %v3239 = vsel %vm3189, %v2550, -inf
      %v3240 = vrot.slane %v3239, 4
      %v3241 = vmax.f32 %v3239, %v3240
      %v3242 = vrot.slane %v3241, 2
      %v3243 = vmax.f32 %v3241, %v3242
      %v3244 = vrot.slane %v3243, 1
      %v3245 = vmax.f32 %v3243, %v3244
      %v3246 = vsel %vm3189, %v2558, -inf
      %v3247 = vrot.slane %v3246, 4
      %v3248 = vmax.f32 %v3246, %v3247
      %v3249 = vrot.slane %v3248, 2
      %v3250 = vmax.f32 %v3248, %v3249
      %v3251 = vrot.slane %v3250, 1
      %v3252 = vmax.f32 %v3250, %v3251
      %v3253 = vsel %vm3189, %v2566, -inf
      %v3254 = vrot.slane %v3253, 4
      %v3255 = vmax.f32 %v3253, %v3254
      %v3256 = vrot.slane %v3255, 2
      %v3257 = vmax.f32 %v3255, %v3256
      %v3258 = vrot.slane %v3257, 1
      %v3259 = vmax.f32 %v3257, %v3258
      %v3260 = vsel %vm3189, %v2565, -inf
      %v3261 = vrot.slane %v3260, 4
      %v3262 = vmax.f32 %v3260, %v3261
      %v3263 = vrot.slane %v3262, 2
      %v3264 = vmax.f32 %v3262, %v3263
      %v3265 = vrot.slane %v3264, 1
      %v3266 = vmax.f32 %v3264, %v3265
      %v3267 = vsel %vm3189, %v2567, -inf
      %v3268 = vrot.slane %v3267, 4
      %v3269 = vmax.f32 %v3267, %v3268
      %v3270 = vrot.slane %v3269, 2
      %v3271 = vmax.f32 %v3269, %v3270
      %v3272 = vrot.slane %v3271, 1
      %v3273 = vmax.f32 %v3271, %v3272
      %v3274 = vsel %vm3189, %v2575, -inf
      %v3275 = vrot.slane %v3274, 4
      %v3276 = vmax.f32 %v3274, %v3275
      %v3277 = vrot.slane %v3276, 2
      %v3278 = vmax.f32 %v3276, %v3277
      %v3279 = vrot.slane %v3278, 1
      %v3280 = vmax.f32 %v3278, %v3279
      %v3281 = vsel %vm3189, %v2583, -inf
      %v3282 = vrot.slane %v3281, 4
      %v3283 = vmax.f32 %v3281, %v3282
      %v3284 = vrot.slane %v3283, 2
      %v3285 = vmax.f32 %v3283, %v3284
      %v3286 = vrot.slane %v3285, 1
      %v3287 = vmax.f32 %v3285, %v3286
      %v3288 = vsel %vm3189, %v2582, -inf
      %v3289 = vrot.slane %v3288, 4
      %v3290 = vmax.f32 %v3288, %v3289
      %v3291 = vrot.slane %v3290, 2
      %v3292 = vmax.f32 %v3290, %v3291
      %v3293 = vrot.slane %v3292, 1
      %v3294 = vmax.f32 %v3292, %v3293
      %v3295 = vsel %vm3189, %v2584, -inf
      %v3296 = vrot.slane %v3295, 4
      %v3297 = vmax.f32 %v3295, %v3296
      %v3298 = vrot.slane %v3297, 2
      %v3299 = vmax.f32 %v3297, %v3298
      %v3300 = vrot.slane %v3299, 1
      %v3301 = vmax.f32 %v3299, %v3300
      %v3302 = vsel %vm3189, %v2592, -inf
      %v3303 = vrot.slane %v3302, 4
      %v3304 = vmax.f32 %v3302, %v3303
      %v3305 = vrot.slane %v3304, 2
      %v3306 = vmax.f32 %v3304, %v3305
      %v3307 = vrot.slane %v3306, 1
      %v3308 = vmax.f32 %v3306, %v3307
      %v3309 = vsel %vm3189, %v2600, -inf
      %v3310 = vrot.slane %v3309, 4
      %v3311 = vmax.f32 %v3309, %v3310
      %v3312 = vrot.slane %v3311, 2
      %v3313 = vmax.f32 %v3311, %v3312
      %v3314 = vrot.slane %v3313, 1
      %v3315 = vmax.f32 %v3313, %v3314
      %v3316 = vsel %vm3189, %v2599, -inf
      %v3317 = vrot.slane %v3316, 4
      %v3318 = vmax.f32 %v3316, %v3317
      %v3319 = vrot.slane %v3318, 2
      %v3320 = vmax.f32 %v3318, %v3319
      %v3321 = vrot.slane %v3320, 1
      %v3322 = vmax.f32 %v3320, %v3321
      %v3323 = vsel %vm3189, %v2601, -inf
      %v3324 = vrot.slane %v3323, 4
      %v3325 = vmax.f32 %v3323, %v3324
      %v3326 = vrot.slane %v3325, 2
      %v3327 = vmax.f32 %v3325, %v3326
      %v3328 = vrot.slane %v3327, 1
      %v3329 = vmax.f32 %v3327, %v3328
      %v3330 = vsel %vm3189, %v2609, -inf
      %v3331 = vrot.slane %v3330, 4
      %v3332 = vmax.f32 %v3330, %v3331
      %v3333 = vrot.slane %v3332, 2
      %v3334 = vmax.f32 %v3332, %v3333
      %v3335 = vrot.slane %v3334, 1
      %v3336 = vmax.f32 %v3334, %v3335
      %v3337 = vsel %vm3189, %v2617, -inf
      %v3338 = vrot.slane %v3337, 4
      %v3339 = vmax.f32 %v3337, %v3338
      %v3340 = vrot.slane %v3339, 2
      %v3341 = vmax.f32 %v3339, %v3340
      %v3342 = vrot.slane %v3341, 1
      %v3343 = vmax.f32 %v3341, %v3342
      %v3344 = vsel %vm3189, %v2616, -inf
      %v3345 = vrot.slane %v3344, 4
      %v3346 = vmax.f32 %v3344, %v3345
      %v3347 = vrot.slane %v3346, 2
      %v3348 = vmax.f32 %v3346, %v3347
      %v3349 = vrot.slane %v3348, 1
      %v3350 = vmax.f32 %v3348, %v3349
      %v3351 = vsel %vm3189, %v2618, -inf
      %v3352 = vrot.slane %v3351, 4
      %v3353 = vmax.f32 %v3351, %v3352
      %v3354 = vrot.slane %v3353, 2
      %v3355 = vmax.f32 %v3353, %v3354
      %v3356 = vrot.slane %v3355, 1
      %v3357 = vmax.f32 %v3355, %v3356
      %v3358 = vsel %vm3189, %v2626, -inf
      %v3359 = vrot.slane %v3358, 4
      %v3360 = vmax.f32 %v3358, %v3359
      %v3361 = vrot.slane %v3360, 2
      %v3362 = vmax.f32 %v3360, %v3361
      %v3363 = vrot.slane %v3362, 1
      %v3364 = vmax.f32 %v3362, %v3363
      %v3365 = vsel %vm3189, %v2634, -inf
      %v3366 = vrot.slane %v3365, 4
      %v3367 = vmax.f32 %v3365, %v3366
      %v3368 = vrot.slane %v3367, 2
      %v3369 = vmax.f32 %v3367, %v3368
      %v3370 = vrot.slane %v3369, 1
      %v3371 = vmax.f32 %v3369, %v3370
      %v3372 = vsel %vm3189, %v2633, -inf
      %v3373 = vrot.slane %v3372, 4
      %v3374 = vmax.f32 %v3372, %v3373
      %v3375 = vrot.slane %v3374, 2
      %v3376 = vmax.f32 %v3374, %v3375
      %v3377 = vrot.slane %v3376, 1
      %v3378 = vmax.f32 %v3376, %v3377
      %v3379 = vsel %vm3189, %v2635, -inf
      %v3380 = vrot.slane %v3379, 4
      %v3381 = vmax.f32 %v3379, %v3380
      %v3382 = vrot.slane %v3381, 2
      %v3383 = vmax.f32 %v3381, %v3382
      %v3384 = vrot.slane %v3383, 1
      %v3385 = vmax.f32 %v3383, %v3384
      %v3386 = vsel %vm3189, %v2643, -inf
      %v3387 = vrot.slane %v3386, 4
      %v3388 = vmax.f32 %v3386, %v3387
      %v3389 = vrot.slane %v3388, 2
      %v3390 = vmax.f32 %v3388, %v3389
      %v3391 = vrot.slane %v3390, 1
      %v3392 = vmax.f32 %v3390, %v3391
      %v3393 = vsel %vm3189, %v2651, -inf
      %v3394 = vrot.slane %v3393, 4
      %v3395 = vmax.f32 %v3393, %v3394
      %v3396 = vrot.slane %v3395, 2
      %v3397 = vmax.f32 %v3395, %v3396
      %v3398 = vrot.slane %v3397, 1
      %v3399 = vmax.f32 %v3397, %v3398
      %v3400 = vsel %vm3189, %v2650, -inf
      %v3401 = vrot.slane %v3400, 4
      %v3402 = vmax.f32 %v3400, %v3401
      %v3403 = vrot.slane %v3402, 2
      %v3404 = vmax.f32 %v3402, %v3403
      %v3405 = vrot.slane %v3404, 1
      %v3406 = vmax.f32 %v3404, %v3405
      %v3407 = vsel %vm3189, %v2652, -inf
      %v3408 = vrot.slane %v3407, 4
      %v3409 = vmax.f32 %v3407, %v3408
      %v3410 = vrot.slane %v3409, 2
      %v3411 = vmax.f32 %v3409, %v3410
      %v3412 = vrot.slane %v3411, 1
      %v3413 = vmax.f32 %v3411, %v3412
      %v3414 = vsel %vm3189, %v2660, -inf
      %v3415 = vrot.slane %v3414, 4
      %v3416 = vmax.f32 %v3414, %v3415
      %v3417 = vrot.slane %v3416, 2
      %v3418 = vmax.f32 %v3416, %v3417
      %v3419 = vrot.slane %v3418, 1
      %v3420 = vmax.f32 %v3418, %v3419
      %v3421 = vsel %vm3189, %v2668, -inf
      %v3422 = vrot.slane %v3421, 4
      %v3423 = vmax.f32 %v3421, %v3422
      %v3424 = vrot.slane %v3423, 2
      %v3425 = vmax.f32 %v3423, %v3424
      %v3426 = vrot.slane %v3425, 1
      %v3427 = vmax.f32 %v3425, %v3426
      %v3428 = vsel %vm3189, %v2667, -inf
      %v3429 = vrot.slane %v3428, 4
      %v3430 = vmax.f32 %v3428, %v3429
      %v3431 = vrot.slane %v3430, 2
      %v3432 = vmax.f32 %v3430, %v3431
      %v3433 = vrot.slane %v3432, 1
      %v3434 = vmax.f32 %v3432, %v3433
      %v3435 = vsel %vm3189, %v2669, -inf
      %v3436 = vrot.slane %v3435, 4
      %v3437 = vmax.f32 %v3435, %v3436
      %v3438 = vrot.slane %v3437, 2
      %v3439 = vmax.f32 %v3437, %v3438
      %v3440 = vrot.slane %v3439, 1
      %v3441 = vmax.f32 %v3439, %v3440
      %v3442 = vsel %vm3189, %v2677, -inf
      %v3443 = vrot.slane %v3442, 4
      %v3444 = vmax.f32 %v3442, %v3443
      %v3445 = vrot.slane %v3444, 2
      %v3446 = vmax.f32 %v3444, %v3445
      %v3447 = vrot.slane %v3446, 1
      %v3448 = vmax.f32 %v3446, %v3447
      %v3449 = vsel %vm3189, %v2685, -inf
      %v3450 = vrot.slane %v3449, 4
      %v3451 = vmax.f32 %v3449, %v3450
      %v3452 = vrot.slane %v3451, 2
      %v3453 = vmax.f32 %v3451, %v3452
      %v3454 = vrot.slane %v3453, 1
      %v3455 = vmax.f32 %v3453, %v3454
      %v3456 = vsel %vm3189, %v2684, -inf
      %v3457 = vrot.slane %v3456, 4
      %v3458 = vmax.f32 %v3456, %v3457
      %v3459 = vrot.slane %v3458, 2
      %v3460 = vmax.f32 %v3458, %v3459
      %v3461 = vrot.slane %v3460, 1
      %v3462 = vmax.f32 %v3460, %v3461
      %v3463 = vsel %vm3189, %v2686, -inf
      %v3464 = vrot.slane %v3463, 4
      %v3465 = vmax.f32 %v3463, %v3464
      %v3466 = vrot.slane %v3465, 2
      %v3467 = vmax.f32 %v3465, %v3466
      %v3468 = vrot.slane %v3467, 1
      %v3469 = vmax.f32 %v3467, %v3468
      %v3470 = vsel %vm3189, %v2694, -inf
      %v3471 = vrot.slane %v3470, 4
      %v3472 = vmax.f32 %v3470, %v3471
      %v3473 = vrot.slane %v3472, 2
      %v3474 = vmax.f32 %v3472, %v3473
      %v3475 = vrot.slane %v3474, 1
      %v3476 = vmax.f32 %v3474, %v3475
      %v3477 = vsel %vm3189, %v2702, -inf
      %v3478 = vrot.slane %v3477, 4
      %v3479 = vmax.f32 %v3477, %v3478
      %v3480 = vrot.slane %v3479, 2
      %v3481 = vmax.f32 %v3479, %v3480
      %v3482 = vrot.slane %v3481, 1
      %v3483 = vmax.f32 %v3481, %v3482
      %v3484 = vsel %vm3189, %v2701, -inf
      %v3485 = vrot.slane %v3484, 4
      %v3486 = vmax.f32 %v3484, %v3485
      %v3487 = vrot.slane %v3486, 2
      %v3488 = vmax.f32 %v3486, %v3487
      %v3489 = vrot.slane %v3488, 1
      %v3490 = vmax.f32 %v3488, %v3489
      %v3491 = vsel %vm3189, %v2703, -inf
      %v3492 = vrot.slane %v3491, 4
      %v3493 = vmax.f32 %v3491, %v3492
      %v3494 = vrot.slane %v3493, 2
      %v3495 = vmax.f32 %v3493, %v3494
      %v3496 = vrot.slane %v3495, 1
      %v3497 = vmax.f32 %v3495, %v3496
      %v3498 = vsel %vm3189, %v2711, -inf
      %v3499 = vrot.slane %v3498, 4
      %v3500 = vmax.f32 %v3498, %v3499
      %v3501 = vrot.slane %v3500, 2
      %v3502 = vmax.f32 %v3500, %v3501
      %v3503 = vrot.slane %v3502, 1
      %v3504 = vmax.f32 %v3502, %v3503
      %v3505 = vsel %vm3189, %v2719, -inf
      %v3506 = vrot.slane %v3505, 4
      %v3507 = vmax.f32 %v3505, %v3506
      %v3508 = vrot.slane %v3507, 2
      %v3509 = vmax.f32 %v3507, %v3508
      %v3510 = vrot.slane %v3509, 1
      %v3511 = vmax.f32 %v3509, %v3510
      %v3512 = vsel %vm3189, %v2718, -inf
      %v3513 = vrot.slane %v3512, 4
      %v3514 = vmax.f32 %v3512, %v3513
      %v3515 = vrot.slane %v3514, 2
      %v3516 = vmax.f32 %v3514, %v3515
      %v3517 = vrot.slane %v3516, 1
      %v3518 = vmax.f32 %v3516, %v3517
      %v3519 = vsel %vm3189, %v2720, -inf
      %v3520 = vrot.slane %v3519, 4
      %v3521 = vmax.f32 %v3519, %v3520
      %v3522 = vrot.slane %v3521, 2
      %v3523 = vmax.f32 %v3521, %v3522
      %v3524 = vrot.slane %v3523, 1
      %v3525 = vmax.f32 %v3523, %v3524
      %v3526 = vsel %vm3189, %v2728, -inf
      %v3527 = vrot.slane %v3526, 4
      %v3528 = vmax.f32 %v3526, %v3527
      %v3529 = vrot.slane %v3528, 2
      %v3530 = vmax.f32 %v3528, %v3529
      %v3531 = vrot.slane %v3530, 1
      %v3532 = vmax.f32 %v3530, %v3531
      %v3533 = vsel %vm3189, %v2736, -inf
      %v3534 = vrot.slane %v3533, 4
      %v3535 = vmax.f32 %v3533, %v3534
      %v3536 = vrot.slane %v3535, 2
      %v3537 = vmax.f32 %v3535, %v3536
      %v3538 = vrot.slane %v3537, 1
      %v3539 = vmax.f32 %v3537, %v3538
      %v3540 = vsel %vm3189, %v2735, -inf
      %v3541 = vrot.slane %v3540, 4
      %v3542 = vmax.f32 %v3540, %v3541
      %v3543 = vrot.slane %v3542, 2
      %v3544 = vmax.f32 %v3542, %v3543
      %v3545 = vrot.slane %v3544, 1
      %v3546 = vmax.f32 %v3544, %v3545
      %v3547 = vsel %vm3189, %v2737, -inf
      %v3548 = vrot.slane %v3547, 4
      %v3549 = vmax.f32 %v3547, %v3548
      %v3550 = vrot.slane %v3549, 2
      %v3551 = vmax.f32 %v3549, %v3550
      %v3552 = vrot.slane %v3551, 1
      %v3553 = vmax.f32 %v3551, %v3552
      %v3554 = vsel %vm3189, %v2745, -inf
      %v3555 = vrot.slane %v3554, 4
      %v3556 = vmax.f32 %v3554, %v3555
      %v3557 = vrot.slane %v3556, 2
      %v3558 = vmax.f32 %v3556, %v3557
      %v3559 = vrot.slane %v3558, 1
      %v3560 = vmax.f32 %v3558, %v3559
      %v3561 = vsel %vm3189, %v2753, -inf
      %v3562 = vrot.slane %v3561, 4
      %v3563 = vmax.f32 %v3561, %v3562
      %v3564 = vrot.slane %v3563, 2
      %v3565 = vmax.f32 %v3563, %v3564
      %v3566 = vrot.slane %v3565, 1
      %v3567 = vmax.f32 %v3565, %v3566
      %v3568 = vsel %vm3189, %v2752, -inf
      %v3569 = vrot.slane %v3568, 4
      %v3570 = vmax.f32 %v3568, %v3569
      %v3571 = vrot.slane %v3570, 2
      %v3572 = vmax.f32 %v3570, %v3571
      %v3573 = vrot.slane %v3572, 1
      %v3574 = vmax.f32 %v3572, %v3573
      %v3575 = vsel %vm3189, %v2754, -inf
      %v3576 = vrot.slane %v3575, 4
      %v3577 = vmax.f32 %v3575, %v3576
      %v3578 = vrot.slane %v3577, 2
      %v3579 = vmax.f32 %v3577, %v3578
      %v3580 = vrot.slane %v3579, 1
      %v3581 = vmax.f32 %v3579, %v3580
      %v3582 = vsel %vm3189, %v2762, -inf
      %v3583 = vrot.slane %v3582, 4
      %v3584 = vmax.f32 %v3582, %v3583
      %v3585 = vrot.slane %v3584, 2
      %v3586 = vmax.f32 %v3584, %v3585
      %v3587 = vrot.slane %v3586, 1
      %v3588 = vmax.f32 %v3586, %v3587
      %v3589 = vsel %vm3189, %v2770, -inf
      %v3590 = vrot.slane %v3589, 4
      %v3591 = vmax.f32 %v3589, %v3590
      %v3592 = vrot.slane %v3591, 2
      %v3593 = vmax.f32 %v3591, %v3592
      %v3594 = vrot.slane %v3593, 1
      %v3595 = vmax.f32 %v3593, %v3594
      %v3596 = vsel %vm3189, %v2769, -inf
      %v3597 = vrot.slane %v3596, 4
      %v3598 = vmax.f32 %v3596, %v3597
      %v3599 = vrot.slane %v3598, 2
      %v3600 = vmax.f32 %v3598, %v3599
      %v3601 = vrot.slane %v3600, 1
      %v3602 = vmax.f32 %v3600, %v3601
      %v3603 = vsel %vm3189, %v2771, -inf
      %v3604 = vrot.slane %v3603, 4
      %v3605 = vmax.f32 %v3603, %v3604
      %v3606 = vrot.slane %v3605, 2
      %v3607 = vmax.f32 %v3605, %v3606
      %v3608 = vrot.slane %v3607, 1
      %v3609 = vmax.f32 %v3607, %v3608
      %v3610 = vsel %vm3189, %v2779, -inf
      %v3611 = vrot.slane %v3610, 4
      %v3612 = vmax.f32 %v3610, %v3611
      %v3613 = vrot.slane %v3612, 2
      %v3614 = vmax.f32 %v3612, %v3613
      %v3615 = vrot.slane %v3614, 1
      %v3616 = vmax.f32 %v3614, %v3615
      %v3617 = vsel %vm3189, %v2787, -inf
      %v3618 = vrot.slane %v3617, 4
      %v3619 = vmax.f32 %v3617, %v3618
      %v3620 = vrot.slane %v3619, 2
      %v3621 = vmax.f32 %v3619, %v3620
      %v3622 = vrot.slane %v3621, 1
      %v3623 = vmax.f32 %v3621, %v3622
      %v3624 = vsel %vm3189, %v2786, -inf
      %v3625 = vrot.slane %v3624, 4
      %v3626 = vmax.f32 %v3624, %v3625
      %v3627 = vrot.slane %v3626, 2
      %v3628 = vmax.f32 %v3626, %v3627
      %v3629 = vrot.slane %v3628, 1
      %v3630 = vmax.f32 %v3628, %v3629
      %v3631 = vsel %vm3189, %v2788, -inf
      %v3632 = vrot.slane %v3631, 4
      %v3633 = vmax.f32 %v3631, %v3632
      %v3634 = vrot.slane %v3633, 2
      %v3635 = vmax.f32 %v3633, %v3634
      %v3636 = vrot.slane %v3635, 1
      %v3637 = vmax.f32 %v3635, %v3636
      %v3638 = vsel %vm3189, %v2796, -inf
      %v3639 = vrot.slane %v3638, 4
      %v3640 = vmax.f32 %v3638, %v3639
      %v3641 = vrot.slane %v3640, 2
      %v3642 = vmax.f32 %v3640, %v3641
      %v3643 = vrot.slane %v3642, 1
      %v3644 = vmax.f32 %v3642, %v3643
      %v3645 = vsel %vm3189, %v2804, -inf
      %v3646 = vrot.slane %v3645, 4
      %v3647 = vmax.f32 %v3645, %v3646
      %v3648 = vrot.slane %v3647, 2
      %v3649 = vmax.f32 %v3647, %v3648
      %v3650 = vrot.slane %v3649, 1
      %v3651 = vmax.f32 %v3649, %v3650
      %v3652 = vsel %vm3189, %v2803, -inf
      %v3653 = vrot.slane %v3652, 4
      %v3654 = vmax.f32 %v3652, %v3653
      %v3655 = vrot.slane %v3654, 2
      %v3656 = vmax.f32 %v3654, %v3655
      %v3657 = vrot.slane %v3656, 1
      %v3658 = vmax.f32 %v3656, %v3657
      %v3659 = vsel %vm3189, %v2805, -inf
      %v3660 = vrot.slane %v3659, 4
      %v3661 = vmax.f32 %v3659, %v3660
      %v3662 = vrot.slane %v3661, 2
      %v3663 = vmax.f32 %v3661, %v3662
      %v3664 = vrot.slane %v3663, 1
      %v3665 = vmax.f32 %v3663, %v3664
      %v3666 = vsel %vm3189, %v2813, -inf
      %v3667 = vrot.slane %v3666, 4
      %v3668 = vmax.f32 %v3666, %v3667
      %v3669 = vrot.slane %v3668, 2
      %v3670 = vmax.f32 %v3668, %v3669
      %v3671 = vrot.slane %v3670, 1
      %v3672 = vmax.f32 %v3670, %v3671
      %v3673 = vsel %vm3189, %v2821, -inf
      %v3674 = vrot.slane %v3673, 4
      %v3675 = vmax.f32 %v3673, %v3674
      %v3676 = vrot.slane %v3675, 2
      %v3677 = vmax.f32 %v3675, %v3676
      %v3678 = vrot.slane %v3677, 1
      %v3679 = vmax.f32 %v3677, %v3678
      %v3680 = vsel %vm3189, %v2820, -inf
      %v3681 = vrot.slane %v3680, 4
      %v3682 = vmax.f32 %v3680, %v3681
      %v3683 = vrot.slane %v3682, 2
      %v3684 = vmax.f32 %v3682, %v3683
      %v3685 = vrot.slane %v3684, 1
      %v3686 = vmax.f32 %v3684, %v3685
      %v3687 = vsel %vm3189, %v2822, -inf
      %v3688 = vrot.slane %v3687, 4
      %v3689 = vmax.f32 %v3687, %v3688
      %v3690 = vrot.slane %v3689, 2
      %v3691 = vmax.f32 %v3689, %v3690
      %v3692 = vrot.slane %v3691, 1
      %v3693 = vmax.f32 %v3691, %v3692
      %v3694 = vsel %vm3189, %v2830, -inf
      %v3695 = vrot.slane %v3694, 4
      %v3696 = vmax.f32 %v3694, %v3695
      %v3697 = vrot.slane %v3696, 2
      %v3698 = vmax.f32 %v3696, %v3697
      %v3699 = vrot.slane %v3698, 1
      %v3700 = vmax.f32 %v3698, %v3699
      %v3701 = vsel %vm3189, %v2838, -inf
      %v3702 = vrot.slane %v3701, 4
      %v3703 = vmax.f32 %v3701, %v3702
      %v3704 = vrot.slane %v3703, 2
      %v3705 = vmax.f32 %v3703, %v3704
      %v3706 = vrot.slane %v3705, 1
      %v3707 = vmax.f32 %v3705, %v3706
      %v3708 = vsel %vm3189, %v2837, -inf
      %v3709 = vrot.slane %v3708, 4
      %v3710 = vmax.f32 %v3708, %v3709
      %v3711 = vrot.slane %v3710, 2
      %v3712 = vmax.f32 %v3710, %v3711
      %v3713 = vrot.slane %v3712, 1
      %v3714 = vmax.f32 %v3712, %v3713
      %v3715 = vsel %vm3189, %v2839, -inf
      %v3716 = vrot.slane %v3715, 4
      %v3717 = vmax.f32 %v3715, %v3716
      %v3718 = vrot.slane %v3717, 2
      %v3719 = vmax.f32 %v3717, %v3718
      %v3720 = vrot.slane %v3719, 1
      %v3721 = vmax.f32 %v3719, %v3720
      %v3722 = vsel %vm3189, %v2847, -inf
      %v3723 = vrot.slane %v3722, 4
      %v3724 = vmax.f32 %v3722, %v3723
      %v3725 = vrot.slane %v3724, 2
      %v3726 = vmax.f32 %v3724, %v3725
      %v3727 = vrot.slane %v3726, 1
      %v3728 = vmax.f32 %v3726, %v3727
      %v3729 = vsel %vm3189, %v2855, -inf
      %v3730 = vrot.slane %v3729, 4
      %v3731 = vmax.f32 %v3729, %v3730
      %v3732 = vrot.slane %v3731, 2
      %v3733 = vmax.f32 %v3731, %v3732
      %v3734 = vrot.slane %v3733, 1
      %v3735 = vmax.f32 %v3733, %v3734
      %v3736 = vsel %vm3189, %v2854, -inf
      %v3737 = vrot.slane %v3736, 4
      %v3738 = vmax.f32 %v3736, %v3737
      %v3739 = vrot.slane %v3738, 2
      %v3740 = vmax.f32 %v3738, %v3739
      %v3741 = vrot.slane %v3740, 1
      %v3742 = vmax.f32 %v3740, %v3741
      %v3743 = vsel %vm3189, %v2856, -inf
      %v3744 = vrot.slane %v3743, 4
      %v3745 = vmax.f32 %v3743, %v3744
      %v3746 = vrot.slane %v3745, 2
      %v3747 = vmax.f32 %v3745, %v3746
      %v3748 = vrot.slane %v3747, 1
      %v3749 = vmax.f32 %v3747, %v3748
      %v3750 = vsel %vm3189, %v2864, -inf
      %v3751 = vrot.slane %v3750, 4
      %v3752 = vmax.f32 %v3750, %v3751
      %v3753 = vrot.slane %v3752, 2
      %v3754 = vmax.f32 %v3752, %v3753
      %v3755 = vrot.slane %v3754, 1
      %v3756 = vmax.f32 %v3754, %v3755
      %v3757 = vsel %vm3189, %v2872, -inf
      %v3758 = vrot.slane %v3757, 4
      %v3759 = vmax.f32 %v3757, %v3758
      %v3760 = vrot.slane %v3759, 2
      %v3761 = vmax.f32 %v3759, %v3760
      %v3762 = vrot.slane %v3761, 1
      %v3763 = vmax.f32 %v3761, %v3762
      %v3764 = vsel %vm3189, %v2871, -inf
      %v3765 = vrot.slane %v3764, 4
      %v3766 = vmax.f32 %v3764, %v3765
      %v3767 = vrot.slane %v3766, 2
      %v3768 = vmax.f32 %v3766, %v3767
      %v3769 = vrot.slane %v3768, 1
      %v3770 = vmax.f32 %v3768, %v3769
      %v3771 = vsel %vm3189, %v2873, -inf
      %v3772 = vrot.slane %v3771, 4
      %v3773 = vmax.f32 %v3771, %v3772
      %v3774 = vrot.slane %v3773, 2
      %v3775 = vmax.f32 %v3773, %v3774
      %v3776 = vrot.slane %v3775, 1
      %v3777 = vmax.f32 %v3775, %v3776
      %v3778 = vsel %vm3189, %v2881, -inf
      %v3779 = vrot.slane %v3778, 4
      %v3780 = vmax.f32 %v3778, %v3779
      %v3781 = vrot.slane %v3780, 2
      %v3782 = vmax.f32 %v3780, %v3781
      %v3783 = vrot.slane %v3782, 1
      %v3784 = vmax.f32 %v3782, %v3783
      %v3785 = vsel %vm3189, %v2889, -inf
      %v3786 = vrot.slane %v3785, 4
      %v3787 = vmax.f32 %v3785, %v3786
      %v3788 = vrot.slane %v3787, 2
      %v3789 = vmax.f32 %v3787, %v3788
      %v3790 = vrot.slane %v3789, 1
      %v3791 = vmax.f32 %v3789, %v3790
      %v3792 = vsel %vm3189, %v2888, -inf
      %v3793 = vrot.slane %v3792, 4
      %v3794 = vmax.f32 %v3792, %v3793
      %v3795 = vrot.slane %v3794, 2
      %v3796 = vmax.f32 %v3794, %v3795
      %v3797 = vrot.slane %v3796, 1
      %v3798 = vmax.f32 %v3796, %v3797
      %v3799 = vsel %vm3189, %v2890, -inf
      %v3800 = vrot.slane %v3799, 4
      %v3801 = vmax.f32 %v3799, %v3800
      %v3802 = vrot.slane %v3801, 2
      %v3803 = vmax.f32 %v3801, %v3802
      %v3804 = vrot.slane %v3803, 1
      %v3805 = vmax.f32 %v3803, %v3804
      %v3806 = vsel %vm3189, %v2898, -inf
      %v3807 = vrot.slane %v3806, 4
      %v3808 = vmax.f32 %v3806, %v3807
      %v3809 = vrot.slane %v3808, 2
      %v3810 = vmax.f32 %v3808, %v3809
      %v3811 = vrot.slane %v3810, 1
      %v3812 = vmax.f32 %v3810, %v3811
      %v3813 = vsel %vm3189, %v2906, -inf
      %v3814 = vrot.slane %v3813, 4
      %v3815 = vmax.f32 %v3813, %v3814
      %v3816 = vrot.slane %v3815, 2
      %v3817 = vmax.f32 %v3815, %v3816
      %v3818 = vrot.slane %v3817, 1
      %v3819 = vmax.f32 %v3817, %v3818
      %v3820 = vsel %vm3189, %v2905, -inf
      %v3821 = vrot.slane %v3820, 4
      %v3822 = vmax.f32 %v3820, %v3821
      %v3823 = vrot.slane %v3822, 2
      %v3824 = vmax.f32 %v3822, %v3823
      %v3825 = vrot.slane %v3824, 1
      %v3826 = vmax.f32 %v3824, %v3825
      %v3827 = vsel %vm3189, %v2907, -inf
      %v3828 = vrot.slane %v3827, 4
      %v3829 = vmax.f32 %v3827, %v3828
      %v3830 = vrot.slane %v3829, 2
      %v3831 = vmax.f32 %v3829, %v3830
      %v3832 = vrot.slane %v3831, 1
      %v3833 = vmax.f32 %v3831, %v3832
      %v3834 = vsel %vm3189, %v2915, -inf
      %v3835 = vrot.slane %v3834, 4
      %v3836 = vmax.f32 %v3834, %v3835
      %v3837 = vrot.slane %v3836, 2
      %v3838 = vmax.f32 %v3836, %v3837
      %v3839 = vrot.slane %v3838, 1
      %v3840 = vmax.f32 %v3838, %v3839
      %v3841 = vsel %vm3189, %v2923, -inf
      %v3842 = vrot.slane %v3841, 4
      %v3843 = vmax.f32 %v3841, %v3842
      %v3844 = vrot.slane %v3843, 2
      %v3845 = vmax.f32 %v3843, %v3844
      %v3846 = vrot.slane %v3845, 1
      %v3847 = vmax.f32 %v3845, %v3846
      %v3848 = vsel %vm3189, %v2922, -inf
      %v3849 = vrot.slane %v3848, 4
      %v3850 = vmax.f32 %v3848, %v3849
      %v3851 = vrot.slane %v3850, 2
      %v3852 = vmax.f32 %v3850, %v3851
      %v3853 = vrot.slane %v3852, 1
      %v3854 = vmax.f32 %v3852, %v3853
      %v3855 = vsel %vm3189, %v2924, -inf
      %v3856 = vrot.slane %v3855, 4
      %v3857 = vmax.f32 %v3855, %v3856
      %v3858 = vrot.slane %v3857, 2
      %v3859 = vmax.f32 %v3857, %v3858
      %v3860 = vrot.slane %v3859, 1
      %v3861 = vmax.f32 %v3859, %v3860
      %v3862 = vsel %vm3189, %v2932, -inf
      %v3863 = vrot.slane %v3862, 4
      %v3864 = vmax.f32 %v3862, %v3863
      %v3865 = vrot.slane %v3864, 2
      %v3866 = vmax.f32 %v3864, %v3865
      %v3867 = vrot.slane %v3866, 1
      %v3868 = vmax.f32 %v3866, %v3867
      %v3869 = vsel %vm3189, %v2940, -inf
      %v3870 = vrot.slane %v3869, 4
      %v3871 = vmax.f32 %v3869, %v3870
      %v3872 = vrot.slane %v3871, 2
      %v3873 = vmax.f32 %v3871, %v3872
      %v3874 = vrot.slane %v3873, 1
      %v3875 = vmax.f32 %v3873, %v3874
      %v3876 = vsel %vm3189, %v2939, -inf
      %v3877 = vrot.slane %v3876, 4
      %v3878 = vmax.f32 %v3876, %v3877
      %v3879 = vrot.slane %v3878, 2
      %v3880 = vmax.f32 %v3878, %v3879
      %v3881 = vrot.slane %v3880, 1
      %v3882 = vmax.f32 %v3880, %v3881
      %v3883 = vsel %vm3189, %v2941, -inf
      %v3884 = vrot.slane %v3883, 4
      %v3885 = vmax.f32 %v3883, %v3884
      %v3886 = vrot.slane %v3885, 2
      %v3887 = vmax.f32 %v3885, %v3886
      %v3888 = vrot.slane %v3887, 1
      %v3889 = vmax.f32 %v3887, %v3888
      %v3890 = vsel %vm3189, %v2949, -inf
      %v3891 = vrot.slane %v3890, 4
      %v3892 = vmax.f32 %v3890, %v3891
      %v3893 = vrot.slane %v3892, 2
      %v3894 = vmax.f32 %v3892, %v3893
      %v3895 = vrot.slane %v3894, 1
      %v3896 = vmax.f32 %v3894, %v3895
      %v3897 = vsel %vm3189, %v2957, -inf
      %v3898 = vrot.slane %v3897, 4
      %v3899 = vmax.f32 %v3897, %v3898
      %v3900 = vrot.slane %v3899, 2
      %v3901 = vmax.f32 %v3899, %v3900
      %v3902 = vrot.slane %v3901, 1
      %v3903 = vmax.f32 %v3901, %v3902
      %v3904 = vsel %vm3189, %v2956, -inf
      %v3905 = vrot.slane %v3904, 4
      %v3906 = vmax.f32 %v3904, %v3905
      %v3907 = vrot.slane %v3906, 2
      %v3908 = vmax.f32 %v3906, %v3907
      %v3909 = vrot.slane %v3908, 1
      %v3910 = vmax.f32 %v3908, %v3909
      %v3911 = vsel %vm3189, %v2958, -inf
      %v3912 = vrot.slane %v3911, 4
      %v3913 = vmax.f32 %v3911, %v3912
      %v3914 = vrot.slane %v3913, 2
      %v3915 = vmax.f32 %v3913, %v3914
      %v3916 = vrot.slane %v3915, 1
      %v3917 = vmax.f32 %v3915, %v3916
      %v3918 = vsel %vm3189, %v2966, -inf
      %v3919 = vrot.slane %v3918, 4
      %v3920 = vmax.f32 %v3918, %v3919
      %v3921 = vrot.slane %v3920, 2
      %v3922 = vmax.f32 %v3920, %v3921
      %v3923 = vrot.slane %v3922, 1
      %v3924 = vmax.f32 %v3922, %v3923
      %v3925 = vsel %vm3189, %v2974, -inf
      %v3926 = vrot.slane %v3925, 4
      %v3927 = vmax.f32 %v3925, %v3926
      %v3928 = vrot.slane %v3927, 2
      %v3929 = vmax.f32 %v3927, %v3928
      %v3930 = vrot.slane %v3929, 1
      %v3931 = vmax.f32 %v3929, %v3930
      %v3932 = vsel %vm3189, %v2973, -inf
      %v3933 = vrot.slane %v3932, 4
      %v3934 = vmax.f32 %v3932, %v3933
      %v3935 = vrot.slane %v3934, 2
      %v3936 = vmax.f32 %v3934, %v3935
      %v3937 = vrot.slane %v3936, 1
      %v3938 = vmax.f32 %v3936, %v3937
      %v3939 = vsel %vm3189, %v2975, -inf
      %v3940 = vrot.slane %v3939, 4
      %v3941 = vmax.f32 %v3939, %v3940
      %v3942 = vrot.slane %v3941, 2
      %v3943 = vmax.f32 %v3941, %v3942
      %v3944 = vrot.slane %v3943, 1
      %v3945 = vmax.f32 %v3943, %v3944
      %v3946 = vsel %vm3189, %v2983, -inf
      %v3947 = vrot.slane %v3946, 4
      %v3948 = vmax.f32 %v3946, %v3947
      %v3949 = vrot.slane %v3948, 2
      %v3950 = vmax.f32 %v3948, %v3949
      %v3951 = vrot.slane %v3950, 1
      %v3952 = vmax.f32 %v3950, %v3951
      %v3953 = vsel %vm3189, %v2991, -inf
      %v3954 = vrot.slane %v3953, 4
      %v3955 = vmax.f32 %v3953, %v3954
      %v3956 = vrot.slane %v3955, 2
      %v3957 = vmax.f32 %v3955, %v3956
      %v3958 = vrot.slane %v3957, 1
      %v3959 = vmax.f32 %v3957, %v3958
      %v3960 = vsel %vm3189, %v2990, -inf
      %v3961 = vrot.slane %v3960, 4
      %v3962 = vmax.f32 %v3960, %v3961
      %v3963 = vrot.slane %v3962, 2
      %v3964 = vmax.f32 %v3962, %v3963
      %v3965 = vrot.slane %v3964, 1
      %v3966 = vmax.f32 %v3964, %v3965
      %v3967 = vsel %vm3189, %v2992, -inf
      %v3968 = vrot.slane %v3967, 4
      %v3969 = vmax.f32 %v3967, %v3968
      %v3970 = vrot.slane %v3969, 2
      %v3971 = vmax.f32 %v3969, %v3970
      %v3972 = vrot.slane %v3971, 1
      %v3973 = vmax.f32 %v3971, %v3972
      %v3974 = vsel %vm3189, %v3000, -inf
      %v3975 = vrot.slane %v3974, 4
      %v3976 = vmax.f32 %v3974, %v3975
      %v3977 = vrot.slane %v3976, 2
      %v3978 = vmax.f32 %v3976, %v3977
      %v3979 = vrot.slane %v3978, 1
      %v3980 = vmax.f32 %v3978, %v3979
      %v3981 = vsel %vm3189, %v3008, -inf
      %v3982 = vrot.slane %v3981, 4
      %v3983 = vmax.f32 %v3981, %v3982
      %v3984 = vrot.slane %v3983, 2
      %v3985 = vmax.f32 %v3983, %v3984
      %v3986 = vrot.slane %v3985, 1
      %v3987 = vmax.f32 %v3985, %v3986
      %v3988 = vsel %vm3189, %v3007, -inf
      %v3989 = vrot.slane %v3988, 4
      %v3990 = vmax.f32 %v3988, %v3989
      %v3991 = vrot.slane %v3990, 2
      %v3992 = vmax.f32 %v3990, %v3991
      %v3993 = vrot.slane %v3992, 1
      %v3994 = vmax.f32 %v3992, %v3993
      %v3995 = vsel %vm3189, %v3009, -inf
      %v3996 = vrot.slane %v3995, 4
      %v3997 = vmax.f32 %v3995, %v3996
      %v3998 = vrot.slane %v3997, 2
      %v3999 = vmax.f32 %v3997, %v3998
      %v4000 = vrot.slane %v3999, 1
      %v4001 = vmax.f32 %v3999, %v4000
      %v4002 = vsel %vm3189, %v3017, -inf
      %v4003 = vrot.slane %v4002, 4
      %v4004 = vmax.f32 %v4002, %v4003
      %v4005 = vrot.slane %v4004, 2
      %v4006 = vmax.f32 %v4004, %v4005
      %v4007 = vrot.slane %v4006, 1
      %v4008 = vmax.f32 %v4006, %v4007
      %v4009 = vsel %vm3189, %v3025, -inf
      %v4010 = vrot.slane %v4009, 4
      %v4011 = vmax.f32 %v4009, %v4010
      %v4012 = vrot.slane %v4011, 2
      %v4013 = vmax.f32 %v4011, %v4012
      %v4014 = vrot.slane %v4013, 1
      %v4015 = vmax.f32 %v4013, %v4014
      %v4016 = vsel %vm3189, %v3024, -inf
      %v4017 = vrot.slane %v4016, 4
      %v4018 = vmax.f32 %v4016, %v4017
      %v4019 = vrot.slane %v4018, 2
      %v4020 = vmax.f32 %v4018, %v4019
      %v4021 = vrot.slane %v4020, 1
      %v4022 = vmax.f32 %v4020, %v4021
      %v4023 = vsel %vm3189, %v3026, -inf
      %v4024 = vrot.slane %v4023, 4
      %v4025 = vmax.f32 %v4023, %v4024
      %v4026 = vrot.slane %v4025, 2
      %v4027 = vmax.f32 %v4025, %v4026
      %v4028 = vrot.slane %v4027, 1
      %v4029 = vmax.f32 %v4027, %v4028
      %v4030 = vsel %vm3189, %v3034, -inf
      %v4031 = vrot.slane %v4030, 4
      %v4032 = vmax.f32 %v4030, %v4031
      %v4033 = vrot.slane %v4032, 2
      %v4034 = vmax.f32 %v4032, %v4033
      %v4035 = vrot.slane %v4034, 1
      %v4036 = vmax.f32 %v4034, %v4035
      %v4037 = vsel %vm3189, %v3042, -inf
      %v4038 = vrot.slane %v4037, 4
      %v4039 = vmax.f32 %v4037, %v4038
      %v4040 = vrot.slane %v4039, 2
      %v4041 = vmax.f32 %v4039, %v4040
      %v4042 = vrot.slane %v4041, 1
      %v4043 = vmax.f32 %v4041, %v4042
      %v4044 = vsel %vm3189, %v3041, -inf
      %v4045 = vrot.slane %v4044, 4
      %v4046 = vmax.f32 %v4044, %v4045
      %v4047 = vrot.slane %v4046, 2
      %v4048 = vmax.f32 %v4046, %v4047
      %v4049 = vrot.slane %v4048, 1
      %v4050 = vmax.f32 %v4048, %v4049
      %v4051 = vsel %vm3189, %v3043, -inf
      %v4052 = vrot.slane %v4051, 4
      %v4053 = vmax.f32 %v4051, %v4052
      %v4054 = vrot.slane %v4053, 2
      %v4055 = vmax.f32 %v4053, %v4054
      %v4056 = vrot.slane %v4055, 1
      %v4057 = vmax.f32 %v4055, %v4056
      %v4058 = vsel %vm3189, %v3051, -inf
      %v4059 = vrot.slane %v4058, 4
      %v4060 = vmax.f32 %v4058, %v4059
      %v4061 = vrot.slane %v4060, 2
      %v4062 = vmax.f32 %v4060, %v4061
      %v4063 = vrot.slane %v4062, 1
      %v4064 = vmax.f32 %v4062, %v4063
      %v4065 = vsel %vm3189, %v3059, -inf
      %v4066 = vrot.slane %v4065, 4
      %v4067 = vmax.f32 %v4065, %v4066
      %v4068 = vrot.slane %v4067, 2
      %v4069 = vmax.f32 %v4067, %v4068
      %v4070 = vrot.slane %v4069, 1
      %v4071 = vmax.f32 %v4069, %v4070
      %v4072 = vsel %vm3189, %v3058, -inf
      %v4073 = vrot.slane %v4072, 4
      %v4074 = vmax.f32 %v4072, %v4073
      %v4075 = vrot.slane %v4074, 2
      %v4076 = vmax.f32 %v4074, %v4075
      %v4077 = vrot.slane %v4076, 1
      %v4078 = vmax.f32 %v4076, %v4077
      %v4079 = vsel %vm3189, %v3060, -inf
      %v4080 = vrot.slane %v4079, 4
      %v4081 = vmax.f32 %v4079, %v4080
      %v4082 = vrot.slane %v4081, 2
      %v4083 = vmax.f32 %v4081, %v4082
      %v4084 = vrot.slane %v4083, 1
      %v4085 = vmax.f32 %v4083, %v4084
      %vm4086 = vcmask 261120
      %v4087 = vsel %vm4086, %v3196, -inf
      %v4088 = vsel %vm4086, %v3252, -inf
      %v4089 = vmax.f32 %v4087, %v4088
      %v4090 = vsel %vm4086, %v3203, -inf
      %v4091 = vsel %vm4086, %v3259, -inf
      %v4092 = vmax.f32 %v4090, %v4091
      %v4093 = vsel %vm4086, %v3210, -inf
      %v4094 = vsel %vm4086, %v3266, -inf
      %v4095 = vmax.f32 %v4093, %v4094
      %v4096 = vsel %vm4086, %v3217, -inf
      %v4097 = vsel %vm4086, %v3273, -inf
      %v4098 = vmax.f32 %v4096, %v4097
      %v4099 = vsel %vm4086, %v3224, -inf
      %v4100 = vsel %vm4086, %v3280, -inf
      %v4101 = vmax.f32 %v4099, %v4100
      %v4102 = vsel %vm4086, %v3231, -inf
      %v4103 = vsel %vm4086, %v3287, -inf
      %v4104 = vmax.f32 %v4102, %v4103
      %v4105 = vsel %vm4086, %v3238, -inf
      %v4106 = vsel %vm4086, %v3294, -inf
      %v4107 = vmax.f32 %v4105, %v4106
      %v4108 = vsel %vm4086, %v3245, -inf
      %v4109 = vsel %vm4086, %v3301, -inf
      %v4110 = vmax.f32 %v4108, %v4109
      %v4111 = vsel %vm4086, %v3308, -inf
      %v4112 = vsel %vm4086, %v3364, -inf
      %v4113 = vmax.f32 %v4111, %v4112
      %v4114 = vsel %vm4086, %v3315, -inf
      %v4115 = vsel %vm4086, %v3371, -inf
      %v4116 = vmax.f32 %v4114, %v4115
      %v4117 = vsel %vm4086, %v3322, -inf
      %v4118 = vsel %vm4086, %v3378, -inf
      %v4119 = vmax.f32 %v4117, %v4118
      %v4120 = vsel %vm4086, %v3329, -inf
      %v4121 = vsel %vm4086, %v3385, -inf
      %v4122 = vmax.f32 %v4120, %v4121
      %v4123 = vsel %vm4086, %v3336, -inf
      %v4124 = vsel %vm4086, %v3392, -inf
      %v4125 = vmax.f32 %v4123, %v4124
      %v4126 = vsel %vm4086, %v3343, -inf
      %v4127 = vsel %vm4086, %v3399, -inf
      %v4128 = vmax.f32 %v4126, %v4127
      %v4129 = vsel %vm4086, %v3350, -inf
      %v4130 = vsel %vm4086, %v3406, -inf
      %v4131 = vmax.f32 %v4129, %v4130
      %v4132 = vsel %vm4086, %v3357, -inf
      %v4133 = vsel %vm4086, %v3413, -inf
      %v4134 = vmax.f32 %v4132, %v4133
      %v4135 = vsel %vm4086, %v3420, -inf
      %v4136 = vsel %vm4086, %v3476, -inf
      %v4137 = vmax.f32 %v4135, %v4136
      %v4138 = vsel %vm4086, %v3427, -inf
      %v4139 = vsel %vm4086, %v3483, -inf
      %v4140 = vmax.f32 %v4138, %v4139
      %v4141 = vsel %vm4086, %v3434, -inf
      %v4142 = vsel %vm4086, %v3490, -inf
      %v4143 = vmax.f32 %v4141, %v4142
      %v4144 = vsel %vm4086, %v3441, -inf
      %v4145 = vsel %vm4086, %v3497, -inf
      %v4146 = vmax.f32 %v4144, %v4145
      %v4147 = vsel %vm4086, %v3448, -inf
      %v4148 = vsel %vm4086, %v3504, -inf
      %v4149 = vmax.f32 %v4147, %v4148
      %v4150 = vsel %vm4086, %v3455, -inf
      %v4151 = vsel %vm4086, %v3511, -inf
      %v4152 = vmax.f32 %v4150, %v4151
      %v4153 = vsel %vm4086, %v3462, -inf
      %v4154 = vsel %vm4086, %v3518, -inf
      %v4155 = vmax.f32 %v4153, %v4154
      %v4156 = vsel %vm4086, %v3469, -inf
      %v4157 = vsel %vm4086, %v3525, -inf
      %v4158 = vmax.f32 %v4156, %v4157
      %v4159 = vsel %vm4086, %v3532, -inf
      %v4160 = vsel %vm4086, %v3588, -inf
      %v4161 = vmax.f32 %v4159, %v4160
      %v4162 = vsel %vm4086, %v3539, -inf
      %v4163 = vsel %vm4086, %v3595, -inf
      %v4164 = vmax.f32 %v4162, %v4163
      %v4165 = vsel %vm4086, %v3546, -inf
      %v4166 = vsel %vm4086, %v3602, -inf
      %v4167 = vmax.f32 %v4165, %v4166
      %v4168 = vsel %vm4086, %v3553, -inf
      %v4169 = vsel %vm4086, %v3609, -inf
      %v4170 = vmax.f32 %v4168, %v4169
      %v4171 = vsel %vm4086, %v3560, -inf
      %v4172 = vsel %vm4086, %v3616, -inf
      %v4173 = vmax.f32 %v4171, %v4172
      %v4174 = vsel %vm4086, %v3567, -inf
      %v4175 = vsel %vm4086, %v3623, -inf
      %v4176 = vmax.f32 %v4174, %v4175
      %v4177 = vsel %vm4086, %v3574, -inf
      %v4178 = vsel %vm4086, %v3630, -inf
      %v4179 = vmax.f32 %v4177, %v4178
      %v4180 = vsel %vm4086, %v3581, -inf
      %v4181 = vsel %vm4086, %v3637, -inf
      %v4182 = vmax.f32 %v4180, %v4181
      %v4183 = vsel %vm4086, %v3644, -inf
      %v4184 = vsel %vm4086, %v3700, -inf
      %v4185 = vmax.f32 %v4183, %v4184
      %v4186 = vsel %vm4086, %v3651, -inf
      %v4187 = vsel %vm4086, %v3707, -inf
      %v4188 = vmax.f32 %v4186, %v4187
      %v4189 = vsel %vm4086, %v3658, -inf
      %v4190 = vsel %vm4086, %v3714, -inf
      %v4191 = vmax.f32 %v4189, %v4190
      %v4192 = vsel %vm4086, %v3665, -inf
      %v4193 = vsel %vm4086, %v3721, -inf
      %v4194 = vmax.f32 %v4192, %v4193
      %v4195 = vsel %vm4086, %v3672, -inf
      %v4196 = vsel %vm4086, %v3728, -inf
      %v4197 = vmax.f32 %v4195, %v4196
      %v4198 = vsel %vm4086, %v3679, -inf
      %v4199 = vsel %vm4086, %v3735, -inf
      %v4200 = vmax.f32 %v4198, %v4199
      %v4201 = vsel %vm4086, %v3686, -inf
      %v4202 = vsel %vm4086, %v3742, -inf
      %v4203 = vmax.f32 %v4201, %v4202
      %v4204 = vsel %vm4086, %v3693, -inf
      %v4205 = vsel %vm4086, %v3749, -inf
      %v4206 = vmax.f32 %v4204, %v4205
      %v4207 = vsel %vm4086, %v3756, -inf
      %v4208 = vsel %vm4086, %v3812, -inf
      %v4209 = vmax.f32 %v4207, %v4208
      %v4210 = vsel %vm4086, %v3763, -inf
      %v4211 = vsel %vm4086, %v3819, -inf
      %v4212 = vmax.f32 %v4210, %v4211
      %v4213 = vsel %vm4086, %v3770, -inf
      %v4214 = vsel %vm4086, %v3826, -inf
      %v4215 = vmax.f32 %v4213, %v4214
      %v4216 = vsel %vm4086, %v3777, -inf
      %v4217 = vsel %vm4086, %v3833, -inf
      %v4218 = vmax.f32 %v4216, %v4217
      %v4219 = vsel %vm4086, %v3784, -inf
      %v4220 = vsel %vm4086, %v3840, -inf
      %v4221 = vmax.f32 %v4219, %v4220
      %v4222 = vsel %vm4086, %v3791, -inf
      %v4223 = vsel %vm4086, %v3847, -inf
      %v4224 = vmax.f32 %v4222, %v4223
      %v4225 = vsel %vm4086, %v3798, -inf
      %v4226 = vsel %vm4086, %v3854, -inf
      %v4227 = vmax.f32 %v4225, %v4226
      %v4228 = vsel %vm4086, %v3805, -inf
      %v4229 = vsel %vm4086, %v3861, -inf
      %v4230 = vmax.f32 %v4228, %v4229
      %v4231 = vsel %vm4086, %v3868, -inf
      %v4232 = vsel %vm4086, %v3924, -inf
      %v4233 = vmax.f32 %v4231, %v4232
      %v4234 = vsel %vm4086, %v3875, -inf
      %v4235 = vsel %vm4086, %v3931, -inf
      %v4236 = vmax.f32 %v4234, %v4235
      %v4237 = vsel %vm4086, %v3882, -inf
      %v4238 = vsel %vm4086, %v3938, -inf
      %v4239 = vmax.f32 %v4237, %v4238
      %v4240 = vsel %vm4086, %v3889, -inf
      %v4241 = vsel %vm4086, %v3945, -inf
      %v4242 = vmax.f32 %v4240, %v4241
      %v4243 = vsel %vm4086, %v3896, -inf
      %v4244 = vsel %vm4086, %v3952, -inf
      %v4245 = vmax.f32 %v4243, %v4244
      %v4246 = vsel %vm4086, %v3903, -inf
      %v4247 = vsel %vm4086, %v3959, -inf
      %v4248 = vmax.f32 %v4246, %v4247
      %v4249 = vsel %vm4086, %v3910, -inf
      %v4250 = vsel %vm4086, %v3966, -inf
      %v4251 = vmax.f32 %v4249, %v4250
      %v4252 = vsel %vm4086, %v3917, -inf
      %v4253 = vsel %vm4086, %v3973, -inf
      %v4254 = vmax.f32 %v4252, %v4253
      %v4255 = vsel %vm4086, %v3980, -inf
      %v4256 = vsel %vm4086, %v4036, -inf
      %v4257 = vmax.f32 %v4255, %v4256
      %v4258 = vsel %vm4086, %v3987, -inf
      %v4259 = vsel %vm4086, %v4043, -inf
      %v4260 = vmax.f32 %v4258, %v4259
      %v4261 = vsel %vm4086, %v3994, -inf
      %v4262 = vsel %vm4086, %v4050, -inf
      %v4263 = vmax.f32 %v4261, %v4262
      %v4264 = vsel %vm4086, %v4001, -inf
      %v4265 = vsel %vm4086, %v4057, -inf
      %v4266 = vmax.f32 %v4264, %v4265
      %v4267 = vsel %vm4086, %v4008, -inf
      %v4268 = vsel %vm4086, %v4064, -inf
      %v4269 = vmax.f32 %v4267, %v4268
      %v4270 = vsel %vm4086, %v4015, -inf
      %v4271 = vsel %vm4086, %v4071, -inf
      %v4272 = vmax.f32 %v4270, %v4271
      %v4273 = vsel %vm4086, %v4022, -inf
      %v4274 = vsel %vm4086, %v4078, -inf
      %v4275 = vmax.f32 %v4273, %v4274
      %v4276 = vsel %vm4086, %v4029, -inf
      %v4277 = vsel %vm4086, %v4085, -inf
      %v4278 = vmax.f32 %v4276, %v4277
      %4279 = vst.msk [vmem:[#allocation3] sm:$0xff] %vm4086, 0.0
      %4280 = vst.msk [vmem:[#allocation3 + $0x8] sm:$0x3] %vm3189, 0.0
      %4281 = vst.msk [vmem:[#allocation3 + $0x10] sm:$0xff] %vm4086, 0.0
      %4282 = vst.msk [vmem:[#allocation3 + $0x18] sm:$0x3] %vm3189, 0.0
      %4283 = vst.msk [vmem:[#allocation3 + $0x20] sm:$0xff] %vm4086, 0.0
      %4284 = vst.msk [vmem:[#allocation3 + $0x28] sm:$0x3] %vm3189, 0.0
      %4285 = vst.msk [vmem:[#allocation3 + $0x30] sm:$0xff] %vm4086, 0.0
      %4286 = vst.msk [vmem:[#allocation3 + $0x38] sm:$0x3] %vm3189, 0.0
      %4287 = vst.msk [vmem:[#allocation3 + $0x40] sm:$0xff] %vm4086, 0.0
      %4288 = vst.msk [vmem:[#allocation3 + $0x48] sm:$0x3] %vm3189, 0.0
      %4289 = vst.msk [vmem:[#allocation3 + $0x50] sm:$0xff] %vm4086, 0.0
      %4290 = vst.msk [vmem:[#allocation3 + $0x58] sm:$0x3] %vm3189, 0.0
      %4291 = vst.msk [vmem:[#allocation3 + $0x60] sm:$0xff] %vm4086, 0.0
      %4292 = vst.msk [vmem:[#allocation3 + $0x68] sm:$0x3] %vm3189, 0.0
      %4293 = vst.msk [vmem:[#allocation3 + $0x70] sm:$0xff] %vm4086, 0.0
      %4294 = vst.msk [vmem:[#allocation3 + $0x78] sm:$0x3] %vm3189, 0.0
      %4295 = vst.msk [vmem:[#allocation3 + $0x80] sm:$0xff] %vm4086, 0.0
      %4296 = vst.msk [vmem:[#allocation3 + $0x88] sm:$0x3] %vm3189, 0.0
      %4297 = vst.msk [vmem:[#allocation3 + $0x90] sm:$0xff] %vm4086, 0.0
      %4298 = vst.msk [vmem:[#allocation3 + $0x98] sm:$0x3] %vm3189, 0.0
      %vm4363 = vcmask 1041409
      %v4364 = vsel %vm4363, %v4092, %v4089
      %vm4365 = vcmask 1042434
      %v4366 = vsel %vm4365, %v4095, %v4364
      %vm4367 = vcmask 1043459
      %v4368 = vsel %vm4367, %v4098, %v4366
      %vm4369 = vcmask 1044484
      %v4370 = vsel %vm4369, %v4101, %v4368
      %vm4371 = vcmask 1045509
      %v4372 = vsel %vm4371, %v4104, %v4370
      %vm4373 = vcmask 1046534
      %v4374 = vsel %vm4373, %v4107, %v4372
      %vm4375 = vcmask 1047559
      %v4376 = vsel %vm4375, %v4110, %v4374
      %v4377 = vsel %vm4363, %v4116, %v4113
      %v4378 = vsel %vm4365, %v4119, %v4377
      %v4379 = vsel %vm4367, %v4122, %v4378
      %v4380 = vsel %vm4369, %v4125, %v4379
      %v4381 = vsel %vm4371, %v4128, %v4380
      %v4382 = vsel %vm4373, %v4131, %v4381
      %v4383 = vsel %vm4375, %v4134, %v4382
      %v4384 = vsel %vm4363, %v4140, %v4137
      %v4385 = vsel %vm4365, %v4143, %v4384
      %v4386 = vsel %vm4367, %v4146, %v4385
      %v4387 = vsel %vm4369, %v4149, %v4386
      %v4388 = vsel %vm4371, %v4152, %v4387
      %v4389 = vsel %vm4373, %v4155, %v4388
      %v4390 = vsel %vm4375, %v4158, %v4389
      %v4391 = vsel %vm4363, %v4164, %v4161
      %v4392 = vsel %vm4365, %v4167, %v4391
      %v4393 = vsel %vm4367, %v4170, %v4392
      %v4394 = vsel %vm4369, %v4173, %v4393
      %v4395 = vsel %vm4371, %v4176, %v4394
      %v4396 = vsel %vm4373, %v4179, %v4395
      %v4397 = vsel %vm4375, %v4182, %v4396
      %v4398 = vsel %vm4363, %v4188, %v4185
      %v4399 = vsel %vm4365, %v4191, %v4398
      %v4400 = vsel %vm4367, %v4194, %v4399
      %v4401 = vsel %vm4369, %v4197, %v4400
      %v4402 = vsel %vm4371, %v4200, %v4401
      %v4403 = vsel %vm4373, %v4203, %v4402
      %v4404 = vsel %vm4375, %v4206, %v4403
      %v4405 = vsel %vm4363, %v4212, %v4209
      %v4406 = vsel %vm4365, %v4215, %v4405
      %v4407 = vsel %vm4367, %v4218, %v4406
      %v4408 = vsel %vm4369, %v4221, %v4407
      %v4409 = vsel %vm4371, %v4224, %v4408
      %v4410 = vsel %vm4373, %v4227, %v4409
      %v4411 = vsel %vm4375, %v4230, %v4410
      %v4412 = vsel %vm4363, %v4236, %v4233
      %v4413 = vsel %vm4365, %v4239, %v4412
      %v4414 = vsel %vm4367, %v4242, %v4413
      %v4415 = vsel %vm4369, %v4245, %v4414
      %v4416 = vsel %vm4371, %v4248, %v4415
      %v4417 = vsel %vm4373, %v4251, %v4416
      %v4418 = vsel %vm4375, %v4254, %v4417
      %v4419 = vsel %vm4363, %v4260, %v4257
      %v4420 = vsel %vm4365, %v4263, %v4419
      %v4421 = vsel %vm4367, %v4266, %v4420
      %v4422 = vsel %vm4369, %v4269, %v4421
      %v4423 = vsel %vm4371, %v4272, %v4422
      %v4424 = vsel %vm4373, %v4275, %v4423
      %v4425 = vsel %vm4375, %v4278, %v4424
      %s4434 = scalar_lea.vmem [#allocation3], 16
      %4435 = vst.msk [vmem:[%s4434 + $0x1] sm:$0xff] %vm4086, %v4376
      %4436 = vst.msk [vmem:[%s4434 + $0x11] sm:$0xff] %vm4086, %v4383
      %4437 = vst.msk [vmem:[%s4434 + $0x21] sm:$0xff] %vm4086, %v4390
      %4438 = vst.msk [vmem:[%s4434 + $0x31] sm:$0xff] %vm4086, %v4397
      %4439 = vst.msk [vmem:[%s4434 + $0x41] sm:$0xff] %vm4086, %v4404
      %4440 = vst.msk [vmem:[%s4434 + $0x51] sm:$0xff] %vm4086, %v4411
      %4441 = vst.msk [vmem:[%s4434 + $0x61] sm:$0xff] %vm4086, %v4418
      %4442 = vst.msk [vmem:[%s4434 + $0x71] sm:$0xff] %vm4086, %v4425
      %v4443 = vld [vmem:[#allocation3] sm:$0xff]
      %v4444 = vld [vmem:[#allocation3 + $0x10] sm:$0xff]
      %v4445 = vld [vmem:[#allocation3 + $0x20] sm:$0xff]
      %v4446 = vld [vmem:[#allocation3 + $0x30] sm:$0xff]
      %v4447 = vld [vmem:[#allocation3 + $0x40] sm:$0xff]
      %v4448 = vld [vmem:[#allocation3 + $0x50] sm:$0xff]
      %v4449 = vld [vmem:[#allocation3 + $0x60] sm:$0xff]
      %v4450 = vld [vmem:[#allocation3 + $0x70] sm:$0xff]
      %4451 = vst.msk [vmem:[#allocation6] sm:$0xff] %vm4086, %v4443
      %4452 = vst.msk [vmem:[#allocation6 + $0x18] sm:$0xff] %vm4086, %v4444
      %4453 = vst.msk [vmem:[#allocation6 + $0x30] sm:$0xff] %vm4086, %v4445
      %4454 = vst.msk [vmem:[#allocation6 + $0x48] sm:$0xff] %vm4086, %v4446
      %4455 = vst.msk [vmem:[#allocation6 + $0x60] sm:$0xff] %vm4086, %v4447
      %4456 = vst.msk [vmem:[#allocation6 + $0x78] sm:$0xff] %vm4086, %v4448
      %4457 = vst.msk [vmem:[#allocation6 + $0x90] sm:$0xff] %vm4086, %v4449
      %4458 = vst.msk [vmem:[#allocation6 + $0xa8] sm:$0xff] %vm4086, %v4450
      %v4459 = vld [vmem:[#allocation3 + $0x1] sm:$0xff]
      %v4460 = vld [vmem:[#allocation3 + $0x11] sm:$0xff]
      %v4461 = vld [vmem:[#allocation3 + $0x21] sm:$0xff]
      %v4462 = vld [vmem:[#allocation3 + $0x31] sm:$0xff]
      %v4463 = vld [vmem:[#allocation3 + $0x41] sm:$0xff]
      %v4464 = vld [vmem:[#allocation3 + $0x51] sm:$0xff]
      %v4465 = vld [vmem:[#allocation3 + $0x61] sm:$0xff]
      %v4466 = vld [vmem:[#allocation3 + $0x71] sm:$0xff]
      %4475 = vrot.lane.b32.xlu0 %v4459, 32
      %v4476 = vpop.permute.xlu0 %4475
      %4477 = vrot.lane.b32.xlu0 %v4460, 32
      %v4478 = vpop.permute.xlu0 %4477
      %4479 = vrot.lane.b32.xlu0 %v4461, 32
      %v4480 = vpop.permute.xlu0 %4479
      %4481 = vrot.lane.b32.xlu0 %v4462, 32
      %v4482 = vpop.permute.xlu0 %4481
      %4483 = vrot.lane.b32.xlu0 %v4463, 32
      %v4484 = vpop.permute.xlu0 %4483
      %4485 = vrot.lane.b32.xlu0 %v4464, 32
      %v4486 = vpop.permute.xlu0 %4485
      %4487 = vrot.lane.b32.xlu0 %v4465, 32
      %v4488 = vpop.permute.xlu0 %4487
      %4489 = vrot.lane.b32.xlu0 %v4466, 32
      %v4490 = vpop.permute.xlu0 %4489
      %vm4499 = vcmask 523520
      %4500 = vst.msk [vmem:[#allocation6] sm:$0xff] %vm4499, %v4476
      %4501 = vst.msk [vmem:[#allocation6 + $0x18] sm:$0xff] %vm4499, %v4478
      %4502 = vst.msk [vmem:[#allocation6 + $0x30] sm:$0xff] %vm4499, %v4480
      %4503 = vst.msk [vmem:[#allocation6 + $0x48] sm:$0xff] %vm4499, %v4482
      %4504 = vst.msk [vmem:[#allocation6 + $0x60] sm:$0xff] %vm4499, %v4484
      %4505 = vst.msk [vmem:[#allocation6 + $0x78] sm:$0xff] %vm4499, %v4486
      %4506 = vst.msk [vmem:[#allocation6 + $0x90] sm:$0xff] %vm4499, %v4488
      %4507 = vst.msk [vmem:[#allocation6 + $0xa8] sm:$0xff] %vm4499, %v4490
      %v4508 = vld [vmem:[#allocation3 + $0x2] sm:$0xff]
      %v4509 = vld [vmem:[#allocation3 + $0x12] sm:$0xff]
      %v4510 = vld [vmem:[#allocation3 + $0x22] sm:$0xff]
      %v4511 = vld [vmem:[#allocation3 + $0x32] sm:$0xff]
      %v4512 = vld [vmem:[#allocation3 + $0x42] sm:$0xff]
      %v4513 = vld [vmem:[#allocation3 + $0x52] sm:$0xff]
      %v4514 = vld [vmem:[#allocation3 + $0x62] sm:$0xff]
      %v4515 = vld [vmem:[#allocation3 + $0x72] sm:$0xff]
      %4524 = vrot.lane.b32.xlu0 %v4508, 64
      %v4525 = vpop.permute.xlu0 %4524
      %4526 = vrot.lane.b32.xlu0 %v4509, 64
      %v4527 = vpop.permute.xlu0 %4526
      %4528 = vrot.lane.b32.xlu0 %v4510, 64
      %v4529 = vpop.permute.xlu0 %4528
      %4530 = vrot.lane.b32.xlu0 %v4511, 64
      %v4531 = vpop.permute.xlu0 %4530
      %4532 = vrot.lane.b32.xlu0 %v4512, 64
      %v4533 = vpop.permute.xlu0 %4532
      %4534 = vrot.lane.b32.xlu0 %v4513, 64
      %v4535 = vpop.permute.xlu0 %4534
      %4536 = vrot.lane.b32.xlu0 %v4514, 64
      %v4537 = vpop.permute.xlu0 %4536
      %4538 = vrot.lane.b32.xlu0 %v4515, 64
      %v4539 = vpop.permute.xlu0 %4538
      %vm4548 = vcmask 785920
      %4549 = vst.msk [vmem:[#allocation6] sm:$0xff] %vm4548, %v4525
      %4550 = vst.msk [vmem:[#allocation6 + $0x18] sm:$0xff] %vm4548, %v4527
      %4551 = vst.msk [vmem:[#allocation6 + $0x30] sm:$0xff] %vm4548, %v4529
      %4552 = vst.msk [vmem:[#allocation6 + $0x48] sm:$0xff] %vm4548, %v4531
      %4553 = vst.msk [vmem:[#allocation6 + $0x60] sm:$0xff] %vm4548, %v4533
      %4554 = vst.msk [vmem:[#allocation6 + $0x78] sm:$0xff] %vm4548, %v4535
      %4555 = vst.msk [vmem:[#allocation6 + $0x90] sm:$0xff] %vm4548, %v4537
      %4556 = vst.msk [vmem:[#allocation6 + $0xa8] sm:$0xff] %vm4548, %v4539
      %v4557 = vld [vmem:[%s4434] sm:$0xff]
      %v4558 = vld [vmem:[%s4434 + $0x10] sm:$0xff]
      %v4559 = vld [vmem:[%s4434 + $0x20] sm:$0xff]
      %v4560 = vld [vmem:[%s4434 + $0x30] sm:$0xff]
      %v4561 = vld [vmem:[%s4434 + $0x40] sm:$0xff]
      %v4562 = vld [vmem:[%s4434 + $0x50] sm:$0xff]
      %v4563 = vld [vmem:[%s4434 + $0x60] sm:$0xff]
      %v4564 = vld [vmem:[%s4434 + $0x70] sm:$0xff]
      %4573 = vrot.lane.b32.xlu0 %v4557, 96
      %v4574 = vpop.permute.xlu0 %4573
      %4575 = vrot.lane.b32.xlu0 %v4558, 96
      %v4576 = vpop.permute.xlu0 %4575
      %4577 = vrot.lane.b32.xlu0 %v4559, 96
      %v4578 = vpop.permute.xlu0 %4577
      %4579 = vrot.lane.b32.xlu0 %v4560, 96
      %v4580 = vpop.permute.xlu0 %4579
      %4581 = vrot.lane.b32.xlu0 %v4561, 96
      %v4582 = vpop.permute.xlu0 %4581
      %4583 = vrot.lane.b32.xlu0 %v4562, 96
      %v4584 = vpop.permute.xlu0 %4583
      %4585 = vrot.lane.b32.xlu0 %v4563, 96
      %v4586 = vpop.permute.xlu0 %4585
      %4587 = vrot.lane.b32.xlu0 %v4564, 96
      %v4588 = vpop.permute.xlu0 %4587
      %vm4597 = vcmask 1048320
      %4598 = vst.msk [vmem:[#allocation6] sm:$0xff] %vm4597, %v4574
      %4599 = vst.msk [vmem:[#allocation6 + $0x18] sm:$0xff] %vm4597, %v4576
      %4600 = vst.msk [vmem:[#allocation6 + $0x30] sm:$0xff] %vm4597, %v4578
      %4601 = vst.msk [vmem:[#allocation6 + $0x48] sm:$0xff] %vm4597, %v4580
      %4602 = vst.msk [vmem:[#allocation6 + $0x60] sm:$0xff] %vm4597, %v4582
      %4603 = vst.msk [vmem:[#allocation6 + $0x78] sm:$0xff] %vm4597, %v4584
      %4604 = vst.msk [vmem:[#allocation6 + $0x90] sm:$0xff] %vm4597, %v4586
      %4605 = vst.msk [vmem:[#allocation6 + $0xa8] sm:$0xff] %vm4597, %v4588
      %v4606 = vld [vmem:[%s4434 + $0x1] sm:$0xff]
      %v4607 = vld [vmem:[%s4434 + $0x11] sm:$0xff]
      %v4608 = vld [vmem:[%s4434 + $0x21] sm:$0xff]
      %v4609 = vld [vmem:[%s4434 + $0x31] sm:$0xff]
      %v4610 = vld [vmem:[%s4434 + $0x41] sm:$0xff]
      %v4611 = vld [vmem:[%s4434 + $0x51] sm:$0xff]
      %v4612 = vld [vmem:[%s4434 + $0x61] sm:$0xff]
      %v4613 = vld [vmem:[%s4434 + $0x71] sm:$0xff]
      %4614 = vst.msk [vmem:[#allocation6 + $0x8] sm:$0xff] %vm4086, %v4606
      %4615 = vst.msk [vmem:[#allocation6 + $0x20] sm:$0xff] %vm4086, %v4607
      %4616 = vst.msk [vmem:[#allocation6 + $0x38] sm:$0xff] %vm4086, %v4608
      %4617 = vst.msk [vmem:[#allocation6 + $0x50] sm:$0xff] %vm4086, %v4609
      %4618 = vst.msk [vmem:[#allocation6 + $0x68] sm:$0xff] %vm4086, %v4610
      %4619 = vst.msk [vmem:[#allocation6 + $0x80] sm:$0xff] %vm4086, %v4611
      %4620 = vst.msk [vmem:[#allocation6 + $0x98] sm:$0xff] %vm4086, %v4612
      %4621 = vst.msk [vmem:[#allocation6 + $0xb0] sm:$0xff] %vm4086, %v4613
      %v4622 = vld [vmem:[%s4434 + $0x2] sm:$0xff]
      %v4623 = vld [vmem:[%s4434 + $0x12] sm:$0xff]
      %v4624 = vld [vmem:[%s4434 + $0x22] sm:$0xff]
      %v4625 = vld [vmem:[%s4434 + $0x32] sm:$0xff]
      %v4626 = vld [vmem:[%s4434 + $0x42] sm:$0xff]
      %v4627 = vld [vmem:[%s4434 + $0x52] sm:$0xff]
      %v4628 = vld [vmem:[%s4434 + $0x62] sm:$0xff]
      %v4629 = vld [vmem:[%s4434 + $0x72] sm:$0xff]
      %4638 = vrot.lane.b32.xlu0 %v4622, 32
      %v4639 = vpop.permute.xlu0 %4638
      %4640 = vrot.lane.b32.xlu0 %v4623, 32
      %v4641 = vpop.permute.xlu0 %4640
      %4642 = vrot.lane.b32.xlu0 %v4624, 32
      %v4643 = vpop.permute.xlu0 %4642
      %4644 = vrot.lane.b32.xlu0 %v4625, 32
      %v4645 = vpop.permute.xlu0 %4644
      %4646 = vrot.lane.b32.xlu0 %v4626, 32
      %v4647 = vpop.permute.xlu0 %4646
      %4648 = vrot.lane.b32.xlu0 %v4627, 32
      %v4649 = vpop.permute.xlu0 %4648
      %4650 = vrot.lane.b32.xlu0 %v4628, 32
      %v4651 = vpop.permute.xlu0 %4650
      %4652 = vrot.lane.b32.xlu0 %v4629, 32
      %v4653 = vpop.permute.xlu0 %4652
      %4662 = vst.msk [vmem:[#allocation6 + $0x8] sm:$0xff] %vm4499, %v4639
      %4663 = vst.msk [vmem:[#allocation6 + $0x20] sm:$0xff] %vm4499, %v4641
      %4664 = vst.msk [vmem:[#allocation6 + $0x38] sm:$0xff] %vm4499, %v4643
      %4665 = vst.msk [vmem:[#allocation6 + $0x50] sm:$0xff] %vm4499, %v4645
      %4666 = vst.msk [vmem:[#allocation6 + $0x68] sm:$0xff] %vm4499, %v4647
      %4667 = vst.msk [vmem:[#allocation6 + $0x80] sm:$0xff] %vm4499, %v4649
      %4668 = vst.msk [vmem:[#allocation6 + $0x98] sm:$0xff] %vm4499, %v4651
      %4669 = vst.msk [vmem:[#allocation6 + $0xb0] sm:$0xff] %vm4499, %v4653
      %s4670 = scalar_lea.vmem [#allocation3], 32
      %v4671 = vld [vmem:[%s4670] sm:$0xff]
      %v4672 = vld [vmem:[%s4670 + $0x10] sm:$0xff]
      %v4673 = vld [vmem:[%s4670 + $0x20] sm:$0xff]
      %v4674 = vld [vmem:[%s4670 + $0x30] sm:$0xff]
      %v4675 = vld [vmem:[%s4670 + $0x40] sm:$0xff]
      %v4676 = vld [vmem:[%s4670 + $0x50] sm:$0xff]
      %v4677 = vld [vmem:[%s4670 + $0x60] sm:$0xff]
      %v4678 = vld [vmem:[%s4670 + $0x70] sm:$0xff]
      %4687 = vrot.lane.b32.xlu0 %v4671, 64
      %v4688 = vpop.permute.xlu0 %4687
      %4689 = vrot.lane.b32.xlu0 %v4672, 64
      %v4690 = vpop.permute.xlu0 %4689
      %4691 = vrot.lane.b32.xlu0 %v4673, 64
      %v4692 = vpop.permute.xlu0 %4691
      %4693 = vrot.lane.b32.xlu0 %v4674, 64
      %v4694 = vpop.permute.xlu0 %4693
      %4695 = vrot.lane.b32.xlu0 %v4675, 64
      %v4696 = vpop.permute.xlu0 %4695
      %4697 = vrot.lane.b32.xlu0 %v4676, 64
      %v4698 = vpop.permute.xlu0 %4697
      %4699 = vrot.lane.b32.xlu0 %v4677, 64
      %v4700 = vpop.permute.xlu0 %4699
      %4701 = vrot.lane.b32.xlu0 %v4678, 64
      %v4702 = vpop.permute.xlu0 %4701
      %4711 = vst.msk [vmem:[#allocation6 + $0x8] sm:$0xff] %vm4548, %v4688
      %4712 = vst.msk [vmem:[#allocation6 + $0x20] sm:$0xff] %vm4548, %v4690
      %4713 = vst.msk [vmem:[#allocation6 + $0x38] sm:$0xff] %vm4548, %v4692
      %4714 = vst.msk [vmem:[#allocation6 + $0x50] sm:$0xff] %vm4548, %v4694
      %4715 = vst.msk [vmem:[#allocation6 + $0x68] sm:$0xff] %vm4548, %v4696
      %4716 = vst.msk [vmem:[#allocation6 + $0x80] sm:$0xff] %vm4548, %v4698
      %4717 = vst.msk [vmem:[#allocation6 + $0x98] sm:$0xff] %vm4548, %v4700
      %4718 = vst.msk [vmem:[#allocation6 + $0xb0] sm:$0xff] %vm4548, %v4702
      %v4719 = vld [vmem:[%s4670 + $0x1] sm:$0xff]
      %v4720 = vld [vmem:[%s4670 + $0x11] sm:$0xff]
      %v4721 = vld [vmem:[%s4670 + $0x21] sm:$0xff]
      %v4722 = vld [vmem:[%s4670 + $0x31] sm:$0xff]
      %v4723 = vld [vmem:[%s4670 + $0x41] sm:$0xff]
      %v4724 = vld [vmem:[%s4670 + $0x51] sm:$0xff]
      %v4725 = vld [vmem:[%s4670 + $0x61] sm:$0xff]
      %v4726 = vld [vmem:[%s4670 + $0x71] sm:$0xff]
      %4735 = vrot.lane.b32.xlu0 %v4719, 96
      %v4736 = vpop.permute.xlu0 %4735
      %4737 = vrot.lane.b32.xlu0 %v4720, 96
      %v4738 = vpop.permute.xlu0 %4737
      %4739 = vrot.lane.b32.xlu0 %v4721, 96
      %v4740 = vpop.permute.xlu0 %4739
      %4741 = vrot.lane.b32.xlu0 %v4722, 96
      %v4742 = vpop.permute.xlu0 %4741
      %4743 = vrot.lane.b32.xlu0 %v4723, 96
      %v4744 = vpop.permute.xlu0 %4743
      %4745 = vrot.lane.b32.xlu0 %v4724, 96
      %v4746 = vpop.permute.xlu0 %4745
      %4747 = vrot.lane.b32.xlu0 %v4725, 96
      %v4748 = vpop.permute.xlu0 %4747
      %4749 = vrot.lane.b32.xlu0 %v4726, 96
      %v4750 = vpop.permute.xlu0 %4749
      %4759 = vst.msk [vmem:[#allocation6 + $0x8] sm:$0xff] %vm4597, %v4736
      %4760 = vst.msk [vmem:[#allocation6 + $0x20] sm:$0xff] %vm4597, %v4738
      %4761 = vst.msk [vmem:[#allocation6 + $0x38] sm:$0xff] %vm4597, %v4740
      %4762 = vst.msk [vmem:[#allocation6 + $0x50] sm:$0xff] %vm4597, %v4742
      %4763 = vst.msk [vmem:[#allocation6 + $0x68] sm:$0xff] %vm4597, %v4744
      %4764 = vst.msk [vmem:[#allocation6 + $0x80] sm:$0xff] %vm4597, %v4746
      %4765 = vst.msk [vmem:[#allocation6 + $0x98] sm:$0xff] %vm4597, %v4748
      %4766 = vst.msk [vmem:[#allocation6 + $0xb0] sm:$0xff] %vm4597, %v4750
      %v4767 = vld [vmem:[%s4670 + $0x2] sm:$0xff]
      %v4768 = vld [vmem:[%s4670 + $0x12] sm:$0xff]
      %v4769 = vld [vmem:[%s4670 + $0x22] sm:$0xff]
      %v4770 = vld [vmem:[%s4670 + $0x32] sm:$0xff]
      %v4771 = vld [vmem:[%s4670 + $0x42] sm:$0xff]
      %v4772 = vld [vmem:[%s4670 + $0x52] sm:$0xff]
      %v4773 = vld [vmem:[%s4670 + $0x62] sm:$0xff]
      %v4774 = vld [vmem:[%s4670 + $0x72] sm:$0xff]
      %4775 = vst.msk [vmem:[#allocation6 + $0x10] sm:$0xff] %vm4086, %v4767
      %4776 = vst.msk [vmem:[#allocation6 + $0x28] sm:$0xff] %vm4086, %v4768
      %4777 = vst.msk [vmem:[#allocation6 + $0x40] sm:$0xff] %vm4086, %v4769
      %4778 = vst.msk [vmem:[#allocation6 + $0x58] sm:$0xff] %vm4086, %v4770
      %4779 = vst.msk [vmem:[#allocation6 + $0x70] sm:$0xff] %vm4086, %v4771
      %4780 = vst.msk [vmem:[#allocation6 + $0x88] sm:$0xff] %vm4086, %v4772
      %4781 = vst.msk [vmem:[#allocation6 + $0xa0] sm:$0xff] %vm4086, %v4773
      %4782 = vst.msk [vmem:[#allocation6 + $0xb8] sm:$0xff] %vm4086, %v4774
      %v4783 = vld [vmem:[#allocation6] sm:$0xff]
      %v4784 = vld [vmem:[#allocation6 + $0x8] sm:$0xff]
      %v4785 = vld [vmem:[#allocation6 + $0x10] sm:$0xff]
      %v4786 = vld [vmem:[#allocation6 + $0x18] sm:$0xff]
      %v4787 = vld [vmem:[#allocation6 + $0x20] sm:$0xff]
      %v4788 = vld [vmem:[#allocation6 + $0x28] sm:$0xff]
      %v4789 = vld [vmem:[#allocation6 + $0x30] sm:$0xff]
      %v4790 = vld [vmem:[#allocation6 + $0x38] sm:$0xff]
      %v4791 = vld [vmem:[#allocation6 + $0x40] sm:$0xff]
      %v4792 = vld [vmem:[#allocation6 + $0x48] sm:$0xff]
      %v4793 = vld [vmem:[#allocation6 + $0x50] sm:$0xff]
      %v4794 = vld [vmem:[#allocation6 + $0x58] sm:$0xff]
      %v4795 = vld [vmem:[#allocation6 + $0x60] sm:$0xff]
      %v4796 = vld [vmem:[#allocation6 + $0x68] sm:$0xff]
      %v4797 = vld [vmem:[#allocation6 + $0x70] sm:$0xff]
      %v4798 = vld [vmem:[#allocation6 + $0x78] sm:$0xff]
      %v4799 = vld [vmem:[#allocation6 + $0x80] sm:$0xff]
      %v4800 = vld [vmem:[#allocation6 + $0x88] sm:$0xff]
      %v4801 = vld [vmem:[#allocation6 + $0x90] sm:$0xff]
      %v4802 = vld [vmem:[#allocation6 + $0x98] sm:$0xff]
      %v4803 = vld [vmem:[#allocation6 + $0xa0] sm:$0xff]
      %v4804 = vld [vmem:[#allocation6 + $0xa8] sm:$0xff]
      %v4805 = vld [vmem:[#allocation6 + $0xb0] sm:$0xff]
      %v4806 = vld [vmem:[#allocation6 + $0xb8] sm:$0xff]
      %v4807 = vpack.c.bf16 %v4786, %v4783
      %v4808 = vpack.c.bf16 %v4787, %v4784
      %v4809 = vpack.c.bf16 %v4788, %v4785
      %v4810 = vpack.c.bf16 %v4792, %v4789
      %v4811 = vpack.c.bf16 %v4793, %v4790
      %v4812 = vpack.c.bf16 %v4794, %v4791
      %v4813 = vpack.c.bf16 %v4798, %v4795
      %v4814 = vpack.c.bf16 %v4799, %v4796
      %v4815 = vpack.c.bf16 %v4800, %v4797
      %v4816 = vpack.c.bf16 %v4804, %v4801
      %v4817 = vpack.c.bf16 %v4805, %v4802
      %v4818 = vpack.c.bf16 %v4806, %v4803
      %v4819 = vld [vmem:[%s3] sm:$0xf]
      %v4820 = vld [vmem:[%s3 + $0x4] sm:$0xf]
      %v4821 = vld [vmem:[%s3 + $0x8] sm:$0xf]
      %v4822 = vld [vmem:[%s3 + $0xc] sm:$0xf]
      %v4823 = vld [vmem:[%s3 + $0x10] sm:$0xf]
      %v4824 = vld [vmem:[%s3 + $0x14] sm:$0xf]
      %v4825 = vld [vmem:[%s3 + $0x18] sm:$0xf]
      %v4826 = vld [vmem:[%s3 + $0x1c] sm:$0xf]
      %v4827 = vld [vmem:[%s3 + $0x20] sm:$0xf]
      %v4828 = vld [vmem:[%s3 + $0x24] sm:$0xf]
      %v4829 = vld [vmem:[%s3 + $0x28] sm:$0xf]
      %v4830 = vld [vmem:[%s3 + $0x2c] sm:$0xf]
      %v4831 = vld [vmem:[%s3 + $0x30] sm:$0xf]
      %v4832 = vld [vmem:[%s3 + $0x34] sm:$0xf]
      %v4833 = vld [vmem:[%s3 + $0x38] sm:$0xf]
      %v4834 = vld [vmem:[%s3 + $0x3c] sm:$0xf]
      %v4835 = vld [vmem:[%s3 + $0x40] sm:$0xf]
      %v4836 = vld [vmem:[%s3 + $0x44] sm:$0xf]
      %v4837 = vld [vmem:[%s3 + $0x48] sm:$0xf]
      %v4838 = vld [vmem:[%s3 + $0x4c] sm:$0xf]
      %v4839 = vld [vmem:[%s3 + $0x50] sm:$0xf]
      %v4840 = vld [vmem:[%s3 + $0x54] sm:$0xf]
      %v4841 = vld [vmem:[%s3 + $0x58] sm:$0xf]
      %v4842 = vld [vmem:[%s3 + $0x5c] sm:$0xf]
      %v4843 = vld [vmem:[%s3 + $0x60] sm:$0xf]
      %v4844 = vld [vmem:[%s3 + $0x64] sm:$0xf]
      %v4845 = vld [vmem:[%s3 + $0x68] sm:$0xf]
      %v4846 = vld [vmem:[%s3 + $0x6c] sm:$0xf]
      %v4847 = vld [vmem:[%s3 + $0x70] sm:$0xf]
      %v4848 = vld [vmem:[%s3 + $0x74] sm:$0xf]
      %v4849 = vld [vmem:[%s3 + $0x78] sm:$0xf]
      %v4850 = vld [vmem:[%s3 + $0x7c] sm:$0xf]
      %v4851 = vld [vmem:[%s3 + $0x80] sm:$0xf]
      %v4852 = vld [vmem:[%s3 + $0x84] sm:$0xf]
      %v4853 = vld [vmem:[%s3 + $0x88] sm:$0xf]
      %v4854 = vld [vmem:[%s3 + $0x8c] sm:$0xf]
      %v4855 = vld [vmem:[%s4] sm:$0x1]
      %v4857 = vlaneseq
      %v4858 = vshrl.u32 %v4857, 7
      %v4859 = vsub.s32 0, %v4858
      %v4860 = vrot.slane %v4855, %v4859
      %v4898 = vunpack.c.l.b16 %v4819
      %v4899 = vunpack.c.l.b16 %v4820
      %v4900 = vunpack.c.l.b16 %v4821
      %v4901 = vunpack.c.l.b16 %v4822
      %v4902 = vunpack.c.l.b16 %v4823
      %v4903 = vunpack.c.l.b16 %v4824
      %v4904 = vunpack.c.l.b16 %v4825
      %v4905 = vunpack.c.l.b16 %v4826
      %v4906 = vunpack.c.l.b16 %v4827
      %v4907 = vunpack.c.l.b16 %v4828
      %v4908 = vunpack.c.l.b16 %v4829
      %v4909 = vunpack.c.l.b16 %v4830
      %v4910 = vunpack.c.l.b16 %v4831
      %v4911 = vunpack.c.l.b16 %v4832
      %v4912 = vunpack.c.l.b16 %v4833
      %v4913 = vunpack.c.l.b16 %v4834
      %v4914 = vunpack.c.l.b16 %v4835
      %v4915 = vunpack.c.l.b16 %v4836
      %v4916 = vunpack.c.l.b16 %v4837
      %v4917 = vunpack.c.l.b16 %v4838
      %v4918 = vunpack.c.l.b16 %v4839
      %v4919 = vunpack.c.l.b16 %v4840
      %v4920 = vunpack.c.l.b16 %v4841
      %v4921 = vunpack.c.l.b16 %v4842
      %v4922 = vunpack.c.l.b16 %v4843
      %v4923 = vunpack.c.l.b16 %v4844
      %v4924 = vunpack.c.l.b16 %v4845
      %v4925 = vunpack.c.l.b16 %v4846
      %v4926 = vunpack.c.l.b16 %v4847
      %v4927 = vunpack.c.l.b16 %v4848
      %v4928 = vunpack.c.l.b16 %v4849
      %v4929 = vunpack.c.l.b16 %v4850
      %v4930 = vunpack.c.l.b16 %v4851
      %v4931 = vunpack.c.l.b16 %v4852
      %v4932 = vunpack.c.l.b16 %v4853
      %v4933 = vunpack.c.l.b16 %v4854
      %v4934 = vpack.c.b16 %v4899, %v4898
      %v4935 = vpack.c.b16 %v4901, %v4900
      %v4936 = vpack.c.b16 %v4903, %v4902
      %v4937 = vpack.c.b16 %v4905, %v4904
      %v4938 = vpack.c.b16 %v4907, %v4906
      %v4939 = vpack.c.b16 %v4909, %v4908
      %v4940 = vpack.c.b16 %v4911, %v4910
      %v4941 = vpack.c.b16 %v4913, %v4912
      %v4942 = vpack.c.b16 %v4915, %v4914
      %v4943 = vpack.c.b16 %v4917, %v4916
      %v4944 = vpack.c.b16 %v4919, %v4918
      %v4945 = vpack.c.b16 %v4921, %v4920
      %v4946 = vpack.c.b16 %v4923, %v4922
      %v4947 = vpack.c.b16 %v4925, %v4924
      %v4948 = vpack.c.b16 %v4927, %v4926
      %v4949 = vpack.c.b16 %v4929, %v4928
      %v4950 = vpack.c.b16 %v4931, %v4930
      %v4951 = vpack.c.b16 %v4933, %v4932
      %v4971 = vsel %vm4086, %v4809, 0
      %v4974 = vsel %vm4086, %v4812, 0
      %v4977 = vsel %vm4086, %v4815, 0
      %v4980 = vsel %vm4086, %v4818, 0
      %4982 = vmatprep.subr.bf16.mxu0 0
      %4983 = vmatpush1.bf16.msra.mxu0 %v4941
      %4984 = vmatprep.subr.bf16.mxu0 0
      %4985 = vmatpush1.bf16.msra.mxu0 %v4940
      %4986 = vmatprep.subr.bf16.mxu0 0
      %4987 = vmatpush1.bf16.msra.mxu0 %v4939
      %4988 = vmatprep.subr.bf16.mxu0 0
      %4989 = vmatpush1.bf16.msra.mxu0 %v4938
      %4990 = vmatprep.subr.bf16.mxu0 0
      %4991 = vmatpush1.bf16.msra.mxu0 %v4937
      %4992 = vmatprep.subr.bf16.mxu0 0
      %4993 = vmatpush1.bf16.msra.mxu0 %v4936
      %4994 = vmatprep.subr.bf16.mxu0 0
      %4995 = vmatpush1.bf16.msra.mxu0 %v4935
      %4996 = vmatprep.subr.bf16.mxu0 0
      %4997 = vmatpush1.bf16.msra.mxu0 %v4934
      %4998 = vmatprep.subr.bf16.mxu0 0
      %4999 = vmatpush2.bf16.msra.mxu0 %v4949
      %5000 = vmatprep.subr.bf16.mxu0 0
      %5001 = vmatpush2.bf16.msra.mxu0 %v4948
      %5002 = vmatprep.subr.bf16.mxu0 0
      %5003 = vmatpush2.bf16.msra.mxu0 %v4947
      %5004 = vmatprep.subr.bf16.mxu0 0
      %5005 = vmatpush2.bf16.msra.mxu0 %v4946
      %5006 = vmatprep.subr.bf16.mxu0 0
      %5007 = vmatpush2.bf16.msra.mxu0 %v4945
      %5008 = vmatprep.subr.bf16.mxu0 0
      %5009 = vmatpush2.bf16.msra.mxu0 %v4944
      %5010 = vmatprep.subr.bf16.mxu0 0
      %5011 = vmatpush2.bf16.msra.mxu0 %v4943
      %5012 = vmatprep.subr.bf16.mxu0 0
      %5013 = vmatpush2.bf16.msra.mxu0 %v4942
      %5014 = vmatprep.mubr.bf16.mxu0 %v4808
      %5015 = vmatmul.mubr.bf16.gmra.mxu0 %v4807
      %v5016 = vpop.f32.mrf.mxu0
      %v5017 = vadd.f32 %v4860, %v5016
      %v5018 = vpop.f32.mrf.mxu0
      %v5019 = vpop.f32.mrf.mxu0
      %v5020 = vadd.f32 %v4860, %v5019
      %v5021 = vpop.f32.mrf.mxu0
      %5022 = vmatprep.mubr.bf16.mxu0 %v4811
      %5023 = vmatmul.mubr.bf16.gmra.mxu0 %v4810
      %v5024 = vpop.f32.mrf.mxu0
      %v5025 = vadd.f32 %v4860, %v5024
      %v5026 = vpop.f32.mrf.mxu0
      %v5027 = vpop.f32.mrf.mxu0
      %v5028 = vadd.f32 %v4860, %v5027
      %v5029 = vpop.f32.mrf.mxu0
      %5030 = vmatprep.mubr.bf16.mxu0 %v4814
      %5031 = vmatmul.mubr.bf16.gmra.mxu0 %v4813
      %v5032 = vpop.f32.mrf.mxu0
      %v5033 = vadd.f32 %v4860, %v5032
      %v5034 = vpop.f32.mrf.mxu0
      %v5035 = vpop.f32.mrf.mxu0
      %v5036 = vadd.f32 %v4860, %v5035
      %v5037 = vpop.f32.mrf.mxu0
      %5038 = vmatprep.mubr.bf16.mxu0 %v4817
      %5039 = vmatmul.mubr.bf16.gmra.mxu0 %v4816
      %v5040 = vpop.f32.mrf.mxu0
      %v5041 = vadd.f32 %v4860, %v5040
      %v5042 = vpop.f32.mrf.mxu0
      %v5043 = vpop.f32.mrf.mxu0
      %v5044 = vadd.f32 %v4860, %v5043
      %v5045 = vpop.f32.mrf.mxu0
      %5046 = vdwg.mxu0
      %5047 = vmatprep.subr.bf16.mxu0 0
      %5048 = vmatpush1.bf16.msra.mxu0 0
      %5049 = vmatprep.subr.bf16.mxu0 0
      %5050 = vmatpush1.bf16.msra.mxu0 0
      %5051 = vmatprep.subr.bf16.mxu0 0
      %5052 = vmatpush1.bf16.msra.mxu0 0
      %5053 = vmatprep.subr.bf16.mxu0 0
      %5054 = vmatpush1.bf16.msra.mxu0 0
      %5055 = vmatprep.subr.bf16.mxu0 0
      %5056 = vmatpush1.bf16.msra.mxu0 0
      %5057 = vmatprep.subr.bf16.mxu0 0
      %5058 = vmatpush1.bf16.msra.mxu0 0
      %5059 = vmatprep.subr.bf16.mxu0 0
      %5060 = vmatpush1.bf16.msra.mxu0 %v4951
      %5061 = vmatprep.subr.bf16.mxu0 0
      %5062 = vmatpush1.bf16.msra.mxu0 %v4950
      %5063 = vmatprep.subr.bf16.mxu0 0
      %5064 = vmatpush2.bf16.msra.mxu0 0
      %5065 = vmatprep.subr.bf16.mxu0 0
      %5066 = vmatpush2.bf16.msra.mxu0 0
      %5067 = vmatprep.subr.bf16.mxu0 0
      %5068 = vmatpush2.bf16.msra.mxu0 0
      %5069 = vmatprep.subr.bf16.mxu0 0
      %5070 = vmatpush2.bf16.msra.mxu0 0
      %5071 = vmatprep.subr.bf16.mxu0 0
      %5072 = vmatpush2.bf16.msra.mxu0 0
      %5073 = vmatprep.subr.bf16.mxu0 0
      %5074 = vmatpush2.bf16.msra.mxu0 0
      %5075 = vmatprep.subr.bf16.mxu0 0
      %5076 = vmatpush2.bf16.msra.mxu0 0
      %5077 = vmatprep.subr.bf16.mxu0 0
      %5078 = vmatpush2.bf16.msra.mxu0 0
      %5079 = vmatprep.mubr.bf16.mxu0 0
      %5080 = vmatmul.mubr.bf16.gmra.mxu0 %v4971
      %v5081 = vpop.f32.mrf.mxu0
      %v5082 = vadd.f32 %v5017, %v5081
      %v5083 = vpop.f32.mrf.mxu0
      %v5084 = vpop.f32.mrf.mxu0
      %v5085 = vadd.f32 %v5020, %v5084
      %v5086 = vpop.f32.mrf.mxu0
      %5087 = vmatprep.mubr.bf16.mxu0 0
      %5088 = vmatmul.mubr.bf16.gmra.mxu0 %v4974
      %v5089 = vpop.f32.mrf.mxu0
      %v5090 = vadd.f32 %v5025, %v5089
      %v5091 = vpop.f32.mrf.mxu0
      %v5092 = vpop.f32.mrf.mxu0
      %v5093 = vadd.f32 %v5028, %v5092
      %v5094 = vpop.f32.mrf.mxu0
      %5095 = vmatprep.mubr.bf16.mxu0 0
      %5096 = vmatmul.mubr.bf16.gmra.mxu0 %v4977
      %v5097 = vpop.f32.mrf.mxu0
      %v5098 = vadd.f32 %v5033, %v5097
      %v5099 = vpop.f32.mrf.mxu0
      %v5100 = vpop.f32.mrf.mxu0
      %v5101 = vadd.f32 %v5036, %v5100
      %v5102 = vpop.f32.mrf.mxu0
      %5103 = vmatprep.mubr.bf16.mxu0 0
      %5104 = vmatmul.mubr.bf16.gmra.mxu0 %v4980
      %v5105 = vpop.f32.mrf.mxu0
      %v5106 = vadd.f32 %v5041, %v5105
      %v5107 = vpop.f32.mrf.mxu0
      %v5108 = vpop.f32.mrf.mxu0
      %v5109 = vadd.f32 %v5044, %v5108
      %v5110 = vpop.f32.mrf.mxu0
      %5111 = vdwg.mxu0
      %v5112 = vmax.f32 %v5082, 0.0
      %v5113 = vmax.f32 %v5085, 0.0
      %v5114 = vmax.f32 %v5090, 0.0
      %v5115 = vmax.f32 %v5093, 0.0
      %v5116 = vmax.f32 %v5098, 0.0
      %v5117 = vmax.f32 %v5101, 0.0
      %v5118 = vmax.f32 %v5106, 0.0
      %v5119 = vmax.f32 %v5109, 0.0
      %v5128 = vcombine.high %v5112, %v5112
      %v5130 = vunpack.c.l.s4 1983009808
      %v5131 = vunpack.c.0.s8 %v5130
      %v5132 = vlaneseq
      %v5133 = vshrl.u32 %v5132, 7
      %v5134 = vsub.s32 %v5131, %v5133
      %v5135 = vrot.slane %v5112, %v5134
      %v5137 = vunpack.c.l.s4 1983009808
      %v5138 = vunpack.c.0.s8 %v5137
      %v5139 = vlaneseq
      %v5140 = vshrl.u32 %v5139, 7
      %v5141 = vsub.s32 %v5138, %v5140
      %v5142 = vrot.slane %v5128, %v5141
      %v5143 = vcombine.high %v5135, %v5135
      %v5144 = vcombine.high %v5142, %v5142
      %v5145 = vcombine.high %v5113, %v5113
      %v5147 = vunpack.c.l.s4 1983009808
      %v5148 = vunpack.c.0.s8 %v5147
      %v5149 = vlaneseq
      %v5150 = vshrl.u32 %v5149, 7
      %v5151 = vsub.s32 %v5148, %v5150
      %v5152 = vrot.slane %v5113, %v5151
      %v5154 = vunpack.c.l.s4 1983009808
      %v5155 = vunpack.c.0.s8 %v5154
      %v5156 = vlaneseq
      %v5157 = vshrl.u32 %v5156, 7
      %v5158 = vsub.s32 %v5155, %v5157
      %v5159 = vrot.slane %v5145, %v5158
      %v5160 = vcombine.high %v5152, %v5152
      %v5161 = vcombine.high %v5159, %v5159
      %v5162 = vcombine.high %v5114, %v5114
      %v5164 = vunpack.c.l.s4 1983009808
      %v5165 = vunpack.c.0.s8 %v5164
      %v5166 = vlaneseq
      %v5167 = vshrl.u32 %v5166, 7
      %v5168 = vsub.s32 %v5165, %v5167
      %v5169 = vrot.slane %v5114, %v5168
      %v5171 = vunpack.c.l.s4 1983009808
      %v5172 = vunpack.c.0.s8 %v5171
      %v5173 = vlaneseq
      %v5174 = vshrl.u32 %v5173, 7
      %v5175 = vsub.s32 %v5172, %v5174
      %v5176 = vrot.slane %v5162, %v5175
      %v5177 = vcombine.high %v5169, %v5169
      %v5178 = vcombine.high %v5176, %v5176
      %v5179 = vcombine.high %v5115, %v5115
      %v5181 = vunpack.c.l.s4 1983009808
      %v5182 = vunpack.c.0.s8 %v5181
      %v5183 = vlaneseq
      %v5184 = vshrl.u32 %v5183, 7
      %v5185 = vsub.s32 %v5182, %v5184
      %v5186 = vrot.slane %v5115, %v5185
      %v5188 = vunpack.c.l.s4 1983009808
      %v5189 = vunpack.c.0.s8 %v5188
      %v5190 = vlaneseq
      %v5191 = vshrl.u32 %v5190, 7
      %v5192 = vsub.s32 %v5189, %v5191
      %v5193 = vrot.slane %v5179, %v5192
      %v5194 = vcombine.high %v5186, %v5186
      %v5195 = vcombine.high %v5193, %v5193
      %v5196 = vcombine.high %v5116, %v5116
      %v5198 = vunpack.c.l.s4 1983009808
      %v5199 = vunpack.c.0.s8 %v5198
      %v5200 = vlaneseq
      %v5201 = vshrl.u32 %v5200, 7
      %v5202 = vsub.s32 %v5199, %v5201
      %v5203 = vrot.slane %v5116, %v5202
      %v5205 = vunpack.c.l.s4 1983009808
      %v5206 = vunpack.c.0.s8 %v5205
      %v5207 = vlaneseq
      %v5208 = vshrl.u32 %v5207, 7
      %v5209 = vsub.s32 %v5206, %v5208
      %v5210 = vrot.slane %v5196, %v5209
      %v5211 = vcombine.high %v5203, %v5203
      %v5212 = vcombine.high %v5210, %v5210
      %v5213 = vcombine.high %v5117, %v5117
      %v5215 = vunpack.c.l.s4 1983009808
      %v5216 = vunpack.c.0.s8 %v5215
      %v5217 = vlaneseq
      %v5218 = vshrl.u32 %v5217, 7
      %v5219 = vsub.s32 %v5216, %v5218
      %v5220 = vrot.slane %v5117, %v5219
      %v5222 = vunpack.c.l.s4 1983009808
      %v5223 = vunpack.c.0.s8 %v5222
      %v5224 = vlaneseq
      %v5225 = vshrl.u32 %v5224, 7
      %v5226 = vsub.s32 %v5223, %v5225
      %v5227 = vrot.slane %v5213, %v5226
      %v5228 = vcombine.high %v5220, %v5220
      %v5229 = vcombine.high %v5227, %v5227
      %v5230 = vcombine.high %v5118, %v5118
      %v5232 = vunpack.c.l.s4 1983009808
      %v5233 = vunpack.c.0.s8 %v5232
      %v5234 = vlaneseq
      %v5235 = vshrl.u32 %v5234, 7
      %v5236 = vsub.s32 %v5233, %v5235
      %v5237 = vrot.slane %v5118, %v5236
      %v5239 = vunpack.c.l.s4 1983009808
      %v5240 = vunpack.c.0.s8 %v5239
      %v5241 = vlaneseq
      %v5242 = vshrl.u32 %v5241, 7
      %v5243 = vsub.s32 %v5240, %v5242
      %v5244 = vrot.slane %v5230, %v5243
      %v5245 = vcombine.high %v5237, %v5237
      %v5246 = vcombine.high %v5244, %v5244
      %v5247 = vcombine.high %v5119, %v5119
      %v5249 = vunpack.c.l.s4 1983009808
      %v5250 = vunpack.c.0.s8 %v5249
      %v5251 = vlaneseq
      %v5252 = vshrl.u32 %v5251, 7
      %v5253 = vsub.s32 %v5250, %v5252
      %v5254 = vrot.slane %v5119, %v5253
      %v5256 = vunpack.c.l.s4 1983009808
      %v5257 = vunpack.c.0.s8 %v5256
      %v5258 = vlaneseq
      %v5259 = vshrl.u32 %v5258, 7
      %v5260 = vsub.s32 %v5257, %v5259
      %v5261 = vrot.slane %v5247, %v5260
      %v5262 = vcombine.high %v5254, %v5254
      %v5263 = vcombine.high %v5261, %v5261
      %v5296 = vsel %vm3189, %v5135, -inf
      %v5297 = vrot.slane %v5296, 4
      %v5298 = vmax.f32 %v5296, %v5297
      %v5299 = vrot.slane %v5298, 2
      %v5300 = vmax.f32 %v5298, %v5299
      %v5301 = vrot.slane %v5300, 1
      %v5302 = vmax.f32 %v5300, %v5301
      %v5303 = vsel %vm3189, %v5143, -inf
      %v5304 = vrot.slane %v5303, 4
      %v5305 = vmax.f32 %v5303, %v5304
      %v5306 = vrot.slane %v5305, 2
      %v5307 = vmax.f32 %v5305, %v5306
      %v5308 = vrot.slane %v5307, 1
      %v5309 = vmax.f32 %v5307, %v5308
      %v5310 = vsel %vm3189, %v5142, -inf
      %v5311 = vrot.slane %v5310, 4
      %v5312 = vmax.f32 %v5310, %v5311
      %v5313 = vrot.slane %v5312, 2
      %v5314 = vmax.f32 %v5312, %v5313
      %v5315 = vrot.slane %v5314, 1
      %v5316 = vmax.f32 %v5314, %v5315
      %v5317 = vsel %vm3189, %v5144, -inf
      %v5318 = vrot.slane %v5317, 4
      %v5319 = vmax.f32 %v5317, %v5318
      %v5320 = vrot.slane %v5319, 2
      %v5321 = vmax.f32 %v5319, %v5320
      %v5322 = vrot.slane %v5321, 1
      %v5323 = vmax.f32 %v5321, %v5322
      %v5324 = vsel %vm3189, %v5152, -inf
      %v5325 = vrot.slane %v5324, 4
      %v5326 = vmax.f32 %v5324, %v5325
      %v5327 = vrot.slane %v5326, 2
      %v5328 = vmax.f32 %v5326, %v5327
      %v5329 = vrot.slane %v5328, 1
      %v5330 = vmax.f32 %v5328, %v5329
      %v5331 = vsel %vm3189, %v5160, -inf
      %v5332 = vrot.slane %v5331, 4
      %v5333 = vmax.f32 %v5331, %v5332
      %v5334 = vrot.slane %v5333, 2
      %v5335 = vmax.f32 %v5333, %v5334
      %v5336 = vrot.slane %v5335, 1
      %v5337 = vmax.f32 %v5335, %v5336
      %v5338 = vsel %vm3189, %v5159, -inf
      %v5339 = vrot.slane %v5338, 4
      %v5340 = vmax.f32 %v5338, %v5339
      %v5341 = vrot.slane %v5340, 2
      %v5342 = vmax.f32 %v5340, %v5341
      %v5343 = vrot.slane %v5342, 1
      %v5344 = vmax.f32 %v5342, %v5343
      %v5345 = vsel %vm3189, %v5161, -inf
      %v5346 = vrot.slane %v5345, 4
      %v5347 = vmax.f32 %v5345, %v5346
      %v5348 = vrot.slane %v5347, 2
      %v5349 = vmax.f32 %v5347, %v5348
      %v5350 = vrot.slane %v5349, 1
      %v5351 = vmax.f32 %v5349, %v5350
      %v5352 = vsel %vm3189, %v5169, -inf
      %v5353 = vrot.slane %v5352, 4
      %v5354 = vmax.f32 %v5352, %v5353
      %v5355 = vrot.slane %v5354, 2
      %v5356 = vmax.f32 %v5354, %v5355
      %v5357 = vrot.slane %v5356, 1
      %v5358 = vmax.f32 %v5356, %v5357
      %v5359 = vsel %vm3189, %v5177, -inf
      %v5360 = vrot.slane %v5359, 4
      %v5361 = vmax.f32 %v5359, %v5360
      %v5362 = vrot.slane %v5361, 2
      %v5363 = vmax.f32 %v5361, %v5362
      %v5364 = vrot.slane %v5363, 1
      %v5365 = vmax.f32 %v5363, %v5364
      %v5366 = vsel %vm3189, %v5176, -inf
      %v5367 = vrot.slane %v5366, 4
      %v5368 = vmax.f32 %v5366, %v5367
      %v5369 = vrot.slane %v5368, 2
      %v5370 = vmax.f32 %v5368, %v5369
      %v5371 = vrot.slane %v5370, 1
      %v5372 = vmax.f32 %v5370, %v5371
      %v5373 = vsel %vm3189, %v5178, -inf
      %v5374 = vrot.slane %v5373, 4
      %v5375 = vmax.f32 %v5373, %v5374
      %v5376 = vrot.slane %v5375, 2
      %v5377 = vmax.f32 %v5375, %v5376
      %v5378 = vrot.slane %v5377, 1
      %v5379 = vmax.f32 %v5377, %v5378
      %v5380 = vsel %vm3189, %v5186, -inf
      %v5381 = vrot.slane %v5380, 4
      %v5382 = vmax.f32 %v5380, %v5381
      %v5383 = vrot.slane %v5382, 2
      %v5384 = vmax.f32 %v5382, %v5383
      %v5385 = vrot.slane %v5384, 1
      %v5386 = vmax.f32 %v5384, %v5385
      %v5387 = vsel %vm3189, %v5194, -inf
      %v5388 = vrot.slane %v5387, 4
      %v5389 = vmax.f32 %v5387, %v5388
      %v5390 = vrot.slane %v5389, 2
      %v5391 = vmax.f32 %v5389, %v5390
      %v5392 = vrot.slane %v5391, 1
      %v5393 = vmax.f32 %v5391, %v5392
      %v5394 = vsel %vm3189, %v5193, -inf
      %v5395 = vrot.slane %v5394, 4
      %v5396 = vmax.f32 %v5394, %v5395
      %v5397 = vrot.slane %v5396, 2
      %v5398 = vmax.f32 %v5396, %v5397
      %v5399 = vrot.slane %v5398, 1
      %v5400 = vmax.f32 %v5398, %v5399
      %v5401 = vsel %vm3189, %v5195, -inf
      %v5402 = vrot.slane %v5401, 4
      %v5403 = vmax.f32 %v5401, %v5402
      %v5404 = vrot.slane %v5403, 2
      %v5405 = vmax.f32 %v5403, %v5404
      %v5406 = vrot.slane %v5405, 1
      %v5407 = vmax.f32 %v5405, %v5406
      %v5408 = vsel %vm3189, %v5203, -inf
      %v5409 = vrot.slane %v5408, 4
      %v5410 = vmax.f32 %v5408, %v5409
      %v5411 = vrot.slane %v5410, 2
      %v5412 = vmax.f32 %v5410, %v5411
      %v5413 = vrot.slane %v5412, 1
      %v5414 = vmax.f32 %v5412, %v5413
      %v5415 = vsel %vm3189, %v5211, -inf
      %v5416 = vrot.slane %v5415, 4
      %v5417 = vmax.f32 %v5415, %v5416
      %v5418 = vrot.slane %v5417, 2
      %v5419 = vmax.f32 %v5417, %v5418
      %v5420 = vrot.slane %v5419, 1
      %v5421 = vmax.f32 %v5419, %v5420
      %v5422 = vsel %vm3189, %v5210, -inf
      %v5423 = vrot.slane %v5422, 4
      %v5424 = vmax.f32 %v5422, %v5423
      %v5425 = vrot.slane %v5424, 2
      %v5426 = vmax.f32 %v5424, %v5425
      %v5427 = vrot.slane %v5426, 1
      %v5428 = vmax.f32 %v5426, %v5427
      %v5429 = vsel %vm3189, %v5212, -inf
      %v5430 = vrot.slane %v5429, 4
      %v5431 = vmax.f32 %v5429, %v5430
      %v5432 = vrot.slane %v5431, 2
      %v5433 = vmax.f32 %v5431, %v5432
      %v5434 = vrot.slane %v5433, 1
      %v5435 = vmax.f32 %v5433, %v5434
      %v5436 = vsel %vm3189, %v5220, -inf
      %v5437 = vrot.slane %v5436, 4
      %v5438 = vmax.f32 %v5436, %v5437
      %v5439 = vrot.slane %v5438, 2
      %v5440 = vmax.f32 %v5438, %v5439
      %v5441 = vrot.slane %v5440, 1
      %v5442 = vmax.f32 %v5440, %v5441
      %v5443 = vsel %vm3189, %v5228, -inf
      %v5444 = vrot.slane %v5443, 4
      %v5445 = vmax.f32 %v5443, %v5444
      %v5446 = vrot.slane %v5445, 2
      %v5447 = vmax.f32 %v5445, %v5446
      %v5448 = vrot.slane %v5447, 1
      %v5449 = vmax.f32 %v5447, %v5448
      %v5450 = vsel %vm3189, %v5227, -inf
      %v5451 = vrot.slane %v5450, 4
      %v5452 = vmax.f32 %v5450, %v5451
      %v5453 = vrot.slane %v5452, 2
      %v5454 = vmax.f32 %v5452, %v5453
      %v5455 = vrot.slane %v5454, 1
      %v5456 = vmax.f32 %v5454, %v5455
      %v5457 = vsel %vm3189, %v5229, -inf
      %v5458 = vrot.slane %v5457, 4
      %v5459 = vmax.f32 %v5457, %v5458
      %v5460 = vrot.slane %v5459, 2
      %v5461 = vmax.f32 %v5459, %v5460
      %v5462 = vrot.slane %v5461, 1
      %v5463 = vmax.f32 %v5461, %v5462
      %v5464 = vsel %vm3189, %v5237, -inf
      %v5465 = vrot.slane %v5464, 4
      %v5466 = vmax.f32 %v5464, %v5465
      %v5467 = vrot.slane %v5466, 2
      %v5468 = vmax.f32 %v5466, %v5467
      %v5469 = vrot.slane %v5468, 1
      %v5470 = vmax.f32 %v5468, %v5469
      %v5471 = vsel %vm3189, %v5245, -inf
      %v5472 = vrot.slane %v5471, 4
      %v5473 = vmax.f32 %v5471, %v5472
      %v5474 = vrot.slane %v5473, 2
      %v5475 = vmax.f32 %v5473, %v5474
      %v5476 = vrot.slane %v5475, 1
      %v5477 = vmax.f32 %v5475, %v5476
      %v5478 = vsel %vm3189, %v5244, -inf
      %v5479 = vrot.slane %v5478, 4
      %v5480 = vmax.f32 %v5478, %v5479
      %v5481 = vrot.slane %v5480, 2
      %v5482 = vmax.f32 %v5480, %v5481
      %v5483 = vrot.slane %v5482, 1
      %v5484 = vmax.f32 %v5482, %v5483
      %v5485 = vsel %vm3189, %v5246, -inf
      %v5486 = vrot.slane %v5485, 4
      %v5487 = vmax.f32 %v5485, %v5486
      %v5488 = vrot.slane %v5487, 2
      %v5489 = vmax.f32 %v5487, %v5488
      %v5490 = vrot.slane %v5489, 1
      %v5491 = vmax.f32 %v5489, %v5490
      %v5492 = vsel %vm3189, %v5254, -inf
      %v5493 = vrot.slane %v5492, 4
      %v5494 = vmax.f32 %v5492, %v5493
      %v5495 = vrot.slane %v5494, 2
      %v5496 = vmax.f32 %v5494, %v5495
      %v5497 = vrot.slane %v5496, 1
      %v5498 = vmax.f32 %v5496, %v5497
      %v5499 = vsel %vm3189, %v5262, -inf
      %v5500 = vrot.slane %v5499, 4
      %v5501 = vmax.f32 %v5499, %v5500
      %v5502 = vrot.slane %v5501, 2
      %v5503 = vmax.f32 %v5501, %v5502
      %v5504 = vrot.slane %v5503, 1
      %v5505 = vmax.f32 %v5503, %v5504
      %v5506 = vsel %vm3189, %v5261, -inf
      %v5507 = vrot.slane %v5506, 4
      %v5508 = vmax.f32 %v5506, %v5507
      %v5509 = vrot.slane %v5508, 2
      %v5510 = vmax.f32 %v5508, %v5509
      %v5511 = vrot.slane %v5510, 1
      %v5512 = vmax.f32 %v5510, %v5511
      %v5513 = vsel %vm3189, %v5263, -inf
      %v5514 = vrot.slane %v5513, 4
      %v5515 = vmax.f32 %v5513, %v5514
      %v5516 = vrot.slane %v5515, 2
      %v5517 = vmax.f32 %v5515, %v5516
      %v5518 = vrot.slane %v5517, 1
      %v5519 = vmax.f32 %v5517, %v5518
      %v5520 = vsel %vm4086, %v5302, -inf
      %v5521 = vsel %vm4086, %v5330, -inf
      %v5522 = vmax.f32 %v5520, %v5521
      %v5523 = vsel %vm4086, %v5309, -inf
      %v5524 = vsel %vm4086, %v5337, -inf
      %v5525 = vmax.f32 %v5523, %v5524
      %v5526 = vsel %vm4086, %v5316, -inf
      %v5527 = vsel %vm4086, %v5344, -inf
      %v5528 = vmax.f32 %v5526, %v5527
      %v5529 = vsel %vm4086, %v5323, -inf
      %v5530 = vsel %vm4086, %v5351, -inf
      %v5531 = vmax.f32 %v5529, %v5530
      %v5532 = vsel %vm4086, %v5358, -inf
      %v5533 = vsel %vm4086, %v5386, -inf
      %v5534 = vmax.f32 %v5532, %v5533
      %v5535 = vsel %vm4086, %v5365, -inf
      %v5536 = vsel %vm4086, %v5393, -inf
      %v5537 = vmax.f32 %v5535, %v5536
      %v5538 = vsel %vm4086, %v5372, -inf
      %v5539 = vsel %vm4086, %v5400, -inf
      %v5540 = vmax.f32 %v5538, %v5539
      %v5541 = vsel %vm4086, %v5379, -inf
      %v5542 = vsel %vm4086, %v5407, -inf
      %v5543 = vmax.f32 %v5541, %v5542
      %v5544 = vsel %vm4086, %v5414, -inf
      %v5545 = vsel %vm4086, %v5442, -inf
      %v5546 = vmax.f32 %v5544, %v5545
      %v5547 = vsel %vm4086, %v5421, -inf
      %v5548 = vsel %vm4086, %v5449, -inf
      %v5549 = vmax.f32 %v5547, %v5548
      %v5550 = vsel %vm4086, %v5428, -inf
      %v5551 = vsel %vm4086, %v5456, -inf
      %v5552 = vmax.f32 %v5550, %v5551
      %v5553 = vsel %vm4086, %v5435, -inf
      %v5554 = vsel %vm4086, %v5463, -inf
      %v5555 = vmax.f32 %v5553, %v5554
      %v5556 = vsel %vm4086, %v5470, -inf
      %v5557 = vsel %vm4086, %v5498, -inf
      %v5558 = vmax.f32 %v5556, %v5557
      %v5559 = vsel %vm4086, %v5477, -inf
      %v5560 = vsel %vm4086, %v5505, -inf
      %v5561 = vmax.f32 %v5559, %v5560
      %v5562 = vsel %vm4086, %v5484, -inf
      %v5563 = vsel %vm4086, %v5512, -inf
      %v5564 = vmax.f32 %v5562, %v5563
      %v5565 = vsel %vm4086, %v5491, -inf
      %v5566 = vsel %vm4086, %v5519, -inf
      %v5567 = vmax.f32 %v5565, %v5566
      %vm5568 = vcmask 259072
      %5569 = vst.msk [vmem:[#allocation4] sm:$0x3f] %vm5568, 0.0
      %5570 = vst.msk [vmem:[#allocation4 + $0x8] sm:$0x3f] %vm5568, 0.0
      %5571 = vst.msk [vmem:[#allocation4 + $0x10] sm:$0x3f] %vm5568, 0.0
      %5572 = vst.msk [vmem:[#allocation4 + $0x18] sm:$0x3f] %vm5568, 0.0
      %5573 = vst.msk [vmem:[#allocation4 + $0x20] sm:$0x3f] %vm5568, 0.0
      %5574 = vst.msk [vmem:[#allocation4 + $0x28] sm:$0x3f] %vm5568, 0.0
      %v5591 = vsel %vm4363, %v5525, %v5522
      %v5592 = vsel %vm4365, %v5528, %v5591
      %v5593 = vsel %vm4367, %v5531, %v5592
      %v5594 = vsel %vm4363, %v5537, %v5534
      %v5595 = vsel %vm4365, %v5540, %v5594
      %v5596 = vsel %vm4367, %v5543, %v5595
      %v5597 = vsel %vm4363, %v5549, %v5546
      %v5598 = vsel %vm4365, %v5552, %v5597
      %v5599 = vsel %vm4367, %v5555, %v5598
      %v5600 = vsel %vm4363, %v5561, %v5558
      %v5601 = vsel %vm4365, %v5564, %v5600
      %v5602 = vsel %vm4367, %v5567, %v5601
      %s5607 = scalar_lea.vmem [#allocation4], 8
      %vm5608 = vcmask 257024
      %5609 = vst.msk [vmem:[%s5607 + $0x1] sm:$0xf] %vm5608, %v5593
      %5610 = vst.msk [vmem:[%s5607 + $0x9] sm:$0xf] %vm5608, %v5596
      %5611 = vst.msk [vmem:[%s5607 + $0x11] sm:$0xf] %vm5608, %v5599
      %5612 = vst.msk [vmem:[%s5607 + $0x19] sm:$0xf] %vm5608, %v5602
      %v5613 = vld [vmem:[#allocation4] sm:$0xf]
      %v5614 = vld [vmem:[#allocation4 + $0x8] sm:$0xf]
      %v5615 = vld [vmem:[#allocation4 + $0x10] sm:$0xf]
      %v5616 = vld [vmem:[#allocation4 + $0x18] sm:$0xf]
      %v5621 = vcombine.low %v5613, %v5614
      %v5622 = vcombine.low %v5615, %v5616
      %5625 = vst.msk [vmem:[#allocation6] sm:$0xff] %vm4086, %v5621
      %5626 = vst.msk [vmem:[#allocation6 + $0x18] sm:$0xff] %vm4086, %v5622
      %v5627 = vld [vmem:[#allocation4 + $0x1] sm:$0xf]
      %v5628 = vld [vmem:[#allocation4 + $0x9] sm:$0xf]
      %v5629 = vld [vmem:[#allocation4 + $0x11] sm:$0xf]
      %v5630 = vld [vmem:[#allocation4 + $0x19] sm:$0xf]
      %v5635 = vcombine.low %v5627, %v5628
      %v5636 = vcombine.low %v5629, %v5630
      %5637 = vrot.lane.b32.xlu0 %v5635, 32
      %v5638 = vpop.permute.xlu0 %5637
      %5639 = vrot.lane.b32.xlu0 %v5636, 32
      %v5640 = vpop.permute.xlu0 %5639
      %5643 = vst.msk [vmem:[#allocation6] sm:$0xff] %vm4499, %v5638
      %5644 = vst.msk [vmem:[#allocation6 + $0x18] sm:$0xff] %vm4499, %v5640
      %v5645 = vld [vmem:[#allocation4 + $0x2] sm:$0xf]
      %v5646 = vld [vmem:[#allocation4 + $0xa] sm:$0xf]
      %v5647 = vld [vmem:[#allocation4 + $0x12] sm:$0xf]
      %v5648 = vld [vmem:[#allocation4 + $0x1a] sm:$0xf]
      %v5653 = vcombine.low %v5645, %v5646
      %v5654 = vcombine.low %v5647, %v5648
      %5655 = vrot.lane.b32.xlu0 %v5653, 64
      %v5656 = vpop.permute.xlu0 %5655
      %5657 = vrot.lane.b32.xlu0 %v5654, 64
      %v5658 = vpop.permute.xlu0 %5657
      %5661 = vst.msk [vmem:[#allocation6] sm:$0xff] %vm4548, %v5656
      %5662 = vst.msk [vmem:[#allocation6 + $0x18] sm:$0xff] %vm4548, %v5658
      %v5663 = vld [vmem:[%s5607] sm:$0xf]
      %v5664 = vld [vmem:[%s5607 + $0x8] sm:$0xf]
      %v5665 = vld [vmem:[%s5607 + $0x10] sm:$0xf]
      %v5666 = vld [vmem:[%s5607 + $0x18] sm:$0xf]
      %v5671 = vcombine.low %v5663, %v5664
      %v5672 = vcombine.low %v5665, %v5666
      %5673 = vrot.lane.b32.xlu0 %v5671, 96
      %v5674 = vpop.permute.xlu0 %5673
      %5675 = vrot.lane.b32.xlu0 %v5672, 96
      %v5676 = vpop.permute.xlu0 %5675
      %5679 = vst.msk [vmem:[#allocation6] sm:$0xff] %vm4597, %v5674
      %5680 = vst.msk [vmem:[#allocation6 + $0x18] sm:$0xff] %vm4597, %v5676
      %v5681 = vld [vmem:[%s5607 + $0x1] sm:$0xf]
      %v5682 = vld [vmem:[%s5607 + $0x9] sm:$0xf]
      %v5683 = vld [vmem:[%s5607 + $0x11] sm:$0xf]
      %v5684 = vld [vmem:[%s5607 + $0x19] sm:$0xf]
      %v5689 = vcombine.low %v5681, %v5682
      %v5690 = vcombine.low %v5683, %v5684
      %5693 = vst.msk [vmem:[#allocation6 + $0x8] sm:$0xff] %vm4086, %v5689
      %5694 = vst.msk [vmem:[#allocation6 + $0x20] sm:$0xff] %vm4086, %v5690
      %v5695 = vld [vmem:[%s5607 + $0x2] sm:$0xf]
      %v5696 = vld [vmem:[%s5607 + $0xa] sm:$0xf]
      %v5697 = vld [vmem:[%s5607 + $0x12] sm:$0xf]
      %v5698 = vld [vmem:[%s5607 + $0x1a] sm:$0xf]
      %v5703 = vcombine.low %v5695, %v5696
      %v5704 = vcombine.low %v5697, %v5698
      %5705 = vrot.lane.b32.xlu0 %v5703, 32
      %v5706 = vpop.permute.xlu0 %5705
      %5707 = vrot.lane.b32.xlu0 %v5704, 32
      %v5708 = vpop.permute.xlu0 %5707
      %5711 = vst.msk [vmem:[#allocation6 + $0x8] sm:$0xff] %vm4499, %v5706
      %5712 = vst.msk [vmem:[#allocation6 + $0x20] sm:$0xff] %vm4499, %v5708
      %s5713 = scalar_lea.vmem [#allocation4], 16
      %v5714 = vld [vmem:[%s5713] sm:$0xf]
      %v5715 = vld [vmem:[%s5713 + $0x8] sm:$0xf]
      %v5716 = vld [vmem:[%s5713 + $0x10] sm:$0xf]
      %v5717 = vld [vmem:[%s5713 + $0x18] sm:$0xf]
      %v5722 = vcombine.low %v5714, %v5715
      %v5723 = vcombine.low %v5716, %v5717
      %5724 = vrot.lane.b32.xlu0 %v5722, 64
      %v5725 = vpop.permute.xlu0 %5724
      %5726 = vrot.lane.b32.xlu0 %v5723, 64
      %v5727 = vpop.permute.xlu0 %5726
      %5730 = vst.msk [vmem:[#allocation6 + $0x8] sm:$0xff] %vm4548, %v5725
      %5731 = vst.msk [vmem:[#allocation6 + $0x20] sm:$0xff] %vm4548, %v5727
      %v5732 = vld [vmem:[%s5713 + $0x1] sm:$0xf]
      %v5733 = vld [vmem:[%s5713 + $0x9] sm:$0xf]
      %v5734 = vld [vmem:[%s5713 + $0x11] sm:$0xf]
      %v5735 = vld [vmem:[%s5713 + $0x19] sm:$0xf]
      %v5740 = vcombine.low %v5732, %v5733
      %v5741 = vcombine.low %v5734, %v5735
      %5742 = vrot.lane.b32.xlu0 %v5740, 96
      %v5743 = vpop.permute.xlu0 %5742
      %5744 = vrot.lane.b32.xlu0 %v5741, 96
      %v5745 = vpop.permute.xlu0 %5744
      %5748 = vst.msk [vmem:[#allocation6 + $0x8] sm:$0xff] %vm4597, %v5743
      %5749 = vst.msk [vmem:[#allocation6 + $0x20] sm:$0xff] %vm4597, %v5745
      %v5750 = vld [vmem:[%s5713 + $0x2] sm:$0xf]
      %v5751 = vld [vmem:[%s5713 + $0xa] sm:$0xf]
      %v5752 = vld [vmem:[%s5713 + $0x12] sm:$0xf]
      %v5753 = vld [vmem:[%s5713 + $0x1a] sm:$0xf]
      %v5758 = vcombine.low %v5750, %v5751
      %v5759 = vcombine.low %v5752, %v5753
      %5762 = vst.msk [vmem:[#allocation6 + $0x10] sm:$0xff] %vm4086, %v5758
      %5763 = vst.msk [vmem:[#allocation6 + $0x28] sm:$0xff] %vm4086, %v5759
      %v5764 = vld [vmem:[#allocation6] sm:$0xff]
      %v5765 = vld [vmem:[#allocation6 + $0x8] sm:$0xff]
      %v5766 = vld [vmem:[#allocation6 + $0x10] sm:$0xff]
      %v5767 = vld [vmem:[#allocation6 + $0x18] sm:$0xff]
      %v5768 = vld [vmem:[#allocation6 + $0x20] sm:$0xff]
      %v5769 = vld [vmem:[#allocation6 + $0x28] sm:$0xff]
      %v5770 = vpack.c.bf16 %v5767, %v5764
      %v5771 = vpack.c.bf16 %v5768, %v5765
      %v5772 = vpack.c.bf16 %v5769, %v5766
      %v5773 = vld [vmem:[%s5] sm:$0xf]
      %v5774 = vld [vmem:[%s5 + $0x4] sm:$0xf]
      %v5775 = vld [vmem:[%s5 + $0x8] sm:$0xf]
      %v5776 = vld [vmem:[%s5 + $0xc] sm:$0xf]
      %v5777 = vld [vmem:[%s5 + $0x10] sm:$0xf]
      %v5778 = vld [vmem:[%s5 + $0x14] sm:$0xf]
      %v5779 = vld [vmem:[%s5 + $0x18] sm:$0xf]
      %v5780 = vld [vmem:[%s5 + $0x1c] sm:$0xf]
      %v5781 = vld [vmem:[%s5 + $0x20] sm:$0xf]
      %v5782 = vld [vmem:[%s5 + $0x24] sm:$0xf]
      %v5783 = vld [vmem:[%s5 + $0x28] sm:$0xf]
      %v5784 = vld [vmem:[%s5 + $0x2c] sm:$0xf]
      %v5785 = vld [vmem:[%s5 + $0x30] sm:$0xf]
      %v5786 = vld [vmem:[%s5 + $0x34] sm:$0xf]
      %v5787 = vld [vmem:[%s5 + $0x38] sm:$0xf]
      %v5788 = vld [vmem:[%s5 + $0x3c] sm:$0xf]
      %v5789 = vld [vmem:[%s5 + $0x40] sm:$0xf]
      %v5790 = vld [vmem:[%s5 + $0x44] sm:$0xf]
      %v5791 = vld [vmem:[%s5 + $0x48] sm:$0xf]
      %v5792 = vld [vmem:[%s5 + $0x4c] sm:$0xf]
      %v5793 = vld [vmem:[%s5 + $0x50] sm:$0xf]
      %v5794 = vld [vmem:[%s5 + $0x54] sm:$0xf]
      %v5795 = vld [vmem:[%s5 + $0x58] sm:$0xf]
      %v5796 = vld [vmem:[%s5 + $0x5c] sm:$0xf]
      %v5797 = vld [vmem:[%s5 + $0x60] sm:$0xf]
      %v5798 = vld [vmem:[%s5 + $0x64] sm:$0xf]
      %v5799 = vld [vmem:[%s5 + $0x68] sm:$0xf]
      %v5800 = vld [vmem:[%s5 + $0x6c] sm:$0xf]
      %v5801 = vld [vmem:[%s5 + $0x70] sm:$0xf]
      %v5802 = vld [vmem:[%s5 + $0x74] sm:$0xf]
      %v5803 = vld [vmem:[%s5 + $0x78] sm:$0xf]
      %v5804 = vld [vmem:[%s5 + $0x7c] sm:$0xf]
      %v5805 = vld [vmem:[%s5 + $0x80] sm:$0xf]
      %v5806 = vld [vmem:[%s5 + $0x84] sm:$0xf]
      %v5807 = vld [vmem:[%s5 + $0x88] sm:$0xf]
      %v5808 = vld [vmem:[%s5 + $0x8c] sm:$0xf]
      %v5809 = vld [vmem:[%s6] sm:$0x1]
      %v5811 = vlaneseq
      %v5812 = vshrl.u32 %v5811, 7
      %v5813 = vsub.s32 0, %v5812
      %v5814 = vrot.slane %v5809, %v5813
      %v5852 = vunpack.c.l.b16 %v5773
      %v5853 = vunpack.c.l.b16 %v5774
      %v5854 = vunpack.c.l.b16 %v5775
      %v5855 = vunpack.c.l.b16 %v5776
      %v5856 = vunpack.c.l.b16 %v5777
      %v5857 = vunpack.c.l.b16 %v5778
      %v5858 = vunpack.c.l.b16 %v5779
      %v5859 = vunpack.c.l.b16 %v5780
      %v5860 = vunpack.c.l.b16 %v5781
      %v5861 = vunpack.c.l.b16 %v5782
      %v5862 = vunpack.c.l.b16 %v5783
      %v5863 = vunpack.c.l.b16 %v5784
      %v5864 = vunpack.c.l.b16 %v5785
      %v5865 = vunpack.c.l.b16 %v5786
      %v5866 = vunpack.c.l.b16 %v5787
      %v5867 = vunpack.c.l.b16 %v5788
      %v5868 = vunpack.c.l.b16 %v5789
      %v5869 = vunpack.c.l.b16 %v5790
      %v5870 = vunpack.c.l.b16 %v5791
      %v5871 = vunpack.c.l.b16 %v5792
      %v5872 = vunpack.c.l.b16 %v5793
      %v5873 = vunpack.c.l.b16 %v5794
      %v5874 = vunpack.c.l.b16 %v5795
      %v5875 = vunpack.c.l.b16 %v5796
      %v5876 = vunpack.c.l.b16 %v5797
      %v5877 = vunpack.c.l.b16 %v5798
      %v5878 = vunpack.c.l.b16 %v5799
      %v5879 = vunpack.c.l.b16 %v5800
      %v5880 = vunpack.c.l.b16 %v5801
      %v5881 = vunpack.c.l.b16 %v5802
      %v5882 = vunpack.c.l.b16 %v5803
      %v5883 = vunpack.c.l.b16 %v5804
      %v5884 = vunpack.c.l.b16 %v5805
      %v5885 = vunpack.c.l.b16 %v5806
      %v5886 = vunpack.c.l.b16 %v5807
      %v5887 = vunpack.c.l.b16 %v5808
      %v5888 = vpack.c.b16 %v5853, %v5852
      %v5889 = vpack.c.b16 %v5855, %v5854
      %v5890 = vpack.c.b16 %v5857, %v5856
      %v5891 = vpack.c.b16 %v5859, %v5858
      %v5892 = vpack.c.b16 %v5861, %v5860
      %v5893 = vpack.c.b16 %v5863, %v5862
      %v5894 = vpack.c.b16 %v5865, %v5864
      %v5895 = vpack.c.b16 %v5867, %v5866
      %v5896 = vpack.c.b16 %v5869, %v5868
      %v5897 = vpack.c.b16 %v5871, %v5870
      %v5898 = vpack.c.b16 %v5873, %v5872
      %v5899 = vpack.c.b16 %v5875, %v5874
      %v5900 = vpack.c.b16 %v5877, %v5876
      %v5901 = vpack.c.b16 %v5879, %v5878
      %v5902 = vpack.c.b16 %v5881, %v5880
      %v5903 = vpack.c.b16 %v5883, %v5882
      %v5904 = vpack.c.b16 %v5885, %v5884
      %v5905 = vpack.c.b16 %v5887, %v5886
      %v5925 = vsel %vm4086, %v5772, 0
      %5927 = vmatprep.subr.bf16.mxu0 0
      %5928 = vmatpush1.bf16.msra.mxu0 %v5895
      %5929 = vmatprep.subr.bf16.mxu0 0
      %5930 = vmatpush1.bf16.msra.mxu0 %v5894
      %5931 = vmatprep.subr.bf16.mxu0 0
      %5932 = vmatpush1.bf16.msra.mxu0 %v5893
      %5933 = vmatprep.subr.bf16.mxu0 0
      %5934 = vmatpush1.bf16.msra.mxu0 %v5892
      %5935 = vmatprep.subr.bf16.mxu0 0
      %5936 = vmatpush1.bf16.msra.mxu0 %v5891
      %5937 = vmatprep.subr.bf16.mxu0 0
      %5938 = vmatpush1.bf16.msra.mxu0 %v5890
      %5939 = vmatprep.subr.bf16.mxu0 0
      %5940 = vmatpush1.bf16.msra.mxu0 %v5889
      %5941 = vmatprep.subr.bf16.mxu0 0
      %5942 = vmatpush1.bf16.msra.mxu0 %v5888
      %5943 = vmatprep.subr.bf16.mxu0 0
      %5944 = vmatpush2.bf16.msra.mxu0 %v5903
      %5945 = vmatprep.subr.bf16.mxu0 0
      %5946 = vmatpush2.bf16.msra.mxu0 %v5902
      %5947 = vmatprep.subr.bf16.mxu0 0
      %5948 = vmatpush2.bf16.msra.mxu0 %v5901
      %5949 = vmatprep.subr.bf16.mxu0 0
      %5950 = vmatpush2.bf16.msra.mxu0 %v5900
      %5951 = vmatprep.subr.bf16.mxu0 0
      %5952 = vmatpush2.bf16.msra.mxu0 %v5899
      %5953 = vmatprep.subr.bf16.mxu0 0
      %5954 = vmatpush2.bf16.msra.mxu0 %v5898
      %5955 = vmatprep.subr.bf16.mxu0 0
      %5956 = vmatpush2.bf16.msra.mxu0 %v5897
      %5957 = vmatprep.subr.bf16.mxu0 0
      %5958 = vmatpush2.bf16.msra.mxu0 %v5896
      %5959 = vmatprep.mubr.bf16.mxu0 %v5771
      %5960 = vmatmul.mubr.bf16.gmra.mxu0 %v5770
      %v5961 = vpop.f32.mrf.mxu0
      %v5962 = vadd.f32 %v5814, %v5961
      %v5963 = vpop.f32.mrf.mxu0
      %v5964 = vpop.f32.mrf.mxu0
      %v5965 = vadd.f32 %v5814, %v5964
      %v5966 = vpop.f32.mrf.mxu0
      %5967 = vdwg.mxu0
      %5968 = vmatprep.subr.bf16.mxu0 0
      %5969 = vmatpush1.bf16.msra.mxu0 0
      %5970 = vmatprep.subr.bf16.mxu0 0
      %5971 = vmatpush1.bf16.msra.mxu0 0
      %5972 = vmatprep.subr.bf16.mxu0 0
      %5973 = vmatpush1.bf16.msra.mxu0 0
      %5974 = vmatprep.subr.bf16.mxu0 0
      %5975 = vmatpush1.bf16.msra.mxu0 0
      %5976 = vmatprep.subr.bf16.mxu0 0
      %5977 = vmatpush1.bf16.msra.mxu0 0
      %5978 = vmatprep.subr.bf16.mxu0 0
      %5979 = vmatpush1.bf16.msra.mxu0 0
      %5980 = vmatprep.subr.bf16.mxu0 0
      %5981 = vmatpush1.bf16.msra.mxu0 %v5905
      %5982 = vmatprep.subr.bf16.mxu0 0
      %5983 = vmatpush1.bf16.msra.mxu0 %v5904
      %5984 = vmatprep.subr.bf16.mxu0 0
      %5985 = vmatpush2.bf16.msra.mxu0 0
      %5986 = vmatprep.subr.bf16.mxu0 0
      %5987 = vmatpush2.bf16.msra.mxu0 0
      %5988 = vmatprep.subr.bf16.mxu0 0
      %5989 = vmatpush2.bf16.msra.mxu0 0
      %5990 = vmatprep.subr.bf16.mxu0 0
      %5991 = vmatpush2.bf16.msra.mxu0 0
      %5992 = vmatprep.subr.bf16.mxu0 0
      %5993 = vmatpush2.bf16.msra.mxu0 0
      %5994 = vmatprep.subr.bf16.mxu0 0
      %5995 = vmatpush2.bf16.msra.mxu0 0
      %5996 = vmatprep.subr.bf16.mxu0 0
      %5997 = vmatpush2.bf16.msra.mxu0 0
      %5998 = vmatprep.subr.bf16.mxu0 0
      %5999 = vmatpush2.bf16.msra.mxu0 0
      %6000 = vmatprep.mubr.bf16.mxu0 0
      %6001 = vmatmul.mubr.bf16.gmra.mxu0 %v5925
      %v6002 = vpop.f32.mrf.mxu0
      %v6003 = vadd.f32 %v5962, %v6002
      %v6004 = vpop.f32.mrf.mxu0
      %v6005 = vpop.f32.mrf.mxu0
      %v6006 = vadd.f32 %v5965, %v6005
      %v6007 = vpop.f32.mrf.mxu0
      %6008 = vdwg.mxu0
      %v6009 = vld [vmem:[%s11] sm:$0xff]
      %v6010 = vld [vmem:[%s11 + $0x8] sm:$0xff]
      %v6011 = vld [vmem:[%s11 + $0x10] sm:$0xff]
      %v6012 = vld [vmem:[%s11 + $0x18] sm:$0xff]
      %v6013 = vld [vmem:[%s11 + $0x20] sm:$0xff]
      %v6014 = vld [vmem:[%s11 + $0x28] sm:$0xff]
      %v6015 = vld [vmem:[%s11 + $0x30] sm:$0xff]
      %v6016 = vld [vmem:[%s11 + $0x38] sm:$0xff]
      %vm6017 = vcmask 130048
      %v6019 = vsel %vm6017, %v6009, 0
      %v6022 = vsel %vm6017, %v6010, 0
      %v6025 = vsel %vm6017, %v6011, 0
      %v6028 = vsel %vm6017, %v6012, 0
      %v6031 = vsel %vm6017, %v6013, 0
      %v6034 = vsel %vm6017, %v6014, 0
      %v6037 = vsel %vm6017, %v6015, 0
      %v6040 = vsel %vm6017, %v6016, 0
      %6042 = vmatprep.subr.mxu0 0.0
      %6043 = vmatpush1.msra.mxu0 0.0
      %6044 = vmatprep.subr.mxu0 0.0
      %6045 = vmatpush1.msra.mxu0 0.0
      %6046 = vmatprep.subr.mxu0 0.0
      %6047 = vmatpush1.msra.mxu0 0.0
      %6048 = vmatprep.subr.mxu0 0.0
      %6049 = vmatpush1.msra.mxu0 0.0
      %6050 = vmatprep.subr.mxu0 0.0
      %6051 = vmatpush1.msra.mxu0 0.0
      %6052 = vmatprep.subr.mxu0 0.0
      %6053 = vmatpush1.msra.mxu0 0.0
      %6054 = vmatprep.subr.mxu0 0.0
      %6055 = vmatpush1.msra.mxu0 0.0
      %6056 = vmatprep.subr.mxu0 0.0
      %6057 = vmatpush1.msra.mxu0 0.0
      %6058 = vmatprep.subr.mxu0 0.0
      %6059 = vmatpush1.msra.mxu0 0.0
      %6060 = vmatprep.subr.mxu0 0.0
      %6061 = vmatpush1.msra.mxu0 0.0
      %6062 = vmatprep.subr.mxu0 0.0
      %6063 = vmatpush1.msra.mxu0 0.0
      %6064 = vmatprep.subr.mxu0 0.0
      %6065 = vmatpush1.msra.mxu0 0.0
      %6066 = vmatprep.subr.mxu0 0.0
      %6067 = vmatpush1.msra.mxu0 0.0
      %6068 = vmatprep.subr.mxu0 0.0
      %6069 = vmatpush1.msra.mxu0 0.0
      %6070 = vmatprep.subr.mxu0 0.0
      %6071 = vmatpush1.msra.mxu0 %v6006
      %6072 = vmatprep.subr.mxu0 0.0
      %6073 = vmatpush1.msra.mxu0 %v6003
      %6074 = vmatprep.subr.mxu0 0.0
      %6075 = vmatpush2.msra.mxu0 0.0
      %6076 = vmatprep.subr.mxu0 0.0
      %6077 = vmatpush2.msra.mxu0 0.0
      %6078 = vmatprep.subr.mxu0 0.0
      %6079 = vmatpush2.msra.mxu0 0.0
      %6080 = vmatprep.subr.mxu0 0.0
      %6081 = vmatpush2.msra.mxu0 0.0
      %6082 = vmatprep.subr.mxu0 0.0
      %6083 = vmatpush2.msra.mxu0 0.0
      %6084 = vmatprep.subr.mxu0 0.0
      %6085 = vmatpush2.msra.mxu0 0.0
      %6086 = vmatprep.subr.mxu0 0.0
      %6087 = vmatpush2.msra.mxu0 0.0
      %6088 = vmatprep.subr.mxu0 0.0
      %6089 = vmatpush2.msra.mxu0 0.0
      %6090 = vmatprep.subr.mxu0 0.0
      %6091 = vmatpush2.msra.mxu0 0.0
      %6092 = vmatprep.subr.mxu0 0.0
      %6093 = vmatpush2.msra.mxu0 0.0
      %6094 = vmatprep.subr.mxu0 0.0
      %6095 = vmatpush2.msra.mxu0 0.0
      %6096 = vmatprep.subr.mxu0 0.0
      %6097 = vmatpush2.msra.mxu0 0.0
      %6098 = vmatprep.subr.mxu0 0.0
      %6099 = vmatpush2.msra.mxu0 0.0
      %6100 = vmatprep.subr.mxu0 0.0
      %6101 = vmatpush2.msra.mxu0 0.0
      %6102 = vmatprep.subr.mxu0 0.0
      %6103 = vmatpush2.msra.mxu0 0.0
      %6104 = vmatprep.subr.mxu0 0.0
      %6105 = vmatpush2.msra.mxu0 0.0
      %6106 = vmatprep.mubr.f32.mxu0 0.0
      %6107 = vmatmul.mubr.f32.gmra.mxu0 %v6019
      %v6108 = vpop.f32.mrf.mxu0
      %v6109 = vadd.f32 0.0, %v6108
      %v6110 = vpop.f32.mrf.mxu0
      %6111 = vmatprep.mubr.f32.mxu0 0.0
      %6112 = vmatmul.mubr.f32.gmra.mxu0 %v6022
      %v6113 = vpop.f32.mrf.mxu0
      %v6114 = vadd.f32 0.0, %v6113
      %v6115 = vpop.f32.mrf.mxu0
      %6116 = vmatprep.mubr.f32.mxu0 0.0
      %6117 = vmatmul.mubr.f32.gmra.mxu0 %v6025
      %v6118 = vpop.f32.mrf.mxu0
      %v6119 = vadd.f32 0.0, %v6118
      %v6120 = vpop.f32.mrf.mxu0
      %6121 = vmatprep.mubr.f32.mxu0 0.0
      %6122 = vmatmul.mubr.f32.gmra.mxu0 %v6028
      %v6123 = vpop.f32.mrf.mxu0
      %v6124 = vadd.f32 0.0, %v6123
      %v6125 = vpop.f32.mrf.mxu0
      %6126 = vmatprep.mubr.f32.mxu0 0.0
      %6127 = vmatmul.mubr.f32.gmra.mxu0 %v6031
      %v6128 = vpop.f32.mrf.mxu0
      %v6129 = vadd.f32 0.0, %v6128
      %v6130 = vpop.f32.mrf.mxu0
      %6131 = vmatprep.mubr.f32.mxu0 0.0
      %6132 = vmatmul.mubr.f32.gmra.mxu0 %v6034
      %v6133 = vpop.f32.mrf.mxu0
      %v6134 = vadd.f32 0.0, %v6133
      %v6135 = vpop.f32.mrf.mxu0
      %6136 = vmatprep.mubr.f32.mxu0 0.0
      %6137 = vmatmul.mubr.f32.gmra.mxu0 %v6037
      %v6138 = vpop.f32.mrf.mxu0
      %v6139 = vadd.f32 0.0, %v6138
      %v6140 = vpop.f32.mrf.mxu0
      %6141 = vmatprep.mubr.f32.mxu0 0.0
      %6142 = vmatmul.mubr.f32.gmra.mxu0 %v6040
      %v6143 = vpop.f32.mrf.mxu0
      %v6144 = vadd.f32 0.0, %v6143
      %v6145 = vpop.f32.mrf.mxu0
      %6146 = vdwg.mxu0
      %v6147 = vmax.f32 %v6109, 0.0
      %v6148 = vmax.f32 %v6114, 0.0
      %v6149 = vmax.f32 %v6119, 0.0
      %v6150 = vmax.f32 %v6124, 0.0
      %v6151 = vmax.f32 %v6129, 0.0
      %v6152 = vmax.f32 %v6134, 0.0
      %v6153 = vmax.f32 %v6139, 0.0
      %v6154 = vmax.f32 %v6144, 0.0
      %6155 = vst.msk [vmem:[%s4434 + $0x1] sm:$0xff] %vm4086, %v6147
      %6156 = vst.msk [vmem:[%s4434 + $0x11] sm:$0xff] %vm4086, %v6148
      %6157 = vst.msk [vmem:[%s4434 + $0x21] sm:$0xff] %vm4086, %v6149
      %6158 = vst.msk [vmem:[%s4434 + $0x31] sm:$0xff] %vm4086, %v6150
      %6159 = vst.msk [vmem:[%s4434 + $0x41] sm:$0xff] %vm4086, %v6151
      %6160 = vst.msk [vmem:[%s4434 + $0x51] sm:$0xff] %vm4086, %v6152
      %6161 = vst.msk [vmem:[%s4434 + $0x61] sm:$0xff] %vm4086, %v6153
      %6162 = vst.msk [vmem:[%s4434 + $0x71] sm:$0xff] %vm4086, %v6154
      %v6163 = vld [vmem:[#allocation3] sm:$0xff]
      %v6164 = vld [vmem:[#allocation3 + $0x10] sm:$0xff]
      %v6165 = vld [vmem:[#allocation3 + $0x20] sm:$0xff]
      %v6166 = vld [vmem:[#allocation3 + $0x30] sm:$0xff]
      %v6167 = vld [vmem:[#allocation3 + $0x40] sm:$0xff]
      %v6168 = vld [vmem:[#allocation3 + $0x50] sm:$0xff]
      %v6169 = vld [vmem:[#allocation3 + $0x60] sm:$0xff]
      %v6170 = vld [vmem:[#allocation3 + $0x70] sm:$0xff]
      %6171 = vst.msk [vmem:[#allocation6] sm:$0xff] %vm4086, %v6163
      %6172 = vst.msk [vmem:[#allocation6 + $0x18] sm:$0xff] %vm4086, %v6164
      %6173 = vst.msk [vmem:[#allocation6 + $0x30] sm:$0xff] %vm4086, %v6165
      %6174 = vst.msk [vmem:[#allocation6 + $0x48] sm:$0xff] %vm4086, %v6166
      %6175 = vst.msk [vmem:[#allocation6 + $0x60] sm:$0xff] %vm4086, %v6167
      %6176 = vst.msk [vmem:[#allocation6 + $0x78] sm:$0xff] %vm4086, %v6168
      %6177 = vst.msk [vmem:[#allocation6 + $0x90] sm:$0xff] %vm4086, %v6169
      %6178 = vst.msk [vmem:[#allocation6 + $0xa8] sm:$0xff] %vm4086, %v6170
      %v6179 = vld [vmem:[#allocation3 + $0x1] sm:$0xff]
      %v6180 = vld [vmem:[#allocation3 + $0x11] sm:$0xff]
      %v6181 = vld [vmem:[#allocation3 + $0x21] sm:$0xff]
      %v6182 = vld [vmem:[#allocation3 + $0x31] sm:$0xff]
      %v6183 = vld [vmem:[#allocation3 + $0x41] sm:$0xff]
      %v6184 = vld [vmem:[#allocation3 + $0x51] sm:$0xff]
      %v6185 = vld [vmem:[#allocation3 + $0x61] sm:$0xff]
      %v6186 = vld [vmem:[#allocation3 + $0x71] sm:$0xff]
      %6195 = vrot.lane.b32.xlu0 %v6179, 32
      %v6196 = vpop.permute.xlu0 %6195
      %6197 = vrot.lane.b32.xlu0 %v6180, 32
      %v6198 = vpop.permute.xlu0 %6197
      %6199 = vrot.lane.b32.xlu0 %v6181, 32
      %v6200 = vpop.permute.xlu0 %6199
      %6201 = vrot.lane.b32.xlu0 %v6182, 32
      %v6202 = vpop.permute.xlu0 %6201
      %6203 = vrot.lane.b32.xlu0 %v6183, 32
      %v6204 = vpop.permute.xlu0 %6203
      %6205 = vrot.lane.b32.xlu0 %v6184, 32
      %v6206 = vpop.permute.xlu0 %6205
      %6207 = vrot.lane.b32.xlu0 %v6185, 32
      %v6208 = vpop.permute.xlu0 %6207
      %6209 = vrot.lane.b32.xlu0 %v6186, 32
      %v6210 = vpop.permute.xlu0 %6209
      %6219 = vst.msk [vmem:[#allocation6] sm:$0xff] %vm4499, %v6196
      %6220 = vst.msk [vmem:[#allocation6 + $0x18] sm:$0xff] %vm4499, %v6198
      %6221 = vst.msk [vmem:[#allocation6 + $0x30] sm:$0xff] %vm4499, %v6200
      %6222 = vst.msk [vmem:[#allocation6 + $0x48] sm:$0xff] %vm4499, %v6202
      %6223 = vst.msk [vmem:[#allocation6 + $0x60] sm:$0xff] %vm4499, %v6204
      %6224 = vst.msk [vmem:[#allocation6 + $0x78] sm:$0xff] %vm4499, %v6206
      %6225 = vst.msk [vmem:[#allocation6 + $0x90] sm:$0xff] %vm4499, %v6208
      %6226 = vst.msk [vmem:[#allocation6 + $0xa8] sm:$0xff] %vm4499, %v6210
      %v6227 = vld [vmem:[#allocation3 + $0x2] sm:$0xff]
      %v6228 = vld [vmem:[#allocation3 + $0x12] sm:$0xff]
      %v6229 = vld [vmem:[#allocation3 + $0x22] sm:$0xff]
      %v6230 = vld [vmem:[#allocation3 + $0x32] sm:$0xff]
      %v6231 = vld [vmem:[#allocation3 + $0x42] sm:$0xff]
      %v6232 = vld [vmem:[#allocation3 + $0x52] sm:$0xff]
      %v6233 = vld [vmem:[#allocation3 + $0x62] sm:$0xff]
      %v6234 = vld [vmem:[#allocation3 + $0x72] sm:$0xff]
      %6243 = vrot.lane.b32.xlu0 %v6227, 64
      %v6244 = vpop.permute.xlu0 %6243
      %6245 = vrot.lane.b32.xlu0 %v6228, 64
      %v6246 = vpop.permute.xlu0 %6245
      %6247 = vrot.lane.b32.xlu0 %v6229, 64
      %v6248 = vpop.permute.xlu0 %6247
      %6249 = vrot.lane.b32.xlu0 %v6230, 64
      %v6250 = vpop.permute.xlu0 %6249
      %6251 = vrot.lane.b32.xlu0 %v6231, 64
      %v6252 = vpop.permute.xlu0 %6251
      %6253 = vrot.lane.b32.xlu0 %v6232, 64
      %v6254 = vpop.permute.xlu0 %6253
      %6255 = vrot.lane.b32.xlu0 %v6233, 64
      %v6256 = vpop.permute.xlu0 %6255
      %6257 = vrot.lane.b32.xlu0 %v6234, 64
      %v6258 = vpop.permute.xlu0 %6257
      %6267 = vst.msk [vmem:[#allocation6] sm:$0xff] %vm4548, %v6244
      %6268 = vst.msk [vmem:[#allocation6 + $0x18] sm:$0xff] %vm4548, %v6246
      %6269 = vst.msk [vmem:[#allocation6 + $0x30] sm:$0xff] %vm4548, %v6248
      %6270 = vst.msk [vmem:[#allocation6 + $0x48] sm:$0xff] %vm4548, %v6250
      %6271 = vst.msk [vmem:[#allocation6 + $0x60] sm:$0xff] %vm4548, %v6252
      %6272 = vst.msk [vmem:[#allocation6 + $0x78] sm:$0xff] %vm4548, %v6254
      %6273 = vst.msk [vmem:[#allocation6 + $0x90] sm:$0xff] %vm4548, %v6256
      %6274 = vst.msk [vmem:[#allocation6 + $0xa8] sm:$0xff] %vm4548, %v6258
      %v6275 = vld [vmem:[%s4434] sm:$0xff]
      %v6276 = vld [vmem:[%s4434 + $0x10] sm:$0xff]
      %v6277 = vld [vmem:[%s4434 + $0x20] sm:$0xff]
      %v6278 = vld [vmem:[%s4434 + $0x30] sm:$0xff]
      %v6279 = vld [vmem:[%s4434 + $0x40] sm:$0xff]
      %v6280 = vld [vmem:[%s4434 + $0x50] sm:$0xff]
      %v6281 = vld [vmem:[%s4434 + $0x60] sm:$0xff]
      %v6282 = vld [vmem:[%s4434 + $0x70] sm:$0xff]
      %6291 = vrot.lane.b32.xlu0 %v6275, 96
      %v6292 = vpop.permute.xlu0 %6291
      %6293 = vrot.lane.b32.xlu0 %v6276, 96
      %v6294 = vpop.permute.xlu0 %6293
      %6295 = vrot.lane.b32.xlu0 %v6277, 96
      %v6296 = vpop.permute.xlu0 %6295
      %6297 = vrot.lane.b32.xlu0 %v6278, 96
      %v6298 = vpop.permute.xlu0 %6297
      %6299 = vrot.lane.b32.xlu0 %v6279, 96
      %v6300 = vpop.permute.xlu0 %6299
      %6301 = vrot.lane.b32.xlu0 %v6280, 96
      %v6302 = vpop.permute.xlu0 %6301
      %6303 = vrot.lane.b32.xlu0 %v6281, 96
      %v6304 = vpop.permute.xlu0 %6303
      %6305 = vrot.lane.b32.xlu0 %v6282, 96
      %v6306 = vpop.permute.xlu0 %6305
      %6315 = vst.msk [vmem:[#allocation6] sm:$0xff] %vm4597, %v6292
      %6316 = vst.msk [vmem:[#allocation6 + $0x18] sm:$0xff] %vm4597, %v6294
      %6317 = vst.msk [vmem:[#allocation6 + $0x30] sm:$0xff] %vm4597, %v6296
      %6318 = vst.msk [vmem:[#allocation6 + $0x48] sm:$0xff] %vm4597, %v6298
      %6319 = vst.msk [vmem:[#allocation6 + $0x60] sm:$0xff] %vm4597, %v6300
      %6320 = vst.msk [vmem:[#allocation6 + $0x78] sm:$0xff] %vm4597, %v6302
      %6321 = vst.msk [vmem:[#allocation6 + $0x90] sm:$0xff] %vm4597, %v6304
      %6322 = vst.msk [vmem:[#allocation6 + $0xa8] sm:$0xff] %vm4597, %v6306
      %v6323 = vld [vmem:[%s4434 + $0x1] sm:$0xff]
      %v6324 = vld [vmem:[%s4434 + $0x11] sm:$0xff]
      %v6325 = vld [vmem:[%s4434 + $0x21] sm:$0xff]
      %v6326 = vld [vmem:[%s4434 + $0x31] sm:$0xff]
      %v6327 = vld [vmem:[%s4434 + $0x41] sm:$0xff]
      %v6328 = vld [vmem:[%s4434 + $0x51] sm:$0xff]
      %v6329 = vld [vmem:[%s4434 + $0x61] sm:$0xff]
      %v6330 = vld [vmem:[%s4434 + $0x71] sm:$0xff]
      %6331 = vst.msk [vmem:[#allocation6 + $0x8] sm:$0xff] %vm4086, %v6323
      %6332 = vst.msk [vmem:[#allocation6 + $0x20] sm:$0xff] %vm4086, %v6324
      %6333 = vst.msk [vmem:[#allocation6 + $0x38] sm:$0xff] %vm4086, %v6325
      %6334 = vst.msk [vmem:[#allocation6 + $0x50] sm:$0xff] %vm4086, %v6326
      %6335 = vst.msk [vmem:[#allocation6 + $0x68] sm:$0xff] %vm4086, %v6327
      %6336 = vst.msk [vmem:[#allocation6 + $0x80] sm:$0xff] %vm4086, %v6328
      %6337 = vst.msk [vmem:[#allocation6 + $0x98] sm:$0xff] %vm4086, %v6329
      %6338 = vst.msk [vmem:[#allocation6 + $0xb0] sm:$0xff] %vm4086, %v6330
      %v6339 = vld [vmem:[%s4434 + $0x2] sm:$0xff]
      %v6340 = vld [vmem:[%s4434 + $0x12] sm:$0xff]
      %v6341 = vld [vmem:[%s4434 + $0x22] sm:$0xff]
      %v6342 = vld [vmem:[%s4434 + $0x32] sm:$0xff]
      %v6343 = vld [vmem:[%s4434 + $0x42] sm:$0xff]
      %v6344 = vld [vmem:[%s4434 + $0x52] sm:$0xff]
      %v6345 = vld [vmem:[%s4434 + $0x62] sm:$0xff]
      %v6346 = vld [vmem:[%s4434 + $0x72] sm:$0xff]
      %6355 = vrot.lane.b32.xlu0 %v6339, 32
      %v6356 = vpop.permute.xlu0 %6355
      %6357 = vrot.lane.b32.xlu0 %v6340, 32
      %v6358 = vpop.permute.xlu0 %6357
      %6359 = vrot.lane.b32.xlu0 %v6341, 32
      %v6360 = vpop.permute.xlu0 %6359
      %6361 = vrot.lane.b32.xlu0 %v6342, 32
      %v6362 = vpop.permute.xlu0 %6361
      %6363 = vrot.lane.b32.xlu0 %v6343, 32
      %v6364 = vpop.permute.xlu0 %6363
      %6365 = vrot.lane.b32.xlu0 %v6344, 32
      %v6366 = vpop.permute.xlu0 %6365
      %6367 = vrot.lane.b32.xlu0 %v6345, 32
      %v6368 = vpop.permute.xlu0 %6367
      %6369 = vrot.lane.b32.xlu0 %v6346, 32
      %v6370 = vpop.permute.xlu0 %6369
      %6379 = vst.msk [vmem:[#allocation6 + $0x8] sm:$0xff] %vm4499, %v6356
      %6380 = vst.msk [vmem:[#allocation6 + $0x20] sm:$0xff] %vm4499, %v6358
      %6381 = vst.msk [vmem:[#allocation6 + $0x38] sm:$0xff] %vm4499, %v6360
      %6382 = vst.msk [vmem:[#allocation6 + $0x50] sm:$0xff] %vm4499, %v6362
      %6383 = vst.msk [vmem:[#allocation6 + $0x68] sm:$0xff] %vm4499, %v6364
      %6384 = vst.msk [vmem:[#allocation6 + $0x80] sm:$0xff] %vm4499, %v6366
      %6385 = vst.msk [vmem:[#allocation6 + $0x98] sm:$0xff] %vm4499, %v6368
      %6386 = vst.msk [vmem:[#allocation6 + $0xb0] sm:$0xff] %vm4499, %v6370
      %v6387 = vld [vmem:[%s4670] sm:$0xff]
      %v6388 = vld [vmem:[%s4670 + $0x10] sm:$0xff]
      %v6389 = vld [vmem:[%s4670 + $0x20] sm:$0xff]
      %v6390 = vld [vmem:[%s4670 + $0x30] sm:$0xff]
      %v6391 = vld [vmem:[%s4670 + $0x40] sm:$0xff]
      %v6392 = vld [vmem:[%s4670 + $0x50] sm:$0xff]
      %v6393 = vld [vmem:[%s4670 + $0x60] sm:$0xff]
      %v6394 = vld [vmem:[%s4670 + $0x70] sm:$0xff]
      %6403 = vrot.lane.b32.xlu0 %v6387, 64
      %v6404 = vpop.permute.xlu0 %6403
      %6405 = vrot.lane.b32.xlu0 %v6388, 64
      %v6406 = vpop.permute.xlu0 %6405
      %6407 = vrot.lane.b32.xlu0 %v6389, 64
      %v6408 = vpop.permute.xlu0 %6407
      %6409 = vrot.lane.b32.xlu0 %v6390, 64
      %v6410 = vpop.permute.xlu0 %6409
      %6411 = vrot.lane.b32.xlu0 %v6391, 64
      %v6412 = vpop.permute.xlu0 %6411
      %6413 = vrot.lane.b32.xlu0 %v6392, 64
      %v6414 = vpop.permute.xlu0 %6413
      %6415 = vrot.lane.b32.xlu0 %v6393, 64
      %v6416 = vpop.permute.xlu0 %6415
      %6417 = vrot.lane.b32.xlu0 %v6394, 64
      %v6418 = vpop.permute.xlu0 %6417
      %6427 = vst.msk [vmem:[#allocation6 + $0x8] sm:$0xff] %vm4548, %v6404
      %6428 = vst.msk [vmem:[#allocation6 + $0x20] sm:$0xff] %vm4548, %v6406
      %6429 = vst.msk [vmem:[#allocation6 + $0x38] sm:$0xff] %vm4548, %v6408
      %6430 = vst.msk [vmem:[#allocation6 + $0x50] sm:$0xff] %vm4548, %v6410
      %6431 = vst.msk [vmem:[#allocation6 + $0x68] sm:$0xff] %vm4548, %v6412
      %6432 = vst.msk [vmem:[#allocation6 + $0x80] sm:$0xff] %vm4548, %v6414
      %6433 = vst.msk [vmem:[#allocation6 + $0x98] sm:$0xff] %vm4548, %v6416
      %6434 = vst.msk [vmem:[#allocation6 + $0xb0] sm:$0xff] %vm4548, %v6418
      %v6435 = vld [vmem:[%s4670 + $0x1] sm:$0xff]
      %v6436 = vld [vmem:[%s4670 + $0x11] sm:$0xff]
      %v6437 = vld [vmem:[%s4670 + $0x21] sm:$0xff]
      %v6438 = vld [vmem:[%s4670 + $0x31] sm:$0xff]
      %v6439 = vld [vmem:[%s4670 + $0x41] sm:$0xff]
      %v6440 = vld [vmem:[%s4670 + $0x51] sm:$0xff]
      %v6441 = vld [vmem:[%s4670 + $0x61] sm:$0xff]
      %v6442 = vld [vmem:[%s4670 + $0x71] sm:$0xff]
      %6451 = vrot.lane.b32.xlu0 %v6435, 96
      %v6452 = vpop.permute.xlu0 %6451
      %6453 = vrot.lane.b32.xlu0 %v6436, 96
      %v6454 = vpop.permute.xlu0 %6453
      %6455 = vrot.lane.b32.xlu0 %v6437, 96
      %v6456 = vpop.permute.xlu0 %6455
      %6457 = vrot.lane.b32.xlu0 %v6438, 96
      %v6458 = vpop.permute.xlu0 %6457
      %6459 = vrot.lane.b32.xlu0 %v6439, 96
      %v6460 = vpop.permute.xlu0 %6459
      %6461 = vrot.lane.b32.xlu0 %v6440, 96
      %v6462 = vpop.permute.xlu0 %6461
      %6463 = vrot.lane.b32.xlu0 %v6441, 96
      %v6464 = vpop.permute.xlu0 %6463
      %6465 = vrot.lane.b32.xlu0 %v6442, 96
      %v6466 = vpop.permute.xlu0 %6465
      %6475 = vst.msk [vmem:[#allocation6 + $0x8] sm:$0xff] %vm4597, %v6452
      %6476 = vst.msk [vmem:[#allocation6 + $0x20] sm:$0xff] %vm4597, %v6454
      %6477 = vst.msk [vmem:[#allocation6 + $0x38] sm:$0xff] %vm4597, %v6456
      %6478 = vst.msk [vmem:[#allocation6 + $0x50] sm:$0xff] %vm4597, %v6458
      %6479 = vst.msk [vmem:[#allocation6 + $0x68] sm:$0xff] %vm4597, %v6460
      %6480 = vst.msk [vmem:[#allocation6 + $0x80] sm:$0xff] %vm4597, %v6462
      %6481 = vst.msk [vmem:[#allocation6 + $0x98] sm:$0xff] %vm4597, %v6464
      %6482 = vst.msk [vmem:[#allocation6 + $0xb0] sm:$0xff] %vm4597, %v6466
      %v6483 = vld [vmem:[%s4670 + $0x2] sm:$0xff]
      %v6484 = vld [vmem:[%s4670 + $0x12] sm:$0xff]
      %v6485 = vld [vmem:[%s4670 + $0x22] sm:$0xff]
      %v6486 = vld [vmem:[%s4670 + $0x32] sm:$0xff]
      %v6487 = vld [vmem:[%s4670 + $0x42] sm:$0xff]
      %v6488 = vld [vmem:[%s4670 + $0x52] sm:$0xff]
      %v6489 = vld [vmem:[%s4670 + $0x62] sm:$0xff]
      %v6490 = vld [vmem:[%s4670 + $0x72] sm:$0xff]
      %6491 = vst.msk [vmem:[#allocation6 + $0x10] sm:$0xff] %vm4086, %v6483
      %6492 = vst.msk [vmem:[#allocation6 + $0x28] sm:$0xff] %vm4086, %v6484
      %6493 = vst.msk [vmem:[#allocation6 + $0x40] sm:$0xff] %vm4086, %v6485
      %6494 = vst.msk [vmem:[#allocation6 + $0x58] sm:$0xff] %vm4086, %v6486
      %6495 = vst.msk [vmem:[#allocation6 + $0x70] sm:$0xff] %vm4086, %v6487
      %6496 = vst.msk [vmem:[#allocation6 + $0x88] sm:$0xff] %vm4086, %v6488
      %6497 = vst.msk [vmem:[#allocation6 + $0xa0] sm:$0xff] %vm4086, %v6489
      %6498 = vst.msk [vmem:[#allocation6 + $0xb8] sm:$0xff] %vm4086, %v6490
      %v6499 = vld [vmem:[#allocation6] sm:$0xff]
      %v6500 = vld [vmem:[#allocation6 + $0x8] sm:$0xff]
      %v6501 = vld [vmem:[#allocation6 + $0x10] sm:$0xff]
      %v6502 = vld [vmem:[#allocation6 + $0x18] sm:$0xff]
      %v6503 = vld [vmem:[#allocation6 + $0x20] sm:$0xff]
      %v6504 = vld [vmem:[#allocation6 + $0x28] sm:$0xff]
      %v6505 = vld [vmem:[#allocation6 + $0x30] sm:$0xff]
      %v6506 = vld [vmem:[#allocation6 + $0x38] sm:$0xff]
      %v6507 = vld [vmem:[#allocation6 + $0x40] sm:$0xff]
      %v6508 = vld [vmem:[#allocation6 + $0x48] sm:$0xff]
      %v6509 = vld [vmem:[#allocation6 + $0x50] sm:$0xff]
      %v6510 = vld [vmem:[#allocation6 + $0x58] sm:$0xff]
      %v6511 = vld [vmem:[#allocation6 + $0x60] sm:$0xff]
      %v6512 = vld [vmem:[#allocation6 + $0x68] sm:$0xff]
      %v6513 = vld [vmem:[#allocation6 + $0x70] sm:$0xff]
      %v6514 = vld [vmem:[#allocation6 + $0x78] sm:$0xff]
      %v6515 = vld [vmem:[#allocation6 + $0x80] sm:$0xff]
      %v6516 = vld [vmem:[#allocation6 + $0x88] sm:$0xff]
      %v6517 = vld [vmem:[#allocation6 + $0x90] sm:$0xff]
      %v6518 = vld [vmem:[#allocation6 + $0x98] sm:$0xff]
      %v6519 = vld [vmem:[#allocation6 + $0xa0] sm:$0xff]
      %v6520 = vld [vmem:[#allocation6 + $0xa8] sm:$0xff]
      %v6521 = vld [vmem:[#allocation6 + $0xb0] sm:$0xff]
      %v6522 = vld [vmem:[#allocation6 + $0xb8] sm:$0xff]
      %v6523 = vpack.c.bf16 %v6502, %v6499
      %v6524 = vpack.c.bf16 %v6503, %v6500
      %v6525 = vpack.c.bf16 %v6504, %v6501
      %v6526 = vpack.c.bf16 %v6508, %v6505
      %v6527 = vpack.c.bf16 %v6509, %v6506
      %v6528 = vpack.c.bf16 %v6510, %v6507
      %v6529 = vpack.c.bf16 %v6514, %v6511
      %v6530 = vpack.c.bf16 %v6515, %v6512
      %v6531 = vpack.c.bf16 %v6516, %v6513
      %v6532 = vpack.c.bf16 %v6520, %v6517
      %v6533 = vpack.c.bf16 %v6521, %v6518
      %v6534 = vpack.c.bf16 %v6522, %v6519
      %v6535 = vld [vmem:[%s7] sm:$0xf]
      %v6536 = vld [vmem:[%s7 + $0x4] sm:$0xf]
      %v6537 = vld [vmem:[%s7 + $0x8] sm:$0xf]
      %v6538 = vld [vmem:[%s7 + $0xc] sm:$0xf]
      %v6539 = vld [vmem:[%s7 + $0x10] sm:$0xf]
      %v6540 = vld [vmem:[%s7 + $0x14] sm:$0xf]
      %v6541 = vld [vmem:[%s7 + $0x18] sm:$0xf]
      %v6542 = vld [vmem:[%s7 + $0x1c] sm:$0xf]
      %v6543 = vld [vmem:[%s7 + $0x20] sm:$0xf]
      %v6544 = vld [vmem:[%s7 + $0x24] sm:$0xf]
      %v6545 = vld [vmem:[%s7 + $0x28] sm:$0xf]
      %v6546 = vld [vmem:[%s7 + $0x2c] sm:$0xf]
      %v6547 = vld [vmem:[%s7 + $0x30] sm:$0xf]
      %v6548 = vld [vmem:[%s7 + $0x34] sm:$0xf]
      %v6549 = vld [vmem:[%s7 + $0x38] sm:$0xf]
      %v6550 = vld [vmem:[%s7 + $0x3c] sm:$0xf]
      %v6551 = vld [vmem:[%s7 + $0x40] sm:$0xf]
      %v6552 = vld [vmem:[%s7 + $0x44] sm:$0xf]
      %v6553 = vld [vmem:[%s7 + $0x48] sm:$0xf]
      %v6554 = vld [vmem:[%s7 + $0x4c] sm:$0xf]
      %v6555 = vld [vmem:[%s7 + $0x50] sm:$0xf]
      %v6556 = vld [vmem:[%s7 + $0x54] sm:$0xf]
      %v6557 = vld [vmem:[%s7 + $0x58] sm:$0xf]
      %v6558 = vld [vmem:[%s7 + $0x5c] sm:$0xf]
      %v6559 = vld [vmem:[%s7 + $0x60] sm:$0xf]
      %v6560 = vld [vmem:[%s7 + $0x64] sm:$0xf]
      %v6561 = vld [vmem:[%s7 + $0x68] sm:$0xf]
      %v6562 = vld [vmem:[%s7 + $0x6c] sm:$0xf]
      %v6563 = vld [vmem:[%s7 + $0x70] sm:$0xf]
      %v6564 = vld [vmem:[%s7 + $0x74] sm:$0xf]
      %v6565 = vld [vmem:[%s7 + $0x78] sm:$0xf]
      %v6566 = vld [vmem:[%s7 + $0x7c] sm:$0xf]
      %v6567 = vld [vmem:[%s7 + $0x80] sm:$0xf]
      %v6568 = vld [vmem:[%s7 + $0x84] sm:$0xf]
      %v6569 = vld [vmem:[%s7 + $0x88] sm:$0xf]
      %v6570 = vld [vmem:[%s7 + $0x8c] sm:$0xf]
      %v6571 = vld [vmem:[%s8] sm:$0x1]
      %v6573 = vlaneseq
      %v6574 = vshrl.u32 %v6573, 7
      %v6575 = vsub.s32 0, %v6574
      %v6576 = vrot.slane %v6571, %v6575
      %v6614 = vunpack.c.l.b16 %v6535
      %v6615 = vunpack.c.l.b16 %v6536
      %v6616 = vunpack.c.l.b16 %v6537
      %v6617 = vunpack.c.l.b16 %v6538
      %v6618 = vunpack.c.l.b16 %v6539
      %v6619 = vunpack.c.l.b16 %v6540
      %v6620 = vunpack.c.l.b16 %v6541
      %v6621 = vunpack.c.l.b16 %v6542
      %v6622 = vunpack.c.l.b16 %v6543
      %v6623 = vunpack.c.l.b16 %v6544
      %v6624 = vunpack.c.l.b16 %v6545
      %v6625 = vunpack.c.l.b16 %v6546
      %v6626 = vunpack.c.l.b16 %v6547
      %v6627 = vunpack.c.l.b16 %v6548
      %v6628 = vunpack.c.l.b16 %v6549
      %v6629 = vunpack.c.l.b16 %v6550
      %v6630 = vunpack.c.l.b16 %v6551
      %v6631 = vunpack.c.l.b16 %v6552
      %v6632 = vunpack.c.l.b16 %v6553
      %v6633 = vunpack.c.l.b16 %v6554
      %v6634 = vunpack.c.l.b16 %v6555
      %v6635 = vunpack.c.l.b16 %v6556
      %v6636 = vunpack.c.l.b16 %v6557
      %v6637 = vunpack.c.l.b16 %v6558
      %v6638 = vunpack.c.l.b16 %v6559
      %v6639 = vunpack.c.l.b16 %v6560
      %v6640 = vunpack.c.l.b16 %v6561
      %v6641 = vunpack.c.l.b16 %v6562
      %v6642 = vunpack.c.l.b16 %v6563
      %v6643 = vunpack.c.l.b16 %v6564
      %v6644 = vunpack.c.l.b16 %v6565
      %v6645 = vunpack.c.l.b16 %v6566
      %v6646 = vunpack.c.l.b16 %v6567
      %v6647 = vunpack.c.l.b16 %v6568
      %v6648 = vunpack.c.l.b16 %v6569
      %v6649 = vunpack.c.l.b16 %v6570
      %v6650 = vpack.c.b16 %v6615, %v6614
      %v6651 = vpack.c.b16 %v6617, %v6616
      %v6652 = vpack.c.b16 %v6619, %v6618
      %v6653 = vpack.c.b16 %v6621, %v6620
      %v6654 = vpack.c.b16 %v6623, %v6622
      %v6655 = vpack.c.b16 %v6625, %v6624
      %v6656 = vpack.c.b16 %v6627, %v6626
      %v6657 = vpack.c.b16 %v6629, %v6628
      %v6658 = vpack.c.b16 %v6631, %v6630
      %v6659 = vpack.c.b16 %v6633, %v6632
      %v6660 = vpack.c.b16 %v6635, %v6634
      %v6661 = vpack.c.b16 %v6637, %v6636
      %v6662 = vpack.c.b16 %v6639, %v6638
      %v6663 = vpack.c.b16 %v6641, %v6640
      %v6664 = vpack.c.b16 %v6643, %v6642
      %v6665 = vpack.c.b16 %v6645, %v6644
      %v6666 = vpack.c.b16 %v6647, %v6646
      %v6667 = vpack.c.b16 %v6649, %v6648
      %v6687 = vsel %vm4086, %v6525, 0
      %v6690 = vsel %vm4086, %v6528, 0
      %v6693 = vsel %vm4086, %v6531, 0
      %v6696 = vsel %vm4086, %v6534, 0
      %6698 = vmatprep.subr.bf16.mxu0 0
      %6699 = vmatpush1.bf16.msra.mxu0 %v6657
      %6700 = vmatprep.subr.bf16.mxu0 0
      %6701 = vmatpush1.bf16.msra.mxu0 %v6656
      %6702 = vmatprep.subr.bf16.mxu0 0
      %6703 = vmatpush1.bf16.msra.mxu0 %v6655
      %6704 = vmatprep.subr.bf16.mxu0 0
      %6705 = vmatpush1.bf16.msra.mxu0 %v6654
      %6706 = vmatprep.subr.bf16.mxu0 0
      %6707 = vmatpush1.bf16.msra.mxu0 %v6653
      %6708 = vmatprep.subr.bf16.mxu0 0
      %6709 = vmatpush1.bf16.msra.mxu0 %v6652
      %6710 = vmatprep.subr.bf16.mxu0 0
      %6711 = vmatpush1.bf16.msra.mxu0 %v6651
      %6712 = vmatprep.subr.bf16.mxu0 0
      %6713 = vmatpush1.bf16.msra.mxu0 %v6650
      %6714 = vmatprep.subr.bf16.mxu0 0
      %6715 = vmatpush2.bf16.msra.mxu0 %v6665
      %6716 = vmatprep.subr.bf16.mxu0 0
      %6717 = vmatpush2.bf16.msra.mxu0 %v6664
      %6718 = vmatprep.subr.bf16.mxu0 0
      %6719 = vmatpush2.bf16.msra.mxu0 %v6663
      %6720 = vmatprep.subr.bf16.mxu0 0
      %6721 = vmatpush2.bf16.msra.mxu0 %v6662
      %6722 = vmatprep.subr.bf16.mxu0 0
      %6723 = vmatpush2.bf16.msra.mxu0 %v6661
      %6724 = vmatprep.subr.bf16.mxu0 0
      %6725 = vmatpush2.bf16.msra.mxu0 %v6660
      %6726 = vmatprep.subr.bf16.mxu0 0
      %6727 = vmatpush2.bf16.msra.mxu0 %v6659
      %6728 = vmatprep.subr.bf16.mxu0 0
      %6729 = vmatpush2.bf16.msra.mxu0 %v6658
      %6730 = vmatprep.mubr.bf16.mxu0 %v6524
      %6731 = vmatmul.mubr.bf16.gmra.mxu0 %v6523
      %v6732 = vpop.f32.mrf.mxu0
      %v6733 = vadd.f32 %v6576, %v6732
      %v6734 = vpop.f32.mrf.mxu0
      %v6735 = vpop.f32.mrf.mxu0
      %v6736 = vadd.f32 %v6576, %v6735
      %v6737 = vpop.f32.mrf.mxu0
      %6738 = vmatprep.mubr.bf16.mxu0 %v6527
      %6739 = vmatmul.mubr.bf16.gmra.mxu0 %v6526
      %v6740 = vpop.f32.mrf.mxu0
      %v6741 = vadd.f32 %v6576, %v6740
      %v6742 = vpop.f32.mrf.mxu0
      %v6743 = vpop.f32.mrf.mxu0
      %v6744 = vadd.f32 %v6576, %v6743
      %v6745 = vpop.f32.mrf.mxu0
      %6746 = vmatprep.mubr.bf16.mxu0 %v6530
      %6747 = vmatmul.mubr.bf16.gmra.mxu0 %v6529
      %v6748 = vpop.f32.mrf.mxu0
      %v6749 = vadd.f32 %v6576, %v6748
      %v6750 = vpop.f32.mrf.mxu0
      %v6751 = vpop.f32.mrf.mxu0
      %v6752 = vadd.f32 %v6576, %v6751
      %v6753 = vpop.f32.mrf.mxu0
      %6754 = vmatprep.mubr.bf16.mxu0 %v6533
      %6755 = vmatmul.mubr.bf16.gmra.mxu0 %v6532
      %v6756 = vpop.f32.mrf.mxu0
      %v6757 = vadd.f32 %v6576, %v6756
      %v6758 = vpop.f32.mrf.mxu0
      %v6759 = vpop.f32.mrf.mxu0
      %v6760 = vadd.f32 %v6576, %v6759
      %v6761 = vpop.f32.mrf.mxu0
      %6762 = vdwg.mxu0
      %6763 = vmatprep.subr.bf16.mxu0 0
      %6764 = vmatpush1.bf16.msra.mxu0 0
      %6765 = vmatprep.subr.bf16.mxu0 0
      %6766 = vmatpush1.bf16.msra.mxu0 0
      %6767 = vmatprep.subr.bf16.mxu0 0
      %6768 = vmatpush1.bf16.msra.mxu0 0
      %6769 = vmatprep.subr.bf16.mxu0 0
      %6770 = vmatpush1.bf16.msra.mxu0 0
      %6771 = vmatprep.subr.bf16.mxu0 0
      %6772 = vmatpush1.bf16.msra.mxu0 0
      %6773 = vmatprep.subr.bf16.mxu0 0
      %6774 = vmatpush1.bf16.msra.mxu0 0
      %6775 = vmatprep.subr.bf16.mxu0 0
      %6776 = vmatpush1.bf16.msra.mxu0 %v6667
      %6777 = vmatprep.subr.bf16.mxu0 0
      %6778 = vmatpush1.bf16.msra.mxu0 %v6666
      %6779 = vmatprep.subr.bf16.mxu0 0
      %6780 = vmatpush2.bf16.msra.mxu0 0
      %6781 = vmatprep.subr.bf16.mxu0 0
      %6782 = vmatpush2.bf16.msra.mxu0 0
      %6783 = vmatprep.subr.bf16.mxu0 0
      %6784 = vmatpush2.bf16.msra.mxu0 0
      %6785 = vmatprep.subr.bf16.mxu0 0
      %6786 = vmatpush2.bf16.msra.mxu0 0
      %6787 = vmatprep.subr.bf16.mxu0 0
      %6788 = vmatpush2.bf16.msra.mxu0 0
      %6789 = vmatprep.subr.bf16.mxu0 0
      %6790 = vmatpush2.bf16.msra.mxu0 0
      %6791 = vmatprep.subr.bf16.mxu0 0
      %6792 = vmatpush2.bf16.msra.mxu0 0
      %6793 = vmatprep.subr.bf16.mxu0 0
      %6794 = vmatpush2.bf16.msra.mxu0 0
      %6795 = vmatprep.mubr.bf16.mxu0 0
      %6796 = vmatmul.mubr.bf16.gmra.mxu0 %v6687
      %v6797 = vpop.f32.mrf.mxu0
      %v6798 = vadd.f32 %v6733, %v6797
      %v6799 = vpop.f32.mrf.mxu0
      %v6800 = vpop.f32.mrf.mxu0
      %v6801 = vadd.f32 %v6736, %v6800
      %v6802 = vpop.f32.mrf.mxu0
      %6803 = vmatprep.mubr.bf16.mxu0 0
      %6804 = vmatmul.mubr.bf16.gmra.mxu0 %v6690
      %v6805 = vpop.f32.mrf.mxu0
      %v6806 = vadd.f32 %v6741, %v6805
      %v6807 = vpop.f32.mrf.mxu0
      %v6808 = vpop.f32.mrf.mxu0
      %v6809 = vadd.f32 %v6744, %v6808
      %v6810 = vpop.f32.mrf.mxu0
      %6811 = vmatprep.mubr.bf16.mxu0 0
      %6812 = vmatmul.mubr.bf16.gmra.mxu0 %v6693
      %v6813 = vpop.f32.mrf.mxu0
      %v6814 = vadd.f32 %v6749, %v6813
      %v6815 = vpop.f32.mrf.mxu0
      %v6816 = vpop.f32.mrf.mxu0
      %v6817 = vadd.f32 %v6752, %v6816
      %v6818 = vpop.f32.mrf.mxu0
      %6819 = vmatprep.mubr.bf16.mxu0 0
      %6820 = vmatmul.mubr.bf16.gmra.mxu0 %v6696
      %v6821 = vpop.f32.mrf.mxu0
      %v6822 = vadd.f32 %v6757, %v6821
      %v6823 = vpop.f32.mrf.mxu0
      %v6824 = vpop.f32.mrf.mxu0
      %v6825 = vadd.f32 %v6760, %v6824
      %v6826 = vpop.f32.mrf.mxu0
      %6827 = vdwg.mxu0
      %v6828 = vld [vmem:[%s12] sm:$0xff]
      %v6829 = vld [vmem:[%s12 + $0x8] sm:$0xff]
      %v6830 = vld [vmem:[%s12 + $0x10] sm:$0xff]
      %v6831 = vld [vmem:[%s12 + $0x18] sm:$0xff]
      %v6832 = vld [vmem:[%s12 + $0x20] sm:$0xff]
      %v6833 = vld [vmem:[%s12 + $0x28] sm:$0xff]
      %v6834 = vld [vmem:[%s12 + $0x30] sm:$0xff]
      %v6835 = vld [vmem:[%s12 + $0x38] sm:$0xff]
      %v6836 = vld [vmem:[%s12 + $0x40] sm:$0xff]
      %v6837 = vld [vmem:[%s12 + $0x48] sm:$0xff]
      %v6838 = vld [vmem:[%s12 + $0x50] sm:$0xff]
      %v6839 = vld [vmem:[%s12 + $0x58] sm:$0xff]
      %v6840 = vld [vmem:[%s12 + $0x60] sm:$0xff]
      %v6841 = vld [vmem:[%s12 + $0x68] sm:$0xff]
      %v6842 = vld [vmem:[%s12 + $0x70] sm:$0xff]
      %v6843 = vld [vmem:[%s12 + $0x78] sm:$0xff]
      %v6844 = vld [vmem:[%s12 + $0x80] sm:$0xff]
      %v6845 = vld [vmem:[%s12 + $0x88] sm:$0xff]
      %v6846 = vld [vmem:[%s12 + $0x90] sm:$0xff]
      %v6847 = vld [vmem:[%s12 + $0x98] sm:$0xff]
      %v6848 = vld [vmem:[%s12 + $0xa0] sm:$0xff]
      %v6849 = vld [vmem:[%s12 + $0xa8] sm:$0xff]
      %v6850 = vld [vmem:[%s12 + $0xb0] sm:$0xff]
      %v6851 = vld [vmem:[%s12 + $0xb8] sm:$0xff]
      %v6852 = vld [vmem:[%s12 + $0xc0] sm:$0xff]
      %v6853 = vld [vmem:[%s12 + $0xc8] sm:$0xff]
      %v6854 = vld [vmem:[%s12 + $0xd0] sm:$0xff]
      %v6855 = vld [vmem:[%s12 + $0xd8] sm:$0xff]
      %v6856 = vld [vmem:[%s12 + $0xe0] sm:$0xff]
      %v6857 = vld [vmem:[%s12 + $0xe8] sm:$0xff]
      %v6858 = vld [vmem:[%s12 + $0xf0] sm:$0xff]
      %v6859 = vld [vmem:[%s12 + $0xf8] sm:$0xff]
      %vm6860 = vcmask 523264
      %v6862 = vsel %vm6860, %v6828, 0
      %v6865 = vsel %vm6860, %v6829, 0
      %v6868 = vsel %vm6860, %v6830, 0
      %v6871 = vsel %vm6860, %v6831, 0
      %v6874 = vsel %vm6860, %v6832, 0
      %v6877 = vsel %vm6860, %v6833, 0
      %v6880 = vsel %vm6860, %v6834, 0
      %v6883 = vsel %vm6860, %v6835, 0
      %v6886 = vsel %vm6860, %v6836, 0
      %v6889 = vsel %vm6860, %v6837, 0
      %v6892 = vsel %vm6860, %v6838, 0
      %v6895 = vsel %vm6860, %v6839, 0
      %v6898 = vsel %vm6860, %v6840, 0
      %v6901 = vsel %vm6860, %v6841, 0
      %v6904 = vsel %vm6860, %v6842, 0
      %v6907 = vsel %vm6860, %v6843, 0
      %v6910 = vsel %vm6860, %v6844, 0
      %v6913 = vsel %vm6860, %v6845, 0
      %v6916 = vsel %vm6860, %v6846, 0
      %v6919 = vsel %vm6860, %v6847, 0
      %v6922 = vsel %vm6860, %v6848, 0
      %v6925 = vsel %vm6860, %v6849, 0
      %v6928 = vsel %vm6860, %v6850, 0
      %v6931 = vsel %vm6860, %v6851, 0
      %v6934 = vsel %vm6860, %v6852, 0
      %v6937 = vsel %vm6860, %v6853, 0
      %v6940 = vsel %vm6860, %v6854, 0
      %v6943 = vsel %vm6860, %v6855, 0
      %v6946 = vsel %vm6860, %v6856, 0
      %v6949 = vsel %vm6860, %v6857, 0
      %v6952 = vsel %vm6860, %v6858, 0
      %v6955 = vsel %vm6860, %v6859, 0
      %6957 = vmatprep.subr.mxu0 0.0
      %6958 = vmatpush1.msra.mxu0 0.0
      %6959 = vmatprep.subr.mxu0 0.0
      %6960 = vmatpush1.msra.mxu0 0.0
      %6961 = vmatprep.subr.mxu0 0.0
      %6962 = vmatpush1.msra.mxu0 0.0
      %6963 = vmatprep.subr.mxu0 0.0
      %6964 = vmatpush1.msra.mxu0 0.0
      %6965 = vmatprep.subr.mxu0 0.0
      %6966 = vmatpush1.msra.mxu0 0.0
      %6967 = vmatprep.subr.mxu0 0.0
      %6968 = vmatpush1.msra.mxu0 0.0
      %6969 = vmatprep.subr.mxu0 0.0
      %6970 = vmatpush1.msra.mxu0 0.0
      %6971 = vmatprep.subr.mxu0 0.0
      %6972 = vmatpush1.msra.mxu0 0.0
      %6973 = vmatprep.subr.mxu0 0.0
      %6974 = vmatpush1.msra.mxu0 %v6825
      %6975 = vmatprep.subr.mxu0 0.0
      %6976 = vmatpush1.msra.mxu0 %v6822
      %6977 = vmatprep.subr.mxu0 0.0
      %6978 = vmatpush1.msra.mxu0 %v6817
      %6979 = vmatprep.subr.mxu0 0.0
      %6980 = vmatpush1.msra.mxu0 %v6814
      %6981 = vmatprep.subr.mxu0 0.0
      %6982 = vmatpush1.msra.mxu0 %v6809
      %6983 = vmatprep.subr.mxu0 0.0
      %6984 = vmatpush1.msra.mxu0 %v6806
      %6985 = vmatprep.subr.mxu0 0.0
      %6986 = vmatpush1.msra.mxu0 %v6801
      %6987 = vmatprep.subr.mxu0 0.0
      %6988 = vmatpush1.msra.mxu0 %v6798
      %6989 = vmatprep.subr.mxu0 0.0
      %6990 = vmatpush2.msra.mxu0 0.0
      %6991 = vmatprep.subr.mxu0 0.0
      %6992 = vmatpush2.msra.mxu0 0.0
      %6993 = vmatprep.subr.mxu0 0.0
      %6994 = vmatpush2.msra.mxu0 0.0
      %6995 = vmatprep.subr.mxu0 0.0
      %6996 = vmatpush2.msra.mxu0 0.0
      %6997 = vmatprep.subr.mxu0 0.0
      %6998 = vmatpush2.msra.mxu0 0.0
      %6999 = vmatprep.subr.mxu0 0.0
      %7000 = vmatpush2.msra.mxu0 0.0
      %7001 = vmatprep.subr.mxu0 0.0
      %7002 = vmatpush2.msra.mxu0 0.0
      %7003 = vmatprep.subr.mxu0 0.0
      %7004 = vmatpush2.msra.mxu0 0.0
      %7005 = vmatprep.subr.mxu0 0.0
      %7006 = vmatpush2.msra.mxu0 0.0
      %7007 = vmatprep.subr.mxu0 0.0
      %7008 = vmatpush2.msra.mxu0 0.0
      %7009 = vmatprep.subr.mxu0 0.0
      %7010 = vmatpush2.msra.mxu0 0.0
      %7011 = vmatprep.subr.mxu0 0.0
      %7012 = vmatpush2.msra.mxu0 0.0
      %7013 = vmatprep.subr.mxu0 0.0
      %7014 = vmatpush2.msra.mxu0 0.0
      %7015 = vmatprep.subr.mxu0 0.0
      %7016 = vmatpush2.msra.mxu0 0.0
      %7017 = vmatprep.subr.mxu0 0.0
      %7018 = vmatpush2.msra.mxu0 0.0
      %7019 = vmatprep.subr.mxu0 0.0
      %7020 = vmatpush2.msra.mxu0 0.0
      %7021 = vmatprep.mubr.f32.mxu0 0.0
      %7022 = vmatmul.mubr.f32.gmra.mxu0 %v6862
      %v7023 = vpop.f32.mrf.mxu0
      %v7024 = vadd.f32 0.0, %v7023
      %v7025 = vpop.f32.mrf.mxu0
      %7026 = vmatprep.mubr.f32.mxu0 0.0
      %7027 = vmatmul.mubr.f32.gmra.mxu0 %v6865
      %v7028 = vpop.f32.mrf.mxu0
      %v7029 = vadd.f32 0.0, %v7028
      %v7030 = vpop.f32.mrf.mxu0
      %7031 = vmatprep.mubr.f32.mxu0 0.0
      %7032 = vmatmul.mubr.f32.gmra.mxu0 %v6868
      %v7033 = vpop.f32.mrf.mxu0
      %v7034 = vadd.f32 0.0, %v7033
      %v7035 = vpop.f32.mrf.mxu0
      %7036 = vmatprep.mubr.f32.mxu0 0.0
      %7037 = vmatmul.mubr.f32.gmra.mxu0 %v6871
      %v7038 = vpop.f32.mrf.mxu0
      %v7039 = vadd.f32 0.0, %v7038
      %v7040 = vpop.f32.mrf.mxu0
      %7041 = vmatprep.mubr.f32.mxu0 0.0
      %7042 = vmatmul.mubr.f32.gmra.mxu0 %v6874
      %v7043 = vpop.f32.mrf.mxu0
      %v7044 = vadd.f32 0.0, %v7043
      %v7045 = vpop.f32.mrf.mxu0
      %7046 = vmatprep.mubr.f32.mxu0 0.0
      %7047 = vmatmul.mubr.f32.gmra.mxu0 %v6877
      %v7048 = vpop.f32.mrf.mxu0
      %v7049 = vadd.f32 0.0, %v7048
      %v7050 = vpop.f32.mrf.mxu0
      %7051 = vmatprep.mubr.f32.mxu0 0.0
      %7052 = vmatmul.mubr.f32.gmra.mxu0 %v6880
      %v7053 = vpop.f32.mrf.mxu0
      %v7054 = vadd.f32 0.0, %v7053
      %v7055 = vpop.f32.mrf.mxu0
      %7056 = vmatprep.mubr.f32.mxu0 0.0
      %7057 = vmatmul.mubr.f32.gmra.mxu0 %v6883
      %v7058 = vpop.f32.mrf.mxu0
      %v7059 = vadd.f32 0.0, %v7058
      %v7060 = vpop.f32.mrf.mxu0
      %7061 = vmatprep.mubr.f32.mxu0 0.0
      %7062 = vmatmul.mubr.f32.gmra.mxu0 %v6886
      %v7063 = vpop.f32.mrf.mxu0
      %v7064 = vadd.f32 0.0, %v7063
      %v7065 = vpop.f32.mrf.mxu0
      %7066 = vmatprep.mubr.f32.mxu0 0.0
      %7067 = vmatmul.mubr.f32.gmra.mxu0 %v6889
      %v7068 = vpop.f32.mrf.mxu0
      %v7069 = vadd.f32 0.0, %v7068
      %v7070 = vpop.f32.mrf.mxu0
      %7071 = vmatprep.mubr.f32.mxu0 0.0
      %7072 = vmatmul.mubr.f32.gmra.mxu0 %v6892
      %v7073 = vpop.f32.mrf.mxu0
      %v7074 = vadd.f32 0.0, %v7073
      %v7075 = vpop.f32.mrf.mxu0
      %7076 = vmatprep.mubr.f32.mxu0 0.0
      %7077 = vmatmul.mubr.f32.gmra.mxu0 %v6895
      %v7078 = vpop.f32.mrf.mxu0
      %v7079 = vadd.f32 0.0, %v7078
      %v7080 = vpop.f32.mrf.mxu0
      %7081 = vmatprep.mubr.f32.mxu0 0.0
      %7082 = vmatmul.mubr.f32.gmra.mxu0 %v6898
      %v7083 = vpop.f32.mrf.mxu0
      %v7084 = vadd.f32 0.0, %v7083
      %v7085 = vpop.f32.mrf.mxu0
      %7086 = vmatprep.mubr.f32.mxu0 0.0
      %7087 = vmatmul.mubr.f32.gmra.mxu0 %v6901
      %v7088 = vpop.f32.mrf.mxu0
      %v7089 = vadd.f32 0.0, %v7088
      %v7090 = vpop.f32.mrf.mxu0
      %7091 = vmatprep.mubr.f32.mxu0 0.0
      %7092 = vmatmul.mubr.f32.gmra.mxu0 %v6904
      %v7093 = vpop.f32.mrf.mxu0
      %v7094 = vadd.f32 0.0, %v7093
      %v7095 = vpop.f32.mrf.mxu0
      %7096 = vmatprep.mubr.f32.mxu0 0.0
      %7097 = vmatmul.mubr.f32.gmra.mxu0 %v6907
      %v7098 = vpop.f32.mrf.mxu0
      %v7099 = vadd.f32 0.0, %v7098
      %v7100 = vpop.f32.mrf.mxu0
      %7101 = vmatprep.mubr.f32.mxu0 0.0
      %7102 = vmatmul.mubr.f32.gmra.mxu0 %v6910
      %v7103 = vpop.f32.mrf.mxu0
      %v7104 = vadd.f32 0.0, %v7103
      %v7105 = vpop.f32.mrf.mxu0
      %7106 = vmatprep.mubr.f32.mxu0 0.0
      %7107 = vmatmul.mubr.f32.gmra.mxu0 %v6913
      %v7108 = vpop.f32.mrf.mxu0
      %v7109 = vadd.f32 0.0, %v7108
      %v7110 = vpop.f32.mrf.mxu0
      %7111 = vmatprep.mubr.f32.mxu0 0.0
      %7112 = vmatmul.mubr.f32.gmra.mxu0 %v6916
      %v7113 = vpop.f32.mrf.mxu0
      %v7114 = vadd.f32 0.0, %v7113
      %v7115 = vpop.f32.mrf.mxu0
      %7116 = vmatprep.mubr.f32.mxu0 0.0
      %7117 = vmatmul.mubr.f32.gmra.mxu0 %v6919
      %v7118 = vpop.f32.mrf.mxu0
      %v7119 = vadd.f32 0.0, %v7118
      %v7120 = vpop.f32.mrf.mxu0
      %7121 = vmatprep.mubr.f32.mxu0 0.0
      %7122 = vmatmul.mubr.f32.gmra.mxu0 %v6922
      %v7123 = vpop.f32.mrf.mxu0
      %v7124 = vadd.f32 0.0, %v7123
      %v7125 = vpop.f32.mrf.mxu0
      %7126 = vmatprep.mubr.f32.mxu0 0.0
      %7127 = vmatmul.mubr.f32.gmra.mxu0 %v6925
      %v7128 = vpop.f32.mrf.mxu0
      %v7129 = vadd.f32 0.0, %v7128
      %v7130 = vpop.f32.mrf.mxu0
      %7131 = vmatprep.mubr.f32.mxu0 0.0
      %7132 = vmatmul.mubr.f32.gmra.mxu0 %v6928
      %v7133 = vpop.f32.mrf.mxu0
      %v7134 = vadd.f32 0.0, %v7133
      %v7135 = vpop.f32.mrf.mxu0
      %7136 = vmatprep.mubr.f32.mxu0 0.0
      %7137 = vmatmul.mubr.f32.gmra.mxu0 %v6931
      %v7138 = vpop.f32.mrf.mxu0
      %v7139 = vadd.f32 0.0, %v7138
      %v7140 = vpop.f32.mrf.mxu0
      %7141 = vmatprep.mubr.f32.mxu0 0.0
      %7142 = vmatmul.mubr.f32.gmra.mxu0 %v6934
      %v7143 = vpop.f32.mrf.mxu0
      %v7144 = vadd.f32 0.0, %v7143
      %v7145 = vpop.f32.mrf.mxu0
      %7146 = vmatprep.mubr.f32.mxu0 0.0
      %7147 = vmatmul.mubr.f32.gmra.mxu0 %v6937
      %v7148 = vpop.f32.mrf.mxu0
      %v7149 = vadd.f32 0.0, %v7148
      %v7150 = vpop.f32.mrf.mxu0
      %7151 = vmatprep.mubr.f32.mxu0 0.0
      %7152 = vmatmul.mubr.f32.gmra.mxu0 %v6940
      %v7153 = vpop.f32.mrf.mxu0
      %v7154 = vadd.f32 0.0, %v7153
      %v7155 = vpop.f32.mrf.mxu0
      %7156 = vmatprep.mubr.f32.mxu0 0.0
      %7157 = vmatmul.mubr.f32.gmra.mxu0 %v6943
      %v7158 = vpop.f32.mrf.mxu0
      %v7159 = vadd.f32 0.0, %v7158
      %v7160 = vpop.f32.mrf.mxu0
      %7161 = vmatprep.mubr.f32.mxu0 0.0
      %7162 = vmatmul.mubr.f32.gmra.mxu0 %v6946
      %v7163 = vpop.f32.mrf.mxu0
      %v7164 = vadd.f32 0.0, %v7163
      %v7165 = vpop.f32.mrf.mxu0
      %7166 = vmatprep.mubr.f32.mxu0 0.0
      %7167 = vmatmul.mubr.f32.gmra.mxu0 %v6949
      %v7168 = vpop.f32.mrf.mxu0
      %v7169 = vadd.f32 0.0, %v7168
      %v7170 = vpop.f32.mrf.mxu0
      %7171 = vmatprep.mubr.f32.mxu0 0.0
      %7172 = vmatmul.mubr.f32.gmra.mxu0 %v6952
      %v7173 = vpop.f32.mrf.mxu0
      %v7174 = vadd.f32 0.0, %v7173
      %v7175 = vpop.f32.mrf.mxu0
      %7176 = vmatprep.mubr.f32.mxu0 0.0
      %7177 = vmatmul.mubr.f32.gmra.mxu0 %v6955
      %v7178 = vpop.f32.mrf.mxu0
      %v7179 = vadd.f32 0.0, %v7178
      %v7180 = vpop.f32.mrf.mxu0
      %7181 = vdwg.mxu0
      %v7182 = vmax.f32 %v7024, 0.0
      %v7183 = vmax.f32 %v7029, 0.0
      %v7184 = vmax.f32 %v7034, 0.0
      %v7185 = vmax.f32 %v7039, 0.0
      %v7186 = vmax.f32 %v7044, 0.0
      %v7187 = vmax.f32 %v7049, 0.0
      %v7188 = vmax.f32 %v7054, 0.0
      %v7189 = vmax.f32 %v7059, 0.0
      %v7190 = vmax.f32 %v7064, 0.0
      %v7191 = vmax.f32 %v7069, 0.0
      %v7192 = vmax.f32 %v7074, 0.0
      %v7193 = vmax.f32 %v7079, 0.0
      %v7194 = vmax.f32 %v7084, 0.0
      %v7195 = vmax.f32 %v7089, 0.0
      %v7196 = vmax.f32 %v7094, 0.0
      %v7197 = vmax.f32 %v7099, 0.0
      %v7198 = vmax.f32 %v7104, 0.0
      %v7199 = vmax.f32 %v7109, 0.0
      %v7200 = vmax.f32 %v7114, 0.0
      %v7201 = vmax.f32 %v7119, 0.0
      %v7202 = vmax.f32 %v7124, 0.0
      %v7203 = vmax.f32 %v7129, 0.0
      %v7204 = vmax.f32 %v7134, 0.0
      %v7205 = vmax.f32 %v7139, 0.0
      %v7206 = vmax.f32 %v7144, 0.0
      %v7207 = vmax.f32 %v7149, 0.0
      %v7208 = vmax.f32 %v7154, 0.0
      %v7209 = vmax.f32 %v7159, 0.0
      %v7210 = vmax.f32 %v7164, 0.0
      %v7211 = vmax.f32 %v7169, 0.0
      %v7212 = vmax.f32 %v7174, 0.0
      %v7213 = vmax.f32 %v7179, 0.0
      %7214 = vst.msk [vmem:[#allocation5] sm:$0xff] %vm4086, 0.0
      %7215 = vst.msk [vmem:[#allocation5 + $0x8] sm:$0xff] %vm4086, 0.0
      %7216 = vst.msk [vmem:[#allocation5 + $0x10] sm:$0x3] %vm3189, 0.0
      %7217 = vst.msk [vmem:[#allocation5 + $0x18] sm:$0xff] %vm4086, 0.0
      %7218 = vst.msk [vmem:[#allocation5 + $0x20] sm:$0xff] %vm4086, 0.0
      %7219 = vst.msk [vmem:[#allocation5 + $0x28] sm:$0x3] %vm3189, 0.0
      %7220 = vst.msk [vmem:[#allocation5 + $0x30] sm:$0xff] %vm4086, 0.0
      %7221 = vst.msk [vmem:[#allocation5 + $0x38] sm:$0xff] %vm4086, 0.0
      %7222 = vst.msk [vmem:[#allocation5 + $0x40] sm:$0x3] %vm3189, 0.0
      %7223 = vst.msk [vmem:[#allocation5 + $0x48] sm:$0xff] %vm4086, 0.0
      %7224 = vst.msk [vmem:[#allocation5 + $0x50] sm:$0xff] %vm4086, 0.0
      %7225 = vst.msk [vmem:[#allocation5 + $0x58] sm:$0x3] %vm3189, 0.0
      %7226 = vst.msk [vmem:[#allocation5 + $0x60] sm:$0xff] %vm4086, 0.0
      %7227 = vst.msk [vmem:[#allocation5 + $0x68] sm:$0xff] %vm4086, 0.0
      %7228 = vst.msk [vmem:[#allocation5 + $0x70] sm:$0x3] %vm3189, 0.0
      %7229 = vst.msk [vmem:[#allocation5 + $0x78] sm:$0xff] %vm4086, 0.0
      %7230 = vst.msk [vmem:[#allocation5 + $0x80] sm:$0xff] %vm4086, 0.0
      %7231 = vst.msk [vmem:[#allocation5 + $0x88] sm:$0x3] %vm3189, 0.0
      %7232 = vst.msk [vmem:[#allocation5 + $0x90] sm:$0xff] %vm4086, 0.0
      %7233 = vst.msk [vmem:[#allocation5 + $0x98] sm:$0xff] %vm4086, 0.0
      %7234 = vst.msk [vmem:[#allocation5 + $0xa0] sm:$0x3] %vm3189, 0.0
      %7235 = vst.msk [vmem:[#allocation5 + $0xa8] sm:$0xff] %vm4086, 0.0
      %7236 = vst.msk [vmem:[#allocation5 + $0xb0] sm:$0xff] %vm4086, 0.0
      %7237 = vst.msk [vmem:[#allocation5 + $0xb8] sm:$0x3] %vm3189, 0.0
      %7238 = vst.msk [vmem:[#allocation5 + $0xc0] sm:$0xff] %vm4086, 0.0
      %7239 = vst.msk [vmem:[#allocation5 + $0xc8] sm:$0xff] %vm4086, 0.0
      %7240 = vst.msk [vmem:[#allocation5 + $0xd0] sm:$0x3] %vm3189, 0.0
      %7241 = vst.msk [vmem:[#allocation5 + $0xd8] sm:$0xff] %vm4086, 0.0
      %7242 = vst.msk [vmem:[#allocation5 + $0xe0] sm:$0xff] %vm4086, 0.0
      %7243 = vst.msk [vmem:[#allocation5 + $0xe8] sm:$0x3] %vm3189, 0.0
      %7244 = vst.msk [vmem:[#allocation5 + $0xf0] sm:$0xff] %vm4086, 0.0
      %7245 = vst.msk [vmem:[#allocation5 + $0xf8] sm:$0xff] %vm4086, 0.0
      %7246 = vst.msk [vmem:[#allocation5 + $0x100] sm:$0x3] %vm3189, 0.0
      %7247 = vst.msk [vmem:[#allocation5 + $0x108] sm:$0xff] %vm4086, 0.0
      %7248 = vst.msk [vmem:[#allocation5 + $0x110] sm:$0xff] %vm4086, 0.0
      %7249 = vst.msk [vmem:[#allocation5 + $0x118] sm:$0x3] %vm3189, 0.0
      %7250 = vst.msk [vmem:[#allocation5 + $0x120] sm:$0xff] %vm4086, 0.0
      %7251 = vst.msk [vmem:[#allocation5 + $0x128] sm:$0xff] %vm4086, 0.0
      %7252 = vst.msk [vmem:[#allocation5 + $0x130] sm:$0x3] %vm3189, 0.0
      %7253 = vst.msk [vmem:[#allocation5 + $0x138] sm:$0xff] %vm4086, 0.0
      %7254 = vst.msk [vmem:[#allocation5 + $0x140] sm:$0xff] %vm4086, 0.0
      %7255 = vst.msk [vmem:[#allocation5 + $0x148] sm:$0x3] %vm3189, 0.0
      %7256 = vst.msk [vmem:[#allocation5 + $0x150] sm:$0xff] %vm4086, 0.0
      %7257 = vst.msk [vmem:[#allocation5 + $0x158] sm:$0xff] %vm4086, 0.0
      %7258 = vst.msk [vmem:[#allocation5 + $0x160] sm:$0x3] %vm3189, 0.0
      %7259 = vst.msk [vmem:[#allocation5 + $0x168] sm:$0xff] %vm4086, 0.0
      %7260 = vst.msk [vmem:[#allocation5 + $0x170] sm:$0xff] %vm4086, 0.0
      %7261 = vst.msk [vmem:[#allocation5 + $0x178] sm:$0x3] %vm3189, 0.0
      %7262 = vst.msk [vmem:[#allocation5 + $0x180] sm:$0xff] %vm4086, 0.0
      %7263 = vst.msk [vmem:[#allocation5 + $0x188] sm:$0xff] %vm4086, 0.0
      %7264 = vst.msk [vmem:[#allocation5 + $0x190] sm:$0x3] %vm3189, 0.0
      %7265 = vst.msk [vmem:[#allocation5 + $0x198] sm:$0xff] %vm4086, 0.0
      %7266 = vst.msk [vmem:[#allocation5 + $0x1a0] sm:$0xff] %vm4086, 0.0
      %7267 = vst.msk [vmem:[#allocation5 + $0x1a8] sm:$0x3] %vm3189, 0.0
      %s7268 = scalar_lea.vmem [#allocation5], 24
      %7269 = vst.msk [vmem:[%s7268 + $0x1] sm:$0xff] %vm4086, %v7182
      %7270 = vst.msk [vmem:[%s7268 + $0x9] sm:$0xff] %vm4086, %v7183
      %7271 = vst.msk [vmem:[%s7268 + $0x19] sm:$0xff] %vm4086, %v7184
      %7272 = vst.msk [vmem:[%s7268 + $0x21] sm:$0xff] %vm4086, %v7185
      %7273 = vst.msk [vmem:[%s7268 + $0x31] sm:$0xff] %vm4086, %v7186
      %7274 = vst.msk [vmem:[%s7268 + $0x39] sm:$0xff] %vm4086, %v7187
      %7275 = vst.msk [vmem:[%s7268 + $0x49] sm:$0xff] %vm4086, %v7188
      %7276 = vst.msk [vmem:[%s7268 + $0x51] sm:$0xff] %vm4086, %v7189
      %7277 = vst.msk [vmem:[%s7268 + $0x61] sm:$0xff] %vm4086, %v7190
      %7278 = vst.msk [vmem:[%s7268 + $0x69] sm:$0xff] %vm4086, %v7191
      %7279 = vst.msk [vmem:[%s7268 + $0x79] sm:$0xff] %vm4086, %v7192
      %7280 = vst.msk [vmem:[%s7268 + $0x81] sm:$0xff] %vm4086, %v7193
      %7281 = vst.msk [vmem:[%s7268 + $0x91] sm:$0xff] %vm4086, %v7194
      %7282 = vst.msk [vmem:[%s7268 + $0x99] sm:$0xff] %vm4086, %v7195
      %7283 = vst.msk [vmem:[%s7268 + $0xa9] sm:$0xff] %vm4086, %v7196
      %7284 = vst.msk [vmem:[%s7268 + $0xb1] sm:$0xff] %vm4086, %v7197
      %7285 = vst.msk [vmem:[%s7268 + $0xc1] sm:$0xff] %vm4086, %v7198
      %7286 = vst.msk [vmem:[%s7268 + $0xc9] sm:$0xff] %vm4086, %v7199
      %7287 = vst.msk [vmem:[%s7268 + $0xd9] sm:$0xff] %vm4086, %v7200
      %7288 = vst.msk [vmem:[%s7268 + $0xe1] sm:$0xff] %vm4086, %v7201
      %7289 = vst.msk [vmem:[%s7268 + $0xf1] sm:$0xff] %vm4086, %v7202
      %7290 = vst.msk [vmem:[%s7268 + $0xf9] sm:$0xff] %vm4086, %v7203
      %7291 = vst.msk [vmem:[%s7268 + $0x109] sm:$0xff] %vm4086, %v7204
      %7292 = vst.msk [vmem:[%s7268 + $0x111] sm:$0xff] %vm4086, %v7205
      %7293 = vst.msk [vmem:[%s7268 + $0x121] sm:$0xff] %vm4086, %v7206
      %7294 = vst.msk [vmem:[%s7268 + $0x129] sm:$0xff] %vm4086, %v7207
      %7295 = vst.msk [vmem:[%s7268 + $0x139] sm:$0xff] %vm4086, %v7208
      %7296 = vst.msk [vmem:[%s7268 + $0x141] sm:$0xff] %vm4086, %v7209
      %7297 = vst.msk [vmem:[%s7268 + $0x151] sm:$0xff] %vm4086, %v7210
      %7298 = vst.msk [vmem:[%s7268 + $0x159] sm:$0xff] %vm4086, %v7211
      %7299 = vst.msk [vmem:[%s7268 + $0x169] sm:$0xff] %vm4086, %v7212
      %7300 = vst.msk [vmem:[%s7268 + $0x171] sm:$0xff] %vm4086, %v7213
      %v7301 = vld [vmem:[#allocation5] sm:$0xff]
      %v7302 = vld [vmem:[#allocation5 + $0x8] sm:$0xff]
      %v7303 = vld [vmem:[#allocation5 + $0x18] sm:$0xff]
      %v7304 = vld [vmem:[#allocation5 + $0x20] sm:$0xff]
      %v7305 = vld [vmem:[#allocation5 + $0x30] sm:$0xff]
      %v7306 = vld [vmem:[#allocation5 + $0x38] sm:$0xff]
      %v7307 = vld [vmem:[#allocation5 + $0x48] sm:$0xff]
      %v7308 = vld [vmem:[#allocation5 + $0x50] sm:$0xff]
      %v7309 = vld [vmem:[#allocation5 + $0x60] sm:$0xff]
      %v7310 = vld [vmem:[#allocation5 + $0x68] sm:$0xff]
      %v7311 = vld [vmem:[#allocation5 + $0x78] sm:$0xff]
      %v7312 = vld [vmem:[#allocation5 + $0x80] sm:$0xff]
      %v7313 = vld [vmem:[#allocation5 + $0x90] sm:$0xff]
      %v7314 = vld [vmem:[#allocation5 + $0x98] sm:$0xff]
      %v7315 = vld [vmem:[#allocation5 + $0xa8] sm:$0xff]
      %v7316 = vld [vmem:[#allocation5 + $0xb0] sm:$0xff]
      %v7317 = vld [vmem:[#allocation5 + $0xc0] sm:$0xff]
      %v7318 = vld [vmem:[#allocation5 + $0xc8] sm:$0xff]
      %v7319 = vld [vmem:[#allocation5 + $0xd8] sm:$0xff]
      %v7320 = vld [vmem:[#allocation5 + $0xe0] sm:$0xff]
      %v7321 = vld [vmem:[#allocation5 + $0xf0] sm:$0xff]
      %v7322 = vld [vmem:[#allocation5 + $0xf8] sm:$0xff]
      %v7323 = vld [vmem:[#allocation5 + $0x108] sm:$0xff]
      %v7324 = vld [vmem:[#allocation5 + $0x110] sm:$0xff]
      %v7325 = vld [vmem:[#allocation5 + $0x120] sm:$0xff]
      %v7326 = vld [vmem:[#allocation5 + $0x128] sm:$0xff]
      %v7327 = vld [vmem:[#allocation5 + $0x138] sm:$0xff]
      %v7328 = vld [vmem:[#allocation5 + $0x140] sm:$0xff]
      %v7329 = vld [vmem:[#allocation5 + $0x150] sm:$0xff]
      %v7330 = vld [vmem:[#allocation5 + $0x158] sm:$0xff]
      %v7331 = vld [vmem:[#allocation5 + $0x168] sm:$0xff]
      %v7332 = vld [vmem:[#allocation5 + $0x170] sm:$0xff]
      %7333 = vst.msk [vmem:[#allocation6] sm:$0xff] %vm4086, %v7301
      %7334 = vst.msk [vmem:[#allocation6 + $0x18] sm:$0xff] %vm4086, %v7302
      %7335 = vst.msk [vmem:[#allocation6 + $0x30] sm:$0xff] %vm4086, %v7303
      %7336 = vst.msk [vmem:[#allocation6 + $0x48] sm:$0xff] %vm4086, %v7304
      %7337 = vst.msk [vmem:[#allocation6 + $0x60] sm:$0xff] %vm4086, %v7305
      %7338 = vst.msk [vmem:[#allocation6 + $0x78] sm:$0xff] %vm4086, %v7306
      %7339 = vst.msk [vmem:[#allocation6 + $0x90] sm:$0xff] %vm4086, %v7307
      %7340 = vst.msk [vmem:[#allocation6 + $0xa8] sm:$0xff] %vm4086, %v7308
      %7341 = vst.msk [vmem:[#allocation6 + $0xc0] sm:$0xff] %vm4086, %v7309
      %7342 = vst.msk [vmem:[#allocation6 + $0xd8] sm:$0xff] %vm4086, %v7310
      %7343 = vst.msk [vmem:[#allocation6 + $0xf0] sm:$0xff] %vm4086, %v7311
      %7344 = vst.msk [vmem:[#allocation6 + $0x108] sm:$0xff] %vm4086, %v7312
      %7345 = vst.msk [vmem:[#allocation6 + $0x120] sm:$0xff] %vm4086, %v7313
      %7346 = vst.msk [vmem:[#allocation6 + $0x138] sm:$0xff] %vm4086, %v7314
      %7347 = vst.msk [vmem:[#allocation6 + $0x150] sm:$0xff] %vm4086, %v7315
      %7348 = vst.msk [vmem:[#allocation6 + $0x168] sm:$0xff] %vm4086, %v7316
      %7349 = vst.msk [vmem:[#allocation6 + $0x180] sm:$0xff] %vm4086, %v7317
      %7350 = vst.msk [vmem:[#allocation6 + $0x198] sm:$0xff] %vm4086, %v7318
      %7351 = vst.msk [vmem:[#allocation6 + $0x1b0] sm:$0xff] %vm4086, %v7319
      %7352 = vst.msk [vmem:[#allocation6 + $0x1c8] sm:$0xff] %vm4086, %v7320
      %7353 = vst.msk [vmem:[#allocation6 + $0x1e0] sm:$0xff] %vm4086, %v7321
      %7354 = vst.msk [vmem:[#allocation6 + $0x1f8] sm:$0xff] %vm4086, %v7322
      %7355 = vst.msk [vmem:[#allocation6 + $0x210] sm:$0xff] %vm4086, %v7323
      %7356 = vst.msk [vmem:[#allocation6 + $0x228] sm:$0xff] %vm4086, %v7324
      %7357 = vst.msk [vmem:[#allocation6 + $0x240] sm:$0xff] %vm4086, %v7325
      %7358 = vst.msk [vmem:[#allocation6 + $0x258] sm:$0xff] %vm4086, %v7326
      %7359 = vst.msk [vmem:[#allocation6 + $0x270] sm:$0xff] %vm4086, %v7327
      %7360 = vst.msk [vmem:[#allocation6 + $0x288] sm:$0xff] %vm4086, %v7328
      %7361 = vst.msk [vmem:[#allocation6 + $0x2a0] sm:$0xff] %vm4086, %v7329
      %7362 = vst.msk [vmem:[#allocation6 + $0x2b8] sm:$0xff] %vm4086, %v7330
      %7363 = vst.msk [vmem:[#allocation6 + $0x2d0] sm:$0xff] %vm4086, %v7331
      %7364 = vst.msk [vmem:[#allocation6 + $0x2e8] sm:$0xff] %vm4086, %v7332
      %v7365 = vld [vmem:[#allocation5 + $0x1] sm:$0xff]
      %v7366 = vld [vmem:[#allocation5 + $0x9] sm:$0xff]
      %v7367 = vld [vmem:[#allocation5 + $0x19] sm:$0xff]
      %v7368 = vld [vmem:[#allocation5 + $0x21] sm:$0xff]
      %v7369 = vld [vmem:[#allocation5 + $0x31] sm:$0xff]
      %v7370 = vld [vmem:[#allocation5 + $0x39] sm:$0xff]
      %v7371 = vld [vmem:[#allocation5 + $0x49] sm:$0xff]
      %v7372 = vld [vmem:[#allocation5 + $0x51] sm:$0xff]
      %v7373 = vld [vmem:[#allocation5 + $0x61] sm:$0xff]
      %v7374 = vld [vmem:[#allocation5 + $0x69] sm:$0xff]
      %v7375 = vld [vmem:[#allocation5 + $0x79] sm:$0xff]
      %v7376 = vld [vmem:[#allocation5 + $0x81] sm:$0xff]
      %v7377 = vld [vmem:[#allocation5 + $0x91] sm:$0xff]
      %v7378 = vld [vmem:[#allocation5 + $0x99] sm:$0xff]
      %v7379 = vld [vmem:[#allocation5 + $0xa9] sm:$0xff]
      %v7380 = vld [vmem:[#allocation5 + $0xb1] sm:$0xff]
      %v7381 = vld [vmem:[#allocation5 + $0xc1] sm:$0xff]
      %v7382 = vld [vmem:[#allocation5 + $0xc9] sm:$0xff]
      %v7383 = vld [vmem:[#allocation5 + $0xd9] sm:$0xff]
      %v7384 = vld [vmem:[#allocation5 + $0xe1] sm:$0xff]
      %v7385 = vld [vmem:[#allocation5 + $0xf1] sm:$0xff]
      %v7386 = vld [vmem:[#allocation5 + $0xf9] sm:$0xff]
      %v7387 = vld [vmem:[#allocation5 + $0x109] sm:$0xff]
      %v7388 = vld [vmem:[#allocation5 + $0x111] sm:$0xff]
      %v7389 = vld [vmem:[#allocation5 + $0x121] sm:$0xff]
      %v7390 = vld [vmem:[#allocation5 + $0x129] sm:$0xff]
      %v7391 = vld [vmem:[#allocation5 + $0x139] sm:$0xff]
      %v7392 = vld [vmem:[#allocation5 + $0x141] sm:$0xff]
      %v7393 = vld [vmem:[#allocation5 + $0x151] sm:$0xff]
      %v7394 = vld [vmem:[#allocation5 + $0x159] sm:$0xff]
      %v7395 = vld [vmem:[#allocation5 + $0x169] sm:$0xff]
      %v7396 = vld [vmem:[#allocation5 + $0x171] sm:$0xff]
      %7429 = vrot.lane.b32.xlu0 %v7365, 32
      %v7430 = vpop.permute.xlu0 %7429
      %7431 = vrot.lane.b32.xlu0 %v7366, 32
      %v7432 = vpop.permute.xlu0 %7431
      %7433 = vrot.lane.b32.xlu0 %v7367, 32
      %v7434 = vpop.permute.xlu0 %7433
      %7435 = vrot.lane.b32.xlu0 %v7368, 32
      %v7436 = vpop.permute.xlu0 %7435
      %7437 = vrot.lane.b32.xlu0 %v7369, 32
      %v7438 = vpop.permute.xlu0 %7437
      %7439 = vrot.lane.b32.xlu0 %v7370, 32
      %v7440 = vpop.permute.xlu0 %7439
      %7441 = vrot.lane.b32.xlu0 %v7371, 32
      %v7442 = vpop.permute.xlu0 %7441
      %7443 = vrot.lane.b32.xlu0 %v7372, 32
      %v7444 = vpop.permute.xlu0 %7443
      %7445 = vrot.lane.b32.xlu0 %v7373, 32
      %v7446 = vpop.permute.xlu0 %7445
      %7447 = vrot.lane.b32.xlu0 %v7374, 32
      %v7448 = vpop.permute.xlu0 %7447
      %7449 = vrot.lane.b32.xlu0 %v7375, 32
      %v7450 = vpop.permute.xlu0 %7449
      %7451 = vrot.lane.b32.xlu0 %v7376, 32
      %v7452 = vpop.permute.xlu0 %7451
      %7453 = vrot.lane.b32.xlu0 %v7377, 32
      %v7454 = vpop.permute.xlu0 %7453
      %7455 = vrot.lane.b32.xlu0 %v7378, 32
      %v7456 = vpop.permute.xlu0 %7455
      %7457 = vrot.lane.b32.xlu0 %v7379, 32
      %v7458 = vpop.permute.xlu0 %7457
      %7459 = vrot.lane.b32.xlu0 %v7380, 32
      %v7460 = vpop.permute.xlu0 %7459
      %7461 = vrot.lane.b32.xlu0 %v7381, 32
      %v7462 = vpop.permute.xlu0 %7461
      %7463 = vrot.lane.b32.xlu0 %v7382, 32
      %v7464 = vpop.permute.xlu0 %7463
      %7465 = vrot.lane.b32.xlu0 %v7383, 32
      %v7466 = vpop.permute.xlu0 %7465
      %7467 = vrot.lane.b32.xlu0 %v7384, 32
      %v7468 = vpop.permute.xlu0 %7467
      %7469 = vrot.lane.b32.xlu0 %v7385, 32
      %v7470 = vpop.permute.xlu0 %7469
      %7471 = vrot.lane.b32.xlu0 %v7386, 32
      %v7472 = vpop.permute.xlu0 %7471
      %7473 = vrot.lane.b32.xlu0 %v7387, 32
      %v7474 = vpop.permute.xlu0 %7473
      %7475 = vrot.lane.b32.xlu0 %v7388, 32
      %v7476 = vpop.permute.xlu0 %7475
      %7477 = vrot.lane.b32.xlu0 %v7389, 32
      %v7478 = vpop.permute.xlu0 %7477
      %7479 = vrot.lane.b32.xlu0 %v7390, 32
      %v7480 = vpop.permute.xlu0 %7479
      %7481 = vrot.lane.b32.xlu0 %v7391, 32
      %v7482 = vpop.permute.xlu0 %7481
      %7483 = vrot.lane.b32.xlu0 %v7392, 32
      %v7484 = vpop.permute.xlu0 %7483
      %7485 = vrot.lane.b32.xlu0 %v7393, 32
      %v7486 = vpop.permute.xlu0 %7485
      %7487 = vrot.lane.b32.xlu0 %v7394, 32
      %v7488 = vpop.permute.xlu0 %7487
      %7489 = vrot.lane.b32.xlu0 %v7395, 32
      %v7490 = vpop.permute.xlu0 %7489
      %7491 = vrot.lane.b32.xlu0 %v7396, 32
      %v7492 = vpop.permute.xlu0 %7491
      %7525 = vst.msk [vmem:[#allocation6] sm:$0xff] %vm4499, %v7430
      %7526 = vst.msk [vmem:[#allocation6 + $0x18] sm:$0xff] %vm4499, %v7432
      %7527 = vst.msk [vmem:[#allocation6 + $0x30] sm:$0xff] %vm4499, %v7434
      %7528 = vst.msk [vmem:[#allocation6 + $0x48] sm:$0xff] %vm4499, %v7436
      %7529 = vst.msk [vmem:[#allocation6 + $0x60] sm:$0xff] %vm4499, %v7438
      %7530 = vst.msk [vmem:[#allocation6 + $0x78] sm:$0xff] %vm4499, %v7440
      %7531 = vst.msk [vmem:[#allocation6 + $0x90] sm:$0xff] %vm4499, %v7442
      %7532 = vst.msk [vmem:[#allocation6 + $0xa8] sm:$0xff] %vm4499, %v7444
      %7533 = vst.msk [vmem:[#allocation6 + $0xc0] sm:$0xff] %vm4499, %v7446
      %7534 = vst.msk [vmem:[#allocation6 + $0xd8] sm:$0xff] %vm4499, %v7448
      %7535 = vst.msk [vmem:[#allocation6 + $0xf0] sm:$0xff] %vm4499, %v7450
      %7536 = vst.msk [vmem:[#allocation6 + $0x108] sm:$0xff] %vm4499, %v7452
      %7537 = vst.msk [vmem:[#allocation6 + $0x120] sm:$0xff] %vm4499, %v7454
      %7538 = vst.msk [vmem:[#allocation6 + $0x138] sm:$0xff] %vm4499, %v7456
      %7539 = vst.msk [vmem:[#allocation6 + $0x150] sm:$0xff] %vm4499, %v7458
      %7540 = vst.msk [vmem:[#allocation6 + $0x168] sm:$0xff] %vm4499, %v7460
      %7541 = vst.msk [vmem:[#allocation6 + $0x180] sm:$0xff] %vm4499, %v7462
      %7542 = vst.msk [vmem:[#allocation6 + $0x198] sm:$0xff] %vm4499, %v7464
      %7543 = vst.msk [vmem:[#allocation6 + $0x1b0] sm:$0xff] %vm4499, %v7466
      %7544 = vst.msk [vmem:[#allocation6 + $0x1c8] sm:$0xff] %vm4499, %v7468
      %7545 = vst.msk [vmem:[#allocation6 + $0x1e0] sm:$0xff] %vm4499, %v7470
      %7546 = vst.msk [vmem:[#allocation6 + $0x1f8] sm:$0xff] %vm4499, %v7472
      %7547 = vst.msk [vmem:[#allocation6 + $0x210] sm:$0xff] %vm4499, %v7474
      %7548 = vst.msk [vmem:[#allocation6 + $0x228] sm:$0xff] %vm4499, %v7476
      %7549 = vst.msk [vmem:[#allocation6 + $0x240] sm:$0xff] %vm4499, %v7478
      %7550 = vst.msk [vmem:[#allocation6 + $0x258] sm:$0xff] %vm4499, %v7480
      %7551 = vst.msk [vmem:[#allocation6 + $0x270] sm:$0xff] %vm4499, %v7482
      %7552 = vst.msk [vmem:[#allocation6 + $0x288] sm:$0xff] %vm4499, %v7484
      %7553 = vst.msk [vmem:[#allocation6 + $0x2a0] sm:$0xff] %vm4499, %v7486
      %7554 = vst.msk [vmem:[#allocation6 + $0x2b8] sm:$0xff] %vm4499, %v7488
      %7555 = vst.msk [vmem:[#allocation6 + $0x2d0] sm:$0xff] %vm4499, %v7490
      %7556 = vst.msk [vmem:[#allocation6 + $0x2e8] sm:$0xff] %vm4499, %v7492
      %v7557 = vld [vmem:[#allocation5 + $0x2] sm:$0xff]
      %v7558 = vld [vmem:[#allocation5 + $0xa] sm:$0xff]
      %v7559 = vld [vmem:[#allocation5 + $0x1a] sm:$0xff]
      %v7560 = vld [vmem:[#allocation5 + $0x22] sm:$0xff]
      %v7561 = vld [vmem:[#allocation5 + $0x32] sm:$0xff]
      %v7562 = vld [vmem:[#allocation5 + $0x3a] sm:$0xff]
      %v7563 = vld [vmem:[#allocation5 + $0x4a] sm:$0xff]
      %v7564 = vld [vmem:[#allocation5 + $0x52] sm:$0xff]
      %v7565 = vld [vmem:[#allocation5 + $0x62] sm:$0xff]
      %v7566 = vld [vmem:[#allocation5 + $0x6a] sm:$0xff]
      %v7567 = vld [vmem:[#allocation5 + $0x7a] sm:$0xff]
      %v7568 = vld [vmem:[#allocation5 + $0x82] sm:$0xff]
      %v7569 = vld [vmem:[#allocation5 + $0x92] sm:$0xff]
      %v7570 = vld [vmem:[#allocation5 + $0x9a] sm:$0xff]
      %v7571 = vld [vmem:[#allocation5 + $0xaa] sm:$0xff]
      %v7572 = vld [vmem:[#allocation5 + $0xb2] sm:$0xff]
      %v7573 = vld [vmem:[#allocation5 + $0xc2] sm:$0xff]
      %v7574 = vld [vmem:[#allocation5 + $0xca] sm:$0xff]
      %v7575 = vld [vmem:[#allocation5 + $0xda] sm:$0xff]
      %v7576 = vld [vmem:[#allocation5 + $0xe2] sm:$0xff]
      %v7577 = vld [vmem:[#allocation5 + $0xf2] sm:$0xff]
      %v7578 = vld [vmem:[#allocation5 + $0xfa] sm:$0xff]
      %v7579 = vld [vmem:[#allocation5 + $0x10a] sm:$0xff]
      %v7580 = vld [vmem:[#allocation5 + $0x112] sm:$0xff]
      %v7581 = vld [vmem:[#allocation5 + $0x122] sm:$0xff]
      %v7582 = vld [vmem:[#allocation5 + $0x12a] sm:$0xff]
      %v7583 = vld [vmem:[#allocation5 + $0x13a] sm:$0xff]
      %v7584 = vld [vmem:[#allocation5 + $0x142] sm:$0xff]
      %v7585 = vld [vmem:[#allocation5 + $0x152] sm:$0xff]
      %v7586 = vld [vmem:[#allocation5 + $0x15a] sm:$0xff]
      %v7587 = vld [vmem:[#allocation5 + $0x16a] sm:$0xff]
      %v7588 = vld [vmem:[#allocation5 + $0x172] sm:$0xff]
      %7621 = vrot.lane.b32.xlu0 %v7557, 64
      %v7622 = vpop.permute.xlu0 %7621
      %7623 = vrot.lane.b32.xlu0 %v7558, 64
      %v7624 = vpop.permute.xlu0 %7623
      %7625 = vrot.lane.b32.xlu0 %v7559, 64
      %v7626 = vpop.permute.xlu0 %7625
      %7627 = vrot.lane.b32.xlu0 %v7560, 64
      %v7628 = vpop.permute.xlu0 %7627
      %7629 = vrot.lane.b32.xlu0 %v7561, 64
      %v7630 = vpop.permute.xlu0 %7629
      %7631 = vrot.lane.b32.xlu0 %v7562, 64
      %v7632 = vpop.permute.xlu0 %7631
      %7633 = vrot.lane.b32.xlu0 %v7563, 64
      %v7634 = vpop.permute.xlu0 %7633
      %7635 = vrot.lane.b32.xlu0 %v7564, 64
      %v7636 = vpop.permute.xlu0 %7635
      %7637 = vrot.lane.b32.xlu0 %v7565, 64
      %v7638 = vpop.permute.xlu0 %7637
      %7639 = vrot.lane.b32.xlu0 %v7566, 64
      %v7640 = vpop.permute.xlu0 %7639
      %7641 = vrot.lane.b32.xlu0 %v7567, 64
      %v7642 = vpop.permute.xlu0 %7641
      %7643 = vrot.lane.b32.xlu0 %v7568, 64
      %v7644 = vpop.permute.xlu0 %7643
      %7645 = vrot.lane.b32.xlu0 %v7569, 64
      %v7646 = vpop.permute.xlu0 %7645
      %7647 = vrot.lane.b32.xlu0 %v7570, 64
      %v7648 = vpop.permute.xlu0 %7647
      %7649 = vrot.lane.b32.xlu0 %v7571, 64
      %v7650 = vpop.permute.xlu0 %7649
      %7651 = vrot.lane.b32.xlu0 %v7572, 64
      %v7652 = vpop.permute.xlu0 %7651
      %7653 = vrot.lane.b32.xlu0 %v7573, 64
      %v7654 = vpop.permute.xlu0 %7653
      %7655 = vrot.lane.b32.xlu0 %v7574, 64
      %v7656 = vpop.permute.xlu0 %7655
      %7657 = vrot.lane.b32.xlu0 %v7575, 64
      %v7658 = vpop.permute.xlu0 %7657
      %7659 = vrot.lane.b32.xlu0 %v7576, 64
      %v7660 = vpop.permute.xlu0 %7659
      %7661 = vrot.lane.b32.xlu0 %v7577, 64
      %v7662 = vpop.permute.xlu0 %7661
      %7663 = vrot.lane.b32.xlu0 %v7578, 64
      %v7664 = vpop.permute.xlu0 %7663
      %7665 = vrot.lane.b32.xlu0 %v7579, 64
      %v7666 = vpop.permute.xlu0 %7665
      %7667 = vrot.lane.b32.xlu0 %v7580, 64
      %v7668 = vpop.permute.xlu0 %7667
      %7669 = vrot.lane.b32.xlu0 %v7581, 64
      %v7670 = vpop.permute.xlu0 %7669
      %7671 = vrot.lane.b32.xlu0 %v7582, 64
      %v7672 = vpop.permute.xlu0 %7671
      %7673 = vrot.lane.b32.xlu0 %v7583, 64
      %v7674 = vpop.permute.xlu0 %7673
      %7675 = vrot.lane.b32.xlu0 %v7584, 64
      %v7676 = vpop.permute.xlu0 %7675
      %7677 = vrot.lane.b32.xlu0 %v7585, 64
      %v7678 = vpop.permute.xlu0 %7677
      %7679 = vrot.lane.b32.xlu0 %v7586, 64
      %v7680 = vpop.permute.xlu0 %7679
      %7681 = vrot.lane.b32.xlu0 %v7587, 64
      %v7682 = vpop.permute.xlu0 %7681
      %7683 = vrot.lane.b32.xlu0 %v7588, 64
      %v7684 = vpop.permute.xlu0 %7683
      %7717 = vst.msk [vmem:[#allocation6] sm:$0xff] %vm4548, %v7622
      %7718 = vst.msk [vmem:[#allocation6 + $0x18] sm:$0xff] %vm4548, %v7624
      %7719 = vst.msk [vmem:[#allocation6 + $0x30] sm:$0xff] %vm4548, %v7626
      %7720 = vst.msk [vmem:[#allocation6 + $0x48] sm:$0xff] %vm4548, %v7628
      %7721 = vst.msk [vmem:[#allocation6 + $0x60] sm:$0xff] %vm4548, %v7630
      %7722 = vst.msk [vmem:[#allocation6 + $0x78] sm:$0xff] %vm4548, %v7632
      %7723 = vst.msk [vmem:[#allocation6 + $0x90] sm:$0xff] %vm4548, %v7634
      %7724 = vst.msk [vmem:[#allocation6 + $0xa8] sm:$0xff] %vm4548, %v7636
      %7725 = vst.msk [vmem:[#allocation6 + $0xc0] sm:$0xff] %vm4548, %v7638
      %7726 = vst.msk [vmem:[#allocation6 + $0xd8] sm:$0xff] %vm4548, %v7640
      %7727 = vst.msk [vmem:[#allocation6 + $0xf0] sm:$0xff] %vm4548, %v7642
      %7728 = vst.msk [vmem:[#allocation6 + $0x108] sm:$0xff] %vm4548, %v7644
      %7729 = vst.msk [vmem:[#allocation6 + $0x120] sm:$0xff] %vm4548, %v7646
      %7730 = vst.msk [vmem:[#allocation6 + $0x138] sm:$0xff] %vm4548, %v7648
      %7731 = vst.msk [vmem:[#allocation6 + $0x150] sm:$0xff] %vm4548, %v7650
      %7732 = vst.msk [vmem:[#allocation6 + $0x168] sm:$0xff] %vm4548, %v7652
      %7733 = vst.msk [vmem:[#allocation6 + $0x180] sm:$0xff] %vm4548, %v7654
      %7734 = vst.msk [vmem:[#allocation6 + $0x198] sm:$0xff] %vm4548, %v7656
      %7735 = vst.msk [vmem:[#allocation6 + $0x1b0] sm:$0xff] %vm4548, %v7658
      %7736 = vst.msk [vmem:[#allocation6 + $0x1c8] sm:$0xff] %vm4548, %v7660
      %7737 = vst.msk [vmem:[#allocation6 + $0x1e0] sm:$0xff] %vm4548, %v7662
      %7738 = vst.msk [vmem:[#allocation6 + $0x1f8] sm:$0xff] %vm4548, %v7664
      %7739 = vst.msk [vmem:[#allocation6 + $0x210] sm:$0xff] %vm4548, %v7666
      %7740 = vst.msk [vmem:[#allocation6 + $0x228] sm:$0xff] %vm4548, %v7668
      %7741 = vst.msk [vmem:[#allocation6 + $0x240] sm:$0xff] %vm4548, %v7670
      %7742 = vst.msk [vmem:[#allocation6 + $0x258] sm:$0xff] %vm4548, %v7672
      %7743 = vst.msk [vmem:[#allocation6 + $0x270] sm:$0xff] %vm4548, %v7674
      %7744 = vst.msk [vmem:[#allocation6 + $0x288] sm:$0xff] %vm4548, %v7676
      %7745 = vst.msk [vmem:[#allocation6 + $0x2a0] sm:$0xff] %vm4548, %v7678
      %7746 = vst.msk [vmem:[#allocation6 + $0x2b8] sm:$0xff] %vm4548, %v7680
      %7747 = vst.msk [vmem:[#allocation6 + $0x2d0] sm:$0xff] %vm4548, %v7682
      %7748 = vst.msk [vmem:[#allocation6 + $0x2e8] sm:$0xff] %vm4548, %v7684
      %v7749 = vld [vmem:[%s7268] sm:$0xff]
      %v7750 = vld [vmem:[%s7268 + $0x8] sm:$0xff]
      %v7751 = vld [vmem:[%s7268 + $0x18] sm:$0xff]
      %v7752 = vld [vmem:[%s7268 + $0x20] sm:$0xff]
      %v7753 = vld [vmem:[%s7268 + $0x30] sm:$0xff]
      %v7754 = vld [vmem:[%s7268 + $0x38] sm:$0xff]
      %v7755 = vld [vmem:[%s7268 + $0x48] sm:$0xff]
      %v7756 = vld [vmem:[%s7268 + $0x50] sm:$0xff]
      %v7757 = vld [vmem:[%s7268 + $0x60] sm:$0xff]
      %v7758 = vld [vmem:[%s7268 + $0x68] sm:$0xff]
      %v7759 = vld [vmem:[%s7268 + $0x78] sm:$0xff]
      %v7760 = vld [vmem:[%s7268 + $0x80] sm:$0xff]
      %v7761 = vld [vmem:[%s7268 + $0x90] sm:$0xff]
      %v7762 = vld [vmem:[%s7268 + $0x98] sm:$0xff]
      %v7763 = vld [vmem:[%s7268 + $0xa8] sm:$0xff]
      %v7764 = vld [vmem:[%s7268 + $0xb0] sm:$0xff]
      %v7765 = vld [vmem:[%s7268 + $0xc0] sm:$0xff]
      %v7766 = vld [vmem:[%s7268 + $0xc8] sm:$0xff]
      %v7767 = vld [vmem:[%s7268 + $0xd8] sm:$0xff]
      %v7768 = vld [vmem:[%s7268 + $0xe0] sm:$0xff]
      %v7769 = vld [vmem:[%s7268 + $0xf0] sm:$0xff]
      %v7770 = vld [vmem:[%s7268 + $0xf8] sm:$0xff]
      %v7771 = vld [vmem:[%s7268 + $0x108] sm:$0xff]
      %v7772 = vld [vmem:[%s7268 + $0x110] sm:$0xff]
      %v7773 = vld [vmem:[%s7268 + $0x120] sm:$0xff]
      %v7774 = vld [vmem:[%s7268 + $0x128] sm:$0xff]
      %v7775 = vld [vmem:[%s7268 + $0x138] sm:$0xff]
      %v7776 = vld [vmem:[%s7268 + $0x140] sm:$0xff]
      %v7777 = vld [vmem:[%s7268 + $0x150] sm:$0xff]
      %v7778 = vld [vmem:[%s7268 + $0x158] sm:$0xff]
      %v7779 = vld [vmem:[%s7268 + $0x168] sm:$0xff]
      %v7780 = vld [vmem:[%s7268 + $0x170] sm:$0xff]
      %7813 = vrot.lane.b32.xlu0 %v7749, 96
      %v7814 = vpop.permute.xlu0 %7813
      %7815 = vrot.lane.b32.xlu0 %v7750, 96
      %v7816 = vpop.permute.xlu0 %7815
      %7817 = vrot.lane.b32.xlu0 %v7751, 96
      %v7818 = vpop.permute.xlu0 %7817
      %7819 = vrot.lane.b32.xlu0 %v7752, 96
      %v7820 = vpop.permute.xlu0 %7819
      %7821 = vrot.lane.b32.xlu0 %v7753, 96
      %v7822 = vpop.permute.xlu0 %7821
      %7823 = vrot.lane.b32.xlu0 %v7754, 96
      %v7824 = vpop.permute.xlu0 %7823
      %7825 = vrot.lane.b32.xlu0 %v7755, 96
      %v7826 = vpop.permute.xlu0 %7825
      %7827 = vrot.lane.b32.xlu0 %v7756, 96
      %v7828 = vpop.permute.xlu0 %7827
      %7829 = vrot.lane.b32.xlu0 %v7757, 96
      %v7830 = vpop.permute.xlu0 %7829
      %7831 = vrot.lane.b32.xlu0 %v7758, 96
      %v7832 = vpop.permute.xlu0 %7831
      %7833 = vrot.lane.b32.xlu0 %v7759, 96
      %v7834 = vpop.permute.xlu0 %7833
      %7835 = vrot.lane.b32.xlu0 %v7760, 96
      %v7836 = vpop.permute.xlu0 %7835
      %7837 = vrot.lane.b32.xlu0 %v7761, 96
      %v7838 = vpop.permute.xlu0 %7837
      %7839 = vrot.lane.b32.xlu0 %v7762, 96
      %v7840 = vpop.permute.xlu0 %7839
      %7841 = vrot.lane.b32.xlu0 %v7763, 96
      %v7842 = vpop.permute.xlu0 %7841
      %7843 = vrot.lane.b32.xlu0 %v7764, 96
      %v7844 = vpop.permute.xlu0 %7843
      %7845 = vrot.lane.b32.xlu0 %v7765, 96
      %v7846 = vpop.permute.xlu0 %7845
      %7847 = vrot.lane.b32.xlu0 %v7766, 96
      %v7848 = vpop.permute.xlu0 %7847
      %7849 = vrot.lane.b32.xlu0 %v7767, 96
      %v7850 = vpop.permute.xlu0 %7849
      %7851 = vrot.lane.b32.xlu0 %v7768, 96
      %v7852 = vpop.permute.xlu0 %7851
      %7853 = vrot.lane.b32.xlu0 %v7769, 96
      %v7854 = vpop.permute.xlu0 %7853
      %7855 = vrot.lane.b32.xlu0 %v7770, 96
      %v7856 = vpop.permute.xlu0 %7855
      %7857 = vrot.lane.b32.xlu0 %v7771, 96
      %v7858 = vpop.permute.xlu0 %7857
      %7859 = vrot.lane.b32.xlu0 %v7772, 96
      %v7860 = vpop.permute.xlu0 %7859
      %7861 = vrot.lane.b32.xlu0 %v7773, 96
      %v7862 = vpop.permute.xlu0 %7861
      %7863 = vrot.lane.b32.xlu0 %v7774, 96
      %v7864 = vpop.permute.xlu0 %7863
      %7865 = vrot.lane.b32.xlu0 %v7775, 96
      %v7866 = vpop.permute.xlu0 %7865
      %7867 = vrot.lane.b32.xlu0 %v7776, 96
      %v7868 = vpop.permute.xlu0 %7867
      %7869 = vrot.lane.b32.xlu0 %v7777, 96
      %v7870 = vpop.permute.xlu0 %7869
      %7871 = vrot.lane.b32.xlu0 %v7778, 96
      %v7872 = vpop.permute.xlu0 %7871
      %7873 = vrot.lane.b32.xlu0 %v7779, 96
      %v7874 = vpop.permute.xlu0 %7873
      %7875 = vrot.lane.b32.xlu0 %v7780, 96
      %v7876 = vpop.permute.xlu0 %7875
      %7909 = vst.msk [vmem:[#allocation6] sm:$0xff] %vm4597, %v7814
      %7910 = vst.msk [vmem:[#allocation6 + $0x18] sm:$0xff] %vm4597, %v7816
      %7911 = vst.msk [vmem:[#allocation6 + $0x30] sm:$0xff] %vm4597, %v7818
      %7912 = vst.msk [vmem:[#allocation6 + $0x48] sm:$0xff] %vm4597, %v7820
      %7913 = vst.msk [vmem:[#allocation6 + $0x60] sm:$0xff] %vm4597, %v7822
      %7914 = vst.msk [vmem:[#allocation6 + $0x78] sm:$0xff] %vm4597, %v7824
      %7915 = vst.msk [vmem:[#allocation6 + $0x90] sm:$0xff] %vm4597, %v7826
      %7916 = vst.msk [vmem:[#allocation6 + $0xa8] sm:$0xff] %vm4597, %v7828
      %7917 = vst.msk [vmem:[#allocation6 + $0xc0] sm:$0xff] %vm4597, %v7830
      %7918 = vst.msk [vmem:[#allocation6 + $0xd8] sm:$0xff] %vm4597, %v7832
      %7919 = vst.msk [vmem:[#allocation6 + $0xf0] sm:$0xff] %vm4597, %v7834
      %7920 = vst.msk [vmem:[#allocation6 + $0x108] sm:$0xff] %vm4597, %v7836
      %7921 = vst.msk [vmem:[#allocation6 + $0x120] sm:$0xff] %vm4597, %v7838
      %7922 = vst.msk [vmem:[#allocation6 + $0x138] sm:$0xff] %vm4597, %v7840
      %7923 = vst.msk [vmem:[#allocation6 + $0x150] sm:$0xff] %vm4597, %v7842
      %7924 = vst.msk [vmem:[#allocation6 + $0x168] sm:$0xff] %vm4597, %v7844
      %7925 = vst.msk [vmem:[#allocation6 + $0x180] sm:$0xff] %vm4597, %v7846
      %7926 = vst.msk [vmem:[#allocation6 + $0x198] sm:$0xff] %vm4597, %v7848
      %7927 = vst.msk [vmem:[#allocation6 + $0x1b0] sm:$0xff] %vm4597, %v7850
      %7928 = vst.msk [vmem:[#allocation6 + $0x1c8] sm:$0xff] %vm4597, %v7852
      %7929 = vst.msk [vmem:[#allocation6 + $0x1e0] sm:$0xff] %vm4597, %v7854
      %7930 = vst.msk [vmem:[#allocation6 + $0x1f8] sm:$0xff] %vm4597, %v7856
      %7931 = vst.msk [vmem:[#allocation6 + $0x210] sm:$0xff] %vm4597, %v7858
      %7932 = vst.msk [vmem:[#allocation6 + $0x228] sm:$0xff] %vm4597, %v7860
      %7933 = vst.msk [vmem:[#allocation6 + $0x240] sm:$0xff] %vm4597, %v7862
      %7934 = vst.msk [vmem:[#allocation6 + $0x258] sm:$0xff] %vm4597, %v7864
      %7935 = vst.msk [vmem:[#allocation6 + $0x270] sm:$0xff] %vm4597, %v7866
      %7936 = vst.msk [vmem:[#allocation6 + $0x288] sm:$0xff] %vm4597, %v7868
      %7937 = vst.msk [vmem:[#allocation6 + $0x2a0] sm:$0xff] %vm4597, %v7870
      %7938 = vst.msk [vmem:[#allocation6 + $0x2b8] sm:$0xff] %vm4597, %v7872
      %7939 = vst.msk [vmem:[#allocation6 + $0x2d0] sm:$0xff] %vm4597, %v7874
      %7940 = vst.msk [vmem:[#allocation6 + $0x2e8] sm:$0xff] %vm4597, %v7876
      %v7941 = vld [vmem:[%s7268 + $0x1] sm:$0xff]
      %v7942 = vld [vmem:[%s7268 + $0x9] sm:$0xff]
      %v7943 = vld [vmem:[%s7268 + $0x19] sm:$0xff]
      %v7944 = vld [vmem:[%s7268 + $0x21] sm:$0xff]
      %v7945 = vld [vmem:[%s7268 + $0x31] sm:$0xff]
      %v7946 = vld [vmem:[%s7268 + $0x39] sm:$0xff]
      %v7947 = vld [vmem:[%s7268 + $0x49] sm:$0xff]
      %v7948 = vld [vmem:[%s7268 + $0x51] sm:$0xff]
      %v7949 = vld [vmem:[%s7268 + $0x61] sm:$0xff]
      %v7950 = vld [vmem:[%s7268 + $0x69] sm:$0xff]
      %v7951 = vld [vmem:[%s7268 + $0x79] sm:$0xff]
      %v7952 = vld [vmem:[%s7268 + $0x81] sm:$0xff]
      %v7953 = vld [vmem:[%s7268 + $0x91] sm:$0xff]
      %v7954 = vld [vmem:[%s7268 + $0x99] sm:$0xff]
      %v7955 = vld [vmem:[%s7268 + $0xa9] sm:$0xff]
      %v7956 = vld [vmem:[%s7268 + $0xb1] sm:$0xff]
      %v7957 = vld [vmem:[%s7268 + $0xc1] sm:$0xff]
      %v7958 = vld [vmem:[%s7268 + $0xc9] sm:$0xff]
      %v7959 = vld [vmem:[%s7268 + $0xd9] sm:$0xff]
      %v7960 = vld [vmem:[%s7268 + $0xe1] sm:$0xff]
      %v7961 = vld [vmem:[%s7268 + $0xf1] sm:$0xff]
      %v7962 = vld [vmem:[%s7268 + $0xf9] sm:$0xff]
      %v7963 = vld [vmem:[%s7268 + $0x109] sm:$0xff]
      %v7964 = vld [vmem:[%s7268 + $0x111] sm:$0xff]
      %v7965 = vld [vmem:[%s7268 + $0x121] sm:$0xff]
      %v7966 = vld [vmem:[%s7268 + $0x129] sm:$0xff]
      %v7967 = vld [vmem:[%s7268 + $0x139] sm:$0xff]
      %v7968 = vld [vmem:[%s7268 + $0x141] sm:$0xff]
      %v7969 = vld [vmem:[%s7268 + $0x151] sm:$0xff]
      %v7970 = vld [vmem:[%s7268 + $0x159] sm:$0xff]
      %v7971 = vld [vmem:[%s7268 + $0x169] sm:$0xff]
      %v7972 = vld [vmem:[%s7268 + $0x171] sm:$0xff]
      %7973 = vst.msk [vmem:[#allocation6 + $0x8] sm:$0xff] %vm4086, %v7941
      %7974 = vst.msk [vmem:[#allocation6 + $0x20] sm:$0xff] %vm4086, %v7942
      %7975 = vst.msk [vmem:[#allocation6 + $0x38] sm:$0xff] %vm4086, %v7943
      %7976 = vst.msk [vmem:[#allocation6 + $0x50] sm:$0xff] %vm4086, %v7944
      %7977 = vst.msk [vmem:[#allocation6 + $0x68] sm:$0xff] %vm4086, %v7945
      %7978 = vst.msk [vmem:[#allocation6 + $0x80] sm:$0xff] %vm4086, %v7946
      %7979 = vst.msk [vmem:[#allocation6 + $0x98] sm:$0xff] %vm4086, %v7947
      %7980 = vst.msk [vmem:[#allocation6 + $0xb0] sm:$0xff] %vm4086, %v7948
      %7981 = vst.msk [vmem:[#allocation6 + $0xc8] sm:$0xff] %vm4086, %v7949
      %7982 = vst.msk [vmem:[#allocation6 + $0xe0] sm:$0xff] %vm4086, %v7950
      %7983 = vst.msk [vmem:[#allocation6 + $0xf8] sm:$0xff] %vm4086, %v7951
      %7984 = vst.msk [vmem:[#allocation6 + $0x110] sm:$0xff] %vm4086, %v7952
      %7985 = vst.msk [vmem:[#allocation6 + $0x128] sm:$0xff] %vm4086, %v7953
      %7986 = vst.msk [vmem:[#allocation6 + $0x140] sm:$0xff] %vm4086, %v7954
      %7987 = vst.msk [vmem:[#allocation6 + $0x158] sm:$0xff] %vm4086, %v7955
      %7988 = vst.msk [vmem:[#allocation6 + $0x170] sm:$0xff] %vm4086, %v7956
      %7989 = vst.msk [vmem:[#allocation6 + $0x188] sm:$0xff] %vm4086, %v7957
      %7990 = vst.msk [vmem:[#allocation6 + $0x1a0] sm:$0xff] %vm4086, %v7958
      %7991 = vst.msk [vmem:[#allocation6 + $0x1b8] sm:$0xff] %vm4086, %v7959
      %7992 = vst.msk [vmem:[#allocation6 + $0x1d0] sm:$0xff] %vm4086, %v7960
      %7993 = vst.msk [vmem:[#allocation6 + $0x1e8] sm:$0xff] %vm4086, %v7961
      %7994 = vst.msk [vmem:[#allocation6 + $0x200] sm:$0xff] %vm4086, %v7962
      %7995 = vst.msk [vmem:[#allocation6 + $0x218] sm:$0xff] %vm4086, %v7963
      %7996 = vst.msk [vmem:[#allocation6 + $0x230] sm:$0xff] %vm4086, %v7964
      %7997 = vst.msk [vmem:[#allocation6 + $0x248] sm:$0xff] %vm4086, %v7965
      %7998 = vst.msk [vmem:[#allocation6 + $0x260] sm:$0xff] %vm4086, %v7966
      %7999 = vst.msk [vmem:[#allocation6 + $0x278] sm:$0xff] %vm4086, %v7967
      %8000 = vst.msk [vmem:[#allocation6 + $0x290] sm:$0xff] %vm4086, %v7968
      %8001 = vst.msk [vmem:[#allocation6 + $0x2a8] sm:$0xff] %vm4086, %v7969
      %8002 = vst.msk [vmem:[#allocation6 + $0x2c0] sm:$0xff] %vm4086, %v7970
      %8003 = vst.msk [vmem:[#allocation6 + $0x2d8] sm:$0xff] %vm4086, %v7971
      %8004 = vst.msk [vmem:[#allocation6 + $0x2f0] sm:$0xff] %vm4086, %v7972
      %v8005 = vld [vmem:[%s7268 + $0x2] sm:$0xff]
      %v8006 = vld [vmem:[%s7268 + $0xa] sm:$0xff]
      %v8007 = vld [vmem:[%s7268 + $0x1a] sm:$0xff]
      %v8008 = vld [vmem:[%s7268 + $0x22] sm:$0xff]
      %v8009 = vld [vmem:[%s7268 + $0x32] sm:$0xff]
      %v8010 = vld [vmem:[%s7268 + $0x3a] sm:$0xff]
      %v8011 = vld [vmem:[%s7268 + $0x4a] sm:$0xff]
      %v8012 = vld [vmem:[%s7268 + $0x52] sm:$0xff]
      %v8013 = vld [vmem:[%s7268 + $0x62] sm:$0xff]
      %v8014 = vld [vmem:[%s7268 + $0x6a] sm:$0xff]
      %v8015 = vld [vmem:[%s7268 + $0x7a] sm:$0xff]
      %v8016 = vld [vmem:[%s7268 + $0x82] sm:$0xff]
      %v8017 = vld [vmem:[%s7268 + $0x92] sm:$0xff]
      %v8018 = vld [vmem:[%s7268 + $0x9a] sm:$0xff]
      %v8019 = vld [vmem:[%s7268 + $0xaa] sm:$0xff]
      %v8020 = vld [vmem:[%s7268 + $0xb2] sm:$0xff]
      %v8021 = vld [vmem:[%s7268 + $0xc2] sm:$0xff]
      %v8022 = vld [vmem:[%s7268 + $0xca] sm:$0xff]
      %v8023 = vld [vmem:[%s7268 + $0xda] sm:$0xff]
      %v8024 = vld [vmem:[%s7268 + $0xe2] sm:$0xff]
      %v8025 = vld [vmem:[%s7268 + $0xf2] sm:$0xff]
      %v8026 = vld [vmem:[%s7268 + $0xfa] sm:$0xff]
      %v8027 = vld [vmem:[%s7268 + $0x10a] sm:$0xff]
      %v8028 = vld [vmem:[%s7268 + $0x112] sm:$0xff]
      %v8029 = vld [vmem:[%s7268 + $0x122] sm:$0xff]
      %v8030 = vld [vmem:[%s7268 + $0x12a] sm:$0xff]
      %v8031 = vld [vmem:[%s7268 + $0x13a] sm:$0xff]
      %v8032 = vld [vmem:[%s7268 + $0x142] sm:$0xff]
      %v8033 = vld [vmem:[%s7268 + $0x152] sm:$0xff]
      %v8034 = vld [vmem:[%s7268 + $0x15a] sm:$0xff]
      %v8035 = vld [vmem:[%s7268 + $0x16a] sm:$0xff]
      %v8036 = vld [vmem:[%s7268 + $0x172] sm:$0xff]
      %8069 = vrot.lane.b32.xlu0 %v8005, 32
      %v8070 = vpop.permute.xlu0 %8069
      %8071 = vrot.lane.b32.xlu0 %v8006, 32
      %v8072 = vpop.permute.xlu0 %8071
      %8073 = vrot.lane.b32.xlu0 %v8007, 32
      %v8074 = vpop.permute.xlu0 %8073
      %8075 = vrot.lane.b32.xlu0 %v8008, 32
      %v8076 = vpop.permute.xlu0 %8075
      %8077 = vrot.lane.b32.xlu0 %v8009, 32
      %v8078 = vpop.permute.xlu0 %8077
      %8079 = vrot.lane.b32.xlu0 %v8010, 32
      %v8080 = vpop.permute.xlu0 %8079
      %8081 = vrot.lane.b32.xlu0 %v8011, 32
      %v8082 = vpop.permute.xlu0 %8081
      %8083 = vrot.lane.b32.xlu0 %v8012, 32
      %v8084 = vpop.permute.xlu0 %8083
      %8085 = vrot.lane.b32.xlu0 %v8013, 32
      %v8086 = vpop.permute.xlu0 %8085
      %8087 = vrot.lane.b32.xlu0 %v8014, 32
      %v8088 = vpop.permute.xlu0 %8087
      %8089 = vrot.lane.b32.xlu0 %v8015, 32
      %v8090 = vpop.permute.xlu0 %8089
      %8091 = vrot.lane.b32.xlu0 %v8016, 32
      %v8092 = vpop.permute.xlu0 %8091
      %8093 = vrot.lane.b32.xlu0 %v8017, 32
      %v8094 = vpop.permute.xlu0 %8093
      %8095 = vrot.lane.b32.xlu0 %v8018, 32
      %v8096 = vpop.permute.xlu0 %8095
      %8097 = vrot.lane.b32.xlu0 %v8019, 32
      %v8098 = vpop.permute.xlu0 %8097
      %8099 = vrot.lane.b32.xlu0 %v8020, 32
      %v8100 = vpop.permute.xlu0 %8099
      %8101 = vrot.lane.b32.xlu0 %v8021, 32
      %v8102 = vpop.permute.xlu0 %8101
      %8103 = vrot.lane.b32.xlu0 %v8022, 32
      %v8104 = vpop.permute.xlu0 %8103
      %8105 = vrot.lane.b32.xlu0 %v8023, 32
      %v8106 = vpop.permute.xlu0 %8105
      %8107 = vrot.lane.b32.xlu0 %v8024, 32
      %v8108 = vpop.permute.xlu0 %8107
      %8109 = vrot.lane.b32.xlu0 %v8025, 32
      %v8110 = vpop.permute.xlu0 %8109
      %8111 = vrot.lane.b32.xlu0 %v8026, 32
      %v8112 = vpop.permute.xlu0 %8111
      %8113 = vrot.lane.b32.xlu0 %v8027, 32
      %v8114 = vpop.permute.xlu0 %8113
      %8115 = vrot.lane.b32.xlu0 %v8028, 32
      %v8116 = vpop.permute.xlu0 %8115
      %8117 = vrot.lane.b32.xlu0 %v8029, 32
      %v8118 = vpop.permute.xlu0 %8117
      %8119 = vrot.lane.b32.xlu0 %v8030, 32
      %v8120 = vpop.permute.xlu0 %8119
      %8121 = vrot.lane.b32.xlu0 %v8031, 32
      %v8122 = vpop.permute.xlu0 %8121
      %8123 = vrot.lane.b32.xlu0 %v8032, 32
      %v8124 = vpop.permute.xlu0 %8123
      %8125 = vrot.lane.b32.xlu0 %v8033, 32
      %v8126 = vpop.permute.xlu0 %8125
      %8127 = vrot.lane.b32.xlu0 %v8034, 32
      %v8128 = vpop.permute.xlu0 %8127
      %8129 = vrot.lane.b32.xlu0 %v8035, 32
      %v8130 = vpop.permute.xlu0 %8129
      %8131 = vrot.lane.b32.xlu0 %v8036, 32
      %v8132 = vpop.permute.xlu0 %8131
      %8165 = vst.msk [vmem:[#allocation6 + $0x8] sm:$0xff] %vm4499, %v8070
      %8166 = vst.msk [vmem:[#allocation6 + $0x20] sm:$0xff] %vm4499, %v8072
      %8167 = vst.msk [vmem:[#allocation6 + $0x38] sm:$0xff] %vm4499, %v8074
      %8168 = vst.msk [vmem:[#allocation6 + $0x50] sm:$0xff] %vm4499, %v8076
      %8169 = vst.msk [vmem:[#allocation6 + $0x68] sm:$0xff] %vm4499, %v8078
      %8170 = vst.msk [vmem:[#allocation6 + $0x80] sm:$0xff] %vm4499, %v8080
      %8171 = vst.msk [vmem:[#allocation6 + $0x98] sm:$0xff] %vm4499, %v8082
      %8172 = vst.msk [vmem:[#allocation6 + $0xb0] sm:$0xff] %vm4499, %v8084
      %8173 = vst.msk [vmem:[#allocation6 + $0xc8] sm:$0xff] %vm4499, %v8086
      %8174 = vst.msk [vmem:[#allocation6 + $0xe0] sm:$0xff] %vm4499, %v8088
      %8175 = vst.msk [vmem:[#allocation6 + $0xf8] sm:$0xff] %vm4499, %v8090
      %8176 = vst.msk [vmem:[#allocation6 + $0x110] sm:$0xff] %vm4499, %v8092
      %8177 = vst.msk [vmem:[#allocation6 + $0x128] sm:$0xff] %vm4499, %v8094
      %8178 = vst.msk [vmem:[#allocation6 + $0x140] sm:$0xff] %vm4499, %v8096
      %8179 = vst.msk [vmem:[#allocation6 + $0x158] sm:$0xff] %vm4499, %v8098
      %8180 = vst.msk [vmem:[#allocation6 + $0x170] sm:$0xff] %vm4499, %v8100
      %8181 = vst.msk [vmem:[#allocation6 + $0x188] sm:$0xff] %vm4499, %v8102
      %8182 = vst.msk [vmem:[#allocation6 + $0x1a0] sm:$0xff] %vm4499, %v8104
      %8183 = vst.msk [vmem:[#allocation6 + $0x1b8] sm:$0xff] %vm4499, %v8106
      %8184 = vst.msk [vmem:[#allocation6 + $0x1d0] sm:$0xff] %vm4499, %v8108
      %8185 = vst.msk [vmem:[#allocation6 + $0x1e8] sm:$0xff] %vm4499, %v8110
      %8186 = vst.msk [vmem:[#allocation6 + $0x200] sm:$0xff] %vm4499, %v8112
      %8187 = vst.msk [vmem:[#allocation6 + $0x218] sm:$0xff] %vm4499, %v8114
      %8188 = vst.msk [vmem:[#allocation6 + $0x230] sm:$0xff] %vm4499, %v8116
      %8189 = vst.msk [vmem:[#allocation6 + $0x248] sm:$0xff] %vm4499, %v8118
      %8190 = vst.msk [vmem:[#allocation6 + $0x260] sm:$0xff] %vm4499, %v8120
      %8191 = vst.msk [vmem:[#allocation6 + $0x278] sm:$0xff] %vm4499, %v8122
      %8192 = vst.msk [vmem:[#allocation6 + $0x290] sm:$0xff] %vm4499, %v8124
      %8193 = vst.msk [vmem:[#allocation6 + $0x2a8] sm:$0xff] %vm4499, %v8126
      %8194 = vst.msk [vmem:[#allocation6 + $0x2c0] sm:$0xff] %vm4499, %v8128
      %8195 = vst.msk [vmem:[#allocation6 + $0x2d8] sm:$0xff] %vm4499, %v8130
      %8196 = vst.msk [vmem:[#allocation6 + $0x2f0] sm:$0xff] %vm4499, %v8132
      %s8197 = scalar_lea.vmem [#allocation5], 48
      %v8198 = vld [vmem:[%s8197] sm:$0xff]
      %v8199 = vld [vmem:[%s8197 + $0x8] sm:$0xff]
      %v8200 = vld [vmem:[%s8197 + $0x18] sm:$0xff]
      %v8201 = vld [vmem:[%s8197 + $0x20] sm:$0xff]
      %v8202 = vld [vmem:[%s8197 + $0x30] sm:$0xff]
      %v8203 = vld [vmem:[%s8197 + $0x38] sm:$0xff]
      %v8204 = vld [vmem:[%s8197 + $0x48] sm:$0xff]
      %v8205 = vld [vmem:[%s8197 + $0x50] sm:$0xff]
      %v8206 = vld [vmem:[%s8197 + $0x60] sm:$0xff]
      %v8207 = vld [vmem:[%s8197 + $0x68] sm:$0xff]
      %v8208 = vld [vmem:[%s8197 + $0x78] sm:$0xff]
      %v8209 = vld [vmem:[%s8197 + $0x80] sm:$0xff]
      %v8210 = vld [vmem:[%s8197 + $0x90] sm:$0xff]
      %v8211 = vld [vmem:[%s8197 + $0x98] sm:$0xff]
      %v8212 = vld [vmem:[%s8197 + $0xa8] sm:$0xff]
      %v8213 = vld [vmem:[%s8197 + $0xb0] sm:$0xff]
      %v8214 = vld [vmem:[%s8197 + $0xc0] sm:$0xff]
      %v8215 = vld [vmem:[%s8197 + $0xc8] sm:$0xff]
      %v8216 = vld [vmem:[%s8197 + $0xd8] sm:$0xff]
      %v8217 = vld [vmem:[%s8197 + $0xe0] sm:$0xff]
      %v8218 = vld [vmem:[%s8197 + $0xf0] sm:$0xff]
      %v8219 = vld [vmem:[%s8197 + $0xf8] sm:$0xff]
      %v8220 = vld [vmem:[%s8197 + $0x108] sm:$0xff]
      %v8221 = vld [vmem:[%s8197 + $0x110] sm:$0xff]
      %v8222 = vld [vmem:[%s8197 + $0x120] sm:$0xff]
      %v8223 = vld [vmem:[%s8197 + $0x128] sm:$0xff]
      %v8224 = vld [vmem:[%s8197 + $0x138] sm:$0xff]
      %v8225 = vld [vmem:[%s8197 + $0x140] sm:$0xff]
      %v8226 = vld [vmem:[%s8197 + $0x150] sm:$0xff]
      %v8227 = vld [vmem:[%s8197 + $0x158] sm:$0xff]
      %v8228 = vld [vmem:[%s8197 + $0x168] sm:$0xff]
      %v8229 = vld [vmem:[%s8197 + $0x170] sm:$0xff]
      %8262 = vrot.lane.b32.xlu0 %v8198, 64
      %v8263 = vpop.permute.xlu0 %8262
      %8264 = vrot.lane.b32.xlu0 %v8199, 64
      %v8265 = vpop.permute.xlu0 %8264
      %8266 = vrot.lane.b32.xlu0 %v8200, 64
      %v8267 = vpop.permute.xlu0 %8266
      %8268 = vrot.lane.b32.xlu0 %v8201, 64
      %v8269 = vpop.permute.xlu0 %8268
      %8270 = vrot.lane.b32.xlu0 %v8202, 64
      %v8271 = vpop.permute.xlu0 %8270
      %8272 = vrot.lane.b32.xlu0 %v8203, 64
      %v8273 = vpop.permute.xlu0 %8272
      %8274 = vrot.lane.b32.xlu0 %v8204, 64
      %v8275 = vpop.permute.xlu0 %8274
      %8276 = vrot.lane.b32.xlu0 %v8205, 64
      %v8277 = vpop.permute.xlu0 %8276
      %8278 = vrot.lane.b32.xlu0 %v8206, 64
      %v8279 = vpop.permute.xlu0 %8278
      %8280 = vrot.lane.b32.xlu0 %v8207, 64
      %v8281 = vpop.permute.xlu0 %8280
      %8282 = vrot.lane.b32.xlu0 %v8208, 64
      %v8283 = vpop.permute.xlu0 %8282
      %8284 = vrot.lane.b32.xlu0 %v8209, 64
      %v8285 = vpop.permute.xlu0 %8284
      %8286 = vrot.lane.b32.xlu0 %v8210, 64
      %v8287 = vpop.permute.xlu0 %8286
      %8288 = vrot.lane.b32.xlu0 %v8211, 64
      %v8289 = vpop.permute.xlu0 %8288
      %8290 = vrot.lane.b32.xlu0 %v8212, 64
      %v8291 = vpop.permute.xlu0 %8290
      %8292 = vrot.lane.b32.xlu0 %v8213, 64
      %v8293 = vpop.permute.xlu0 %8292
      %8294 = vrot.lane.b32.xlu0 %v8214, 64
      %v8295 = vpop.permute.xlu0 %8294
      %8296 = vrot.lane.b32.xlu0 %v8215, 64
      %v8297 = vpop.permute.xlu0 %8296
      %8298 = vrot.lane.b32.xlu0 %v8216, 64
      %v8299 = vpop.permute.xlu0 %8298
      %8300 = vrot.lane.b32.xlu0 %v8217, 64
      %v8301 = vpop.permute.xlu0 %8300
      %8302 = vrot.lane.b32.xlu0 %v8218, 64
      %v8303 = vpop.permute.xlu0 %8302
      %8304 = vrot.lane.b32.xlu0 %v8219, 64
      %v8305 = vpop.permute.xlu0 %8304
      %8306 = vrot.lane.b32.xlu0 %v8220, 64
      %v8307 = vpop.permute.xlu0 %8306
      %8308 = vrot.lane.b32.xlu0 %v8221, 64
      %v8309 = vpop.permute.xlu0 %8308
      %8310 = vrot.lane.b32.xlu0 %v8222, 64
      %v8311 = vpop.permute.xlu0 %8310
      %8312 = vrot.lane.b32.xlu0 %v8223, 64
      %v8313 = vpop.permute.xlu0 %8312
      %8314 = vrot.lane.b32.xlu0 %v8224, 64
      %v8315 = vpop.permute.xlu0 %8314
      %8316 = vrot.lane.b32.xlu0 %v8225, 64
      %v8317 = vpop.permute.xlu0 %8316
      %8318 = vrot.lane.b32.xlu0 %v8226, 64
      %v8319 = vpop.permute.xlu0 %8318
      %8320 = vrot.lane.b32.xlu0 %v8227, 64
      %v8321 = vpop.permute.xlu0 %8320
      %8322 = vrot.lane.b32.xlu0 %v8228, 64
      %v8323 = vpop.permute.xlu0 %8322
      %8324 = vrot.lane.b32.xlu0 %v8229, 64
      %v8325 = vpop.permute.xlu0 %8324
      %8358 = vst.msk [vmem:[#allocation6 + $0x8] sm:$0xff] %vm4548, %v8263
      %8359 = vst.msk [vmem:[#allocation6 + $0x20] sm:$0xff] %vm4548, %v8265
      %8360 = vst.msk [vmem:[#allocation6 + $0x38] sm:$0xff] %vm4548, %v8267
      %8361 = vst.msk [vmem:[#allocation6 + $0x50] sm:$0xff] %vm4548, %v8269
      %8362 = vst.msk [vmem:[#allocation6 + $0x68] sm:$0xff] %vm4548, %v8271
      %8363 = vst.msk [vmem:[#allocation6 + $0x80] sm:$0xff] %vm4548, %v8273
      %8364 = vst.msk [vmem:[#allocation6 + $0x98] sm:$0xff] %vm4548, %v8275
      %8365 = vst.msk [vmem:[#allocation6 + $0xb0] sm:$0xff] %vm4548, %v8277
      %8366 = vst.msk [vmem:[#allocation6 + $0xc8] sm:$0xff] %vm4548, %v8279
      %8367 = vst.msk [vmem:[#allocation6 + $0xe0] sm:$0xff] %vm4548, %v8281
      %8368 = vst.msk [vmem:[#allocation6 + $0xf8] sm:$0xff] %vm4548, %v8283
      %8369 = vst.msk [vmem:[#allocation6 + $0x110] sm:$0xff] %vm4548, %v8285
      %8370 = vst.msk [vmem:[#allocation6 + $0x128] sm:$0xff] %vm4548, %v8287
      %8371 = vst.msk [vmem:[#allocation6 + $0x140] sm:$0xff] %vm4548, %v8289
      %8372 = vst.msk [vmem:[#allocation6 + $0x158] sm:$0xff] %vm4548, %v8291
      %8373 = vst.msk [vmem:[#allocation6 + $0x170] sm:$0xff] %vm4548, %v8293
      %8374 = vst.msk [vmem:[#allocation6 + $0x188] sm:$0xff] %vm4548, %v8295
      %8375 = vst.msk [vmem:[#allocation6 + $0x1a0] sm:$0xff] %vm4548, %v8297
      %8376 = vst.msk [vmem:[#allocation6 + $0x1b8] sm:$0xff] %vm4548, %v8299
      %8377 = vst.msk [vmem:[#allocation6 + $0x1d0] sm:$0xff] %vm4548, %v8301
      %8378 = vst.msk [vmem:[#allocation6 + $0x1e8] sm:$0xff] %vm4548, %v8303
      %8379 = vst.msk [vmem:[#allocation6 + $0x200] sm:$0xff] %vm4548, %v8305
      %8380 = vst.msk [vmem:[#allocation6 + $0x218] sm:$0xff] %vm4548, %v8307
      %8381 = vst.msk [vmem:[#allocation6 + $0x230] sm:$0xff] %vm4548, %v8309
      %8382 = vst.msk [vmem:[#allocation6 + $0x248] sm:$0xff] %vm4548, %v8311
      %8383 = vst.msk [vmem:[#allocation6 + $0x260] sm:$0xff] %vm4548, %v8313
      %8384 = vst.msk [vmem:[#allocation6 + $0x278] sm:$0xff] %vm4548, %v8315
      %8385 = vst.msk [vmem:[#allocation6 + $0x290] sm:$0xff] %vm4548, %v8317
      %8386 = vst.msk [vmem:[#allocation6 + $0x2a8] sm:$0xff] %vm4548, %v8319
      %8387 = vst.msk [vmem:[#allocation6 + $0x2c0] sm:$0xff] %vm4548, %v8321
      %8388 = vst.msk [vmem:[#allocation6 + $0x2d8] sm:$0xff] %vm4548, %v8323
      %8389 = vst.msk [vmem:[#allocation6 + $0x2f0] sm:$0xff] %vm4548, %v8325
      %v8390 = vld [vmem:[%s8197 + $0x1] sm:$0xff]
      %v8391 = vld [vmem:[%s8197 + $0x9] sm:$0xff]
      %v8392 = vld [vmem:[%s8197 + $0x19] sm:$0xff]
      %v8393 = vld [vmem:[%s8197 + $0x21] sm:$0xff]
      %v8394 = vld [vmem:[%s8197 + $0x31] sm:$0xff]
      %v8395 = vld [vmem:[%s8197 + $0x39] sm:$0xff]
      %v8396 = vld [vmem:[%s8197 + $0x49] sm:$0xff]
      %v8397 = vld [vmem:[%s8197 + $0x51] sm:$0xff]
      %v8398 = vld [vmem:[%s8197 + $0x61] sm:$0xff]
      %v8399 = vld [vmem:[%s8197 + $0x69] sm:$0xff]
      %v8400 = vld [vmem:[%s8197 + $0x79] sm:$0xff]
      %v8401 = vld [vmem:[%s8197 + $0x81] sm:$0xff]
      %v8402 = vld [vmem:[%s8197 + $0x91] sm:$0xff]
      %v8403 = vld [vmem:[%s8197 + $0x99] sm:$0xff]
      %v8404 = vld [vmem:[%s8197 + $0xa9] sm:$0xff]
      %v8405 = vld [vmem:[%s8197 + $0xb1] sm:$0xff]
      %v8406 = vld [vmem:[%s8197 + $0xc1] sm:$0xff]
      %v8407 = vld [vmem:[%s8197 + $0xc9] sm:$0xff]
      %v8408 = vld [vmem:[%s8197 + $0xd9] sm:$0xff]
      %v8409 = vld [vmem:[%s8197 + $0xe1] sm:$0xff]
      %v8410 = vld [vmem:[%s8197 + $0xf1] sm:$0xff]
      %v8411 = vld [vmem:[%s8197 + $0xf9] sm:$0xff]
      %v8412 = vld [vmem:[%s8197 + $0x109] sm:$0xff]
      %v8413 = vld [vmem:[%s8197 + $0x111] sm:$0xff]
      %v8414 = vld [vmem:[%s8197 + $0x121] sm:$0xff]
      %v8415 = vld [vmem:[%s8197 + $0x129] sm:$0xff]
      %v8416 = vld [vmem:[%s8197 + $0x139] sm:$0xff]
      %v8417 = vld [vmem:[%s8197 + $0x141] sm:$0xff]
      %v8418 = vld [vmem:[%s8197 + $0x151] sm:$0xff]
      %v8419 = vld [vmem:[%s8197 + $0x159] sm:$0xff]
      %v8420 = vld [vmem:[%s8197 + $0x169] sm:$0xff]
      %v8421 = vld [vmem:[%s8197 + $0x171] sm:$0xff]
      %8454 = vrot.lane.b32.xlu0 %v8390, 96
      %v8455 = vpop.permute.xlu0 %8454
      %8456 = vrot.lane.b32.xlu0 %v8391, 96
      %v8457 = vpop.permute.xlu0 %8456
      %8458 = vrot.lane.b32.xlu0 %v8392, 96
      %v8459 = vpop.permute.xlu0 %8458
      %8460 = vrot.lane.b32.xlu0 %v8393, 96
      %v8461 = vpop.permute.xlu0 %8460
      %8462 = vrot.lane.b32.xlu0 %v8394, 96
      %v8463 = vpop.permute.xlu0 %8462
      %8464 = vrot.lane.b32.xlu0 %v8395, 96
      %v8465 = vpop.permute.xlu0 %8464
      %8466 = vrot.lane.b32.xlu0 %v8396, 96
      %v8467 = vpop.permute.xlu0 %8466
      %8468 = vrot.lane.b32.xlu0 %v8397, 96
      %v8469 = vpop.permute.xlu0 %8468
      %8470 = vrot.lane.b32.xlu0 %v8398, 96
      %v8471 = vpop.permute.xlu0 %8470
      %8472 = vrot.lane.b32.xlu0 %v8399, 96
      %v8473 = vpop.permute.xlu0 %8472
      %8474 = vrot.lane.b32.xlu0 %v8400, 96
      %v8475 = vpop.permute.xlu0 %8474
      %8476 = vrot.lane.b32.xlu0 %v8401, 96
      %v8477 = vpop.permute.xlu0 %8476
      %8478 = vrot.lane.b32.xlu0 %v8402, 96
      %v8479 = vpop.permute.xlu0 %8478
      %8480 = vrot.lane.b32.xlu0 %v8403, 96
      %v8481 = vpop.permute.xlu0 %8480
      %8482 = vrot.lane.b32.xlu0 %v8404, 96
      %v8483 = vpop.permute.xlu0 %8482
      %8484 = vrot.lane.b32.xlu0 %v8405, 96
      %v8485 = vpop.permute.xlu0 %8484
      %8486 = vrot.lane.b32.xlu0 %v8406, 96
      %v8487 = vpop.permute.xlu0 %8486
      %8488 = vrot.lane.b32.xlu0 %v8407, 96
      %v8489 = vpop.permute.xlu0 %8488
      %8490 = vrot.lane.b32.xlu0 %v8408, 96
      %v8491 = vpop.permute.xlu0 %8490
      %8492 = vrot.lane.b32.xlu0 %v8409, 96
      %v8493 = vpop.permute.xlu0 %8492
      %8494 = vrot.lane.b32.xlu0 %v8410, 96
      %v8495 = vpop.permute.xlu0 %8494
      %8496 = vrot.lane.b32.xlu0 %v8411, 96
      %v8497 = vpop.permute.xlu0 %8496
      %8498 = vrot.lane.b32.xlu0 %v8412, 96
      %v8499 = vpop.permute.xlu0 %8498
      %8500 = vrot.lane.b32.xlu0 %v8413, 96
      %v8501 = vpop.permute.xlu0 %8500
      %8502 = vrot.lane.b32.xlu0 %v8414, 96
      %v8503 = vpop.permute.xlu0 %8502
      %8504 = vrot.lane.b32.xlu0 %v8415, 96
      %v8505 = vpop.permute.xlu0 %8504
      %8506 = vrot.lane.b32.xlu0 %v8416, 96
      %v8507 = vpop.permute.xlu0 %8506
      %8508 = vrot.lane.b32.xlu0 %v8417, 96
      %v8509 = vpop.permute.xlu0 %8508
      %8510 = vrot.lane.b32.xlu0 %v8418, 96
      %v8511 = vpop.permute.xlu0 %8510
      %8512 = vrot.lane.b32.xlu0 %v8419, 96
      %v8513 = vpop.permute.xlu0 %8512
      %8514 = vrot.lane.b32.xlu0 %v8420, 96
      %v8515 = vpop.permute.xlu0 %8514
      %8516 = vrot.lane.b32.xlu0 %v8421, 96
      %v8517 = vpop.permute.xlu0 %8516
      %8550 = vst.msk [vmem:[#allocation6 + $0x8] sm:$0xff] %vm4597, %v8455
      %8551 = vst.msk [vmem:[#allocation6 + $0x20] sm:$0xff] %vm4597, %v8457
      %8552 = vst.msk [vmem:[#allocation6 + $0x38] sm:$0xff] %vm4597, %v8459
      %8553 = vst.msk [vmem:[#allocation6 + $0x50] sm:$0xff] %vm4597, %v8461
      %8554 = vst.msk [vmem:[#allocation6 + $0x68] sm:$0xff] %vm4597, %v8463
      %8555 = vst.msk [vmem:[#allocation6 + $0x80] sm:$0xff] %vm4597, %v8465
      %8556 = vst.msk [vmem:[#allocation6 + $0x98] sm:$0xff] %vm4597, %v8467
      %8557 = vst.msk [vmem:[#allocation6 + $0xb0] sm:$0xff] %vm4597, %v8469
      %8558 = vst.msk [vmem:[#allocation6 + $0xc8] sm:$0xff] %vm4597, %v8471
      %8559 = vst.msk [vmem:[#allocation6 + $0xe0] sm:$0xff] %vm4597, %v8473
      %8560 = vst.msk [vmem:[#allocation6 + $0xf8] sm:$0xff] %vm4597, %v8475
      %8561 = vst.msk [vmem:[#allocation6 + $0x110] sm:$0xff] %vm4597, %v8477
      %8562 = vst.msk [vmem:[#allocation6 + $0x128] sm:$0xff] %vm4597, %v8479
      %8563 = vst.msk [vmem:[#allocation6 + $0x140] sm:$0xff] %vm4597, %v8481
      %8564 = vst.msk [vmem:[#allocation6 + $0x158] sm:$0xff] %vm4597, %v8483
      %8565 = vst.msk [vmem:[#allocation6 + $0x170] sm:$0xff] %vm4597, %v8485
      %8566 = vst.msk [vmem:[#allocation6 + $0x188] sm:$0xff] %vm4597, %v8487
      %8567 = vst.msk [vmem:[#allocation6 + $0x1a0] sm:$0xff] %vm4597, %v8489
      %8568 = vst.msk [vmem:[#allocation6 + $0x1b8] sm:$0xff] %vm4597, %v8491
      %8569 = vst.msk [vmem:[#allocation6 + $0x1d0] sm:$0xff] %vm4597, %v8493
      %8570 = vst.msk [vmem:[#allocation6 + $0x1e8] sm:$0xff] %vm4597, %v8495
      %8571 = vst.msk [vmem:[#allocation6 + $0x200] sm:$0xff] %vm4597, %v8497
      %8572 = vst.msk [vmem:[#allocation6 + $0x218] sm:$0xff] %vm4597, %v8499
      %8573 = vst.msk [vmem:[#allocation6 + $0x230] sm:$0xff] %vm4597, %v8501
      %8574 = vst.msk [vmem:[#allocation6 + $0x248] sm:$0xff] %vm4597, %v8503
      %8575 = vst.msk [vmem:[#allocation6 + $0x260] sm:$0xff] %vm4597, %v8505
      %8576 = vst.msk [vmem:[#allocation6 + $0x278] sm:$0xff] %vm4597, %v8507
      %8577 = vst.msk [vmem:[#allocation6 + $0x290] sm:$0xff] %vm4597, %v8509
      %8578 = vst.msk [vmem:[#allocation6 + $0x2a8] sm:$0xff] %vm4597, %v8511
      %8579 = vst.msk [vmem:[#allocation6 + $0x2c0] sm:$0xff] %vm4597, %v8513
      %8580 = vst.msk [vmem:[#allocation6 + $0x2d8] sm:$0xff] %vm4597, %v8515
      %8581 = vst.msk [vmem:[#allocation6 + $0x2f0] sm:$0xff] %vm4597, %v8517
      %v8582 = vld [vmem:[%s8197 + $0x2] sm:$0xff]
      %v8583 = vld [vmem:[%s8197 + $0xa] sm:$0xff]
      %v8584 = vld [vmem:[%s8197 + $0x1a] sm:$0xff]
      %v8585 = vld [vmem:[%s8197 + $0x22] sm:$0xff]
      %v8586 = vld [vmem:[%s8197 + $0x32] sm:$0xff]
      %v8587 = vld [vmem:[%s8197 + $0x3a] sm:$0xff]
      %v8588 = vld [vmem:[%s8197 + $0x4a] sm:$0xff]
      %v8589 = vld [vmem:[%s8197 + $0x52] sm:$0xff]
      %v8590 = vld [vmem:[%s8197 + $0x62] sm:$0xff]
      %v8591 = vld [vmem:[%s8197 + $0x6a] sm:$0xff]
      %v8592 = vld [vmem:[%s8197 + $0x7a] sm:$0xff]
      %v8593 = vld [vmem:[%s8197 + $0x82] sm:$0xff]
      %v8594 = vld [vmem:[%s8197 + $0x92] sm:$0xff]
      %v8595 = vld [vmem:[%s8197 + $0x9a] sm:$0xff]
      %v8596 = vld [vmem:[%s8197 + $0xaa] sm:$0xff]
      %v8597 = vld [vmem:[%s8197 + $0xb2] sm:$0xff]
      %v8598 = vld [vmem:[%s8197 + $0xc2] sm:$0xff]
      %v8599 = vld [vmem:[%s8197 + $0xca] sm:$0xff]
      %v8600 = vld [vmem:[%s8197 + $0xda] sm:$0xff]
      %v8601 = vld [vmem:[%s8197 + $0xe2] sm:$0xff]
      %v8602 = vld [vmem:[%s8197 + $0xf2] sm:$0xff]
      %v8603 = vld [vmem:[%s8197 + $0xfa] sm:$0xff]
      %v8604 = vld [vmem:[%s8197 + $0x10a] sm:$0xff]
      %v8605 = vld [vmem:[%s8197 + $0x112] sm:$0xff]
      %v8606 = vld [vmem:[%s8197 + $0x122] sm:$0xff]
      %v8607 = vld [vmem:[%s8197 + $0x12a] sm:$0xff]
      %v8608 = vld [vmem:[%s8197 + $0x13a] sm:$0xff]
      %v8609 = vld [vmem:[%s8197 + $0x142] sm:$0xff]
      %v8610 = vld [vmem:[%s8197 + $0x152] sm:$0xff]
      %v8611 = vld [vmem:[%s8197 + $0x15a] sm:$0xff]
      %v8612 = vld [vmem:[%s8197 + $0x16a] sm:$0xff]
      %v8613 = vld [vmem:[%s8197 + $0x172] sm:$0xff]
      %8614 = vst.msk [vmem:[#allocation6 + $0x10] sm:$0xff] %vm4086, %v8582
      %8615 = vst.msk [vmem:[#allocation6 + $0x28] sm:$0xff] %vm4086, %v8583
      %8616 = vst.msk [vmem:[#allocation6 + $0x40] sm:$0xff] %vm4086, %v8584
      %8617 = vst.msk [vmem:[#allocation6 + $0x58] sm:$0xff] %vm4086, %v8585
      %8618 = vst.msk [vmem:[#allocation6 + $0x70] sm:$0xff] %vm4086, %v8586
      %8619 = vst.msk [vmem:[#allocation6 + $0x88] sm:$0xff] %vm4086, %v8587
      %8620 = vst.msk [vmem:[#allocation6 + $0xa0] sm:$0xff] %vm4086, %v8588
      %8621 = vst.msk [vmem:[#allocation6 + $0xb8] sm:$0xff] %vm4086, %v8589
      %8622 = vst.msk [vmem:[#allocation6 + $0xd0] sm:$0xff] %vm4086, %v8590
      %8623 = vst.msk [vmem:[#allocation6 + $0xe8] sm:$0xff] %vm4086, %v8591
      %8624 = vst.msk [vmem:[#allocation6 + $0x100] sm:$0xff] %vm4086, %v8592
      %8625 = vst.msk [vmem:[#allocation6 + $0x118] sm:$0xff] %vm4086, %v8593
      %8626 = vst.msk [vmem:[#allocation6 + $0x130] sm:$0xff] %vm4086, %v8594
      %8627 = vst.msk [vmem:[#allocation6 + $0x148] sm:$0xff] %vm4086, %v8595
      %8628 = vst.msk [vmem:[#allocation6 + $0x160] sm:$0xff] %vm4086, %v8596
      %8629 = vst.msk [vmem:[#allocation6 + $0x178] sm:$0xff] %vm4086, %v8597
      %8630 = vst.msk [vmem:[#allocation6 + $0x190] sm:$0xff] %vm4086, %v8598
      %8631 = vst.msk [vmem:[#allocation6 + $0x1a8] sm:$0xff] %vm4086, %v8599
      %8632 = vst.msk [vmem:[#allocation6 + $0x1c0] sm:$0xff] %vm4086, %v8600
      %8633 = vst.msk [vmem:[#allocation6 + $0x1d8] sm:$0xff] %vm4086, %v8601
      %8634 = vst.msk [vmem:[#allocation6 + $0x1f0] sm:$0xff] %vm4086, %v8602
      %8635 = vst.msk [vmem:[#allocation6 + $0x208] sm:$0xff] %vm4086, %v8603
      %8636 = vst.msk [vmem:[#allocation6 + $0x220] sm:$0xff] %vm4086, %v8604
      %8637 = vst.msk [vmem:[#allocation6 + $0x238] sm:$0xff] %vm4086, %v8605
      %8638 = vst.msk [vmem:[#allocation6 + $0x250] sm:$0xff] %vm4086, %v8606
      %8639 = vst.msk [vmem:[#allocation6 + $0x268] sm:$0xff] %vm4086, %v8607
      %8640 = vst.msk [vmem:[#allocation6 + $0x280] sm:$0xff] %vm4086, %v8608
      %8641 = vst.msk [vmem:[#allocation6 + $0x298] sm:$0xff] %vm4086, %v8609
      %8642 = vst.msk [vmem:[#allocation6 + $0x2b0] sm:$0xff] %vm4086, %v8610
      %8643 = vst.msk [vmem:[#allocation6 + $0x2c8] sm:$0xff] %vm4086, %v8611
      %8644 = vst.msk [vmem:[#allocation6 + $0x2e0] sm:$0xff] %vm4086, %v8612
      %8645 = vst.msk [vmem:[#allocation6 + $0x2f8] sm:$0xff] %vm4086, %v8613
      %v8646 = vld [vmem:[#allocation6] sm:$0xff]
      %v8647 = vld [vmem:[#allocation6 + $0x8] sm:$0xff]
      %v8648 = vld [vmem:[#allocation6 + $0x10] sm:$0xff]
      %v8649 = vld [vmem:[#allocation6 + $0x18] sm:$0xff]
      %v8650 = vld [vmem:[#allocation6 + $0x20] sm:$0xff]
      %v8651 = vld [vmem:[#allocation6 + $0x28] sm:$0xff]
      %v8652 = vld [vmem:[#allocation6 + $0x30] sm:$0xff]
      %v8653 = vld [vmem:[#allocation6 + $0x38] sm:$0xff]
      %v8654 = vld [vmem:[#allocation6 + $0x40] sm:$0xff]
      %v8655 = vld [vmem:[#allocation6 + $0x48] sm:$0xff]
      %v8656 = vld [vmem:[#allocation6 + $0x50] sm:$0xff]
      %v8657 = vld [vmem:[#allocation6 + $0x58] sm:$0xff]
      %v8658 = vld [vmem:[#allocation6 + $0x60] sm:$0xff]
      %v8659 = vld [vmem:[#allocation6 + $0x68] sm:$0xff]
      %v8660 = vld [vmem:[#allocation6 + $0x70] sm:$0xff]
      %v8661 = vld [vmem:[#allocation6 + $0x78] sm:$0xff]
      %v8662 = vld [vmem:[#allocation6 + $0x80] sm:$0xff]
      %v8663 = vld [vmem:[#allocation6 + $0x88] sm:$0xff]
      %v8664 = vld [vmem:[#allocation6 + $0x90] sm:$0xff]
      %v8665 = vld [vmem:[#allocation6 + $0x98] sm:$0xff]
      %v8666 = vld [vmem:[#allocation6 + $0xa0] sm:$0xff]
      %v8667 = vld [vmem:[#allocation6 + $0xa8] sm:$0xff]
      %v8668 = vld [vmem:[#allocation6 + $0xb0] sm:$0xff]
      %v8669 = vld [vmem:[#allocation6 + $0xb8] sm:$0xff]
      %v8670 = vld [vmem:[#allocation6 + $0xc0] sm:$0xff]
      %v8671 = vld [vmem:[#allocation6 + $0xc8] sm:$0xff]
      %v8672 = vld [vmem:[#allocation6 + $0xd0] sm:$0xff]
      %v8673 = vld [vmem:[#allocation6 + $0xd8] sm:$0xff]
      %v8674 = vld [vmem:[#allocation6 + $0xe0] sm:$0xff]
      %v8675 = vld [vmem:[#allocation6 + $0xe8] sm:$0xff]
      %v8676 = vld [vmem:[#allocation6 + $0xf0] sm:$0xff]
      %v8677 = vld [vmem:[#allocation6 + $0xf8] sm:$0xff]
      %v8678 = vld [vmem:[#allocation6 + $0x100] sm:$0xff]
      %v8679 = vld [vmem:[#allocation6 + $0x108] sm:$0xff]
      %v8680 = vld [vmem:[#allocation6 + $0x110] sm:$0xff]
      %v8681 = vld [vmem:[#allocation6 + $0x118] sm:$0xff]
      %v8682 = vld [vmem:[#allocation6 + $0x120] sm:$0xff]
      %v8683 = vld [vmem:[#allocation6 + $0x128] sm:$0xff]
      %v8684 = vld [vmem:[#allocation6 + $0x130] sm:$0xff]
      %v8685 = vld [vmem:[#allocation6 + $0x138] sm:$0xff]
      %v8686 = vld [vmem:[#allocation6 + $0x140] sm:$0xff]
      %v8687 = vld [vmem:[#allocation6 + $0x148] sm:$0xff]
      %v8688 = vld [vmem:[#allocation6 + $0x150] sm:$0xff]
      %v8689 = vld [vmem:[#allocation6 + $0x158] sm:$0xff]
      %v8690 = vld [vmem:[#allocation6 + $0x160] sm:$0xff]
      %v8691 = vld [vmem:[#allocation6 + $0x168] sm:$0xff]
      %v8692 = vld [vmem:[#allocation6 + $0x170] sm:$0xff]
      %v8693 = vld [vmem:[#allocation6 + $0x178] sm:$0xff]
      %v8694 = vld [vmem:[#allocation6 + $0x180] sm:$0xff]
      %v8695 = vld [vmem:[#allocation6 + $0x188] sm:$0xff]
      %v8696 = vld [vmem:[#allocation6 + $0x190] sm:$0xff]
      %v8697 = vld [vmem:[#allocation6 + $0x198] sm:$0xff]
      %v8698 = vld [vmem:[#allocation6 + $0x1a0] sm:$0xff]
      %v8699 = vld [vmem:[#allocation6 + $0x1a8] sm:$0xff]
      %v8700 = vld [vmem:[#allocation6 + $0x1b0] sm:$0xff]
      %v8701 = vld [vmem:[#allocation6 + $0x1b8] sm:$0xff]
      %v8702 = vld [vmem:[#allocation6 + $0x1c0] sm:$0xff]
      %v8703 = vld [vmem:[#allocation6 + $0x1c8] sm:$0xff]
      %v8704 = vld [vmem:[#allocation6 + $0x1d0] sm:$0xff]
      %v8705 = vld [vmem:[#allocation6 + $0x1d8] sm:$0xff]
      %v8706 = vld [vmem:[#allocation6 + $0x1e0] sm:$0xff]
      %v8707 = vld [vmem:[#allocation6 + $0x1e8] sm:$0xff]
      %v8708 = vld [vmem:[#allocation6 + $0x1f0] sm:$0xff]
      %v8709 = vld [vmem:[#allocation6 + $0x1f8] sm:$0xff]
      %v8710 = vld [vmem:[#allocation6 + $0x200] sm:$0xff]
      %v8711 = vld [vmem:[#allocation6 + $0x208] sm:$0xff]
      %v8712 = vld [vmem:[#allocation6 + $0x210] sm:$0xff]
      %v8713 = vld [vmem:[#allocation6 + $0x218] sm:$0xff]
      %v8714 = vld [vmem:[#allocation6 + $0x220] sm:$0xff]
      %v8715 = vld [vmem:[#allocation6 + $0x228] sm:$0xff]
      %v8716 = vld [vmem:[#allocation6 + $0x230] sm:$0xff]
      %v8717 = vld [vmem:[#allocation6 + $0x238] sm:$0xff]
      %v8718 = vld [vmem:[#allocation6 + $0x240] sm:$0xff]
      %v8719 = vld [vmem:[#allocation6 + $0x248] sm:$0xff]
      %v8720 = vld [vmem:[#allocation6 + $0x250] sm:$0xff]
      %v8721 = vld [vmem:[#allocation6 + $0x258] sm:$0xff]
      %v8722 = vld [vmem:[#allocation6 + $0x260] sm:$0xff]
      %v8723 = vld [vmem:[#allocation6 + $0x268] sm:$0xff]
      %v8724 = vld [vmem:[#allocation6 + $0x270] sm:$0xff]
      %v8725 = vld [vmem:[#allocation6 + $0x278] sm:$0xff]
      %v8726 = vld [vmem:[#allocation6 + $0x280] sm:$0xff]
      %v8727 = vld [vmem:[#allocation6 + $0x288] sm:$0xff]
      %v8728 = vld [vmem:[#allocation6 + $0x290] sm:$0xff]
      %v8729 = vld [vmem:[#allocation6 + $0x298] sm:$0xff]
      %v8730 = vld [vmem:[#allocation6 + $0x2a0] sm:$0xff]
      %v8731 = vld [vmem:[#allocation6 + $0x2a8] sm:$0xff]
      %v8732 = vld [vmem:[#allocation6 + $0x2b0] sm:$0xff]
      %v8733 = vld [vmem:[#allocation6 + $0x2b8] sm:$0xff]
      %v8734 = vld [vmem:[#allocation6 + $0x2c0] sm:$0xff]
      %v8735 = vld [vmem:[#allocation6 + $0x2c8] sm:$0xff]
      %v8736 = vld [vmem:[#allocation6 + $0x2d0] sm:$0xff]
      %v8737 = vld [vmem:[#allocation6 + $0x2d8] sm:$0xff]
      %v8738 = vld [vmem:[#allocation6 + $0x2e0] sm:$0xff]
      %v8739 = vld [vmem:[#allocation6 + $0x2e8] sm:$0xff]
      %v8740 = vld [vmem:[#allocation6 + $0x2f0] sm:$0xff]
      %v8741 = vld [vmem:[#allocation6 + $0x2f8] sm:$0xff]
      %v8742 = vpack.c.bf16 %v8649, %v8646
      %v8743 = vpack.c.bf16 %v8650, %v8647
      %v8744 = vpack.c.bf16 %v8651, %v8648
      %v8745 = vpack.c.bf16 %v8655, %v8652
      %v8746 = vpack.c.bf16 %v8656, %v8653
      %v8747 = vpack.c.bf16 %v8657, %v8654
      %v8748 = vpack.c.bf16 %v8661, %v8658
      %v8749 = vpack.c.bf16 %v8662, %v8659
      %v8750 = vpack.c.bf16 %v8663, %v8660
      %v8751 = vpack.c.bf16 %v8667, %v8664
      %v8752 = vpack.c.bf16 %v8668, %v8665
      %v8753 = vpack.c.bf16 %v8669, %v8666
      %v8754 = vpack.c.bf16 %v8673, %v8670
      %v8755 = vpack.c.bf16 %v8674, %v8671
      %v8756 = vpack.c.bf16 %v8675, %v8672
      %v8757 = vpack.c.bf16 %v8679, %v8676
      %v8758 = vpack.c.bf16 %v8680, %v8677
      %v8759 = vpack.c.bf16 %v8681, %v8678
      %v8760 = vpack.c.bf16 %v8685, %v8682
      %v8761 = vpack.c.bf16 %v8686, %v8683
      %v8762 = vpack.c.bf16 %v8687, %v8684
      %v8763 = vpack.c.bf16 %v8691, %v8688
      %v8764 = vpack.c.bf16 %v8692, %v8689
      %v8765 = vpack.c.bf16 %v8693, %v8690
      %v8766 = vpack.c.bf16 %v8697, %v8694
      %v8767 = vpack.c.bf16 %v8698, %v8695
      %v8768 = vpack.c.bf16 %v8699, %v8696
      %v8769 = vpack.c.bf16 %v8703, %v8700
      %v8770 = vpack.c.bf16 %v8704, %v8701
      %v8771 = vpack.c.bf16 %v8705, %v8702
      %v8772 = vpack.c.bf16 %v8709, %v8706
      %v8773 = vpack.c.bf16 %v8710, %v8707
      %v8774 = vpack.c.bf16 %v8711, %v8708
      %v8775 = vpack.c.bf16 %v8715, %v8712
      %v8776 = vpack.c.bf16 %v8716, %v8713
      %v8777 = vpack.c.bf16 %v8717, %v8714
      %v8778 = vpack.c.bf16 %v8721, %v8718
      %v8779 = vpack.c.bf16 %v8722, %v8719
      %v8780 = vpack.c.bf16 %v8723, %v8720
      %v8781 = vpack.c.bf16 %v8727, %v8724
      %v8782 = vpack.c.bf16 %v8728, %v8725
      %v8783 = vpack.c.bf16 %v8729, %v8726
      %v8784 = vpack.c.bf16 %v8733, %v8730
      %v8785 = vpack.c.bf16 %v8734, %v8731
      %v8786 = vpack.c.bf16 %v8735, %v8732
      %v8787 = vpack.c.bf16 %v8739, %v8736
      %v8788 = vpack.c.bf16 %v8740, %v8737
      %v8789 = vpack.c.bf16 %v8741, %v8738
      %v8790 = vld [vmem:[%s9] sm:$0xf]
      %v8791 = vld [vmem:[%s9 + $0x4] sm:$0xf]
      %v8792 = vld [vmem:[%s9 + $0x8] sm:$0xf]
      %v8793 = vld [vmem:[%s9 + $0xc] sm:$0xf]
      %v8794 = vld [vmem:[%s9 + $0x10] sm:$0xf]
      %v8795 = vld [vmem:[%s9 + $0x14] sm:$0xf]
      %v8796 = vld [vmem:[%s9 + $0x18] sm:$0xf]
      %v8797 = vld [vmem:[%s9 + $0x1c] sm:$0xf]
      %v8798 = vld [vmem:[%s9 + $0x20] sm:$0xf]
      %v8799 = vld [vmem:[%s9 + $0x24] sm:$0xf]
      %v8800 = vld [vmem:[%s9 + $0x28] sm:$0xf]
      %v8801 = vld [vmem:[%s9 + $0x2c] sm:$0xf]
      %v8802 = vld [vmem:[%s9 + $0x30] sm:$0xf]
      %v8803 = vld [vmem:[%s9 + $0x34] sm:$0xf]
      %v8804 = vld [vmem:[%s9 + $0x38] sm:$0xf]
      %v8805 = vld [vmem:[%s9 + $0x3c] sm:$0xf]
      %v8806 = vld [vmem:[%s9 + $0x40] sm:$0xf]
      %v8807 = vld [vmem:[%s9 + $0x44] sm:$0xf]
      %v8808 = vld [vmem:[%s9 + $0x48] sm:$0xf]
      %v8809 = vld [vmem:[%s9 + $0x4c] sm:$0xf]
      %v8810 = vld [vmem:[%s9 + $0x50] sm:$0xf]
      %v8811 = vld [vmem:[%s9 + $0x54] sm:$0xf]
      %v8812 = vld [vmem:[%s9 + $0x58] sm:$0xf]
      %v8813 = vld [vmem:[%s9 + $0x5c] sm:$0xf]
      %v8814 = vld [vmem:[%s9 + $0x60] sm:$0xf]
      %v8815 = vld [vmem:[%s9 + $0x64] sm:$0xf]
      %v8816 = vld [vmem:[%s9 + $0x68] sm:$0xf]
      %v8817 = vld [vmem:[%s9 + $0x6c] sm:$0xf]
      %v8818 = vld [vmem:[%s9 + $0x70] sm:$0xf]
      %v8819 = vld [vmem:[%s9 + $0x74] sm:$0xf]
      %v8820 = vld [vmem:[%s9 + $0x78] sm:$0xf]
      %v8821 = vld [vmem:[%s9 + $0x7c] sm:$0xf]
      %v8822 = vld [vmem:[%s9 + $0x80] sm:$0xf]
      %v8823 = vld [vmem:[%s9 + $0x84] sm:$0xf]
      %v8824 = vld [vmem:[%s9 + $0x88] sm:$0xf]
      %v8825 = vld [vmem:[%s9 + $0x8c] sm:$0xf]
      %v8826 = vld [vmem:[#allocation7] sm:$0x1]
      %v8828 = vlaneseq
      %v8829 = vshrl.u32 %v8828, 7
      %v8830 = vsub.s32 0, %v8829
      %v8831 = vrot.slane %v8826, %v8830
      %v8869 = vunpack.c.l.b16 %v8790
      %v8870 = vunpack.c.l.b16 %v8791
      %v8871 = vunpack.c.l.b16 %v8792
      %v8872 = vunpack.c.l.b16 %v8793
      %v8873 = vunpack.c.l.b16 %v8794
      %v8874 = vunpack.c.l.b16 %v8795
      %v8875 = vunpack.c.l.b16 %v8796
      %v8876 = vunpack.c.l.b16 %v8797
      %v8877 = vunpack.c.l.b16 %v8798
      %v8878 = vunpack.c.l.b16 %v8799
      %v8879 = vunpack.c.l.b16 %v8800
      %v8880 = vunpack.c.l.b16 %v8801
      %v8881 = vunpack.c.l.b16 %v8802
      %v8882 = vunpack.c.l.b16 %v8803
      %v8883 = vunpack.c.l.b16 %v8804
      %v8884 = vunpack.c.l.b16 %v8805
      %v8885 = vunpack.c.l.b16 %v8806
      %v8886 = vunpack.c.l.b16 %v8807
      %v8887 = vunpack.c.l.b16 %v8808
      %v8888 = vunpack.c.l.b16 %v8809
      %v8889 = vunpack.c.l.b16 %v8810
      %v8890 = vunpack.c.l.b16 %v8811
      %v8891 = vunpack.c.l.b16 %v8812
      %v8892 = vunpack.c.l.b16 %v8813
      %v8893 = vunpack.c.l.b16 %v8814
      %v8894 = vunpack.c.l.b16 %v8815
      %v8895 = vunpack.c.l.b16 %v8816
      %v8896 = vunpack.c.l.b16 %v8817
      %v8897 = vunpack.c.l.b16 %v8818
      %v8898 = vunpack.c.l.b16 %v8819
      %v8899 = vunpack.c.l.b16 %v8820
      %v8900 = vunpack.c.l.b16 %v8821
      %v8901 = vunpack.c.l.b16 %v8822
      %v8902 = vunpack.c.l.b16 %v8823
      %v8903 = vunpack.c.l.b16 %v8824
      %v8904 = vunpack.c.l.b16 %v8825
      %v8905 = vpack.c.b16 %v8870, %v8869
      %v8906 = vpack.c.b16 %v8872, %v8871
      %v8907 = vpack.c.b16 %v8874, %v8873
      %v8908 = vpack.c.b16 %v8876, %v8875
      %v8909 = vpack.c.b16 %v8878, %v8877
      %v8910 = vpack.c.b16 %v8880, %v8879
      %v8911 = vpack.c.b16 %v8882, %v8881
      %v8912 = vpack.c.b16 %v8884, %v8883
      %v8913 = vpack.c.b16 %v8886, %v8885
      %v8914 = vpack.c.b16 %v8888, %v8887
      %v8915 = vpack.c.b16 %v8890, %v8889
      %v8916 = vpack.c.b16 %v8892, %v8891
      %v8917 = vpack.c.b16 %v8894, %v8893
      %v8918 = vpack.c.b16 %v8896, %v8895
      %v8919 = vpack.c.b16 %v8898, %v8897
      %v8920 = vpack.c.b16 %v8900, %v8899
      %v8921 = vpack.c.b16 %v8902, %v8901
      %v8922 = vpack.c.b16 %v8904, %v8903
      %v8942 = vsel %vm4086, %v8744, 0
      %v8945 = vsel %vm4086, %v8747, 0
      %v8948 = vsel %vm4086, %v8750, 0
      %v8951 = vsel %vm4086, %v8753, 0
      %v8954 = vsel %vm4086, %v8756, 0
      %v8957 = vsel %vm4086, %v8759, 0
      %v8960 = vsel %vm4086, %v8762, 0
      %v8963 = vsel %vm4086, %v8765, 0
      %v8966 = vsel %vm4086, %v8768, 0
      %v8969 = vsel %vm4086, %v8771, 0
      %v8972 = vsel %vm4086, %v8774, 0
      %v8975 = vsel %vm4086, %v8777, 0
      %v8978 = vsel %vm4086, %v8780, 0
      %v8981 = vsel %vm4086, %v8783, 0
      %v8984 = vsel %vm4086, %v8786, 0
      %v8987 = vsel %vm4086, %v8789, 0
      %8989 = vmatprep.subr.bf16.mxu0 0
      %8990 = vmatpush1.bf16.msra.mxu0 %v8912
      %8991 = vmatprep.subr.bf16.mxu0 0
      %8992 = vmatpush1.bf16.msra.mxu0 %v8911
      %8993 = vmatprep.subr.bf16.mxu0 0
      %8994 = vmatpush1.bf16.msra.mxu0 %v8910
      %8995 = vmatprep.subr.bf16.mxu0 0
      %8996 = vmatpush1.bf16.msra.mxu0 %v8909
      %8997 = vmatprep.subr.bf16.mxu0 0
      %8998 = vmatpush1.bf16.msra.mxu0 %v8908
      %8999 = vmatprep.subr.bf16.mxu0 0
      %9000 = vmatpush1.bf16.msra.mxu0 %v8907
      %9001 = vmatprep.subr.bf16.mxu0 0
      %9002 = vmatpush1.bf16.msra.mxu0 %v8906
      %9003 = vmatprep.subr.bf16.mxu0 0
      %9004 = vmatpush1.bf16.msra.mxu0 %v8905
      %9005 = vmatprep.subr.bf16.mxu0 0
      %9006 = vmatpush2.bf16.msra.mxu0 %v8920
      %9007 = vmatprep.subr.bf16.mxu0 0
      %9008 = vmatpush2.bf16.msra.mxu0 %v8919
      %9009 = vmatprep.subr.bf16.mxu0 0
      %9010 = vmatpush2.bf16.msra.mxu0 %v8918
      %9011 = vmatprep.subr.bf16.mxu0 0
      %9012 = vmatpush2.bf16.msra.mxu0 %v8917
      %9013 = vmatprep.subr.bf16.mxu0 0
      %9014 = vmatpush2.bf16.msra.mxu0 %v8916
      %9015 = vmatprep.subr.bf16.mxu0 0
      %9016 = vmatpush2.bf16.msra.mxu0 %v8915
      %9017 = vmatprep.subr.bf16.mxu0 0
      %9018 = vmatpush2.bf16.msra.mxu0 %v8914
      %9019 = vmatprep.subr.bf16.mxu0 0
      %9020 = vmatpush2.bf16.msra.mxu0 %v8913
      %9021 = vmatprep.mubr.bf16.mxu0 %v8743
      %9022 = vmatmul.mubr.bf16.gmra.mxu0 %v8742
      %v9023 = vpop.f32.mrf.mxu0
      %v9024 = vadd.f32 %v8831, %v9023
      %v9025 = vpop.f32.mrf.mxu0
      %v9026 = vpop.f32.mrf.mxu0
      %v9027 = vadd.f32 %v8831, %v9026
      %v9028 = vpop.f32.mrf.mxu0
      %9029 = vmatprep.mubr.bf16.mxu0 %v8746
      %9030 = vmatmul.mubr.bf16.gmra.mxu0 %v8745
      %v9031 = vpop.f32.mrf.mxu0
      %v9032 = vadd.f32 %v8831, %v9031
      %v9033 = vpop.f32.mrf.mxu0
      %v9034 = vpop.f32.mrf.mxu0
      %v9035 = vadd.f32 %v8831, %v9034
      %v9036 = vpop.f32.mrf.mxu0
      %9037 = vmatprep.mubr.bf16.mxu0 %v8749
      %9038 = vmatmul.mubr.bf16.gmra.mxu0 %v8748
      %v9039 = vpop.f32.mrf.mxu0
      %v9040 = vadd.f32 %v8831, %v9039
      %v9041 = vpop.f32.mrf.mxu0
      %v9042 = vpop.f32.mrf.mxu0
      %v9043 = vadd.f32 %v8831, %v9042
      %v9044 = vpop.f32.mrf.mxu0
      %9045 = vmatprep.mubr.bf16.mxu0 %v8752
      %9046 = vmatmul.mubr.bf16.gmra.mxu0 %v8751
      %v9047 = vpop.f32.mrf.mxu0
      %v9048 = vadd.f32 %v8831, %v9047
      %v9049 = vpop.f32.mrf.mxu0
      %v9050 = vpop.f32.mrf.mxu0
      %v9051 = vadd.f32 %v8831, %v9050
      %v9052 = vpop.f32.mrf.mxu0
      %9053 = vmatprep.mubr.bf16.mxu0 %v8755
      %9054 = vmatmul.mubr.bf16.gmra.mxu0 %v8754
      %v9055 = vpop.f32.mrf.mxu0
      %v9056 = vadd.f32 %v8831, %v9055
      %v9057 = vpop.f32.mrf.mxu0
      %v9058 = vpop.f32.mrf.mxu0
      %v9059 = vadd.f32 %v8831, %v9058
      %v9060 = vpop.f32.mrf.mxu0
      %9061 = vmatprep.mubr.bf16.mxu0 %v8758
      %9062 = vmatmul.mubr.bf16.gmra.mxu0 %v8757
      %v9063 = vpop.f32.mrf.mxu0
      %v9064 = vadd.f32 %v8831, %v9063
      %v9065 = vpop.f32.mrf.mxu0
      %v9066 = vpop.f32.mrf.mxu0
      %v9067 = vadd.f32 %v8831, %v9066
      %v9068 = vpop.f32.mrf.mxu0
      %9069 = vmatprep.mubr.bf16.mxu0 %v8761
      %9070 = vmatmul.mubr.bf16.gmra.mxu0 %v8760
      %v9071 = vpop.f32.mrf.mxu0
      %v9072 = vadd.f32 %v8831, %v9071
      %v9073 = vpop.f32.mrf.mxu0
      %v9074 = vpop.f32.mrf.mxu0
      %v9075 = vadd.f32 %v8831, %v9074
      %v9076 = vpop.f32.mrf.mxu0
      %9077 = vmatprep.mubr.bf16.mxu0 %v8764
      %9078 = vmatmul.mubr.bf16.gmra.mxu0 %v8763
      %v9079 = vpop.f32.mrf.mxu0
      %v9080 = vadd.f32 %v8831, %v9079
      %v9081 = vpop.f32.mrf.mxu0
      %v9082 = vpop.f32.mrf.mxu0
      %v9083 = vadd.f32 %v8831, %v9082
      %v9084 = vpop.f32.mrf.mxu0
      %9085 = vmatprep.mubr.bf16.mxu0 %v8767
      %9086 = vmatmul.mubr.bf16.gmra.mxu0 %v8766
      %v9087 = vpop.f32.mrf.mxu0
      %v9088 = vadd.f32 %v8831, %v9087
      %v9089 = vpop.f32.mrf.mxu0
      %v9090 = vpop.f32.mrf.mxu0
      %v9091 = vadd.f32 %v8831, %v9090
      %v9092 = vpop.f32.mrf.mxu0
      %9093 = vmatprep.mubr.bf16.mxu0 %v8770
      %9094 = vmatmul.mubr.bf16.gmra.mxu0 %v8769
      %v9095 = vpop.f32.mrf.mxu0
      %v9096 = vadd.f32 %v8831, %v9095
      %v9097 = vpop.f32.mrf.mxu0
      %v9098 = vpop.f32.mrf.mxu0
      %v9099 = vadd.f32 %v8831, %v9098
      %v9100 = vpop.f32.mrf.mxu0
      %9101 = vmatprep.mubr.bf16.mxu0 %v8773
      %9102 = vmatmul.mubr.bf16.gmra.mxu0 %v8772
      %v9103 = vpop.f32.mrf.mxu0
      %v9104 = vadd.f32 %v8831, %v9103
      %v9105 = vpop.f32.mrf.mxu0
      %v9106 = vpop.f32.mrf.mxu0
      %v9107 = vadd.f32 %v8831, %v9106
      %v9108 = vpop.f32.mrf.mxu0
      %9109 = vmatprep.mubr.bf16.mxu0 %v8776
      %9110 = vmatmul.mubr.bf16.gmra.mxu0 %v8775
      %v9111 = vpop.f32.mrf.mxu0
      %v9112 = vadd.f32 %v8831, %v9111
      %v9113 = vpop.f32.mrf.mxu0
      %v9114 = vpop.f32.mrf.mxu0
      %v9115 = vadd.f32 %v8831, %v9114
      %v9116 = vpop.f32.mrf.mxu0
      %9117 = vmatprep.mubr.bf16.mxu0 %v8779
      %9118 = vmatmul.mubr.bf16.gmra.mxu0 %v8778
      %v9119 = vpop.f32.mrf.mxu0
      %v9120 = vadd.f32 %v8831, %v9119
      %v9121 = vpop.f32.mrf.mxu0
      %v9122 = vpop.f32.mrf.mxu0
      %v9123 = vadd.f32 %v8831, %v9122
      %v9124 = vpop.f32.mrf.mxu0
      %9125 = vmatprep.mubr.bf16.mxu0 %v8782
      %9126 = vmatmul.mubr.bf16.gmra.mxu0 %v8781
      %v9127 = vpop.f32.mrf.mxu0
      %v9128 = vadd.f32 %v8831, %v9127
      %v9129 = vpop.f32.mrf.mxu0
      %v9130 = vpop.f32.mrf.mxu0
      %v9131 = vadd.f32 %v8831, %v9130
      %v9132 = vpop.f32.mrf.mxu0
      %9133 = vmatprep.mubr.bf16.mxu0 %v8785
      %9134 = vmatmul.mubr.bf16.gmra.mxu0 %v8784
      %v9135 = vpop.f32.mrf.mxu0
      %v9136 = vadd.f32 %v8831, %v9135
      %v9137 = vpop.f32.mrf.mxu0
      %v9138 = vpop.f32.mrf.mxu0
      %v9139 = vadd.f32 %v8831, %v9138
      %v9140 = vpop.f32.mrf.mxu0
      %9141 = vmatprep.mubr.bf16.mxu0 %v8788
      %9142 = vmatmul.mubr.bf16.gmra.mxu0 %v8787
      %v9143 = vpop.f32.mrf.mxu0
      %v9144 = vadd.f32 %v8831, %v9143
      %v9145 = vpop.f32.mrf.mxu0
      %v9146 = vpop.f32.mrf.mxu0
      %v9147 = vadd.f32 %v8831, %v9146
      %v9148 = vpop.f32.mrf.mxu0
      %9149 = vdwg.mxu0
      %9150 = vmatprep.subr.bf16.mxu0 0
      %9151 = vmatpush1.bf16.msra.mxu0 0
      %9152 = vmatprep.subr.bf16.mxu0 0
      %9153 = vmatpush1.bf16.msra.mxu0 0
      %9154 = vmatprep.subr.bf16.mxu0 0
      %9155 = vmatpush1.bf16.msra.mxu0 0
      %9156 = vmatprep.subr.bf16.mxu0 0
      %9157 = vmatpush1.bf16.msra.mxu0 0
      %9158 = vmatprep.subr.bf16.mxu0 0
      %9159 = vmatpush1.bf16.msra.mxu0 0
      %9160 = vmatprep.subr.bf16.mxu0 0
      %9161 = vmatpush1.bf16.msra.mxu0 0
      %9162 = vmatprep.subr.bf16.mxu0 0
      %9163 = vmatpush1.bf16.msra.mxu0 %v8922
      %9164 = vmatprep.subr.bf16.mxu0 0
      %9165 = vmatpush1.bf16.msra.mxu0 %v8921
      %9166 = vmatprep.subr.bf16.mxu0 0
      %9167 = vmatpush2.bf16.msra.mxu0 0
      %9168 = vmatprep.subr.bf16.mxu0 0
      %9169 = vmatpush2.bf16.msra.mxu0 0
      %9170 = vmatprep.subr.bf16.mxu0 0
      %9171 = vmatpush2.bf16.msra.mxu0 0
      %9172 = vmatprep.subr.bf16.mxu0 0
      %9173 = vmatpush2.bf16.msra.mxu0 0
      %9174 = vmatprep.subr.bf16.mxu0 0
      %9175 = vmatpush2.bf16.msra.mxu0 0
      %9176 = vmatprep.subr.bf16.mxu0 0
      %9177 = vmatpush2.bf16.msra.mxu0 0
      %9178 = vmatprep.subr.bf16.mxu0 0
      %9179 = vmatpush2.bf16.msra.mxu0 0
      %9180 = vmatprep.subr.bf16.mxu0 0
      %9181 = vmatpush2.bf16.msra.mxu0 0
      %9182 = vmatprep.mubr.bf16.mxu0 0
      %9183 = vmatmul.mubr.bf16.gmra.mxu0 %v8942
      %v9184 = vpop.f32.mrf.mxu0
      %v9185 = vadd.f32 %v9024, %v9184
      %v9186 = vpop.f32.mrf.mxu0
      %v9187 = vpop.f32.mrf.mxu0
      %v9188 = vadd.f32 %v9027, %v9187
      %v9189 = vpop.f32.mrf.mxu0
      %9190 = vmatprep.mubr.bf16.mxu0 0
      %9191 = vmatmul.mubr.bf16.gmra.mxu0 %v8945
      %v9192 = vpop.f32.mrf.mxu0
      %v9193 = vadd.f32 %v9032, %v9192
      %v9194 = vpop.f32.mrf.mxu0
      %v9195 = vpop.f32.mrf.mxu0
      %v9196 = vadd.f32 %v9035, %v9195
      %v9197 = vpop.f32.mrf.mxu0
      %9198 = vmatprep.mubr.bf16.mxu0 0
      %9199 = vmatmul.mubr.bf16.gmra.mxu0 %v8948
      %v9200 = vpop.f32.mrf.mxu0
      %v9201 = vadd.f32 %v9040, %v9200
      %v9202 = vpop.f32.mrf.mxu0
      %v9203 = vpop.f32.mrf.mxu0
      %v9204 = vadd.f32 %v9043, %v9203
      %v9205 = vpop.f32.mrf.mxu0
      %9206 = vmatprep.mubr.bf16.mxu0 0
      %9207 = vmatmul.mubr.bf16.gmra.mxu0 %v8951
      %v9208 = vpop.f32.mrf.mxu0
      %v9209 = vadd.f32 %v9048, %v9208
      %v9210 = vpop.f32.mrf.mxu0
      %v9211 = vpop.f32.mrf.mxu0
      %v9212 = vadd.f32 %v9051, %v9211
      %v9213 = vpop.f32.mrf.mxu0
      %9214 = vmatprep.mubr.bf16.mxu0 0
      %9215 = vmatmul.mubr.bf16.gmra.mxu0 %v8954
      %v9216 = vpop.f32.mrf.mxu0
      %v9217 = vadd.f32 %v9056, %v9216
      %v9218 = vpop.f32.mrf.mxu0
      %v9219 = vpop.f32.mrf.mxu0
      %v9220 = vadd.f32 %v9059, %v9219
      %v9221 = vpop.f32.mrf.mxu0
      %9222 = vmatprep.mubr.bf16.mxu0 0
      %9223 = vmatmul.mubr.bf16.gmra.mxu0 %v8957
      %v9224 = vpop.f32.mrf.mxu0
      %v9225 = vadd.f32 %v9064, %v9224
      %v9226 = vpop.f32.mrf.mxu0
      %v9227 = vpop.f32.mrf.mxu0
      %v9228 = vadd.f32 %v9067, %v9227
      %v9229 = vpop.f32.mrf.mxu0
      %9230 = vmatprep.mubr.bf16.mxu0 0
      %9231 = vmatmul.mubr.bf16.gmra.mxu0 %v8960
      %v9232 = vpop.f32.mrf.mxu0
      %v9233 = vadd.f32 %v9072, %v9232
      %v9234 = vpop.f32.mrf.mxu0
      %v9235 = vpop.f32.mrf.mxu0
      %v9236 = vadd.f32 %v9075, %v9235
      %v9237 = vpop.f32.mrf.mxu0
      %9238 = vmatprep.mubr.bf16.mxu0 0
      %9239 = vmatmul.mubr.bf16.gmra.mxu0 %v8963
      %v9240 = vpop.f32.mrf.mxu0
      %v9241 = vadd.f32 %v9080, %v9240
      %v9242 = vpop.f32.mrf.mxu0
      %v9243 = vpop.f32.mrf.mxu0
      %v9244 = vadd.f32 %v9083, %v9243
      %v9245 = vpop.f32.mrf.mxu0
      %9246 = vmatprep.mubr.bf16.mxu0 0
      %9247 = vmatmul.mubr.bf16.gmra.mxu0 %v8966
      %v9248 = vpop.f32.mrf.mxu0
      %v9249 = vadd.f32 %v9088, %v9248
      %v9250 = vpop.f32.mrf.mxu0
      %v9251 = vpop.f32.mrf.mxu0
      %v9252 = vadd.f32 %v9091, %v9251
      %v9253 = vpop.f32.mrf.mxu0
      %9254 = vmatprep.mubr.bf16.mxu0 0
      %9255 = vmatmul.mubr.bf16.gmra.mxu0 %v8969
      %v9256 = vpop.f32.mrf.mxu0
      %v9257 = vadd.f32 %v9096, %v9256
      %v9258 = vpop.f32.mrf.mxu0
      %v9259 = vpop.f32.mrf.mxu0
      %v9260 = vadd.f32 %v9099, %v9259
      %v9261 = vpop.f32.mrf.mxu0
      %9262 = vmatprep.mubr.bf16.mxu0 0
      %9263 = vmatmul.mubr.bf16.gmra.mxu0 %v8972
      %v9264 = vpop.f32.mrf.mxu0
      %v9265 = vadd.f32 %v9104, %v9264
      %v9266 = vpop.f32.mrf.mxu0
      %v9267 = vpop.f32.mrf.mxu0
      %v9268 = vadd.f32 %v9107, %v9267
      %v9269 = vpop.f32.mrf.mxu0
      %9270 = vmatprep.mubr.bf16.mxu0 0
      %9271 = vmatmul.mubr.bf16.gmra.mxu0 %v8975
      %v9272 = vpop.f32.mrf.mxu0
      %v9273 = vadd.f32 %v9112, %v9272
      %v9274 = vpop.f32.mrf.mxu0
      %v9275 = vpop.f32.mrf.mxu0
      %v9276 = vadd.f32 %v9115, %v9275
      %v9277 = vpop.f32.mrf.mxu0
      %9278 = vmatprep.mubr.bf16.mxu0 0
      %9279 = vmatmul.mubr.bf16.gmra.mxu0 %v8978
      %v9280 = vpop.f32.mrf.mxu0
      %v9281 = vadd.f32 %v9120, %v9280
      %v9282 = vpop.f32.mrf.mxu0
      %v9283 = vpop.f32.mrf.mxu0
      %v9284 = vadd.f32 %v9123, %v9283
      %v9285 = vpop.f32.mrf.mxu0
      %9286 = vmatprep.mubr.bf16.mxu0 0
      %9287 = vmatmul.mubr.bf16.gmra.mxu0 %v8981
      %v9288 = vpop.f32.mrf.mxu0
      %v9289 = vadd.f32 %v9128, %v9288
      %v9290 = vpop.f32.mrf.mxu0
      %v9291 = vpop.f32.mrf.mxu0
      %v9292 = vadd.f32 %v9131, %v9291
      %v9293 = vpop.f32.mrf.mxu0
      %9294 = vmatprep.mubr.bf16.mxu0 0
      %9295 = vmatmul.mubr.bf16.gmra.mxu0 %v8984
      %v9296 = vpop.f32.mrf.mxu0
      %v9297 = vadd.f32 %v9136, %v9296
      %v9298 = vpop.f32.mrf.mxu0
      %v9299 = vpop.f32.mrf.mxu0
      %v9300 = vadd.f32 %v9139, %v9299
      %v9301 = vpop.f32.mrf.mxu0
      %9302 = vmatprep.mubr.bf16.mxu0 0
      %9303 = vmatmul.mubr.bf16.gmra.mxu0 %v8987
      %v9304 = vpop.f32.mrf.mxu0
      %v9305 = vadd.f32 %v9144, %v9304
      %v9306 = vpop.f32.mrf.mxu0
      %v9307 = vpop.f32.mrf.mxu0
      %v9308 = vadd.f32 %v9147, %v9307
      %v9309 = vpop.f32.mrf.mxu0
      %9310 = vdwg.mxu0
      %v9311 = vxor.u32 %v9185, 2147483648
      %v9312 = vxor.u32 %v9188, 2147483648
      %v9313 = vxor.u32 %v9193, 2147483648
      %v9314 = vxor.u32 %v9196, 2147483648
      %v9315 = vxor.u32 %v9201, 2147483648
      %v9316 = vxor.u32 %v9204, 2147483648
      %v9317 = vxor.u32 %v9209, 2147483648
      %v9318 = vxor.u32 %v9212, 2147483648
      %v9319 = vxor.u32 %v9217, 2147483648
      %v9320 = vxor.u32 %v9220, 2147483648
      %v9321 = vxor.u32 %v9225, 2147483648
      %v9322 = vxor.u32 %v9228, 2147483648
      %v9323 = vxor.u32 %v9233, 2147483648
      %v9324 = vxor.u32 %v9236, 2147483648
      %v9325 = vxor.u32 %v9241, 2147483648
      %v9326 = vxor.u32 %v9244, 2147483648
      %v9327 = vxor.u32 %v9249, 2147483648
      %v9328 = vxor.u32 %v9252, 2147483648
      %v9329 = vxor.u32 %v9257, 2147483648
      %v9330 = vxor.u32 %v9260, 2147483648
      %v9331 = vxor.u32 %v9265, 2147483648
      %v9332 = vxor.u32 %v9268, 2147483648
      %v9333 = vxor.u32 %v9273, 2147483648
      %v9334 = vxor.u32 %v9276, 2147483648
      %v9335 = vxor.u32 %v9281, 2147483648
      %v9336 = vxor.u32 %v9284, 2147483648
      %v9337 = vxor.u32 %v9289, 2147483648
      %v9338 = vxor.u32 %v9292, 2147483648
      %v9339 = vxor.u32 %v9297, 2147483648
      %v9340 = vxor.u32 %v9300, 2147483648
      %v9341 = vxor.u32 %v9305, 2147483648
      %v9342 = vxor.u32 %v9308, 2147483648
      %v9343 = vmul.f32 %v9311, 1.442695
      %v9344 = vpow.pop %v9343
      %v9345 = vmul.f32 %v9312, 1.442695
      %v9346 = vpow.pop %v9345
      %v9347 = vmul.f32 %v9313, 1.442695
      %v9348 = vpow.pop %v9347
      %v9349 = vmul.f32 %v9314, 1.442695
      %v9350 = vpow.pop %v9349
      %v9351 = vmul.f32 %v9315, 1.442695
      %v9352 = vpow.pop %v9351
      %v9353 = vmul.f32 %v9316, 1.442695
      %v9354 = vpow.pop %v9353
      %v9355 = vmul.f32 %v9317, 1.442695
      %v9356 = vpow.pop %v9355
      %v9357 = vmul.f32 %v9318, 1.442695
      %v9358 = vpow.pop %v9357
      %v9359 = vmul.f32 %v9319, 1.442695
      %v9360 = vpow.pop %v9359
      %v9361 = vmul.f32 %v9320, 1.442695
      %v9362 = vpow.pop %v9361
      %v9363 = vmul.f32 %v9321, 1.442695
      %v9364 = vpow.pop %v9363
      %v9365 = vmul.f32 %v9322, 1.442695
      %v9366 = vpow.pop %v9365
      %v9367 = vmul.f32 %v9323, 1.442695
      %v9368 = vpow.pop %v9367
      %v9369 = vmul.f32 %v9324, 1.442695
      %v9370 = vpow.pop %v9369
      %v9371 = vmul.f32 %v9325, 1.442695
      %v9372 = vpow.pop %v9371
      %v9373 = vmul.f32 %v9326, 1.442695
      %v9374 = vpow.pop %v9373
      %v9375 = vmul.f32 %v9327, 1.442695
      %v9376 = vpow.pop %v9375
      %v9377 = vmul.f32 %v9328, 1.442695
      %v9378 = vpow.pop %v9377
      %v9379 = vmul.f32 %v9329, 1.442695
      %v9380 = vpow.pop %v9379
      %v9381 = vmul.f32 %v9330, 1.442695
      %v9382 = vpow.pop %v9381
      %v9383 = vmul.f32 %v9331, 1.442695
      %v9384 = vpow.pop %v9383
      %v9385 = vmul.f32 %v9332, 1.442695
      %v9386 = vpow.pop %v9385
      %v9387 = vmul.f32 %v9333, 1.442695
      %v9388 = vpow.pop %v9387
      %v9389 = vmul.f32 %v9334, 1.442695
      %v9390 = vpow.pop %v9389
      %v9391 = vmul.f32 %v9335, 1.442695
      %v9392 = vpow.pop %v9391
      %v9393 = vmul.f32 %v9336, 1.442695
      %v9394 = vpow.pop %v9393
      %v9395 = vmul.f32 %v9337, 1.442695
      %v9396 = vpow.pop %v9395
      %v9397 = vmul.f32 %v9338, 1.442695
      %v9398 = vpow.pop %v9397
      %v9399 = vmul.f32 %v9339, 1.442695
      %v9400 = vpow.pop %v9399
      %v9401 = vmul.f32 %v9340, 1.442695
      %v9402 = vpow.pop %v9401
      %v9403 = vmul.f32 %v9341, 1.442695
      %v9404 = vpow.pop %v9403
      %v9405 = vmul.f32 %v9342, 1.442695
      %v9406 = vpow.pop %v9405
      %v9407 = vadd.f32 %v9344, 1.0
      %v9408 = vadd.f32 %v9346, 1.0
      %v9409 = vadd.f32 %v9348, 1.0
      %v9410 = vadd.f32 %v9350, 1.0
      %v9411 = vadd.f32 %v9352, 1.0
      %v9412 = vadd.f32 %v9354, 1.0
      %v9413 = vadd.f32 %v9356, 1.0
      %v9414 = vadd.f32 %v9358, 1.0
      %v9415 = vadd.f32 %v9360, 1.0
      %v9416 = vadd.f32 %v9362, 1.0
      %v9417 = vadd.f32 %v9364, 1.0
      %v9418 = vadd.f32 %v9366, 1.0
      %v9419 = vadd.f32 %v9368, 1.0
      %v9420 = vadd.f32 %v9370, 1.0
      %v9421 = vadd.f32 %v9372, 1.0
      %v9422 = vadd.f32 %v9374, 1.0
      %v9423 = vadd.f32 %v9376, 1.0
      %v9424 = vadd.f32 %v9378, 1.0
      %v9425 = vadd.f32 %v9380, 1.0
      %v9426 = vadd.f32 %v9382, 1.0
      %v9427 = vadd.f32 %v9384, 1.0
      %v9428 = vadd.f32 %v9386, 1.0
      %v9429 = vadd.f32 %v9388, 1.0
      %v9430 = vadd.f32 %v9390, 1.0
      %v9431 = vadd.f32 %v9392, 1.0
      %v9432 = vadd.f32 %v9394, 1.0
      %v9433 = vadd.f32 %v9396, 1.0
      %v9434 = vadd.f32 %v9398, 1.0
      %v9435 = vadd.f32 %v9400, 1.0
      %v9436 = vadd.f32 %v9402, 1.0
      %v9437 = vadd.f32 %v9404, 1.0
      %v9438 = vadd.f32 %v9406, 1.0
      %v9439 = vrcp.pop %v9407
      %v9440 = vmul.f32 1.0, %v9439
      %v9441 = vrcp.pop %v9408
      %v9442 = vmul.f32 1.0, %v9441
      %v9443 = vrcp.pop %v9409
      %v9444 = vmul.f32 1.0, %v9443
      %v9445 = vrcp.pop %v9410
      %v9446 = vmul.f32 1.0, %v9445
      %v9447 = vrcp.pop %v9411
      %v9448 = vmul.f32 1.0, %v9447
      %v9449 = vrcp.pop %v9412
      %v9450 = vmul.f32 1.0, %v9449
      %v9451 = vrcp.pop %v9413
      %v9452 = vmul.f32 1.0, %v9451
      %v9453 = vrcp.pop %v9414
      %v9454 = vmul.f32 1.0, %v9453
      %v9455 = vrcp.pop %v9415
      %v9456 = vmul.f32 1.0, %v9455
      %v9457 = vrcp.pop %v9416
      %v9458 = vmul.f32 1.0, %v9457
      %v9459 = vrcp.pop %v9417
      %v9460 = vmul.f32 1.0, %v9459
      %v9461 = vrcp.pop %v9418
      %v9462 = vmul.f32 1.0, %v9461
      %v9463 = vrcp.pop %v9419
      %v9464 = vmul.f32 1.0, %v9463
      %v9465 = vrcp.pop %v9420
      %v9466 = vmul.f32 1.0, %v9465
      %v9467 = vrcp.pop %v9421
      %v9468 = vmul.f32 1.0, %v9467
      %v9469 = vrcp.pop %v9422
      %v9470 = vmul.f32 1.0, %v9469
      %v9471 = vrcp.pop %v9423
      %v9472 = vmul.f32 1.0, %v9471
      %v9473 = vrcp.pop %v9424
      %v9474 = vmul.f32 1.0, %v9473
      %v9475 = vrcp.pop %v9425
      %v9476 = vmul.f32 1.0, %v9475
      %v9477 = vrcp.pop %v9426
      %v9478 = vmul.f32 1.0, %v9477
      %v9479 = vrcp.pop %v9427
      %v9480 = vmul.f32 1.0, %v9479
      %v9481 = vrcp.pop %v9428
      %v9482 = vmul.f32 1.0, %v9481
      %v9483 = vrcp.pop %v9429
      %v9484 = vmul.f32 1.0, %v9483
      %v9485 = vrcp.pop %v9430
      %v9486 = vmul.f32 1.0, %v9485
      %v9487 = vrcp.pop %v9431
      %v9488 = vmul.f32 1.0, %v9487
      %v9489 = vrcp.pop %v9432
      %v9490 = vmul.f32 1.0, %v9489
      %v9491 = vrcp.pop %v9433
      %v9492 = vmul.f32 1.0, %v9491
      %v9493 = vrcp.pop %v9434
      %v9494 = vmul.f32 1.0, %v9493
      %v9495 = vrcp.pop %v9435
      %v9496 = vmul.f32 1.0, %v9495
      %v9497 = vrcp.pop %v9436
      %v9498 = vmul.f32 1.0, %v9497
      %v9499 = vrcp.pop %v9437
      %v9500 = vmul.f32 1.0, %v9499
      %v9501 = vrcp.pop %v9438
      %v9502 = vmul.f32 1.0, %v9501
      %9503 = vst.msk [vmem:[%s442] sm:$0xff] %vm444, %v9440
      %9504 = vst.msk [vmem:[%s442 + $0x8] sm:$0xff] %vm444, %v9442
      %9505 = vst.msk [vmem:[%s442 + $0x10] sm:$0xff] %vm444, %v9444
      %9506 = vst.msk [vmem:[%s442 + $0x18] sm:$0xff] %vm444, %v9446
      %9507 = vst.msk [vmem:[%s442 + $0x20] sm:$0xff] %vm444, %v9448
      %9508 = vst.msk [vmem:[%s442 + $0x28] sm:$0xff] %vm444, %v9450
      %9509 = vst.msk [vmem:[%s442 + $0x30] sm:$0xff] %vm444, %v9452
      %9510 = vst.msk [vmem:[%s442 + $0x38] sm:$0xff] %vm444, %v9454
      %9511 = vst.msk [vmem:[%s442 + $0x40] sm:$0xff] %vm444, %v9456
      %9512 = vst.msk [vmem:[%s442 + $0x48] sm:$0xff] %vm444, %v9458
      %9513 = vst.msk [vmem:[%s442 + $0x50] sm:$0xff] %vm444, %v9460
      %9514 = vst.msk [vmem:[%s442 + $0x58] sm:$0xff] %vm444, %v9462
      %9515 = vst.msk [vmem:[%s442 + $0x60] sm:$0xff] %vm444, %v9464
      %9516 = vst.msk [vmem:[%s442 + $0x68] sm:$0xff] %vm444, %v9466
      %9517 = vst.msk [vmem:[%s442 + $0x70] sm:$0xff] %vm444, %v9468
      %9518 = vst.msk [vmem:[%s442 + $0x78] sm:$0xff] %vm444, %v9470
      %9519 = vst.msk [vmem:[%s442 + $0x80] sm:$0xff] %vm444, %v9472
      %9520 = vst.msk [vmem:[%s442 + $0x88] sm:$0xff] %vm444, %v9474
      %9521 = vst.msk [vmem:[%s442 + $0x90] sm:$0xff] %vm444, %v9476
      %9522 = vst.msk [vmem:[%s442 + $0x98] sm:$0xff] %vm444, %v9478
      %9523 = vst.msk [vmem:[%s442 + $0xa0] sm:$0xff] %vm444, %v9480
      %9524 = vst.msk [vmem:[%s442 + $0xa8] sm:$0xff] %vm444, %v9482
      %9525 = vst.msk [vmem:[%s442 + $0xb0] sm:$0xff] %vm444, %v9484
      %9526 = vst.msk [vmem:[%s442 + $0xb8] sm:$0xff] %vm444, %v9486
      %9527 = vst.msk [vmem:[%s442 + $0xc0] sm:$0xff] %vm444, %v9488
      %9528 = vst.msk [vmem:[%s442 + $0xc8] sm:$0xff] %vm444, %v9490
      %9529 = vst.msk [vmem:[%s442 + $0xd0] sm:$0xff] %vm444, %v9492
      %9530 = vst.msk [vmem:[%s442 + $0xd8] sm:$0xff] %vm444, %v9494
      %9531 = vst.msk [vmem:[%s442 + $0xe0] sm:$0xff] %vm444, %v9496
      %9532 = vst.msk [vmem:[%s442 + $0xe8] sm:$0xff] %vm444, %v9498
      %9533 = vst.msk [vmem:[%s442 + $0xf0] sm:$0xff] %vm444, %v9500
      %9534 = vst.msk [vmem:[%s442 + $0xf8] sm:$0xff] %vm444, %v9502
      %p9535 = scmp.lt.s32.totalorder %s26, 1
      %s9536 = scalar_select %p9535, %s26, 1
      %s9537 = smul.addr %s9536, 32
      %s9538 = smul.addr %s9537, 8
      %s9539 = scalar_lea.vmem %s13, %s9538
      // Predicated region
      $region73: #{autoencoder_forward.1} parent=71 // pred_check
        %p9540 = pneg %p322
      $region74: #{autoencoder_forward.1} parent=71 // pred_check_branch
        %9542 = sbr.rel (%p9540) target = $region76
      $region75: #{autoencoder_forward.1} parent=71 // pred_region
        _
      $region76: #{autoencoder_forward.1} parent=71 // pred_fallthru
        _
    $region72: #{autoencoder_forward.1} parent=5 // pred_fallthru
      _
    %p9543 = scmp.le.s32.totalorder 2, %s21
    // Predicated region
    $region77: #{autoencoder_forward.1} parent=5 // pred_check
      %p9544 = pneg %p9543
    $region78: #{autoencoder_forward.1} parent=5 // pred_check_branch
      %9546 = sbr.rel (%p9544) target = $region80
    $region79: #{autoencoder_forward.1} parent=5 // pred_region
      %s9547 = ssub.s32 %s21, 2
      // Predicated region
      $region81: #{autoencoder_forward.1} parent=79 // pred_check
        %p9548 = pneg %p328
      $region82: #{autoencoder_forward.1} parent=79 // pred_check_branch
        %9550 = sbr.rel (%p9548) target = $region84
      $region83: #{autoencoder_forward.1} parent=79 // pred_region
        %p9551 = scmp.lt.s32.totalorder %s27, 1
        %s9552 = scalar_select %p9551, %s27, 1
        %s9553 = smul.addr %s9552, 32
        %s9554 = smul.addr %s9553, 8
        %s9555 = scalar_lea.vmem %s13, %s9554
      $region84: #{autoencoder_forward.1} parent=79 // pred_fallthru
        _
    $region80: #{autoencoder_forward.1} parent=5 // pred_fallthru
      _
  $region6: #{autoencoder_forward.1} parent=0 // loop_footer
    %s25 = sadd.s32 1, %s21
  $region7: #{autoencoder_forward.1} parent=0 // loop_footer_branch
    %20 = sbr.rel target = $region3
  $region8: #{autoencoder_forward.1} parent=0 // loop_exit
    _

</llo_original>
